<compile_context>
chip_gen: v7x
topology: tpu7x:2x2x1
jax: 0.10.0
libtpu: 0.0.40
codegen_flags: <defaults>
</compile_context>

<pallas_src>
import jax
import jax.numpy as jnp
import numpy as np
from jax.experimental import pallas as pl
from jax.experimental.pallas import tpu as pltpu

EPS = 1e-5
CIN, COUT, KH, KW = 3, 8, 5, 5
OHW = 15      # conv1 output spatial size (32 -> 15 with k=5, s=2, p=1)
PHW = 7       # pooled spatial size
HM = 14       # pair-max row width kept per pooled row (even anchors = pool outputs)
NFC = COUT * PHW * HM   # 784 features fed to fc1 (odd anchors zeroed in the weight)


# ------------------------------ fused Pallas kernel ------------------------------

def rosnet_fused_kernel(ph_ref, wblk_ref, bn1g_ref, bn1b_ref,
                        w1_ref, bn2g_ref, bn2b_ref, w2_ref, b2_ref, out_ref):
    B = ph_ref.shape[1]

    # ---- conv1: in-VMEM im2col (contiguous phase windows) + one MXU matmul per image ----
    # ph_ref[(pi*2+pj)*3 + c, b, i, j] = x_pad[b, c, 2*i + pi, 2*j + pj]
    planes = {}
    for pi in range(2):
        for pj in range(2):
            for c in range(CIN):
                planes[(pi, pj, c)] = ph_ref[(pi * 2 + pj) * CIN + c]          # [B, 17, 17]

    wins = []
    for c in range(CIN):                       # tap order (c, ki, kj) matches Wblk rows
        for ki in range(KH):
            for kj in range(KW):
                pi, ai = ki % 2, ki // 2
                pj, aj = kj % 2, kj // 2
                wins.append(planes[(pi, pj, c)][:, ai:ai + OHW, aj:aj + OHW])  # [B,15,15]
    patches = jnp.concatenate(wins, axis=-1)                                   # [B, 15, 1125]

    wblk = wblk_ref[...]                                                       # [1125, 120]
    convs = [jnp.dot(patches[b], wblk, preferred_element_type=jnp.float32)     # [15, 120]
             for b in range(B)]                                                # lanes = (co, ow)

    # ---- BN1 (batch stats, biased var) + ReLU + 2x2 stride-2 max-pool, per channel ----
    g1 = bn1g_ref[...]                                                         # [1, 8]
    b1 = bn1b_ref[...]                                                         # [1, 8]
    inv_n = 1.0 / (B * OHW * OHW)
    pieces = [[] for _ in range(B)]            # per-image fc1 feature slivers, (co, qh) order
    for co in range(COUT):
        blks = [convs[b][:, co * OHW:(co + 1) * OHW] for b in range(B)]        # [15,15] each
        s1 = None
        s2 = None
        for b in range(B):
            blk = blks[b]
            c1 = jnp.sum(jnp.sum(blk, axis=1, keepdims=True), axis=0, keepdims=True)
            c2 = jnp.sum(jnp.sum(blk * blk, axis=1, keepdims=True), axis=0, keepdims=True)
            s1 = c1 if s1 is None else s1 + c1
            s2 = c2 if s2 is None else s2 + c2
        mean = s1 * inv_n                                                      # [1,1]
        var = s2 * inv_n - mean * mean                                         # biased variance
        scale = g1[:, co:co + 1] * jax.lax.rsqrt(var + EPS)
        shift = b1[:, co:co + 1] - mean * scale
        for b in range(B):
            y = jnp.maximum(blks[b] * scale + shift, 0.0)                      # [15,15]
            vmax = jnp.maximum(y[0:2 * PHW, :], y[1:2 * PHW + 1, :])           # [14,15]
            for qh in range(PHW):
                r = vmax[2 * qh:2 * qh + 1, :]                                 # [1,15]
                pieces[b].append(jnp.maximum(r[:, 0:HM], r[:, 1:HM + 1]))      # [1,14]

    rows = [jnp.concatenate(pieces[b], axis=-1) for b in range(B)]             # [1, 784]
    xfc = jnp.concatenate(rows, axis=0)                                        # [B, 784]

    # ---- fc1 + BN1d (batch stats) + ReLU + fc2 ----
    h = jnp.dot(xfc, w1_ref[...], preferred_element_type=jnp.float32)          # [B, 256]
    hm = jnp.mean(h, axis=0, keepdims=True)
    hv = jnp.mean(h * h, axis=0, keepdims=True) - hm * hm
    h = (h - hm) * jax.lax.rsqrt(hv + EPS) * bn2g_ref[...] + bn2b_ref[...]
    h = jnp.maximum(h, 0.0)
    out_ref[...] = jnp.dot(h, w2_ref[...], preferred_element_type=jnp.float32) + b2_ref[...]


# ------------------------------------ wrapper ------------------------------------

@jax.jit
def rosnet_forward(x, p):
    B = x.shape[0]

    # Pad once and split into the 4 even/odd phase grids so every conv tap is a
    # contiguous window inside the kernel (in-VMEM im2col).
    xp = jnp.pad(x, ((0, 0), (0, 0), (1, 1), (1, 1)))                          # [B,3,34,34]
    phases = jnp.stack([xp[:, :, pi::2, pj::2]
                        for pi in range(2) for pj in range(2)], axis=0)        # [4,B,3,17,17]
    phases = phases.transpose(0, 2, 1, 3, 4).reshape(4 * CIN, B, 17, 17)       # [(p,c),B,17,17]

    # conv1 weight as block matrix Wblk[(tap, ow'), (co, ow)] = W[tap, co] * delta(ow', ow)
    # -> the conv becomes a single lane-dense matmul per image.
    wc = p['conv1_w'].transpose(1, 2, 3, 0).reshape(CIN * KH * KW, COUT)       # [(c,ki,kj), co]
    eye = jnp.eye(OHW, dtype=jnp.float32)
    wblk = jnp.einsum('to,uv->tuov', wc, eye).reshape(CIN * KH * KW * OHW, COUT * OHW)

    # fc1 weight pre-permuted to the kernel's pooled-feature layout (co, qh, anchor);
    # odd anchors zeroed so the stride-2 pool selection is folded into the weight.
    w1r = p['fc1_w'].reshape(256, COUT, PHW, PHW)                              # [n, co, qh, qw]
    w1z = jnp.zeros((256, COUT, PHW, HM), jnp.float32).at[:, :, :, 0:HM:2].set(w1r)
    w1big = w1z.transpose(1, 2, 3, 0).reshape(NFC, 256)                        # [784, 256]

    # NOTE: conv1_b / fc1_b are omitted — exactly cancelled by the batch-stat BatchNorms.
    vmem = pl.BlockSpec(memory_space=pltpu.MemorySpace.VMEM)
    return pl.pallas_call(
        rosnet_fused_kernel,
        out_shape=jax.ShapeDtypeStruct((B, 10), jnp.float32),
        in_specs=[vmem] * 9,
        out_specs=vmem,
    )(phases, wblk,
      p['bn1_g'].reshape(1, COUT), p['bn1_b'].reshape(1, COUT),
      w1big,
      p['bn2_g'].reshape(1, 256), p['bn2_b'].reshape(1, 256),
      p['fc2_w'].T, p['fc2_b'].reshape(1, 10))


# --------------------------------- parameter init ---------------------------------

def init_params(key):
    ks = jax.random.split(key, 10)

    def xavier(k, shape, fan_in, fan_out):
        std = np.sqrt(2.0 / (fan_in + fan_out))
        return jax.random.normal(k, shape, jnp.float32) * std

    return dict(
        conv1_w=xavier(ks[0], (8, 3, 5, 5), 3 * 25, 8 * 25),
        conv1_b=jax.random.normal(ks[1], (8,), jnp.float32) * 0.05,
        bn1_g=1.0 + 0.1 * jax.random.normal(ks[2], (8,), jnp.float32),
        bn1_b=0.1 * jax.random.normal(ks[3], (8,), jnp.float32),
        fc1_w=xavier(ks[4], (256, 8 * 7 * 7), 8 * 7 * 7, 256),
        fc1_b=jax.random.normal(ks[5], (256,), jnp.float32) * 0.05,
        bn2_g=1.0 + 0.1 * jax.random.normal(ks[6], (256,), jnp.float32),
        bn2_b=0.1 * jax.random.normal(ks[7], (256,), jnp.float32),
        fc2_w=xavier(ks[8], (10, 256), 256, 10),
        fc2_b=jax.random.normal(ks[9], (10,), jnp.float32) * 0.05,
    )


# --------------------------------- pure-JAX reference ---------------------------------

def reference_forward(x, p):
    y = jax.lax.conv_general_dilated(
        x, p['conv1_w'], window_strides=(2, 2), padding=((1, 1), (1, 1)),
        dimension_numbers=('NCHW', 'OIHW', 'NCHW'),
        precision=jax.lax.Precision.HIGHEST)
    y = y + p['conv1_b'][None, :, None, None]
    mean = y.mean(axis=(0, 2, 3), keepdims=True)
    var = ((y - mean) ** 2).mean(axis=(0, 2, 3), keepdims=True)
    y = (y - mean) / jnp.sqrt(var + EPS)
    y = y * p['bn1_g'][None, :, None, None] + p['bn1_b'][None, :, None, None]
    y = jnp.maximum(y, 0.0)
    y = jax.lax.reduce_window(y, -jnp.inf, jax.lax.max,
                              (1, 1, 2, 2), (1, 1, 2, 2), 'VALID')
    y = y.reshape(y.shape[0], -1)
    h = y @ p['fc1_w'].T + p['fc1_b']
    mean = h.mean(0, keepdims=True)
    var = ((h - mean) ** 2).mean(0, keepdims=True)
    h = (h - mean) / jnp.sqrt(var + EPS) * p['bn2_g'] + p['bn2_b']
    h = jnp.maximum(h, 0.0)
    return h @ p['fc2_w'].T + p['fc2_b']


# ----------------------------------------- main -----------------------------------------

if __name__ == "__main__":
    key = jax.random.PRNGKey(0)
    pkey, xkey = jax.random.split(key)
    params = init_params(pkey)

    # fc1 expects 8*7*7 features -> input must be [B, 3, 32, 32] (NCHW, like PyTorch)
    x = jax.random.normal(xkey, (2, 3, 32, 32), jnp.float32)

    out = rosnet_forward(x, params)
    out = jax.block_until_ready(out)

    ref = reference_forward(x, params)
    np.testing.assert_allclose(np.asarray(out), np.asarray(ref), rtol=2e-2, atol=2e-2)

    print("KERNEL_OK")
</pallas_src>

<mosaic_0001>
module attributes {stable_mosaic.version = 11 : i64} {
  func.func @rosnet_fused_kernel(%arg0: memref<12x2x17x17xf32, #tpu.memory_space<vmem>>, %arg1: memref<1125x120xf32, #tpu.memory_space<vmem>>, %arg2: memref<1x8xf32, #tpu.memory_space<vmem>>, %arg3: memref<1x8xf32, #tpu.memory_space<vmem>>, %arg4: memref<784x256xf32, #tpu.memory_space<vmem>>, %arg5: memref<1x256xf32, #tpu.memory_space<vmem>>, %arg6: memref<1x256xf32, #tpu.memory_space<vmem>>, %arg7: memref<256x10xf32, #tpu.memory_space<vmem>>, %arg8: memref<1x10xf32, #tpu.memory_space<vmem>>, %arg9: memref<2x10xf32, #tpu.memory_space<vmem>>) attributes {dimension_semantics = [], scalar_prefetch = 0 : i64, scratch_operands = 0 : i64, tpu.core_type = #tpu.core_type<tc>} {
    %c0 = arith.constant 0 : index
    %c0_0 = arith.constant 0 : index
    %c0_1 = arith.constant 0 : index
    %c0_2 = arith.constant 0 : index
    %0 = vector.load %arg0[%c0, %c0_0, %c0_1, %c0_2] : memref<12x2x17x17xf32, #tpu.memory_space<vmem>>, vector<1x2x17x17xf32>
    %1 = vector.shape_cast %0 : vector<1x2x17x17xf32> to vector<2x17x17xf32>
    %c1 = arith.constant 1 : index
    %c0_3 = arith.constant 0 : index
    %c0_4 = arith.constant 0 : index
    %c0_5 = arith.constant 0 : index
    %2 = vector.load %arg0[%c1, %c0_3, %c0_4, %c0_5] : memref<12x2x17x17xf32, #tpu.memory_space<vmem>>, vector<1x2x17x17xf32>
    %3 = vector.shape_cast %2 : vector<1x2x17x17xf32> to vector<2x17x17xf32>
    %c2 = arith.constant 2 : index
    %c0_6 = arith.constant 0 : index
    %c0_7 = arith.constant 0 : index
    %c0_8 = arith.constant 0 : index
    %4 = vector.load %arg0[%c2, %c0_6, %c0_7, %c0_8] : memref<12x2x17x17xf32, #tpu.memory_space<vmem>>, vector<1x2x17x17xf32>
    %5 = vector.shape_cast %4 : vector<1x2x17x17xf32> to vector<2x17x17xf32>
    %c3 = arith.constant 3 : index
    %c0_9 = arith.constant 0 : index
    %c0_10 = arith.constant 0 : index
    %c0_11 = arith.constant 0 : index
    %6 = vector.load %arg0[%c3, %c0_9, %c0_10, %c0_11] : memref<12x2x17x17xf32, #tpu.memory_space<vmem>>, vector<1x2x17x17xf32>
    %7 = vector.shape_cast %6 : vector<1x2x17x17xf32> to vector<2x17x17xf32>
    %c4 = arith.constant 4 : index
    %c0_12 = arith.constant 0 : index
    %c0_13 = arith.constant 0 : index
    %c0_14 = arith.constant 0 : index
    %8 = vector.load %arg0[%c4, %c0_12, %c0_13, %c0_14] : memref<12x2x17x17xf32, #tpu.memory_space<vmem>>, vector<1x2x17x17xf32>
    %9 = vector.shape_cast %8 : vector<1x2x17x17xf32> to vector<2x17x17xf32>
    %c5 = arith.constant 5 : index
    %c0_15 = arith.constant 0 : index
    %c0_16 = arith.constant 0 : index
    %c0_17 = arith.constant 0 : index
    %10 = vector.load %arg0[%c5, %c0_15, %c0_16, %c0_17] : memref<12x2x17x17xf32, #tpu.memory_space<vmem>>, vector<1x2x17x17xf32>
    %11 = vector.shape_cast %10 : vector<1x2x17x17xf32> to vector<2x17x17xf32>
    %c6 = arith.constant 6 : index
    %c0_18 = arith.constant 0 : index
    %c0_19 = arith.constant 0 : index
    %c0_20 = arith.constant 0 : index
    %12 = vector.load %arg0[%c6, %c0_18, %c0_19, %c0_20] : memref<12x2x17x17xf32, #tpu.memory_space<vmem>>, vector<1x2x17x17xf32>
    %13 = vector.shape_cast %12 : vector<1x2x17x17xf32> to vector<2x17x17xf32>
    %c7 = arith.constant 7 : index
    %c0_21 = arith.constant 0 : index
    %c0_22 = arith.constant 0 : index
    %c0_23 = arith.constant 0 : index
    %14 = vector.load %arg0[%c7, %c0_21, %c0_22, %c0_23] : memref<12x2x17x17xf32, #tpu.memory_space<vmem>>, vector<1x2x17x17xf32>
    %15 = vector.shape_cast %14 : vector<1x2x17x17xf32> to vector<2x17x17xf32>
    %c8 = arith.constant 8 : index
    %c0_24 = arith.constant 0 : index
    %c0_25 = arith.constant 0 : index
    %c0_26 = arith.constant 0 : index
    %16 = vector.load %arg0[%c8, %c0_24, %c0_25, %c0_26] : memref<12x2x17x17xf32, #tpu.memory_space<vmem>>, vector<1x2x17x17xf32>
    %17 = vector.shape_cast %16 : vector<1x2x17x17xf32> to vector<2x17x17xf32>
    %c9 = arith.constant 9 : index
    %c0_27 = arith.constant 0 : index
    %c0_28 = arith.constant 0 : index
    %c0_29 = arith.constant 0 : index
    %18 = vector.load %arg0[%c9, %c0_27, %c0_28, %c0_29] : memref<12x2x17x17xf32, #tpu.memory_space<vmem>>, vector<1x2x17x17xf32>
    %19 = vector.shape_cast %18 : vector<1x2x17x17xf32> to vector<2x17x17xf32>
    %c10 = arith.constant 10 : index
    %c0_30 = arith.constant 0 : index
    %c0_31 = arith.constant 0 : index
    %c0_32 = arith.constant 0 : index
    %20 = vector.load %arg0[%c10, %c0_30, %c0_31, %c0_32] : memref<12x2x17x17xf32, #tpu.memory_space<vmem>>, vector<1x2x17x17xf32>
    %21 = vector.shape_cast %20 : vector<1x2x17x17xf32> to vector<2x17x17xf32>
    %c11 = arith.constant 11 : index
    %c0_33 = arith.constant 0 : index
    %c0_34 = arith.constant 0 : index
    %c0_35 = arith.constant 0 : index
    %22 = vector.load %arg0[%c11, %c0_33, %c0_34, %c0_35] : memref<12x2x17x17xf32, #tpu.memory_space<vmem>>, vector<1x2x17x17xf32>
    %23 = vector.shape_cast %22 : vector<1x2x17x17xf32> to vector<2x17x17xf32>
    %24 = vector.extract_strided_slice %1 {offsets = [0, 0, 0], sizes = [2, 15, 15], strides = [1, 1, 1]} : vector<2x17x17xf32> to vector<2x15x15xf32>
    %25 = vector.extract_strided_slice %7 {offsets = [0, 0, 0], sizes = [2, 15, 15], strides = [1, 1, 1]} : vector<2x17x17xf32> to vector<2x15x15xf32>
    %26 = vector.extract_strided_slice %1 {offsets = [0, 0, 1], sizes = [2, 15, 15], strides = [1, 1, 1]} : vector<2x17x17xf32> to vector<2x15x15xf32>
    %27 = vector.extract_strided_slice %7 {offsets = [0, 0, 1], sizes = [2, 15, 15], strides = [1, 1, 1]} : vector<2x17x17xf32> to vector<2x15x15xf32>
    %28 = vector.extract_strided_slice %1 {offsets = [0, 0, 2], sizes = [2, 15, 15], strides = [1, 1, 1]} : vector<2x17x17xf32> to vector<2x15x15xf32>
    %29 = vector.extract_strided_slice %13 {offsets = [0, 0, 0], sizes = [2, 15, 15], strides = [1, 1, 1]} : vector<2x17x17xf32> to vector<2x15x15xf32>
    %30 = vector.extract_strided_slice %19 {offsets = [0, 0, 0], sizes = [2, 15, 15], strides = [1, 1, 1]} : vector<2x17x17xf32> to vector<2x15x15xf32>
    %31 = vector.extract_strided_slice %13 {offsets = [0, 0, 1], sizes = [2, 15, 15], strides = [1, 1, 1]} : vector<2x17x17xf32> to vector<2x15x15xf32>
    %32 = vector.extract_strided_slice %19 {offsets = [0, 0, 1], sizes = [2, 15, 15], strides = [1, 1, 1]} : vector<2x17x17xf32> to vector<2x15x15xf32>
    %33 = vector.extract_strided_slice %13 {offsets = [0, 0, 2], sizes = [2, 15, 15], strides = [1, 1, 1]} : vector<2x17x17xf32> to vector<2x15x15xf32>
    %34 = vector.extract_strided_slice %1 {offsets = [0, 1, 0], sizes = [2, 15, 15], strides = [1, 1, 1]} : vector<2x17x17xf32> to vector<2x15x15xf32>
    %35 = vector.extract_strided_slice %7 {offsets = [0, 1, 0], sizes = [2, 15, 15], strides = [1, 1, 1]} : vector<2x17x17xf32> to vector<2x15x15xf32>
    %36 = vector.extract_strided_slice %1 {offsets = [0, 1, 1], sizes = [2, 15, 15], strides = [1, 1, 1]} : vector<2x17x17xf32> to vector<2x15x15xf32>
    %37 = vector.extract_strided_slice %7 {offsets = [0, 1, 1], sizes = [2, 15, 15], strides = [1, 1, 1]} : vector<2x17x17xf32> to vector<2x15x15xf32>
    %38 = vector.extract_strided_slice %1 {offsets = [0, 1, 2], sizes = [2, 15, 15], strides = [1, 1, 1]} : vector<2x17x17xf32> to vector<2x15x15xf32>
    %39 = vector.extract_strided_slice %13 {offsets = [0, 1, 0], sizes = [2, 15, 15], strides = [1, 1, 1]} : vector<2x17x17xf32> to vector<2x15x15xf32>
    %40 = vector.extract_strided_slice %19 {offsets = [0, 1, 0], sizes = [2, 15, 15], strides = [1, 1, 1]} : vector<2x17x17xf32> to vector<2x15x15xf32>
    %41 = vector.extract_strided_slice %13 {offsets = [0, 1, 1], sizes = [2, 15, 15], strides = [1, 1, 1]} : vector<2x17x17xf32> to vector<2x15x15xf32>
    %42 = vector.extract_strided_slice %19 {offsets = [0, 1, 1], sizes = [2, 15, 15], strides = [1, 1, 1]} : vector<2x17x17xf32> to vector<2x15x15xf32>
    %43 = vector.extract_strided_slice %13 {offsets = [0, 1, 2], sizes = [2, 15, 15], strides = [1, 1, 1]} : vector<2x17x17xf32> to vector<2x15x15xf32>
    %44 = vector.extract_strided_slice %1 {offsets = [0, 2, 0], sizes = [2, 15, 15], strides = [1, 1, 1]} : vector<2x17x17xf32> to vector<2x15x15xf32>
    %45 = vector.extract_strided_slice %7 {offsets = [0, 2, 0], sizes = [2, 15, 15], strides = [1, 1, 1]} : vector<2x17x17xf32> to vector<2x15x15xf32>
    %46 = vector.extract_strided_slice %1 {offsets = [0, 2, 1], sizes = [2, 15, 15], strides = [1, 1, 1]} : vector<2x17x17xf32> to vector<2x15x15xf32>
    %47 = vector.extract_strided_slice %7 {offsets = [0, 2, 1], sizes = [2, 15, 15], strides = [1, 1, 1]} : vector<2x17x17xf32> to vector<2x15x15xf32>
    %48 = vector.extract_strided_slice %1 {offsets = [0, 2, 2], sizes = [2, 15, 15], strides = [1, 1, 1]} : vector<2x17x17xf32> to vector<2x15x15xf32>
    %49 = vector.extract_strided_slice %3 {offsets = [0, 0, 0], sizes = [2, 15, 15], strides = [1, 1, 1]} : vector<2x17x17xf32> to vector<2x15x15xf32>
    %50 = vector.extract_strided_slice %9 {offsets = [0, 0, 0], sizes = [2, 15, 15], strides = [1, 1, 1]} : vector<2x17x17xf32> to vector<2x15x15xf32>
    %51 = vector.extract_strided_slice %3 {offsets = [0, 0, 1], sizes = [2, 15, 15], strides = [1, 1, 1]} : vector<2x17x17xf32> to vector<2x15x15xf32>
    %52 = vector.extract_strided_slice %9 {offsets = [0, 0, 1], sizes = [2, 15, 15], strides = [1, 1, 1]} : vector<2x17x17xf32> to vector<2x15x15xf32>
    %53 = vector.extract_strided_slice %3 {offsets = [0, 0, 2], sizes = [2, 15, 15], strides = [1, 1, 1]} : vector<2x17x17xf32> to vector<2x15x15xf32>
    %54 = vector.extract_strided_slice %15 {offsets = [0, 0, 0], sizes = [2, 15, 15], strides = [1, 1, 1]} : vector<2x17x17xf32> to vector<2x15x15xf32>
    %55 = vector.extract_strided_slice %21 {offsets = [0, 0, 0], sizes = [2, 15, 15], strides = [1, 1, 1]} : vector<2x17x17xf32> to vector<2x15x15xf32>
    %56 = vector.extract_strided_slice %15 {offsets = [0, 0, 1], sizes = [2, 15, 15], strides = [1, 1, 1]} : vector<2x17x17xf32> to vector<2x15x15xf32>
    %57 = vector.extract_strided_slice %21 {offsets = [0, 0, 1], sizes = [2, 15, 15], strides = [1, 1, 1]} : vector<2x17x17xf32> to vector<2x15x15xf32>
    %58 = vector.extract_strided_slice %15 {offsets = [0, 0, 2], sizes = [2, 15, 15], strides = [1, 1, 1]} : vector<2x17x17xf32> to vector<2x15x15xf32>
    %59 = vector.extract_strided_slice %3 {offsets = [0, 1, 0], sizes = [2, 15, 15], strides = [1, 1, 1]} : vector<2x17x17xf32> to vector<2x15x15xf32>
    %60 = vector.extract_strided_slice %9 {offsets = [0, 1, 0], sizes = [2, 15, 15], strides = [1, 1, 1]} : vector<2x17x17xf32> to vector<2x15x15xf32>
    %61 = vector.extract_strided_slice %3 {offsets = [0, 1, 1], sizes = [2, 15, 15], strides = [1, 1, 1]} : vector<2x17x17xf32> to vector<2x15x15xf32>
    %62 = vector.extract_strided_slice %9 {offsets = [0, 1, 1], sizes = [2, 15, 15], strides = [1, 1, 1]} : vector<2x17x17xf32> to vector<2x15x15xf32>
    %63 = vector.extract_strided_slice %3 {offsets = [0, 1, 2], sizes = [2, 15, 15], strides = [1, 1, 1]} : vector<2x17x17xf32> to vector<2x15x15xf32>
    %64 = vector.extract_strided_slice %15 {offsets = [0, 1, 0], sizes = [2, 15, 15], strides = [1, 1, 1]} : vector<2x17x17xf32> to vector<2x15x15xf32>
    %65 = vector.extract_strided_slice %21 {offsets = [0, 1, 0], sizes = [2, 15, 15], strides = [1, 1, 1]} : vector<2x17x17xf32> to vector<2x15x15xf32>
    %66 = vector.extract_strided_slice %15 {offsets = [0, 1, 1], sizes = [2, 15, 15], strides = [1, 1, 1]} : vector<2x17x17xf32> to vector<2x15x15xf32>
    %67 = vector.extract_strided_slice %21 {offsets = [0, 1, 1], sizes = [2, 15, 15], strides = [1, 1, 1]} : vector<2x17x17xf32> to vector<2x15x15xf32>
    %68 = vector.extract_strided_slice %15 {offsets = [0, 1, 2], sizes = [2, 15, 15], strides = [1, 1, 1]} : vector<2x17x17xf32> to vector<2x15x15xf32>
    %69 = vector.extract_strided_slice %3 {offsets = [0, 2, 0], sizes = [2, 15, 15], strides = [1, 1, 1]} : vector<2x17x17xf32> to vector<2x15x15xf32>
    %70 = vector.extract_strided_slice %9 {offsets = [0, 2, 0], sizes = [2, 15, 15], strides = [1, 1, 1]} : vector<2x17x17xf32> to vector<2x15x15xf32>
    %71 = vector.extract_strided_slice %3 {offsets = [0, 2, 1], sizes = [2, 15, 15], strides = [1, 1, 1]} : vector<2x17x17xf32> to vector<2x15x15xf32>
    %72 = vector.extract_strided_slice %9 {offsets = [0, 2, 1], sizes = [2, 15, 15], strides = [1, 1, 1]} : vector<2x17x17xf32> to vector<2x15x15xf32>
    %73 = vector.extract_strided_slice %3 {offsets = [0, 2, 2], sizes = [2, 15, 15], strides = [1, 1, 1]} : vector<2x17x17xf32> to vector<2x15x15xf32>
    %74 = vector.extract_strided_slice %5 {offsets = [0, 0, 0], sizes = [2, 15, 15], strides = [1, 1, 1]} : vector<2x17x17xf32> to vector<2x15x15xf32>
    %75 = vector.extract_strided_slice %11 {offsets = [0, 0, 0], sizes = [2, 15, 15], strides = [1, 1, 1]} : vector<2x17x17xf32> to vector<2x15x15xf32>
    %76 = vector.extract_strided_slice %5 {offsets = [0, 0, 1], sizes = [2, 15, 15], strides = [1, 1, 1]} : vector<2x17x17xf32> to vector<2x15x15xf32>
    %77 = vector.extract_strided_slice %11 {offsets = [0, 0, 1], sizes = [2, 15, 15], strides = [1, 1, 1]} : vector<2x17x17xf32> to vector<2x15x15xf32>
    %78 = vector.extract_strided_slice %5 {offsets = [0, 0, 2], sizes = [2, 15, 15], strides = [1, 1, 1]} : vector<2x17x17xf32> to vector<2x15x15xf32>
    %79 = vector.extract_strided_slice %17 {offsets = [0, 0, 0], sizes = [2, 15, 15], strides = [1, 1, 1]} : vector<2x17x17xf32> to vector<2x15x15xf32>
    %80 = vector.extract_strided_slice %23 {offsets = [0, 0, 0], sizes = [2, 15, 15], strides = [1, 1, 1]} : vector<2x17x17xf32> to vector<2x15x15xf32>
    %81 = vector.extract_strided_slice %17 {offsets = [0, 0, 1], sizes = [2, 15, 15], strides = [1, 1, 1]} : vector<2x17x17xf32> to vector<2x15x15xf32>
    %82 = vector.extract_strided_slice %23 {offsets = [0, 0, 1], sizes = [2, 15, 15], strides = [1, 1, 1]} : vector<2x17x17xf32> to vector<2x15x15xf32>
    %83 = vector.extract_strided_slice %17 {offsets = [0, 0, 2], sizes = [2, 15, 15], strides = [1, 1, 1]} : vector<2x17x17xf32> to vector<2x15x15xf32>
    %84 = vector.extract_strided_slice %5 {offsets = [0, 1, 0], sizes = [2, 15, 15], strides = [1, 1, 1]} : vector<2x17x17xf32> to vector<2x15x15xf32>
    %85 = vector.extract_strided_slice %11 {offsets = [0, 1, 0], sizes = [2, 15, 15], strides = [1, 1, 1]} : vector<2x17x17xf32> to vector<2x15x15xf32>
    %86 = vector.extract_strided_slice %5 {offsets = [0, 1, 1], sizes = [2, 15, 15], strides = [1, 1, 1]} : vector<2x17x17xf32> to vector<2x15x15xf32>
    %87 = vector.extract_strided_slice %11 {offsets = [0, 1, 1], sizes = [2, 15, 15], strides = [1, 1, 1]} : vector<2x17x17xf32> to vector<2x15x15xf32>
    %88 = vector.extract_strided_slice %5 {offsets = [0, 1, 2], sizes = [2, 15, 15], strides = [1, 1, 1]} : vector<2x17x17xf32> to vector<2x15x15xf32>
    %89 = vector.extract_strided_slice %17 {offsets = [0, 1, 0], sizes = [2, 15, 15], strides = [1, 1, 1]} : vector<2x17x17xf32> to vector<2x15x15xf32>
    %90 = vector.extract_strided_slice %23 {offsets = [0, 1, 0], sizes = [2, 15, 15], strides = [1, 1, 1]} : vector<2x17x17xf32> to vector<2x15x15xf32>
    %91 = vector.extract_strided_slice %17 {offsets = [0, 1, 1], sizes = [2, 15, 15], strides = [1, 1, 1]} : vector<2x17x17xf32> to vector<2x15x15xf32>
    %92 = vector.extract_strided_slice %23 {offsets = [0, 1, 1], sizes = [2, 15, 15], strides = [1, 1, 1]} : vector<2x17x17xf32> to vector<2x15x15xf32>
    %93 = vector.extract_strided_slice %17 {offsets = [0, 1, 2], sizes = [2, 15, 15], strides = [1, 1, 1]} : vector<2x17x17xf32> to vector<2x15x15xf32>
    %94 = vector.extract_strided_slice %5 {offsets = [0, 2, 0], sizes = [2, 15, 15], strides = [1, 1, 1]} : vector<2x17x17xf32> to vector<2x15x15xf32>
    %95 = vector.extract_strided_slice %11 {offsets = [0, 2, 0], sizes = [2, 15, 15], strides = [1, 1, 1]} : vector<2x17x17xf32> to vector<2x15x15xf32>
    %96 = vector.extract_strided_slice %5 {offsets = [0, 2, 1], sizes = [2, 15, 15], strides = [1, 1, 1]} : vector<2x17x17xf32> to vector<2x15x15xf32>
    %97 = vector.extract_strided_slice %11 {offsets = [0, 2, 1], sizes = [2, 15, 15], strides = [1, 1, 1]} : vector<2x17x17xf32> to vector<2x15x15xf32>
    %98 = vector.extract_strided_slice %5 {offsets = [0, 2, 2], sizes = [2, 15, 15], strides = [1, 1, 1]} : vector<2x17x17xf32> to vector<2x15x15xf32>
    %99 = tpu.concatenate %24, %25, %26, %27, %28, %29, %30, %31, %32, %33, %34, %35, %36, %37, %38, %39 in 2 : vector<2x15x15xf32>, vector<2x15x15xf32>, vector<2x15x15xf32>, vector<2x15x15xf32>, vector<2x15x15xf32>, vector<2x15x15xf32>, vector<2x15x15xf32>, vector<2x15x15xf32>, vector<2x15x15xf32>, vector<2x15x15xf32>, vector<2x15x15xf32>, vector<2x15x15xf32>, vector<2x15x15xf32>, vector<2x15x15xf32>, vector<2x15x15xf32>, vector<2x15x15xf32> -> vector<2x15x240xf32>
    %100 = tpu.concatenate %40, %41, %42, %43, %44, %45, %46, %47, %48, %49, %50, %51, %52, %53, %54, %55 in 2 : vector<2x15x15xf32>, vector<2x15x15xf32>, vector<2x15x15xf32>, vector<2x15x15xf32>, vector<2x15x15xf32>, vector<2x15x15xf32>, vector<2x15x15xf32>, vector<2x15x15xf32>, vector<2x15x15xf32>, vector<2x15x15xf32>, vector<2x15x15xf32>, vector<2x15x15xf32>, vector<2x15x15xf32>, vector<2x15x15xf32>, vector<2x15x15xf32>, vector<2x15x15xf32> -> vector<2x15x240xf32>
    %101 = tpu.concatenate %56, %57, %58, %59, %60, %61, %62, %63, %64, %65, %66, %67, %68, %69, %70, %71 in 2 : vector<2x15x15xf32>, vector<2x15x15xf32>, vector<2x15x15xf32>, vector<2x15x15xf32>, vector<2x15x15xf32>, vector<2x15x15xf32>, vector<2x15x15xf32>, vector<2x15x15xf32>, vector<2x15x15xf32>, vector<2x15x15xf32>, vector<2x15x15xf32>, vector<2x15x15xf32>, vector<2x15x15xf32>, vector<2x15x15xf32>, vector<2x15x15xf32>, vector<2x15x15xf32> -> vector<2x15x240xf32>
    %102 = tpu.concatenate %72, %73, %74, %75, %76, %77, %78, %79, %80, %81, %82, %83, %84, %85, %86, %87 in 2 : vector<2x15x15xf32>, vector<2x15x15xf32>, vector<2x15x15xf32>, vector<2x15x15xf32>, vector<2x15x15xf32>, vector<2x15x15xf32>, vector<2x15x15xf32>, vector<2x15x15xf32>, vector<2x15x15xf32>, vector<2x15x15xf32>, vector<2x15x15xf32>, vector<2x15x15xf32>, vector<2x15x15xf32>, vector<2x15x15xf32>, vector<2x15x15xf32>, vector<2x15x15xf32> -> vector<2x15x240xf32>
    %103 = tpu.concatenate %88, %89, %90, %91, %92, %93, %94, %95, %96, %97, %98 in 2 : vector<2x15x15xf32>, vector<2x15x15xf32>, vector<2x15x15xf32>, vector<2x15x15xf32>, vector<2x15x15xf32>, vector<2x15x15xf32>, vector<2x15x15xf32>, vector<2x15x15xf32>, vector<2x15x15xf32>, vector<2x15x15xf32>, vector<2x15x15xf32> -> vector<2x15x165xf32>
    %104 = tpu.concatenate %99, %100, %101, %102, %103 in 2 : vector<2x15x240xf32>, vector<2x15x240xf32>, vector<2x15x240xf32>, vector<2x15x240xf32>, vector<2x15x165xf32> -> vector<2x15x1125xf32>
    %c0_36 = arith.constant 0 : index
    %c0_37 = arith.constant 0 : index
    %105 = vector.load %arg1[%c0_36, %c0_37] : memref<1125x120xf32, #tpu.memory_space<vmem>>, vector<1125x120xf32>
    %106 = vector.extract_strided_slice %104 {offsets = [0, 0, 0], sizes = [1, 15, 1125], strides = [1, 1, 1]} : vector<2x15x1125xf32> to vector<1x15x1125xf32>
    %107 = vector.shape_cast %106 : vector<1x15x1125xf32> to vector<15x1125xf32>
    %cst = arith.constant dense<0.000000e+00> : vector<15x120xf32>
    %108 = tpu.matmul %107, %105, %cst {dimension_numbers = #tpu.dot_dimension_numbers<[1], [0], [0], [1], [0, 0, 1, 1], [], []>} : vector<15x1125xf32>, vector<1125x120xf32>, vector<15x120xf32> -> vector<15x120xf32>
    %109 = vector.extract_strided_slice %104 {offsets = [1, 0, 0], sizes = [1, 15, 1125], strides = [1, 1, 1]} : vector<2x15x1125xf32> to vector<1x15x1125xf32>
    %110 = vector.shape_cast %109 : vector<1x15x1125xf32> to vector<15x1125xf32>
    %cst_38 = arith.constant dense<0.000000e+00> : vector<15x120xf32>
    %111 = tpu.matmul %110, %105, %cst_38 {dimension_numbers = #tpu.dot_dimension_numbers<[1], [0], [0], [1], [0, 0, 1, 1], [], []>} : vector<15x1125xf32>, vector<1125x120xf32>, vector<15x120xf32> -> vector<15x120xf32>
    %c0_39 = arith.constant 0 : index
    %c0_40 = arith.constant 0 : index
    %112 = vector.load %arg2[%c0_39, %c0_40] : memref<1x8xf32, #tpu.memory_space<vmem>>, vector<1x8xf32>
    %c0_41 = arith.constant 0 : index
    %c0_42 = arith.constant 0 : index
    %113 = vector.load %arg3[%c0_41, %c0_42] : memref<1x8xf32, #tpu.memory_space<vmem>>, vector<1x8xf32>
    %114 = vector.extract_strided_slice %108 {offsets = [0, 0], sizes = [15, 15], strides = [1, 1]} : vector<15x120xf32> to vector<15x15xf32>
    %115 = vector.extract_strided_slice %111 {offsets = [0, 0], sizes = [15, 15], strides = [1, 1]} : vector<15x120xf32> to vector<15x15xf32>
    %cst_43 = arith.constant dense<0.000000e+00> : vector<15xf32>
    %116 = vector.multi_reduction <add>, %114, %cst_43 [1] : vector<15x15xf32> to vector<15xf32>
    %117 = vector.shape_cast %116 : vector<15xf32> to vector<15x1xf32>
    %cst_44 = arith.constant dense<0.000000e+00> : vector<1xf32>
    %118 = vector.multi_reduction <add>, %117, %cst_44 [0] : vector<15x1xf32> to vector<1xf32>
    %119 = vector.shape_cast %118 : vector<1xf32> to vector<1x1xf32>
    %120 = arith.mulf %114, %114 : vector<15x15xf32>
    %cst_45 = arith.constant dense<0.000000e+00> : vector<15xf32>
    %121 = vector.multi_reduction <add>, %120, %cst_45 [1] : vector<15x15xf32> to vector<15xf32>
    %122 = vector.shape_cast %121 : vector<15xf32> to vector<15x1xf32>
    %cst_46 = arith.constant dense<0.000000e+00> : vector<1xf32>
    %123 = vector.multi_reduction <add>, %122, %cst_46 [0] : vector<15x1xf32> to vector<1xf32>
    %124 = vector.shape_cast %123 : vector<1xf32> to vector<1x1xf32>
    %cst_47 = arith.constant dense<0.000000e+00> : vector<15xf32>
    %125 = vector.multi_reduction <add>, %115, %cst_47 [1] : vector<15x15xf32> to vector<15xf32>
    %126 = vector.shape_cast %125 : vector<15xf32> to vector<15x1xf32>
    %cst_48 = arith.constant dense<0.000000e+00> : vector<1xf32>
    %127 = vector.multi_reduction <add>, %126, %cst_48 [0] : vector<15x1xf32> to vector<1xf32>
    %128 = vector.shape_cast %127 : vector<1xf32> to vector<1x1xf32>
    %129 = arith.mulf %115, %115 : vector<15x15xf32>
    %cst_49 = arith.constant dense<0.000000e+00> : vector<15xf32>
    %130 = vector.multi_reduction <add>, %129, %cst_49 [1] : vector<15x15xf32> to vector<15xf32>
    %131 = vector.shape_cast %130 : vector<15xf32> to vector<15x1xf32>
    %cst_50 = arith.constant dense<0.000000e+00> : vector<1xf32>
    %132 = vector.multi_reduction <add>, %131, %cst_50 [0] : vector<15x1xf32> to vector<1xf32>
    %133 = vector.shape_cast %132 : vector<1xf32> to vector<1x1xf32>
    %134 = arith.addf %119, %128 : vector<1x1xf32>
    %135 = arith.addf %124, %133 : vector<1x1xf32>
    %cst_51 = arith.constant 0.00222222228 : f32
    %136 = vector.broadcast %cst_51 : f32 to vector<1x1xf32>
    %137 = arith.mulf %134, %136 : vector<1x1xf32>
    %cst_52 = arith.constant 0.00222222228 : f32
    %138 = vector.broadcast %cst_52 : f32 to vector<1x1xf32>
    %139 = arith.mulf %135, %138 : vector<1x1xf32>
    %140 = arith.mulf %137, %137 : vector<1x1xf32>
    %141 = arith.subf %139, %140 : vector<1x1xf32>
    %142 = vector.extract_strided_slice %112 {offsets = [0, 0], sizes = [1, 1], strides = [1, 1]} : vector<1x8xf32> to vector<1x1xf32>
    %cst_53 = arith.constant 9.99999974E-6 : f32
    %143 = vector.broadcast %cst_53 : f32 to vector<1x1xf32>
    %144 = arith.addf %141, %143 : vector<1x1xf32>
    %145 = math.rsqrt %144 : vector<1x1xf32>
    %146 = arith.mulf %142, %145 : vector<1x1xf32>
    %147 = vector.extract_strided_slice %113 {offsets = [0, 0], sizes = [1, 1], strides = [1, 1]} : vector<1x8xf32> to vector<1x1xf32>
    %148 = arith.mulf %137, %146 : vector<1x1xf32>
    %149 = arith.subf %147, %148 : vector<1x1xf32>
    %150 = vector.broadcast %146 : vector<1x1xf32> to vector<15x15xf32>
    %151 = arith.mulf %114, %150 : vector<15x15xf32>
    %152 = vector.broadcast %149 : vector<1x1xf32> to vector<15x15xf32>
    %153 = arith.addf %151, %152 : vector<15x15xf32>
    %cst_54 = arith.constant 0.000000e+00 : f32
    %154 = vector.broadcast %cst_54 : f32 to vector<15x15xf32>
    %155 = arith.maximumf %153, %154 : vector<15x15xf32>
    %156 = vector.extract_strided_slice %155 {offsets = [0, 0], sizes = [14, 15], strides = [1, 1]} : vector<15x15xf32> to vector<14x15xf32>
    %157 = vector.extract_strided_slice %155 {offsets = [1, 0], sizes = [14, 15], strides = [1, 1]} : vector<15x15xf32> to vector<14x15xf32>
    %158 = arith.maximumf %156, %157 : vector<14x15xf32>
    %159 = vector.extract_strided_slice %158 {offsets = [0, 0], sizes = [1, 15], strides = [1, 1]} : vector<14x15xf32> to vector<1x15xf32>
    %160 = vector.extract_strided_slice %159 {offsets = [0, 0], sizes = [1, 14], strides = [1, 1]} : vector<1x15xf32> to vector<1x14xf32>
    %161 = vector.extract_strided_slice %159 {offsets = [0, 1], sizes = [1, 14], strides = [1, 1]} : vector<1x15xf32> to vector<1x14xf32>
    %162 = arith.maximumf %160, %161 : vector<1x14xf32>
    %163 = vector.extract_strided_slice %158 {offsets = [2, 0], sizes = [1, 15], strides = [1, 1]} : vector<14x15xf32> to vector<1x15xf32>
    %164 = vector.extract_strided_slice %163 {offsets = [0, 0], sizes = [1, 14], strides = [1, 1]} : vector<1x15xf32> to vector<1x14xf32>
    %165 = vector.extract_strided_slice %163 {offsets = [0, 1], sizes = [1, 14], strides = [1, 1]} : vector<1x15xf32> to vector<1x14xf32>
    %166 = arith.maximumf %164, %165 : vector<1x14xf32>
    %167 = vector.extract_strided_slice %158 {offsets = [4, 0], sizes = [1, 15], strides = [1, 1]} : vector<14x15xf32> to vector<1x15xf32>
    %168 = vector.extract_strided_slice %167 {offsets = [0, 0], sizes = [1, 14], strides = [1, 1]} : vector<1x15xf32> to vector<1x14xf32>
    %169 = vector.extract_strided_slice %167 {offsets = [0, 1], sizes = [1, 14], strides = [1, 1]} : vector<1x15xf32> to vector<1x14xf32>
    %170 = arith.maximumf %168, %169 : vector<1x14xf32>
    %171 = vector.extract_strided_slice %158 {offsets = [6, 0], sizes = [1, 15], strides = [1, 1]} : vector<14x15xf32> to vector<1x15xf32>
    %172 = vector.extract_strided_slice %171 {offsets = [0, 0], sizes = [1, 14], strides = [1, 1]} : vector<1x15xf32> to vector<1x14xf32>
    %173 = vector.extract_strided_slice %171 {offsets = [0, 1], sizes = [1, 14], strides = [1, 1]} : vector<1x15xf32> to vector<1x14xf32>
    %174 = arith.maximumf %172, %173 : vector<1x14xf32>
    %175 = vector.extract_strided_slice %158 {offsets = [8, 0], sizes = [1, 15], strides = [1, 1]} : vector<14x15xf32> to vector<1x15xf32>
    %176 = vector.extract_strided_slice %175 {offsets = [0, 0], sizes = [1, 14], strides = [1, 1]} : vector<1x15xf32> to vector<1x14xf32>
    %177 = vector.extract_strided_slice %175 {offsets = [0, 1], sizes = [1, 14], strides = [1, 1]} : vector<1x15xf32> to vector<1x14xf32>
    %178 = arith.maximumf %176, %177 : vector<1x14xf32>
    %179 = vector.extract_strided_slice %158 {offsets = [10, 0], sizes = [1, 15], strides = [1, 1]} : vector<14x15xf32> to vector<1x15xf32>
    %180 = vector.extract_strided_slice %179 {offsets = [0, 0], sizes = [1, 14], strides = [1, 1]} : vector<1x15xf32> to vector<1x14xf32>
    %181 = vector.extract_strided_slice %179 {offsets = [0, 1], sizes = [1, 14], strides = [1, 1]} : vector<1x15xf32> to vector<1x14xf32>
    %182 = arith.maximumf %180, %181 : vector<1x14xf32>
    %183 = vector.extract_strided_slice %158 {offsets = [12, 0], sizes = [1, 15], strides = [1, 1]} : vector<14x15xf32> to vector<1x15xf32>
    %184 = vector.extract_strided_slice %183 {offsets = [0, 0], sizes = [1, 14], strides = [1, 1]} : vector<1x15xf32> to vector<1x14xf32>
    %185 = vector.extract_strided_slice %183 {offsets = [0, 1], sizes = [1, 14], strides = [1, 1]} : vector<1x15xf32> to vector<1x14xf32>
    %186 = arith.maximumf %184, %185 : vector<1x14xf32>
    %187 = vector.broadcast %146 : vector<1x1xf32> to vector<15x15xf32>
    %188 = arith.mulf %115, %187 : vector<15x15xf32>
    %189 = vector.broadcast %149 : vector<1x1xf32> to vector<15x15xf32>
    %190 = arith.addf %188, %189 : vector<15x15xf32>
    %cst_55 = arith.constant 0.000000e+00 : f32
    %191 = vector.broadcast %cst_55 : f32 to vector<15x15xf32>
    %192 = arith.maximumf %190, %191 : vector<15x15xf32>
    %193 = vector.extract_strided_slice %192 {offsets = [0, 0], sizes = [14, 15], strides = [1, 1]} : vector<15x15xf32> to vector<14x15xf32>
    %194 = vector.extract_strided_slice %192 {offsets = [1, 0], sizes = [14, 15], strides = [1, 1]} : vector<15x15xf32> to vector<14x15xf32>
    %195 = arith.maximumf %193, %194 : vector<14x15xf32>
    %196 = vector.extract_strided_slice %195 {offsets = [0, 0], sizes = [1, 15], strides = [1, 1]} : vector<14x15xf32> to vector<1x15xf32>
    %197 = vector.extract_strided_slice %196 {offsets = [0, 0], sizes = [1, 14], strides = [1, 1]} : vector<1x15xf32> to vector<1x14xf32>
    %198 = vector.extract_strided_slice %196 {offsets = [0, 1], sizes = [1, 14], strides = [1, 1]} : vector<1x15xf32> to vector<1x14xf32>
    %199 = arith.maximumf %197, %198 : vector<1x14xf32>
    %200 = vector.extract_strided_slice %195 {offsets = [2, 0], sizes = [1, 15], strides = [1, 1]} : vector<14x15xf32> to vector<1x15xf32>
    %201 = vector.extract_strided_slice %200 {offsets = [0, 0], sizes = [1, 14], strides = [1, 1]} : vector<1x15xf32> to vector<1x14xf32>
    %202 = vector.extract_strided_slice %200 {offsets = [0, 1], sizes = [1, 14], strides = [1, 1]} : vector<1x15xf32> to vector<1x14xf32>
    %203 = arith.maximumf %201, %202 : vector<1x14xf32>
    %204 = vector.extract_strided_slice %195 {offsets = [4, 0], sizes = [1, 15], strides = [1, 1]} : vector<14x15xf32> to vector<1x15xf32>
    %205 = vector.extract_strided_slice %204 {offsets = [0, 0], sizes = [1, 14], strides = [1, 1]} : vector<1x15xf32> to vector<1x14xf32>
    %206 = vector.extract_strided_slice %204 {offsets = [0, 1], sizes = [1, 14], strides = [1, 1]} : vector<1x15xf32> to vector<1x14xf32>
    %207 = arith.maximumf %205, %206 : vector<1x14xf32>
    %208 = vector.extract_strided_slice %195 {offsets = [6, 0], sizes = [1, 15], strides = [1, 1]} : vector<14x15xf32> to vector<1x15xf32>
    %209 = vector.extract_strided_slice %208 {offsets = [0, 0], sizes = [1, 14], strides = [1, 1]} : vector<1x15xf32> to vector<1x14xf32>
    %210 = vector.extract_strided_slice %208 {offsets = [0, 1], sizes = [1, 14], strides = [1, 1]} : vector<1x15xf32> to vector<1x14xf32>
    %211 = arith.maximumf %209, %210 : vector<1x14xf32>
    %212 = vector.extract_strided_slice %195 {offsets = [8, 0], sizes = [1, 15], strides = [1, 1]} : vector<14x15xf32> to vector<1x15xf32>
    %213 = vector.extract_strided_slice %212 {offsets = [0, 0], sizes = [1, 14], strides = [1, 1]} : vector<1x15xf32> to vector<1x14xf32>
    %214 = vector.extract_strided_slice %212 {offsets = [0, 1], sizes = [1, 14], strides = [1, 1]} : vector<1x15xf32> to vector<1x14xf32>
    %215 = arith.maximumf %213, %214 : vector<1x14xf32>
    %216 = vector.extract_strided_slice %195 {offsets = [10, 0], sizes = [1, 15], strides = [1, 1]} : vector<14x15xf32> to vector<1x15xf32>
    %217 = vector.extract_strided_slice %216 {offsets = [0, 0], sizes = [1, 14], strides = [1, 1]} : vector<1x15xf32> to vector<1x14xf32>
    %218 = vector.extract_strided_slice %216 {offsets = [0, 1], sizes = [1, 14], strides = [1, 1]} : vector<1x15xf32> to vector<1x14xf32>
    %219 = arith.maximumf %217, %218 : vector<1x14xf32>
    %220 = vector.extract_strided_slice %195 {offsets = [12, 0], sizes = [1, 15], strides = [1, 1]} : vector<14x15xf32> to vector<1x15xf32>
    %221 = vector.extract_strided_slice %220 {offsets = [0, 0], sizes = [1, 14], strides = [1, 1]} : vector<1x15xf32> to vector<1x14xf32>
    %222 = vector.extract_strided_slice %220 {offsets = [0, 1], sizes = [1, 14], strides = [1, 1]} : vector<1x15xf32> to vector<1x14xf32>
    %223 = arith.maximumf %221, %222 : vector<1x14xf32>
    %224 = vector.extract_strided_slice %108 {offsets = [0, 15], sizes = [15, 15], strides = [1, 1]} : vector<15x120xf32> to vector<15x15xf32>
    %225 = vector.extract_strided_slice %111 {offsets = [0, 15], sizes = [15, 15], strides = [1, 1]} : vector<15x120xf32> to vector<15x15xf32>
    %cst_56 = arith.constant dense<0.000000e+00> : vector<15xf32>
    %226 = vector.multi_reduction <add>, %224, %cst_56 [1] : vector<15x15xf32> to vector<15xf32>
    %227 = vector.shape_cast %226 : vector<15xf32> to vector<15x1xf32>
    %cst_57 = arith.constant dense<0.000000e+00> : vector<1xf32>
    %228 = vector.multi_reduction <add>, %227, %cst_57 [0] : vector<15x1xf32> to vector<1xf32>
    %229 = vector.shape_cast %228 : vector<1xf32> to vector<1x1xf32>
    %230 = arith.mulf %224, %224 : vector<15x15xf32>
    %cst_58 = arith.constant dense<0.000000e+00> : vector<15xf32>
    %231 = vector.multi_reduction <add>, %230, %cst_58 [1] : vector<15x15xf32> to vector<15xf32>
    %232 = vector.shape_cast %231 : vector<15xf32> to vector<15x1xf32>
    %cst_59 = arith.constant dense<0.000000e+00> : vector<1xf32>
    %233 = vector.multi_reduction <add>, %232, %cst_59 [0] : vector<15x1xf32> to vector<1xf32>
    %234 = vector.shape_cast %233 : vector<1xf32> to vector<1x1xf32>
    %cst_60 = arith.constant dense<0.000000e+00> : vector<15xf32>
    %235 = vector.multi_reduction <add>, %225, %cst_60 [1] : vector<15x15xf32> to vector<15xf32>
    %236 = vector.shape_cast %235 : vector<15xf32> to vector<15x1xf32>
    %cst_61 = arith.constant dense<0.000000e+00> : vector<1xf32>
    %237 = vector.multi_reduction <add>, %236, %cst_61 [0] : vector<15x1xf32> to vector<1xf32>
    %238 = vector.shape_cast %237 : vector<1xf32> to vector<1x1xf32>
    %239 = arith.mulf %225, %225 : vector<15x15xf32>
    %cst_62 = arith.constant dense<0.000000e+00> : vector<15xf32>
    %240 = vector.multi_reduction <add>, %239, %cst_62 [1] : vector<15x15xf32> to vector<15xf32>
    %241 = vector.shape_cast %240 : vector<15xf32> to vector<15x1xf32>
    %cst_63 = arith.constant dense<0.000000e+00> : vector<1xf32>
    %242 = vector.multi_reduction <add>, %241, %cst_63 [0] : vector<15x1xf32> to vector<1xf32>
    %243 = vector.shape_cast %242 : vector<1xf32> to vector<1x1xf32>
    %244 = arith.addf %229, %238 : vector<1x1xf32>
    %245 = arith.addf %234, %243 : vector<1x1xf32>
    %cst_64 = arith.constant 0.00222222228 : f32
    %246 = vector.broadcast %cst_64 : f32 to vector<1x1xf32>
    %247 = arith.mulf %244, %246 : vector<1x1xf32>
    %cst_65 = arith.constant 0.00222222228 : f32
    %248 = vector.broadcast %cst_65 : f32 to vector<1x1xf32>
    %249 = arith.mulf %245, %248 : vector<1x1xf32>
    %250 = arith.mulf %247, %247 : vector<1x1xf32>
    %251 = arith.subf %249, %250 : vector<1x1xf32>
    %252 = vector.extract_strided_slice %112 {offsets = [0, 1], sizes = [1, 1], strides = [1, 1]} : vector<1x8xf32> to vector<1x1xf32>
    %cst_66 = arith.constant 9.99999974E-6 : f32
    %253 = vector.broadcast %cst_66 : f32 to vector<1x1xf32>
    %254 = arith.addf %251, %253 : vector<1x1xf32>
    %255 = math.rsqrt %254 : vector<1x1xf32>
    %256 = arith.mulf %252, %255 : vector<1x1xf32>
    %257 = vector.extract_strided_slice %113 {offsets = [0, 1], sizes = [1, 1], strides = [1, 1]} : vector<1x8xf32> to vector<1x1xf32>
    %258 = arith.mulf %247, %256 : vector<1x1xf32>
    %259 = arith.subf %257, %258 : vector<1x1xf32>
    %260 = vector.broadcast %256 : vector<1x1xf32> to vector<15x15xf32>
    %261 = arith.mulf %224, %260 : vector<15x15xf32>
    %262 = vector.broadcast %259 : vector<1x1xf32> to vector<15x15xf32>
    %263 = arith.addf %261, %262 : vector<15x15xf32>
    %cst_67 = arith.constant 0.000000e+00 : f32
    %264 = vector.broadcast %cst_67 : f32 to vector<15x15xf32>
    %265 = arith.maximumf %263, %264 : vector<15x15xf32>
    %266 = vector.extract_strided_slice %265 {offsets = [0, 0], sizes = [14, 15], strides = [1, 1]} : vector<15x15xf32> to vector<14x15xf32>
    %267 = vector.extract_strided_slice %265 {offsets = [1, 0], sizes = [14, 15], strides = [1, 1]} : vector<15x15xf32> to vector<14x15xf32>
    %268 = arith.maximumf %266, %267 : vector<14x15xf32>
    %269 = vector.extract_strided_slice %268 {offsets = [0, 0], sizes = [1, 15], strides = [1, 1]} : vector<14x15xf32> to vector<1x15xf32>
    %270 = vector.extract_strided_slice %269 {offsets = [0, 0], sizes = [1, 14], strides = [1, 1]} : vector<1x15xf32> to vector<1x14xf32>
    %271 = vector.extract_strided_slice %269 {offsets = [0, 1], sizes = [1, 14], strides = [1, 1]} : vector<1x15xf32> to vector<1x14xf32>
    %272 = arith.maximumf %270, %271 : vector<1x14xf32>
    %273 = vector.extract_strided_slice %268 {offsets = [2, 0], sizes = [1, 15], strides = [1, 1]} : vector<14x15xf32> to vector<1x15xf32>
    %274 = vector.extract_strided_slice %273 {offsets = [0, 0], sizes = [1, 14], strides = [1, 1]} : vector<1x15xf32> to vector<1x14xf32>
    %275 = vector.extract_strided_slice %273 {offsets = [0, 1], sizes = [1, 14], strides = [1, 1]} : vector<1x15xf32> to vector<1x14xf32>
    %276 = arith.maximumf %274, %275 : vector<1x14xf32>
    %277 = vector.extract_strided_slice %268 {offsets = [4, 0], sizes = [1, 15], strides = [1, 1]} : vector<14x15xf32> to vector<1x15xf32>
    %278 = vector.extract_strided_slice %277 {offsets = [0, 0], sizes = [1, 14], strides = [1, 1]} : vector<1x15xf32> to vector<1x14xf32>
    %279 = vector.extract_strided_slice %277 {offsets = [0, 1], sizes = [1, 14], strides = [1, 1]} : vector<1x15xf32> to vector<1x14xf32>
    %280 = arith.maximumf %278, %279 : vector<1x14xf32>
    %281 = vector.extract_strided_slice %268 {offsets = [6, 0], sizes = [1, 15], strides = [1, 1]} : vector<14x15xf32> to vector<1x15xf32>
    %282 = vector.extract_strided_slice %281 {offsets = [0, 0], sizes = [1, 14], strides = [1, 1]} : vector<1x15xf32> to vector<1x14xf32>
    %283 = vector.extract_strided_slice %281 {offsets = [0, 1], sizes = [1, 14], strides = [1, 1]} : vector<1x15xf32> to vector<1x14xf32>
    %284 = arith.maximumf %282, %283 : vector<1x14xf32>
    %285 = vector.extract_strided_slice %268 {offsets = [8, 0], sizes = [1, 15], strides = [1, 1]} : vector<14x15xf32> to vector<1x15xf32>
    %286 = vector.extract_strided_slice %285 {offsets = [0, 0], sizes = [1, 14], strides = [1, 1]} : vector<1x15xf32> to vector<1x14xf32>
    %287 = vector.extract_strided_slice %285 {offsets = [0, 1], sizes = [1, 14], strides = [1, 1]} : vector<1x15xf32> to vector<1x14xf32>
    %288 = arith.maximumf %286, %287 : vector<1x14xf32>
    %289 = vector.extract_strided_slice %268 {offsets = [10, 0], sizes = [1, 15], strides = [1, 1]} : vector<14x15xf32> to vector<1x15xf32>
    %290 = vector.extract_strided_slice %289 {offsets = [0, 0], sizes = [1, 14], strides = [1, 1]} : vector<1x15xf32> to vector<1x14xf32>
    %291 = vector.extract_strided_slice %289 {offsets = [0, 1], sizes = [1, 14], strides = [1, 1]} : vector<1x15xf32> to vector<1x14xf32>
    %292 = arith.maximumf %290, %291 : vector<1x14xf32>
    %293 = vector.extract_strided_slice %268 {offsets = [12, 0], sizes = [1, 15], strides = [1, 1]} : vector<14x15xf32> to vector<1x15xf32>
    %294 = vector.extract_strided_slice %293 {offsets = [0, 0], sizes = [1, 14], strides = [1, 1]} : vector<1x15xf32> to vector<1x14xf32>
    %295 = vector.extract_strided_slice %293 {offsets = [0, 1], sizes = [1, 14], strides = [1, 1]} : vector<1x15xf32> to vector<1x14xf32>
    %296 = arith.maximumf %294, %295 : vector<1x14xf32>
    %297 = vector.broadcast %256 : vector<1x1xf32> to vector<15x15xf32>
    %298 = arith.mulf %225, %297 : vector<15x15xf32>
    %299 = vector.broadcast %259 : vector<1x1xf32> to vector<15x15xf32>
    %300 = arith.addf %298, %299 : vector<15x15xf32>
    %cst_68 = arith.constant 0.000000e+00 : f32
    %301 = vector.broadcast %cst_68 : f32 to vector<15x15xf32>
    %302 = arith.maximumf %300, %301 : vector<15x15xf32>
    %303 = vector.extract_strided_slice %302 {offsets = [0, 0], sizes = [14, 15], strides = [1, 1]} : vector<15x15xf32> to vector<14x15xf32>
    %304 = vector.extract_strided_slice %302 {offsets = [1, 0], sizes = [14, 15], strides = [1, 1]} : vector<15x15xf32> to vector<14x15xf32>
    %305 = arith.maximumf %303, %304 : vector<14x15xf32>
    %306 = vector.extract_strided_slice %305 {offsets = [0, 0], sizes = [1, 15], strides = [1, 1]} : vector<14x15xf32> to vector<1x15xf32>
    %307 = vector.extract_strided_slice %306 {offsets = [0, 0], sizes = [1, 14], strides = [1, 1]} : vector<1x15xf32> to vector<1x14xf32>
    %308 = vector.extract_strided_slice %306 {offsets = [0, 1], sizes = [1, 14], strides = [1, 1]} : vector<1x15xf32> to vector<1x14xf32>
    %309 = arith.maximumf %307, %308 : vector<1x14xf32>
    %310 = vector.extract_strided_slice %305 {offsets = [2, 0], sizes = [1, 15], strides = [1, 1]} : vector<14x15xf32> to vector<1x15xf32>
    %311 = vector.extract_strided_slice %310 {offsets = [0, 0], sizes = [1, 14], strides = [1, 1]} : vector<1x15xf32> to vector<1x14xf32>
    %312 = vector.extract_strided_slice %310 {offsets = [0, 1], sizes = [1, 14], strides = [1, 1]} : vector<1x15xf32> to vector<1x14xf32>
    %313 = arith.maximumf %311, %312 : vector<1x14xf32>
    %314 = vector.extract_strided_slice %305 {offsets = [4, 0], sizes = [1, 15], strides = [1, 1]} : vector<14x15xf32> to vector<1x15xf32>
    %315 = vector.extract_strided_slice %314 {offsets = [0, 0], sizes = [1, 14], strides = [1, 1]} : vector<1x15xf32> to vector<1x14xf32>
    %316 = vector.extract_strided_slice %314 {offsets = [0, 1], sizes = [1, 14], strides = [1, 1]} : vector<1x15xf32> to vector<1x14xf32>
    %317 = arith.maximumf %315, %316 : vector<1x14xf32>
    %318 = vector.extract_strided_slice %305 {offsets = [6, 0], sizes = [1, 15], strides = [1, 1]} : vector<14x15xf32> to vector<1x15xf32>
    %319 = vector.extract_strided_slice %318 {offsets = [0, 0], sizes = [1, 14], strides = [1, 1]} : vector<1x15xf32> to vector<1x14xf32>
    %320 = vector.extract_strided_slice %318 {offsets = [0, 1], sizes = [1, 14], strides = [1, 1]} : vector<1x15xf32> to vector<1x14xf32>
    %321 = arith.maximumf %319, %320 : vector<1x14xf32>
    %322 = vector.extract_strided_slice %305 {offsets = [8, 0], sizes = [1, 15], strides = [1, 1]} : vector<14x15xf32> to vector<1x15xf32>
    %323 = vector.extract_strided_slice %322 {offsets = [0, 0], sizes = [1, 14], strides = [1, 1]} : vector<1x15xf32> to vector<1x14xf32>
    %324 = vector.extract_strided_slice %322 {offsets = [0, 1], sizes = [1, 14], strides = [1, 1]} : vector<1x15xf32> to vector<1x14xf32>
    %325 = arith.maximumf %323, %324 : vector<1x14xf32>
    %326 = vector.extract_strided_slice %305 {offsets = [10, 0], sizes = [1, 15], strides = [1, 1]} : vector<14x15xf32> to vector<1x15xf32>
    %327 = vector.extract_strided_slice %326 {offsets = [0, 0], sizes = [1, 14], strides = [1, 1]} : vector<1x15xf32> to vector<1x14xf32>
    %328 = vector.extract_strided_slice %326 {offsets = [0, 1], sizes = [1, 14], strides = [1, 1]} : vector<1x15xf32> to vector<1x14xf32>
    %329 = arith.maximumf %327, %328 : vector<1x14xf32>
    %330 = vector.extract_strided_slice %305 {offsets = [12, 0], sizes = [1, 15], strides = [1, 1]} : vector<14x15xf32> to vector<1x15xf32>
    %331 = vector.extract_strided_slice %330 {offsets = [0, 0], sizes = [1, 14], strides = [1, 1]} : vector<1x15xf32> to vector<1x14xf32>
    %332 = vector.extract_strided_slice %330 {offsets = [0, 1], sizes = [1, 14], strides = [1, 1]} : vector<1x15xf32> to vector<1x14xf32>
    %333 = arith.maximumf %331, %332 : vector<1x14xf32>
    %334 = vector.extract_strided_slice %108 {offsets = [0, 30], sizes = [15, 15], strides = [1, 1]} : vector<15x120xf32> to vector<15x15xf32>
    %335 = vector.extract_strided_slice %111 {offsets = [0, 30], sizes = [15, 15], strides = [1, 1]} : vector<15x120xf32> to vector<15x15xf32>
    %cst_69 = arith.constant dense<0.000000e+00> : vector<15xf32>
    %336 = vector.multi_reduction <add>, %334, %cst_69 [1] : vector<15x15xf32> to vector<15xf32>
    %337 = vector.shape_cast %336 : vector<15xf32> to vector<15x1xf32>
    %cst_70 = arith.constant dense<0.000000e+00> : vector<1xf32>
    %338 = vector.multi_reduction <add>, %337, %cst_70 [0] : vector<15x1xf32> to vector<1xf32>
    %339 = vector.shape_cast %338 : vector<1xf32> to vector<1x1xf32>
    %340 = arith.mulf %334, %334 : vector<15x15xf32>
    %cst_71 = arith.constant dense<0.000000e+00> : vector<15xf32>
    %341 = vector.multi_reduction <add>, %340, %cst_71 [1] : vector<15x15xf32> to vector<15xf32>
    %342 = vector.shape_cast %341 : vector<15xf32> to vector<15x1xf32>
    %cst_72 = arith.constant dense<0.000000e+00> : vector<1xf32>
    %343 = vector.multi_reduction <add>, %342, %cst_72 [0] : vector<15x1xf32> to vector<1xf32>
    %344 = vector.shape_cast %343 : vector<1xf32> to vector<1x1xf32>
    %cst_73 = arith.constant dense<0.000000e+00> : vector<15xf32>
    %345 = vector.multi_reduction <add>, %335, %cst_73 [1] : vector<15x15xf32> to vector<15xf32>
    %346 = vector.shape_cast %345 : vector<15xf32> to vector<15x1xf32>
    %cst_74 = arith.constant dense<0.000000e+00> : vector<1xf32>
    %347 = vector.multi_reduction <add>, %346, %cst_74 [0] : vector<15x1xf32> to vector<1xf32>
    %348 = vector.shape_cast %347 : vector<1xf32> to vector<1x1xf32>
    %349 = arith.mulf %335, %335 : vector<15x15xf32>
    %cst_75 = arith.constant dense<0.000000e+00> : vector<15xf32>
    %350 = vector.multi_reduction <add>, %349, %cst_75 [1] : vector<15x15xf32> to vector<15xf32>
    %351 = vector.shape_cast %350 : vector<15xf32> to vector<15x1xf32>
    %cst_76 = arith.constant dense<0.000000e+00> : vector<1xf32>
    %352 = vector.multi_reduction <add>, %351, %cst_76 [0] : vector<15x1xf32> to vector<1xf32>
    %353 = vector.shape_cast %352 : vector<1xf32> to vector<1x1xf32>
    %354 = arith.addf %339, %348 : vector<1x1xf32>
    %355 = arith.addf %344, %353 : vector<1x1xf32>
    %cst_77 = arith.constant 0.00222222228 : f32
    %356 = vector.broadcast %cst_77 : f32 to vector<1x1xf32>
    %357 = arith.mulf %354, %356 : vector<1x1xf32>
    %cst_78 = arith.constant 0.00222222228 : f32
    %358 = vector.broadcast %cst_78 : f32 to vector<1x1xf32>
    %359 = arith.mulf %355, %358 : vector<1x1xf32>
    %360 = arith.mulf %357, %357 : vector<1x1xf32>
    %361 = arith.subf %359, %360 : vector<1x1xf32>
    %362 = vector.extract_strided_slice %112 {offsets = [0, 2], sizes = [1, 1], strides = [1, 1]} : vector<1x8xf32> to vector<1x1xf32>
    %cst_79 = arith.constant 9.99999974E-6 : f32
    %363 = vector.broadcast %cst_79 : f32 to vector<1x1xf32>
    %364 = arith.addf %361, %363 : vector<1x1xf32>
    %365 = math.rsqrt %364 : vector<1x1xf32>
    %366 = arith.mulf %362, %365 : vector<1x1xf32>
    %367 = vector.extract_strided_slice %113 {offsets = [0, 2], sizes = [1, 1], strides = [1, 1]} : vector<1x8xf32> to vector<1x1xf32>
    %368 = arith.mulf %357, %366 : vector<1x1xf32>
    %369 = arith.subf %367, %368 : vector<1x1xf32>
    %370 = vector.broadcast %366 : vector<1x1xf32> to vector<15x15xf32>
    %371 = arith.mulf %334, %370 : vector<15x15xf32>
    %372 = vector.broadcast %369 : vector<1x1xf32> to vector<15x15xf32>
    %373 = arith.addf %371, %372 : vector<15x15xf32>
    %cst_80 = arith.constant 0.000000e+00 : f32
    %374 = vector.broadcast %cst_80 : f32 to vector<15x15xf32>
    %375 = arith.maximumf %373, %374 : vector<15x15xf32>
    %376 = vector.extract_strided_slice %375 {offsets = [0, 0], sizes = [14, 15], strides = [1, 1]} : vector<15x15xf32> to vector<14x15xf32>
    %377 = vector.extract_strided_slice %375 {offsets = [1, 0], sizes = [14, 15], strides = [1, 1]} : vector<15x15xf32> to vector<14x15xf32>
    %378 = arith.maximumf %376, %377 : vector<14x15xf32>
    %379 = vector.extract_strided_slice %378 {offsets = [0, 0], sizes = [1, 15], strides = [1, 1]} : vector<14x15xf32> to vector<1x15xf32>
    %380 = vector.extract_strided_slice %379 {offsets = [0, 0], sizes = [1, 14], strides = [1, 1]} : vector<1x15xf32> to vector<1x14xf32>
    %381 = vector.extract_strided_slice %379 {offsets = [0, 1], sizes = [1, 14], strides = [1, 1]} : vector<1x15xf32> to vector<1x14xf32>
    %382 = arith.maximumf %380, %381 : vector<1x14xf32>
    %383 = vector.extract_strided_slice %378 {offsets = [2, 0], sizes = [1, 15], strides = [1, 1]} : vector<14x15xf32> to vector<1x15xf32>
    %384 = vector.extract_strided_slice %383 {offsets = [0, 0], sizes = [1, 14], strides = [1, 1]} : vector<1x15xf32> to vector<1x14xf32>
    %385 = vector.extract_strided_slice %383 {offsets = [0, 1], sizes = [1, 14], strides = [1, 1]} : vector<1x15xf32> to vector<1x14xf32>
    %386 = arith.maximumf %384, %385 : vector<1x14xf32>
    %387 = vector.extract_strided_slice %378 {offsets = [4, 0], sizes = [1, 15], strides = [1, 1]} : vector<14x15xf32> to vector<1x15xf32>
    %388 = vector.extract_strided_slice %387 {offsets = [0, 0], sizes = [1, 14], strides = [1, 1]} : vector<1x15xf32> to vector<1x14xf32>
    %389 = vector.extract_strided_slice %387 {offsets = [0, 1], sizes = [1, 14], strides = [1, 1]} : vector<1x15xf32> to vector<1x14xf32>
    %390 = arith.maximumf %388, %389 : vector<1x14xf32>
    %391 = vector.extract_strided_slice %378 {offsets = [6, 0], sizes = [1, 15], strides = [1, 1]} : vector<14x15xf32> to vector<1x15xf32>
    %392 = vector.extract_strided_slice %391 {offsets = [0, 0], sizes = [1, 14], strides = [1, 1]} : vector<1x15xf32> to vector<1x14xf32>
    %393 = vector.extract_strided_slice %391 {offsets = [0, 1], sizes = [1, 14], strides = [1, 1]} : vector<1x15xf32> to vector<1x14xf32>
    %394 = arith.maximumf %392, %393 : vector<1x14xf32>
    %395 = vector.extract_strided_slice %378 {offsets = [8, 0], sizes = [1, 15], strides = [1, 1]} : vector<14x15xf32> to vector<1x15xf32>
    %396 = vector.extract_strided_slice %395 {offsets = [0, 0], sizes = [1, 14], strides = [1, 1]} : vector<1x15xf32> to vector<1x14xf32>
    %397 = vector.extract_strided_slice %395 {offsets = [0, 1], sizes = [1, 14], strides = [1, 1]} : vector<1x15xf32> to vector<1x14xf32>
    %398 = arith.maximumf %396, %397 : vector<1x14xf32>
    %399 = vector.extract_strided_slice %378 {offsets = [10, 0], sizes = [1, 15], strides = [1, 1]} : vector<14x15xf32> to vector<1x15xf32>
    %400 = vector.extract_strided_slice %399 {offsets = [0, 0], sizes = [1, 14], strides = [1, 1]} : vector<1x15xf32> to vector<1x14xf32>
    %401 = vector.extract_strided_slice %399 {offsets = [0, 1], sizes = [1, 14], strides = [1, 1]} : vector<1x15xf32> to vector<1x14xf32>
    %402 = arith.maximumf %400, %401 : vector<1x14xf32>
    %403 = vector.extract_strided_slice %378 {offsets = [12, 0], sizes = [1, 15], strides = [1, 1]} : vector<14x15xf32> to vector<1x15xf32>
    %404 = vector.extract_strided_slice %403 {offsets = [0, 0], sizes = [1, 14], strides = [1, 1]} : vector<1x15xf32> to vector<1x14xf32>
    %405 = vector.extract_strided_slice %403 {offsets = [0, 1], sizes = [1, 14], strides = [1, 1]} : vector<1x15xf32> to vector<1x14xf32>
    %406 = arith.maximumf %404, %405 : vector<1x14xf32>
    %407 = vector.broadcast %366 : vector<1x1xf32> to vector<15x15xf32>
    %408 = arith.mulf %335, %407 : vector<15x15xf32>
    %409 = vector.broadcast %369 : vector<1x1xf32> to vector<15x15xf32>
    %410 = arith.addf %408, %409 : vector<15x15xf32>
    %cst_81 = arith.constant 0.000000e+00 : f32
    %411 = vector.broadcast %cst_81 : f32 to vector<15x15xf32>
    %412 = arith.maximumf %410, %411 : vector<15x15xf32>
    %413 = vector.extract_strided_slice %412 {offsets = [0, 0], sizes = [14, 15], strides = [1, 1]} : vector<15x15xf32> to vector<14x15xf32>
    %414 = vector.extract_strided_slice %412 {offsets = [1, 0], sizes = [14, 15], strides = [1, 1]} : vector<15x15xf32> to vector<14x15xf32>
    %415 = arith.maximumf %413, %414 : vector<14x15xf32>
    %416 = vector.extract_strided_slice %415 {offsets = [0, 0], sizes = [1, 15], strides = [1, 1]} : vector<14x15xf32> to vector<1x15xf32>
    %417 = vector.extract_strided_slice %416 {offsets = [0, 0], sizes = [1, 14], strides = [1, 1]} : vector<1x15xf32> to vector<1x14xf32>
    %418 = vector.extract_strided_slice %416 {offsets = [0, 1], sizes = [1, 14], strides = [1, 1]} : vector<1x15xf32> to vector<1x14xf32>
    %419 = arith.maximumf %417, %418 : vector<1x14xf32>
    %420 = vector.extract_strided_slice %415 {offsets = [2, 0], sizes = [1, 15], strides = [1, 1]} : vector<14x15xf32> to vector<1x15xf32>
    %421 = vector.extract_strided_slice %420 {offsets = [0, 0], sizes = [1, 14], strides = [1, 1]} : vector<1x15xf32> to vector<1x14xf32>
    %422 = vector.extract_strided_slice %420 {offsets = [0, 1], sizes = [1, 14], strides = [1, 1]} : vector<1x15xf32> to vector<1x14xf32>
    %423 = arith.maximumf %421, %422 : vector<1x14xf32>
    %424 = vector.extract_strided_slice %415 {offsets = [4, 0], sizes = [1, 15], strides = [1, 1]} : vector<14x15xf32> to vector<1x15xf32>
    %425 = vector.extract_strided_slice %424 {offsets = [0, 0], sizes = [1, 14], strides = [1, 1]} : vector<1x15xf32> to vector<1x14xf32>
    %426 = vector.extract_strided_slice %424 {offsets = [0, 1], sizes = [1, 14], strides = [1, 1]} : vector<1x15xf32> to vector<1x14xf32>
    %427 = arith.maximumf %425, %426 : vector<1x14xf32>
    %428 = vector.extract_strided_slice %415 {offsets = [6, 0], sizes = [1, 15], strides = [1, 1]} : vector<14x15xf32> to vector<1x15xf32>
    %429 = vector.extract_strided_slice %428 {offsets = [0, 0], sizes = [1, 14], strides = [1, 1]} : vector<1x15xf32> to vector<1x14xf32>
    %430 = vector.extract_strided_slice %428 {offsets = [0, 1], sizes = [1, 14], strides = [1, 1]} : vector<1x15xf32> to vector<1x14xf32>
    %431 = arith.maximumf %429, %430 : vector<1x14xf32>
    %432 = vector.extract_strided_slice %415 {offsets = [8, 0], sizes = [1, 15], strides = [1, 1]} : vector<14x15xf32> to vector<1x15xf32>
    %433 = vector.extract_strided_slice %432 {offsets = [0, 0], sizes = [1, 14], strides = [1, 1]} : vector<1x15xf32> to vector<1x14xf32>
    %434 = vector.extract_strided_slice %432 {offsets = [0, 1], sizes = [1, 14], strides = [1, 1]} : vector<1x15xf32> to vector<1x14xf32>
    %435 = arith.maximumf %433, %434 : vector<1x14xf32>
    %436 = vector.extract_strided_slice %415 {offsets = [10, 0], sizes = [1, 15], strides = [1, 1]} : vector<14x15xf32> to vector<1x15xf32>
    %437 = vector.extract_strided_slice %436 {offsets = [0, 0], sizes = [1, 14], strides = [1, 1]} : vector<1x15xf32> to vector<1x14xf32>
    %438 = vector.extract_strided_slice %436 {offsets = [0, 1], sizes = [1, 14], strides = [1, 1]} : vector<1x15xf32> to vector<1x14xf32>
    %439 = arith.maximumf %437, %438 : vector<1x14xf32>
    %440 = vector.extract_strided_slice %415 {offsets = [12, 0], sizes = [1, 15], strides = [1, 1]} : vector<14x15xf32> to vector<1x15xf32>
    %441 = vector.extract_strided_slice %440 {offsets = [0, 0], sizes = [1, 14], strides = [1, 1]} : vector<1x15xf32> to vector<1x14xf32>
    %442 = vector.extract_strided_slice %440 {offsets = [0, 1], sizes = [1, 14], strides = [1, 1]} : vector<1x15xf32> to vector<1x14xf32>
    %443 = arith.maximumf %441, %442 : vector<1x14xf32>
    %444 = vector.extract_strided_slice %108 {offsets = [0, 45], sizes = [15, 15], strides = [1, 1]} : vector<15x120xf32> to vector<15x15xf32>
    %445 = vector.extract_strided_slice %111 {offsets = [0, 45], sizes = [15, 15], strides = [1, 1]} : vector<15x120xf32> to vector<15x15xf32>
    %cst_82 = arith.constant dense<0.000000e+00> : vector<15xf32>
    %446 = vector.multi_reduction <add>, %444, %cst_82 [1] : vector<15x15xf32> to vector<15xf32>
    %447 = vector.shape_cast %446 : vector<15xf32> to vector<15x1xf32>
    %cst_83 = arith.constant dense<0.000000e+00> : vector<1xf32>
    %448 = vector.multi_reduction <add>, %447, %cst_83 [0] : vector<15x1xf32> to vector<1xf32>
    %449 = vector.shape_cast %448 : vector<1xf32> to vector<1x1xf32>
    %450 = arith.mulf %444, %444 : vector<15x15xf32>
    %cst_84 = arith.constant dense<0.000000e+00> : vector<15xf32>
    %451 = vector.multi_reduction <add>, %450, %cst_84 [1] : vector<15x15xf32> to vector<15xf32>
    %452 = vector.shape_cast %451 : vector<15xf32> to vector<15x1xf32>
    %cst_85 = arith.constant dense<0.000000e+00> : vector<1xf32>
    %453 = vector.multi_reduction <add>, %452, %cst_85 [0] : vector<15x1xf32> to vector<1xf32>
    %454 = vector.shape_cast %453 : vector<1xf32> to vector<1x1xf32>
    %cst_86 = arith.constant dense<0.000000e+00> : vector<15xf32>
    %455 = vector.multi_reduction <add>, %445, %cst_86 [1] : vector<15x15xf32> to vector<15xf32>
    %456 = vector.shape_cast %455 : vector<15xf32> to vector<15x1xf32>
    %cst_87 = arith.constant dense<0.000000e+00> : vector<1xf32>
    %457 = vector.multi_reduction <add>, %456, %cst_87 [0] : vector<15x1xf32> to vector<1xf32>
    %458 = vector.shape_cast %457 : vector<1xf32> to vector<1x1xf32>
    %459 = arith.mulf %445, %445 : vector<15x15xf32>
    %cst_88 = arith.constant dense<0.000000e+00> : vector<15xf32>
    %460 = vector.multi_reduction <add>, %459, %cst_88 [1] : vector<15x15xf32> to vector<15xf32>
    %461 = vector.shape_cast %460 : vector<15xf32> to vector<15x1xf32>
    %cst_89 = arith.constant dense<0.000000e+00> : vector<1xf32>
    %462 = vector.multi_reduction <add>, %461, %cst_89 [0] : vector<15x1xf32> to vector<1xf32>
    %463 = vector.shape_cast %462 : vector<1xf32> to vector<1x1xf32>
    %464 = arith.addf %449, %458 : vector<1x1xf32>
    %465 = arith.addf %454, %463 : vector<1x1xf32>
    %cst_90 = arith.constant 0.00222222228 : f32
    %466 = vector.broadcast %cst_90 : f32 to vector<1x1xf32>
    %467 = arith.mulf %464, %466 : vector<1x1xf32>
    %cst_91 = arith.constant 0.00222222228 : f32
    %468 = vector.broadcast %cst_91 : f32 to vector<1x1xf32>
    %469 = arith.mulf %465, %468 : vector<1x1xf32>
    %470 = arith.mulf %467, %467 : vector<1x1xf32>
    %471 = arith.subf %469, %470 : vector<1x1xf32>
    %472 = vector.extract_strided_slice %112 {offsets = [0, 3], sizes = [1, 1], strides = [1, 1]} : vector<1x8xf32> to vector<1x1xf32>
    %cst_92 = arith.constant 9.99999974E-6 : f32
    %473 = vector.broadcast %cst_92 : f32 to vector<1x1xf32>
    %474 = arith.addf %471, %473 : vector<1x1xf32>
    %475 = math.rsqrt %474 : vector<1x1xf32>
    %476 = arith.mulf %472, %475 : vector<1x1xf32>
    %477 = vector.extract_strided_slice %113 {offsets = [0, 3], sizes = [1, 1], strides = [1, 1]} : vector<1x8xf32> to vector<1x1xf32>
    %478 = arith.mulf %467, %476 : vector<1x1xf32>
    %479 = arith.subf %477, %478 : vector<1x1xf32>
    %480 = vector.broadcast %476 : vector<1x1xf32> to vector<15x15xf32>
    %481 = arith.mulf %444, %480 : vector<15x15xf32>
    %482 = vector.broadcast %479 : vector<1x1xf32> to vector<15x15xf32>
    %483 = arith.addf %481, %482 : vector<15x15xf32>
    %cst_93 = arith.constant 0.000000e+00 : f32
    %484 = vector.broadcast %cst_93 : f32 to vector<15x15xf32>
    %485 = arith.maximumf %483, %484 : vector<15x15xf32>
    %486 = vector.extract_strided_slice %485 {offsets = [0, 0], sizes = [14, 15], strides = [1, 1]} : vector<15x15xf32> to vector<14x15xf32>
    %487 = vector.extract_strided_slice %485 {offsets = [1, 0], sizes = [14, 15], strides = [1, 1]} : vector<15x15xf32> to vector<14x15xf32>
    %488 = arith.maximumf %486, %487 : vector<14x15xf32>
    %489 = vector.extract_strided_slice %488 {offsets = [0, 0], sizes = [1, 15], strides = [1, 1]} : vector<14x15xf32> to vector<1x15xf32>
    %490 = vector.extract_strided_slice %489 {offsets = [0, 0], sizes = [1, 14], strides = [1, 1]} : vector<1x15xf32> to vector<1x14xf32>
    %491 = vector.extract_strided_slice %489 {offsets = [0, 1], sizes = [1, 14], strides = [1, 1]} : vector<1x15xf32> to vector<1x14xf32>
    %492 = arith.maximumf %490, %491 : vector<1x14xf32>
    %493 = vector.extract_strided_slice %488 {offsets = [2, 0], sizes = [1, 15], strides = [1, 1]} : vector<14x15xf32> to vector<1x15xf32>
    %494 = vector.extract_strided_slice %493 {offsets = [0, 0], sizes = [1, 14], strides = [1, 1]} : vector<1x15xf32> to vector<1x14xf32>
    %495 = vector.extract_strided_slice %493 {offsets = [0, 1], sizes = [1, 14], strides = [1, 1]} : vector<1x15xf32> to vector<1x14xf32>
    %496 = arith.maximumf %494, %495 : vector<1x14xf32>
    %497 = vector.extract_strided_slice %488 {offsets = [4, 0], sizes = [1, 15], strides = [1, 1]} : vector<14x15xf32> to vector<1x15xf32>
    %498 = vector.extract_strided_slice %497 {offsets = [0, 0], sizes = [1, 14], strides = [1, 1]} : vector<1x15xf32> to vector<1x14xf32>
    %499 = vector.extract_strided_slice %497 {offsets = [0, 1], sizes = [1, 14], strides = [1, 1]} : vector<1x15xf32> to vector<1x14xf32>
    %500 = arith.maximumf %498, %499 : vector<1x14xf32>
    %501 = vector.extract_strided_slice %488 {offsets = [6, 0], sizes = [1, 15], strides = [1, 1]} : vector<14x15xf32> to vector<1x15xf32>
    %502 = vector.extract_strided_slice %501 {offsets = [0, 0], sizes = [1, 14], strides = [1, 1]} : vector<1x15xf32> to vector<1x14xf32>
    %503 = vector.extract_strided_slice %501 {offsets = [0, 1], sizes = [1, 14], strides = [1, 1]} : vector<1x15xf32> to vector<1x14xf32>
    %504 = arith.maximumf %502, %503 : vector<1x14xf32>
    %505 = vector.extract_strided_slice %488 {offsets = [8, 0], sizes = [1, 15], strides = [1, 1]} : vector<14x15xf32> to vector<1x15xf32>
    %506 = vector.extract_strided_slice %505 {offsets = [0, 0], sizes = [1, 14], strides = [1, 1]} : vector<1x15xf32> to vector<1x14xf32>
    %507 = vector.extract_strided_slice %505 {offsets = [0, 1], sizes = [1, 14], strides = [1, 1]} : vector<1x15xf32> to vector<1x14xf32>
    %508 = arith.maximumf %506, %507 : vector<1x14xf32>
    %509 = vector.extract_strided_slice %488 {offsets = [10, 0], sizes = [1, 15], strides = [1, 1]} : vector<14x15xf32> to vector<1x15xf32>
    %510 = vector.extract_strided_slice %509 {offsets = [0, 0], sizes = [1, 14], strides = [1, 1]} : vector<1x15xf32> to vector<1x14xf32>
    %511 = vector.extract_strided_slice %509 {offsets = [0, 1], sizes = [1, 14], strides = [1, 1]} : vector<1x15xf32> to vector<1x14xf32>
    %512 = arith.maximumf %510, %511 : vector<1x14xf32>
    %513 = vector.extract_strided_slice %488 {offsets = [12, 0], sizes = [1, 15], strides = [1, 1]} : vector<14x15xf32> to vector<1x15xf32>
    %514 = vector.extract_strided_slice %513 {offsets = [0, 0], sizes = [1, 14], strides = [1, 1]} : vector<1x15xf32> to vector<1x14xf32>
    %515 = vector.extract_strided_slice %513 {offsets = [0, 1], sizes = [1, 14], strides = [1, 1]} : vector<1x15xf32> to vector<1x14xf32>
    %516 = arith.maximumf %514, %515 : vector<1x14xf32>
    %517 = vector.broadcast %476 : vector<1x1xf32> to vector<15x15xf32>
    %518 = arith.mulf %445, %517 : vector<15x15xf32>
    %519 = vector.broadcast %479 : vector<1x1xf32> to vector<15x15xf32>
    %520 = arith.addf %518, %519 : vector<15x15xf32>
    %cst_94 = arith.constant 0.000000e+00 : f32
    %521 = vector.broadcast %cst_94 : f32 to vector<15x15xf32>
    %522 = arith.maximumf %520, %521 : vector<15x15xf32>
    %523 = vector.extract_strided_slice %522 {offsets = [0, 0], sizes = [14, 15], strides = [1, 1]} : vector<15x15xf32> to vector<14x15xf32>
    %524 = vector.extract_strided_slice %522 {offsets = [1, 0], sizes = [14, 15], strides = [1, 1]} : vector<15x15xf32> to vector<14x15xf32>
    %525 = arith.maximumf %523, %524 : vector<14x15xf32>
    %526 = vector.extract_strided_slice %525 {offsets = [0, 0], sizes = [1, 15], strides = [1, 1]} : vector<14x15xf32> to vector<1x15xf32>
    %527 = vector.extract_strided_slice %526 {offsets = [0, 0], sizes = [1, 14], strides = [1, 1]} : vector<1x15xf32> to vector<1x14xf32>
    %528 = vector.extract_strided_slice %526 {offsets = [0, 1], sizes = [1, 14], strides = [1, 1]} : vector<1x15xf32> to vector<1x14xf32>
    %529 = arith.maximumf %527, %528 : vector<1x14xf32>
    %530 = vector.extract_strided_slice %525 {offsets = [2, 0], sizes = [1, 15], strides = [1, 1]} : vector<14x15xf32> to vector<1x15xf32>
    %531 = vector.extract_strided_slice %530 {offsets = [0, 0], sizes = [1, 14], strides = [1, 1]} : vector<1x15xf32> to vector<1x14xf32>
    %532 = vector.extract_strided_slice %530 {offsets = [0, 1], sizes = [1, 14], strides = [1, 1]} : vector<1x15xf32> to vector<1x14xf32>
    %533 = arith.maximumf %531, %532 : vector<1x14xf32>
    %534 = vector.extract_strided_slice %525 {offsets = [4, 0], sizes = [1, 15], strides = [1, 1]} : vector<14x15xf32> to vector<1x15xf32>
    %535 = vector.extract_strided_slice %534 {offsets = [0, 0], sizes = [1, 14], strides = [1, 1]} : vector<1x15xf32> to vector<1x14xf32>
    %536 = vector.extract_strided_slice %534 {offsets = [0, 1], sizes = [1, 14], strides = [1, 1]} : vector<1x15xf32> to vector<1x14xf32>
    %537 = arith.maximumf %535, %536 : vector<1x14xf32>
    %538 = vector.extract_strided_slice %525 {offsets = [6, 0], sizes = [1, 15], strides = [1, 1]} : vector<14x15xf32> to vector<1x15xf32>
    %539 = vector.extract_strided_slice %538 {offsets = [0, 0], sizes = [1, 14], strides = [1, 1]} : vector<1x15xf32> to vector<1x14xf32>
    %540 = vector.extract_strided_slice %538 {offsets = [0, 1], sizes = [1, 14], strides = [1, 1]} : vector<1x15xf32> to vector<1x14xf32>
    %541 = arith.maximumf %539, %540 : vector<1x14xf32>
    %542 = vector.extract_strided_slice %525 {offsets = [8, 0], sizes = [1, 15], strides = [1, 1]} : vector<14x15xf32> to vector<1x15xf32>
    %543 = vector.extract_strided_slice %542 {offsets = [0, 0], sizes = [1, 14], strides = [1, 1]} : vector<1x15xf32> to vector<1x14xf32>
    %544 = vector.extract_strided_slice %542 {offsets = [0, 1], sizes = [1, 14], strides = [1, 1]} : vector<1x15xf32> to vector<1x14xf32>
    %545 = arith.maximumf %543, %544 : vector<1x14xf32>
    %546 = vector.extract_strided_slice %525 {offsets = [10, 0], sizes = [1, 15], strides = [1, 1]} : vector<14x15xf32> to vector<1x15xf32>
    %547 = vector.extract_strided_slice %546 {offsets = [0, 0], sizes = [1, 14], strides = [1, 1]} : vector<1x15xf32> to vector<1x14xf32>
    %548 = vector.extract_strided_slice %546 {offsets = [0, 1], sizes = [1, 14], strides = [1, 1]} : vector<1x15xf32> to vector<1x14xf32>
    %549 = arith.maximumf %547, %548 : vector<1x14xf32>
    %550 = vector.extract_strided_slice %525 {offsets = [12, 0], sizes = [1, 15], strides = [1, 1]} : vector<14x15xf32> to vector<1x15xf32>
    %551 = vector.extract_strided_slice %550 {offsets = [0, 0], sizes = [1, 14], strides = [1, 1]} : vector<1x15xf32> to vector<1x14xf32>
    %552 = vector.extract_strided_slice %550 {offsets = [0, 1], sizes = [1, 14], strides = [1, 1]} : vector<1x15xf32> to vector<1x14xf32>
    %553 = arith.maximumf %551, %552 : vector<1x14xf32>
    %554 = vector.extract_strided_slice %108 {offsets = [0, 60], sizes = [15, 15], strides = [1, 1]} : vector<15x120xf32> to vector<15x15xf32>
    %555 = vector.extract_strided_slice %111 {offsets = [0, 60], sizes = [15, 15], strides = [1, 1]} : vector<15x120xf32> to vector<15x15xf32>
    %cst_95 = arith.constant dense<0.000000e+00> : vector<15xf32>
    %556 = vector.multi_reduction <add>, %554, %cst_95 [1] : vector<15x15xf32> to vector<15xf32>
    %557 = vector.shape_cast %556 : vector<15xf32> to vector<15x1xf32>
    %cst_96 = arith.constant dense<0.000000e+00> : vector<1xf32>
    %558 = vector.multi_reduction <add>, %557, %cst_96 [0] : vector<15x1xf32> to vector<1xf32>
    %559 = vector.shape_cast %558 : vector<1xf32> to vector<1x1xf32>
    %560 = arith.mulf %554, %554 : vector<15x15xf32>
    %cst_97 = arith.constant dense<0.000000e+00> : vector<15xf32>
    %561 = vector.multi_reduction <add>, %560, %cst_97 [1] : vector<15x15xf32> to vector<15xf32>
    %562 = vector.shape_cast %561 : vector<15xf32> to vector<15x1xf32>
    %cst_98 = arith.constant dense<0.000000e+00> : vector<1xf32>
    %563 = vector.multi_reduction <add>, %562, %cst_98 [0] : vector<15x1xf32> to vector<1xf32>
    %564 = vector.shape_cast %563 : vector<1xf32> to vector<1x1xf32>
    %cst_99 = arith.constant dense<0.000000e+00> : vector<15xf32>
    %565 = vector.multi_reduction <add>, %555, %cst_99 [1] : vector<15x15xf32> to vector<15xf32>
    %566 = vector.shape_cast %565 : vector<15xf32> to vector<15x1xf32>
    %cst_100 = arith.constant dense<0.000000e+00> : vector<1xf32>
    %567 = vector.multi_reduction <add>, %566, %cst_100 [0] : vector<15x1xf32> to vector<1xf32>
    %568 = vector.shape_cast %567 : vector<1xf32> to vector<1x1xf32>
    %569 = arith.mulf %555, %555 : vector<15x15xf32>
    %cst_101 = arith.constant dense<0.000000e+00> : vector<15xf32>
    %570 = vector.multi_reduction <add>, %569, %cst_101 [1] : vector<15x15xf32> to vector<15xf32>
    %571 = vector.shape_cast %570 : vector<15xf32> to vector<15x1xf32>
    %cst_102 = arith.constant dense<0.000000e+00> : vector<1xf32>
    %572 = vector.multi_reduction <add>, %571, %cst_102 [0] : vector<15x1xf32> to vector<1xf32>
    %573 = vector.shape_cast %572 : vector<1xf32> to vector<1x1xf32>
    %574 = arith.addf %559, %568 : vector<1x1xf32>
    %575 = arith.addf %564, %573 : vector<1x1xf32>
    %cst_103 = arith.constant 0.00222222228 : f32
    %576 = vector.broadcast %cst_103 : f32 to vector<1x1xf32>
    %577 = arith.mulf %574, %576 : vector<1x1xf32>
    %cst_104 = arith.constant 0.00222222228 : f32
    %578 = vector.broadcast %cst_104 : f32 to vector<1x1xf32>
    %579 = arith.mulf %575, %578 : vector<1x1xf32>
    %580 = arith.mulf %577, %577 : vector<1x1xf32>
    %581 = arith.subf %579, %580 : vector<1x1xf32>
    %582 = vector.extract_strided_slice %112 {offsets = [0, 4], sizes = [1, 1], strides = [1, 1]} : vector<1x8xf32> to vector<1x1xf32>
    %cst_105 = arith.constant 9.99999974E-6 : f32
    %583 = vector.broadcast %cst_105 : f32 to vector<1x1xf32>
    %584 = arith.addf %581, %583 : vector<1x1xf32>
    %585 = math.rsqrt %584 : vector<1x1xf32>
    %586 = arith.mulf %582, %585 : vector<1x1xf32>
    %587 = vector.extract_strided_slice %113 {offsets = [0, 4], sizes = [1, 1], strides = [1, 1]} : vector<1x8xf32> to vector<1x1xf32>
    %588 = arith.mulf %577, %586 : vector<1x1xf32>
    %589 = arith.subf %587, %588 : vector<1x1xf32>
    %590 = vector.broadcast %586 : vector<1x1xf32> to vector<15x15xf32>
    %591 = arith.mulf %554, %590 : vector<15x15xf32>
    %592 = vector.broadcast %589 : vector<1x1xf32> to vector<15x15xf32>
    %593 = arith.addf %591, %592 : vector<15x15xf32>
    %cst_106 = arith.constant 0.000000e+00 : f32
    %594 = vector.broadcast %cst_106 : f32 to vector<15x15xf32>
    %595 = arith.maximumf %593, %594 : vector<15x15xf32>
    %596 = vector.extract_strided_slice %595 {offsets = [0, 0], sizes = [14, 15], strides = [1, 1]} : vector<15x15xf32> to vector<14x15xf32>
    %597 = vector.extract_strided_slice %595 {offsets = [1, 0], sizes = [14, 15], strides = [1, 1]} : vector<15x15xf32> to vector<14x15xf32>
    %598 = arith.maximumf %596, %597 : vector<14x15xf32>
    %599 = vector.extract_strided_slice %598 {offsets = [0, 0], sizes = [1, 15], strides = [1, 1]} : vector<14x15xf32> to vector<1x15xf32>
    %600 = vector.extract_strided_slice %599 {offsets = [0, 0], sizes = [1, 14], strides = [1, 1]} : vector<1x15xf32> to vector<1x14xf32>
    %601 = vector.extract_strided_slice %599 {offsets = [0, 1], sizes = [1, 14], strides = [1, 1]} : vector<1x15xf32> to vector<1x14xf32>
    %602 = arith.maximumf %600, %601 : vector<1x14xf32>
    %603 = vector.extract_strided_slice %598 {offsets = [2, 0], sizes = [1, 15], strides = [1, 1]} : vector<14x15xf32> to vector<1x15xf32>
    %604 = vector.extract_strided_slice %603 {offsets = [0, 0], sizes = [1, 14], strides = [1, 1]} : vector<1x15xf32> to vector<1x14xf32>
    %605 = vector.extract_strided_slice %603 {offsets = [0, 1], sizes = [1, 14], strides = [1, 1]} : vector<1x15xf32> to vector<1x14xf32>
    %606 = arith.maximumf %604, %605 : vector<1x14xf32>
    %607 = vector.extract_strided_slice %598 {offsets = [4, 0], sizes = [1, 15], strides = [1, 1]} : vector<14x15xf32> to vector<1x15xf32>
    %608 = vector.extract_strided_slice %607 {offsets = [0, 0], sizes = [1, 14], strides = [1, 1]} : vector<1x15xf32> to vector<1x14xf32>
    %609 = vector.extract_strided_slice %607 {offsets = [0, 1], sizes = [1, 14], strides = [1, 1]} : vector<1x15xf32> to vector<1x14xf32>
    %610 = arith.maximumf %608, %609 : vector<1x14xf32>
    %611 = vector.extract_strided_slice %598 {offsets = [6, 0], sizes = [1, 15], strides = [1, 1]} : vector<14x15xf32> to vector<1x15xf32>
    %612 = vector.extract_strided_slice %611 {offsets = [0, 0], sizes = [1, 14], strides = [1, 1]} : vector<1x15xf32> to vector<1x14xf32>
    %613 = vector.extract_strided_slice %611 {offsets = [0, 1], sizes = [1, 14], strides = [1, 1]} : vector<1x15xf32> to vector<1x14xf32>
    %614 = arith.maximumf %612, %613 : vector<1x14xf32>
    %615 = vector.extract_strided_slice %598 {offsets = [8, 0], sizes = [1, 15], strides = [1, 1]} : vector<14x15xf32> to vector<1x15xf32>
    %616 = vector.extract_strided_slice %615 {offsets = [0, 0], sizes = [1, 14], strides = [1, 1]} : vector<1x15xf32> to vector<1x14xf32>
    %617 = vector.extract_strided_slice %615 {offsets = [0, 1], sizes = [1, 14], strides = [1, 1]} : vector<1x15xf32> to vector<1x14xf32>
    %618 = arith.maximumf %616, %617 : vector<1x14xf32>
    %619 = vector.extract_strided_slice %598 {offsets = [10, 0], sizes = [1, 15], strides = [1, 1]} : vector<14x15xf32> to vector<1x15xf32>
    %620 = vector.extract_strided_slice %619 {offsets = [0, 0], sizes = [1, 14], strides = [1, 1]} : vector<1x15xf32> to vector<1x14xf32>
    %621 = vector.extract_strided_slice %619 {offsets = [0, 1], sizes = [1, 14], strides = [1, 1]} : vector<1x15xf32> to vector<1x14xf32>
    %622 = arith.maximumf %620, %621 : vector<1x14xf32>
    %623 = vector.extract_strided_slice %598 {offsets = [12, 0], sizes = [1, 15], strides = [1, 1]} : vector<14x15xf32> to vector<1x15xf32>
    %624 = vector.extract_strided_slice %623 {offsets = [0, 0], sizes = [1, 14], strides = [1, 1]} : vector<1x15xf32> to vector<1x14xf32>
    %625 = vector.extract_strided_slice %623 {offsets = [0, 1], sizes = [1, 14], strides = [1, 1]} : vector<1x15xf32> to vector<1x14xf32>
    %626 = arith.maximumf %624, %625 : vector<1x14xf32>
    %627 = vector.broadcast %586 : vector<1x1xf32> to vector<15x15xf32>
    %628 = arith.mulf %555, %627 : vector<15x15xf32>
    %629 = vector.broadcast %589 : vector<1x1xf32> to vector<15x15xf32>
    %630 = arith.addf %628, %629 : vector<15x15xf32>
    %cst_107 = arith.constant 0.000000e+00 : f32
    %631 = vector.broadcast %cst_107 : f32 to vector<15x15xf32>
    %632 = arith.maximumf %630, %631 : vector<15x15xf32>
    %633 = vector.extract_strided_slice %632 {offsets = [0, 0], sizes = [14, 15], strides = [1, 1]} : vector<15x15xf32> to vector<14x15xf32>
    %634 = vector.extract_strided_slice %632 {offsets = [1, 0], sizes = [14, 15], strides = [1, 1]} : vector<15x15xf32> to vector<14x15xf32>
    %635 = arith.maximumf %633, %634 : vector<14x15xf32>
    %636 = vector.extract_strided_slice %635 {offsets = [0, 0], sizes = [1, 15], strides = [1, 1]} : vector<14x15xf32> to vector<1x15xf32>
    %637 = vector.extract_strided_slice %636 {offsets = [0, 0], sizes = [1, 14], strides = [1, 1]} : vector<1x15xf32> to vector<1x14xf32>
    %638 = vector.extract_strided_slice %636 {offsets = [0, 1], sizes = [1, 14], strides = [1, 1]} : vector<1x15xf32> to vector<1x14xf32>
    %639 = arith.maximumf %637, %638 : vector<1x14xf32>
    %640 = vector.extract_strided_slice %635 {offsets = [2, 0], sizes = [1, 15], strides = [1, 1]} : vector<14x15xf32> to vector<1x15xf32>
    %641 = vector.extract_strided_slice %640 {offsets = [0, 0], sizes = [1, 14], strides = [1, 1]} : vector<1x15xf32> to vector<1x14xf32>
    %642 = vector.extract_strided_slice %640 {offsets = [0, 1], sizes = [1, 14], strides = [1, 1]} : vector<1x15xf32> to vector<1x14xf32>
    %643 = arith.maximumf %641, %642 : vector<1x14xf32>
    %644 = vector.extract_strided_slice %635 {offsets = [4, 0], sizes = [1, 15], strides = [1, 1]} : vector<14x15xf32> to vector<1x15xf32>
    %645 = vector.extract_strided_slice %644 {offsets = [0, 0], sizes = [1, 14], strides = [1, 1]} : vector<1x15xf32> to vector<1x14xf32>
    %646 = vector.extract_strided_slice %644 {offsets = [0, 1], sizes = [1, 14], strides = [1, 1]} : vector<1x15xf32> to vector<1x14xf32>
    %647 = arith.maximumf %645, %646 : vector<1x14xf32>
    %648 = vector.extract_strided_slice %635 {offsets = [6, 0], sizes = [1, 15], strides = [1, 1]} : vector<14x15xf32> to vector<1x15xf32>
    %649 = vector.extract_strided_slice %648 {offsets = [0, 0], sizes = [1, 14], strides = [1, 1]} : vector<1x15xf32> to vector<1x14xf32>
    %650 = vector.extract_strided_slice %648 {offsets = [0, 1], sizes = [1, 14], strides = [1, 1]} : vector<1x15xf32> to vector<1x14xf32>
    %651 = arith.maximumf %649, %650 : vector<1x14xf32>
    %652 = vector.extract_strided_slice %635 {offsets = [8, 0], sizes = [1, 15], strides = [1, 1]} : vector<14x15xf32> to vector<1x15xf32>
    %653 = vector.extract_strided_slice %652 {offsets = [0, 0], sizes = [1, 14], strides = [1, 1]} : vector<1x15xf32> to vector<1x14xf32>
    %654 = vector.extract_strided_slice %652 {offsets = [0, 1], sizes = [1, 14], strides = [1, 1]} : vector<1x15xf32> to vector<1x14xf32>
    %655 = arith.maximumf %653, %654 : vector<1x14xf32>
    %656 = vector.extract_strided_slice %635 {offsets = [10, 0], sizes = [1, 15], strides = [1, 1]} : vector<14x15xf32> to vector<1x15xf32>
    %657 = vector.extract_strided_slice %656 {offsets = [0, 0], sizes = [1, 14], strides = [1, 1]} : vector<1x15xf32> to vector<1x14xf32>
    %658 = vector.extract_strided_slice %656 {offsets = [0, 1], sizes = [1, 14], strides = [1, 1]} : vector<1x15xf32> to vector<1x14xf32>
    %659 = arith.maximumf %657, %658 : vector<1x14xf32>
    %660 = vector.extract_strided_slice %635 {offsets = [12, 0], sizes = [1, 15], strides = [1, 1]} : vector<14x15xf32> to vector<1x15xf32>
    %661 = vector.extract_strided_slice %660 {offsets = [0, 0], sizes = [1, 14], strides = [1, 1]} : vector<1x15xf32> to vector<1x14xf32>
    %662 = vector.extract_strided_slice %660 {offsets = [0, 1], sizes = [1, 14], strides = [1, 1]} : vector<1x15xf32> to vector<1x14xf32>
    %663 = arith.maximumf %661, %662 : vector<1x14xf32>
    %664 = vector.extract_strided_slice %108 {offsets = [0, 75], sizes = [15, 15], strides = [1, 1]} : vector<15x120xf32> to vector<15x15xf32>
    %665 = vector.extract_strided_slice %111 {offsets = [0, 75], sizes = [15, 15], strides = [1, 1]} : vector<15x120xf32> to vector<15x15xf32>
    %cst_108 = arith.constant dense<0.000000e+00> : vector<15xf32>
    %666 = vector.multi_reduction <add>, %664, %cst_108 [1] : vector<15x15xf32> to vector<15xf32>
    %667 = vector.shape_cast %666 : vector<15xf32> to vector<15x1xf32>
    %cst_109 = arith.constant dense<0.000000e+00> : vector<1xf32>
    %668 = vector.multi_reduction <add>, %667, %cst_109 [0] : vector<15x1xf32> to vector<1xf32>
    %669 = vector.shape_cast %668 : vector<1xf32> to vector<1x1xf32>
    %670 = arith.mulf %664, %664 : vector<15x15xf32>
    %cst_110 = arith.constant dense<0.000000e+00> : vector<15xf32>
    %671 = vector.multi_reduction <add>, %670, %cst_110 [1] : vector<15x15xf32> to vector<15xf32>
    %672 = vector.shape_cast %671 : vector<15xf32> to vector<15x1xf32>
    %cst_111 = arith.constant dense<0.000000e+00> : vector<1xf32>
    %673 = vector.multi_reduction <add>, %672, %cst_111 [0] : vector<15x1xf32> to vector<1xf32>
    %674 = vector.shape_cast %673 : vector<1xf32> to vector<1x1xf32>
    %cst_112 = arith.constant dense<0.000000e+00> : vector<15xf32>
    %675 = vector.multi_reduction <add>, %665, %cst_112 [1] : vector<15x15xf32> to vector<15xf32>
    %676 = vector.shape_cast %675 : vector<15xf32> to vector<15x1xf32>
    %cst_113 = arith.constant dense<0.000000e+00> : vector<1xf32>
    %677 = vector.multi_reduction <add>, %676, %cst_113 [0] : vector<15x1xf32> to vector<1xf32>
    %678 = vector.shape_cast %677 : vector<1xf32> to vector<1x1xf32>
    %679 = arith.mulf %665, %665 : vector<15x15xf32>
    %cst_114 = arith.constant dense<0.000000e+00> : vector<15xf32>
    %680 = vector.multi_reduction <add>, %679, %cst_114 [1] : vector<15x15xf32> to vector<15xf32>
    %681 = vector.shape_cast %680 : vector<15xf32> to vector<15x1xf32>
    %cst_115 = arith.constant dense<0.000000e+00> : vector<1xf32>
    %682 = vector.multi_reduction <add>, %681, %cst_115 [0] : vector<15x1xf32> to vector<1xf32>
    %683 = vector.shape_cast %682 : vector<1xf32> to vector<1x1xf32>
    %684 = arith.addf %669, %678 : vector<1x1xf32>
    %685 = arith.addf %674, %683 : vector<1x1xf32>
    %cst_116 = arith.constant 0.00222222228 : f32
    %686 = vector.broadcast %cst_116 : f32 to vector<1x1xf32>
    %687 = arith.mulf %684, %686 : vector<1x1xf32>
    %cst_117 = arith.constant 0.00222222228 : f32
    %688 = vector.broadcast %cst_117 : f32 to vector<1x1xf32>
    %689 = arith.mulf %685, %688 : vector<1x1xf32>
    %690 = arith.mulf %687, %687 : vector<1x1xf32>
    %691 = arith.subf %689, %690 : vector<1x1xf32>
    %692 = vector.extract_strided_slice %112 {offsets = [0, 5], sizes = [1, 1], strides = [1, 1]} : vector<1x8xf32> to vector<1x1xf32>
    %cst_118 = arith.constant 9.99999974E-6 : f32
    %693 = vector.broadcast %cst_118 : f32 to vector<1x1xf32>
    %694 = arith.addf %691, %693 : vector<1x1xf32>
    %695 = math.rsqrt %694 : vector<1x1xf32>
    %696 = arith.mulf %692, %695 : vector<1x1xf32>
    %697 = vector.extract_strided_slice %113 {offsets = [0, 5], sizes = [1, 1], strides = [1, 1]} : vector<1x8xf32> to vector<1x1xf32>
    %698 = arith.mulf %687, %696 : vector<1x1xf32>
    %699 = arith.subf %697, %698 : vector<1x1xf32>
    %700 = vector.broadcast %696 : vector<1x1xf32> to vector<15x15xf32>
    %701 = arith.mulf %664, %700 : vector<15x15xf32>
    %702 = vector.broadcast %699 : vector<1x1xf32> to vector<15x15xf32>
    %703 = arith.addf %701, %702 : vector<15x15xf32>
    %cst_119 = arith.constant 0.000000e+00 : f32
    %704 = vector.broadcast %cst_119 : f32 to vector<15x15xf32>
    %705 = arith.maximumf %703, %704 : vector<15x15xf32>
    %706 = vector.extract_strided_slice %705 {offsets = [0, 0], sizes = [14, 15], strides = [1, 1]} : vector<15x15xf32> to vector<14x15xf32>
    %707 = vector.extract_strided_slice %705 {offsets = [1, 0], sizes = [14, 15], strides = [1, 1]} : vector<15x15xf32> to vector<14x15xf32>
    %708 = arith.maximumf %706, %707 : vector<14x15xf32>
    %709 = vector.extract_strided_slice %708 {offsets = [0, 0], sizes = [1, 15], strides = [1, 1]} : vector<14x15xf32> to vector<1x15xf32>
    %710 = vector.extract_strided_slice %709 {offsets = [0, 0], sizes = [1, 14], strides = [1, 1]} : vector<1x15xf32> to vector<1x14xf32>
    %711 = vector.extract_strided_slice %709 {offsets = [0, 1], sizes = [1, 14], strides = [1, 1]} : vector<1x15xf32> to vector<1x14xf32>
    %712 = arith.maximumf %710, %711 : vector<1x14xf32>
    %713 = vector.extract_strided_slice %708 {offsets = [2, 0], sizes = [1, 15], strides = [1, 1]} : vector<14x15xf32> to vector<1x15xf32>
    %714 = vector.extract_strided_slice %713 {offsets = [0, 0], sizes = [1, 14], strides = [1, 1]} : vector<1x15xf32> to vector<1x14xf32>
    %715 = vector.extract_strided_slice %713 {offsets = [0, 1], sizes = [1, 14], strides = [1, 1]} : vector<1x15xf32> to vector<1x14xf32>
    %716 = arith.maximumf %714, %715 : vector<1x14xf32>
    %717 = vector.extract_strided_slice %708 {offsets = [4, 0], sizes = [1, 15], strides = [1, 1]} : vector<14x15xf32> to vector<1x15xf32>
    %718 = vector.extract_strided_slice %717 {offsets = [0, 0], sizes = [1, 14], strides = [1, 1]} : vector<1x15xf32> to vector<1x14xf32>
    %719 = vector.extract_strided_slice %717 {offsets = [0, 1], sizes = [1, 14], strides = [1, 1]} : vector<1x15xf32> to vector<1x14xf32>
    %720 = arith.maximumf %718, %719 : vector<1x14xf32>
    %721 = vector.extract_strided_slice %708 {offsets = [6, 0], sizes = [1, 15], strides = [1, 1]} : vector<14x15xf32> to vector<1x15xf32>
    %722 = vector.extract_strided_slice %721 {offsets = [0, 0], sizes = [1, 14], strides = [1, 1]} : vector<1x15xf32> to vector<1x14xf32>
    %723 = vector.extract_strided_slice %721 {offsets = [0, 1], sizes = [1, 14], strides = [1, 1]} : vector<1x15xf32> to vector<1x14xf32>
    %724 = arith.maximumf %722, %723 : vector<1x14xf32>
    %725 = vector.extract_strided_slice %708 {offsets = [8, 0], sizes = [1, 15], strides = [1, 1]} : vector<14x15xf32> to vector<1x15xf32>
    %726 = vector.extract_strided_slice %725 {offsets = [0, 0], sizes = [1, 14], strides = [1, 1]} : vector<1x15xf32> to vector<1x14xf32>
    %727 = vector.extract_strided_slice %725 {offsets = [0, 1], sizes = [1, 14], strides = [1, 1]} : vector<1x15xf32> to vector<1x14xf32>
    %728 = arith.maximumf %726, %727 : vector<1x14xf32>
    %729 = vector.extract_strided_slice %708 {offsets = [10, 0], sizes = [1, 15], strides = [1, 1]} : vector<14x15xf32> to vector<1x15xf32>
    %730 = vector.extract_strided_slice %729 {offsets = [0, 0], sizes = [1, 14], strides = [1, 1]} : vector<1x15xf32> to vector<1x14xf32>
    %731 = vector.extract_strided_slice %729 {offsets = [0, 1], sizes = [1, 14], strides = [1, 1]} : vector<1x15xf32> to vector<1x14xf32>
    %732 = arith.maximumf %730, %731 : vector<1x14xf32>
    %733 = vector.extract_strided_slice %708 {offsets = [12, 0], sizes = [1, 15], strides = [1, 1]} : vector<14x15xf32> to vector<1x15xf32>
    %734 = vector.extract_strided_slice %733 {offsets = [0, 0], sizes = [1, 14], strides = [1, 1]} : vector<1x15xf32> to vector<1x14xf32>
    %735 = vector.extract_strided_slice %733 {offsets = [0, 1], sizes = [1, 14], strides = [1, 1]} : vector<1x15xf32> to vector<1x14xf32>
    %736 = arith.maximumf %734, %735 : vector<1x14xf32>
    %737 = vector.broadcast %696 : vector<1x1xf32> to vector<15x15xf32>
    %738 = arith.mulf %665, %737 : vector<15x15xf32>
    %739 = vector.broadcast %699 : vector<1x1xf32> to vector<15x15xf32>
    %740 = arith.addf %738, %739 : vector<15x15xf32>
    %cst_120 = arith.constant 0.000000e+00 : f32
    %741 = vector.broadcast %cst_120 : f32 to vector<15x15xf32>
    %742 = arith.maximumf %740, %741 : vector<15x15xf32>
    %743 = vector.extract_strided_slice %742 {offsets = [0, 0], sizes = [14, 15], strides = [1, 1]} : vector<15x15xf32> to vector<14x15xf32>
    %744 = vector.extract_strided_slice %742 {offsets = [1, 0], sizes = [14, 15], strides = [1, 1]} : vector<15x15xf32> to vector<14x15xf32>
    %745 = arith.maximumf %743, %744 : vector<14x15xf32>
    %746 = vector.extract_strided_slice %745 {offsets = [0, 0], sizes = [1, 15], strides = [1, 1]} : vector<14x15xf32> to vector<1x15xf32>
    %747 = vector.extract_strided_slice %746 {offsets = [0, 0], sizes = [1, 14], strides = [1, 1]} : vector<1x15xf32> to vector<1x14xf32>
    %748 = vector.extract_strided_slice %746 {offsets = [0, 1], sizes = [1, 14], strides = [1, 1]} : vector<1x15xf32> to vector<1x14xf32>
    %749 = arith.maximumf %747, %748 : vector<1x14xf32>
    %750 = vector.extract_strided_slice %745 {offsets = [2, 0], sizes = [1, 15], strides = [1, 1]} : vector<14x15xf32> to vector<1x15xf32>
    %751 = vector.extract_strided_slice %750 {offsets = [0, 0], sizes = [1, 14], strides = [1, 1]} : vector<1x15xf32> to vector<1x14xf32>
    %752 = vector.extract_strided_slice %750 {offsets = [0, 1], sizes = [1, 14], strides = [1, 1]} : vector<1x15xf32> to vector<1x14xf32>
    %753 = arith.maximumf %751, %752 : vector<1x14xf32>
    %754 = vector.extract_strided_slice %745 {offsets = [4, 0], sizes = [1, 15], strides = [1, 1]} : vector<14x15xf32> to vector<1x15xf32>
    %755 = vector.extract_strided_slice %754 {offsets = [0, 0], sizes = [1, 14], strides = [1, 1]} : vector<1x15xf32> to vector<1x14xf32>
    %756 = vector.extract_strided_slice %754 {offsets = [0, 1], sizes = [1, 14], strides = [1, 1]} : vector<1x15xf32> to vector<1x14xf32>
    %757 = arith.maximumf %755, %756 : vector<1x14xf32>
    %758 = vector.extract_strided_slice %745 {offsets = [6, 0], sizes = [1, 15], strides = [1, 1]} : vector<14x15xf32> to vector<1x15xf32>
    %759 = vector.extract_strided_slice %758 {offsets = [0, 0], sizes = [1, 14], strides = [1, 1]} : vector<1x15xf32> to vector<1x14xf32>
    %760 = vector.extract_strided_slice %758 {offsets = [0, 1], sizes = [1, 14], strides = [1, 1]} : vector<1x15xf32> to vector<1x14xf32>
    %761 = arith.maximumf %759, %760 : vector<1x14xf32>
    %762 = vector.extract_strided_slice %745 {offsets = [8, 0], sizes = [1, 15], strides = [1, 1]} : vector<14x15xf32> to vector<1x15xf32>
    %763 = vector.extract_strided_slice %762 {offsets = [0, 0], sizes = [1, 14], strides = [1, 1]} : vector<1x15xf32> to vector<1x14xf32>
    %764 = vector.extract_strided_slice %762 {offsets = [0, 1], sizes = [1, 14], strides = [1, 1]} : vector<1x15xf32> to vector<1x14xf32>
    %765 = arith.maximumf %763, %764 : vector<1x14xf32>
    %766 = vector.extract_strided_slice %745 {offsets = [10, 0], sizes = [1, 15], strides = [1, 1]} : vector<14x15xf32> to vector<1x15xf32>
    %767 = vector.extract_strided_slice %766 {offsets = [0, 0], sizes = [1, 14], strides = [1, 1]} : vector<1x15xf32> to vector<1x14xf32>
    %768 = vector.extract_strided_slice %766 {offsets = [0, 1], sizes = [1, 14], strides = [1, 1]} : vector<1x15xf32> to vector<1x14xf32>
    %769 = arith.maximumf %767, %768 : vector<1x14xf32>
    %770 = vector.extract_strided_slice %745 {offsets = [12, 0], sizes = [1, 15], strides = [1, 1]} : vector<14x15xf32> to vector<1x15xf32>
    %771 = vector.extract_strided_slice %770 {offsets = [0, 0], sizes = [1, 14], strides = [1, 1]} : vector<1x15xf32> to vector<1x14xf32>
    %772 = vector.extract_strided_slice %770 {offsets = [0, 1], sizes = [1, 14], strides = [1, 1]} : vector<1x15xf32> to vector<1x14xf32>
    %773 = arith.maximumf %771, %772 : vector<1x14xf32>
    %774 = vector.extract_strided_slice %108 {offsets = [0, 90], sizes = [15, 15], strides = [1, 1]} : vector<15x120xf32> to vector<15x15xf32>
    %775 = vector.extract_strided_slice %111 {offsets = [0, 90], sizes = [15, 15], strides = [1, 1]} : vector<15x120xf32> to vector<15x15xf32>
    %cst_121 = arith.constant dense<0.000000e+00> : vector<15xf32>
    %776 = vector.multi_reduction <add>, %774, %cst_121 [1] : vector<15x15xf32> to vector<15xf32>
    %777 = vector.shape_cast %776 : vector<15xf32> to vector<15x1xf32>
    %cst_122 = arith.constant dense<0.000000e+00> : vector<1xf32>
    %778 = vector.multi_reduction <add>, %777, %cst_122 [0] : vector<15x1xf32> to vector<1xf32>
    %779 = vector.shape_cast %778 : vector<1xf32> to vector<1x1xf32>
    %780 = arith.mulf %774, %774 : vector<15x15xf32>
    %cst_123 = arith.constant dense<0.000000e+00> : vector<15xf32>
    %781 = vector.multi_reduction <add>, %780, %cst_123 [1] : vector<15x15xf32> to vector<15xf32>
    %782 = vector.shape_cast %781 : vector<15xf32> to vector<15x1xf32>
    %cst_124 = arith.constant dense<0.000000e+00> : vector<1xf32>
    %783 = vector.multi_reduction <add>, %782, %cst_124 [0] : vector<15x1xf32> to vector<1xf32>
    %784 = vector.shape_cast %783 : vector<1xf32> to vector<1x1xf32>
    %cst_125 = arith.constant dense<0.000000e+00> : vector<15xf32>
    %785 = vector.multi_reduction <add>, %775, %cst_125 [1] : vector<15x15xf32> to vector<15xf32>
    %786 = vector.shape_cast %785 : vector<15xf32> to vector<15x1xf32>
    %cst_126 = arith.constant dense<0.000000e+00> : vector<1xf32>
    %787 = vector.multi_reduction <add>, %786, %cst_126 [0] : vector<15x1xf32> to vector<1xf32>
    %788 = vector.shape_cast %787 : vector<1xf32> to vector<1x1xf32>
    %789 = arith.mulf %775, %775 : vector<15x15xf32>
    %cst_127 = arith.constant dense<0.000000e+00> : vector<15xf32>
    %790 = vector.multi_reduction <add>, %789, %cst_127 [1] : vector<15x15xf32> to vector<15xf32>
    %791 = vector.shape_cast %790 : vector<15xf32> to vector<15x1xf32>
    %cst_128 = arith.constant dense<0.000000e+00> : vector<1xf32>
    %792 = vector.multi_reduction <add>, %791, %cst_128 [0] : vector<15x1xf32> to vector<1xf32>
    %793 = vector.shape_cast %792 : vector<1xf32> to vector<1x1xf32>
    %794 = arith.addf %779, %788 : vector<1x1xf32>
    %795 = arith.addf %784, %793 : vector<1x1xf32>
    %cst_129 = arith.constant 0.00222222228 : f32
    %796 = vector.broadcast %cst_129 : f32 to vector<1x1xf32>
    %797 = arith.mulf %794, %796 : vector<1x1xf32>
    %cst_130 = arith.constant 0.00222222228 : f32
    %798 = vector.broadcast %cst_130 : f32 to vector<1x1xf32>
    %799 = arith.mulf %795, %798 : vector<1x1xf32>
    %800 = arith.mulf %797, %797 : vector<1x1xf32>
    %801 = arith.subf %799, %800 : vector<1x1xf32>
    %802 = vector.extract_strided_slice %112 {offsets = [0, 6], sizes = [1, 1], strides = [1, 1]} : vector<1x8xf32> to vector<1x1xf32>
    %cst_131 = arith.constant 9.99999974E-6 : f32
    %803 = vector.broadcast %cst_131 : f32 to vector<1x1xf32>
    %804 = arith.addf %801, %803 : vector<1x1xf32>
    %805 = math.rsqrt %804 : vector<1x1xf32>
    %806 = arith.mulf %802, %805 : vector<1x1xf32>
    %807 = vector.extract_strided_slice %113 {offsets = [0, 6], sizes = [1, 1], strides = [1, 1]} : vector<1x8xf32> to vector<1x1xf32>
    %808 = arith.mulf %797, %806 : vector<1x1xf32>
    %809 = arith.subf %807, %808 : vector<1x1xf32>
    %810 = vector.broadcast %806 : vector<1x1xf32> to vector<15x15xf32>
    %811 = arith.mulf %774, %810 : vector<15x15xf32>
    %812 = vector.broadcast %809 : vector<1x1xf32> to vector<15x15xf32>
    %813 = arith.addf %811, %812 : vector<15x15xf32>
    %cst_132 = arith.constant 0.000000e+00 : f32
    %814 = vector.broadcast %cst_132 : f32 to vector<15x15xf32>
    %815 = arith.maximumf %813, %814 : vector<15x15xf32>
    %816 = vector.extract_strided_slice %815 {offsets = [0, 0], sizes = [14, 15], strides = [1, 1]} : vector<15x15xf32> to vector<14x15xf32>
    %817 = vector.extract_strided_slice %815 {offsets = [1, 0], sizes = [14, 15], strides = [1, 1]} : vector<15x15xf32> to vector<14x15xf32>
    %818 = arith.maximumf %816, %817 : vector<14x15xf32>
    %819 = vector.extract_strided_slice %818 {offsets = [0, 0], sizes = [1, 15], strides = [1, 1]} : vector<14x15xf32> to vector<1x15xf32>
    %820 = vector.extract_strided_slice %819 {offsets = [0, 0], sizes = [1, 14], strides = [1, 1]} : vector<1x15xf32> to vector<1x14xf32>
    %821 = vector.extract_strided_slice %819 {offsets = [0, 1], sizes = [1, 14], strides = [1, 1]} : vector<1x15xf32> to vector<1x14xf32>
    %822 = arith.maximumf %820, %821 : vector<1x14xf32>
    %823 = vector.extract_strided_slice %818 {offsets = [2, 0], sizes = [1, 15], strides = [1, 1]} : vector<14x15xf32> to vector<1x15xf32>
    %824 = vector.extract_strided_slice %823 {offsets = [0, 0], sizes = [1, 14], strides = [1, 1]} : vector<1x15xf32> to vector<1x14xf32>
    %825 = vector.extract_strided_slice %823 {offsets = [0, 1], sizes = [1, 14], strides = [1, 1]} : vector<1x15xf32> to vector<1x14xf32>
    %826 = arith.maximumf %824, %825 : vector<1x14xf32>
    %827 = vector.extract_strided_slice %818 {offsets = [4, 0], sizes = [1, 15], strides = [1, 1]} : vector<14x15xf32> to vector<1x15xf32>
    %828 = vector.extract_strided_slice %827 {offsets = [0, 0], sizes = [1, 14], strides = [1, 1]} : vector<1x15xf32> to vector<1x14xf32>
    %829 = vector.extract_strided_slice %827 {offsets = [0, 1], sizes = [1, 14], strides = [1, 1]} : vector<1x15xf32> to vector<1x14xf32>
    %830 = arith.maximumf %828, %829 : vector<1x14xf32>
    %831 = vector.extract_strided_slice %818 {offsets = [6, 0], sizes = [1, 15], strides = [1, 1]} : vector<14x15xf32> to vector<1x15xf32>
    %832 = vector.extract_strided_slice %831 {offsets = [0, 0], sizes = [1, 14], strides = [1, 1]} : vector<1x15xf32> to vector<1x14xf32>
    %833 = vector.extract_strided_slice %831 {offsets = [0, 1], sizes = [1, 14], strides = [1, 1]} : vector<1x15xf32> to vector<1x14xf32>
    %834 = arith.maximumf %832, %833 : vector<1x14xf32>
    %835 = vector.extract_strided_slice %818 {offsets = [8, 0], sizes = [1, 15], strides = [1, 1]} : vector<14x15xf32> to vector<1x15xf32>
    %836 = vector.extract_strided_slice %835 {offsets = [0, 0], sizes = [1, 14], strides = [1, 1]} : vector<1x15xf32> to vector<1x14xf32>
    %837 = vector.extract_strided_slice %835 {offsets = [0, 1], sizes = [1, 14], strides = [1, 1]} : vector<1x15xf32> to vector<1x14xf32>
    %838 = arith.maximumf %836, %837 : vector<1x14xf32>
    %839 = vector.extract_strided_slice %818 {offsets = [10, 0], sizes = [1, 15], strides = [1, 1]} : vector<14x15xf32> to vector<1x15xf32>
    %840 = vector.extract_strided_slice %839 {offsets = [0, 0], sizes = [1, 14], strides = [1, 1]} : vector<1x15xf32> to vector<1x14xf32>
    %841 = vector.extract_strided_slice %839 {offsets = [0, 1], sizes = [1, 14], strides = [1, 1]} : vector<1x15xf32> to vector<1x14xf32>
    %842 = arith.maximumf %840, %841 : vector<1x14xf32>
    %843 = vector.extract_strided_slice %818 {offsets = [12, 0], sizes = [1, 15], strides = [1, 1]} : vector<14x15xf32> to vector<1x15xf32>
    %844 = vector.extract_strided_slice %843 {offsets = [0, 0], sizes = [1, 14], strides = [1, 1]} : vector<1x15xf32> to vector<1x14xf32>
    %845 = vector.extract_strided_slice %843 {offsets = [0, 1], sizes = [1, 14], strides = [1, 1]} : vector<1x15xf32> to vector<1x14xf32>
    %846 = arith.maximumf %844, %845 : vector<1x14xf32>
    %847 = vector.broadcast %806 : vector<1x1xf32> to vector<15x15xf32>
    %848 = arith.mulf %775, %847 : vector<15x15xf32>
    %849 = vector.broadcast %809 : vector<1x1xf32> to vector<15x15xf32>
    %850 = arith.addf %848, %849 : vector<15x15xf32>
    %cst_133 = arith.constant 0.000000e+00 : f32
    %851 = vector.broadcast %cst_133 : f32 to vector<15x15xf32>
    %852 = arith.maximumf %850, %851 : vector<15x15xf32>
    %853 = vector.extract_strided_slice %852 {offsets = [0, 0], sizes = [14, 15], strides = [1, 1]} : vector<15x15xf32> to vector<14x15xf32>
    %854 = vector.extract_strided_slice %852 {offsets = [1, 0], sizes = [14, 15], strides = [1, 1]} : vector<15x15xf32> to vector<14x15xf32>
    %855 = arith.maximumf %853, %854 : vector<14x15xf32>
    %856 = vector.extract_strided_slice %855 {offsets = [0, 0], sizes = [1, 15], strides = [1, 1]} : vector<14x15xf32> to vector<1x15xf32>
    %857 = vector.extract_strided_slice %856 {offsets = [0, 0], sizes = [1, 14], strides = [1, 1]} : vector<1x15xf32> to vector<1x14xf32>
    %858 = vector.extract_strided_slice %856 {offsets = [0, 1], sizes = [1, 14], strides = [1, 1]} : vector<1x15xf32> to vector<1x14xf32>
    %859 = arith.maximumf %857, %858 : vector<1x14xf32>
    %860 = vector.extract_strided_slice %855 {offsets = [2, 0], sizes = [1, 15], strides = [1, 1]} : vector<14x15xf32> to vector<1x15xf32>
    %861 = vector.extract_strided_slice %860 {offsets = [0, 0], sizes = [1, 14], strides = [1, 1]} : vector<1x15xf32> to vector<1x14xf32>
    %862 = vector.extract_strided_slice %860 {offsets = [0, 1], sizes = [1, 14], strides = [1, 1]} : vector<1x15xf32> to vector<1x14xf32>
    %863 = arith.maximumf %861, %862 : vector<1x14xf32>
    %864 = vector.extract_strided_slice %855 {offsets = [4, 0], sizes = [1, 15], strides = [1, 1]} : vector<14x15xf32> to vector<1x15xf32>
    %865 = vector.extract_strided_slice %864 {offsets = [0, 0], sizes = [1, 14], strides = [1, 1]} : vector<1x15xf32> to vector<1x14xf32>
    %866 = vector.extract_strided_slice %864 {offsets = [0, 1], sizes = [1, 14], strides = [1, 1]} : vector<1x15xf32> to vector<1x14xf32>
    %867 = arith.maximumf %865, %866 : vector<1x14xf32>
    %868 = vector.extract_strided_slice %855 {offsets = [6, 0], sizes = [1, 15], strides = [1, 1]} : vector<14x15xf32> to vector<1x15xf32>
    %869 = vector.extract_strided_slice %868 {offsets = [0, 0], sizes = [1, 14], strides = [1, 1]} : vector<1x15xf32> to vector<1x14xf32>
    %870 = vector.extract_strided_slice %868 {offsets = [0, 1], sizes = [1, 14], strides = [1, 1]} : vector<1x15xf32> to vector<1x14xf32>
    %871 = arith.maximumf %869, %870 : vector<1x14xf32>
    %872 = vector.extract_strided_slice %855 {offsets = [8, 0], sizes = [1, 15], strides = [1, 1]} : vector<14x15xf32> to vector<1x15xf32>
    %873 = vector.extract_strided_slice %872 {offsets = [0, 0], sizes = [1, 14], strides = [1, 1]} : vector<1x15xf32> to vector<1x14xf32>
    %874 = vector.extract_strided_slice %872 {offsets = [0, 1], sizes = [1, 14], strides = [1, 1]} : vector<1x15xf32> to vector<1x14xf32>
    %875 = arith.maximumf %873, %874 : vector<1x14xf32>
    %876 = vector.extract_strided_slice %855 {offsets = [10, 0], sizes = [1, 15], strides = [1, 1]} : vector<14x15xf32> to vector<1x15xf32>
    %877 = vector.extract_strided_slice %876 {offsets = [0, 0], sizes = [1, 14], strides = [1, 1]} : vector<1x15xf32> to vector<1x14xf32>
    %878 = vector.extract_strided_slice %876 {offsets = [0, 1], sizes = [1, 14], strides = [1, 1]} : vector<1x15xf32> to vector<1x14xf32>
    %879 = arith.maximumf %877, %878 : vector<1x14xf32>
    %880 = vector.extract_strided_slice %855 {offsets = [12, 0], sizes = [1, 15], strides = [1, 1]} : vector<14x15xf32> to vector<1x15xf32>
    %881 = vector.extract_strided_slice %880 {offsets = [0, 0], sizes = [1, 14], strides = [1, 1]} : vector<1x15xf32> to vector<1x14xf32>
    %882 = vector.extract_strided_slice %880 {offsets = [0, 1], sizes = [1, 14], strides = [1, 1]} : vector<1x15xf32> to vector<1x14xf32>
    %883 = arith.maximumf %881, %882 : vector<1x14xf32>
    %884 = vector.extract_strided_slice %108 {offsets = [0, 105], sizes = [15, 15], strides = [1, 1]} : vector<15x120xf32> to vector<15x15xf32>
    %885 = vector.extract_strided_slice %111 {offsets = [0, 105], sizes = [15, 15], strides = [1, 1]} : vector<15x120xf32> to vector<15x15xf32>
    %cst_134 = arith.constant dense<0.000000e+00> : vector<15xf32>
    %886 = vector.multi_reduction <add>, %884, %cst_134 [1] : vector<15x15xf32> to vector<15xf32>
    %887 = vector.shape_cast %886 : vector<15xf32> to vector<15x1xf32>
    %cst_135 = arith.constant dense<0.000000e+00> : vector<1xf32>
    %888 = vector.multi_reduction <add>, %887, %cst_135 [0] : vector<15x1xf32> to vector<1xf32>
    %889 = vector.shape_cast %888 : vector<1xf32> to vector<1x1xf32>
    %890 = arith.mulf %884, %884 : vector<15x15xf32>
    %cst_136 = arith.constant dense<0.000000e+00> : vector<15xf32>
    %891 = vector.multi_reduction <add>, %890, %cst_136 [1] : vector<15x15xf32> to vector<15xf32>
    %892 = vector.shape_cast %891 : vector<15xf32> to vector<15x1xf32>
    %cst_137 = arith.constant dense<0.000000e+00> : vector<1xf32>
    %893 = vector.multi_reduction <add>, %892, %cst_137 [0] : vector<15x1xf32> to vector<1xf32>
    %894 = vector.shape_cast %893 : vector<1xf32> to vector<1x1xf32>
    %cst_138 = arith.constant dense<0.000000e+00> : vector<15xf32>
    %895 = vector.multi_reduction <add>, %885, %cst_138 [1] : vector<15x15xf32> to vector<15xf32>
    %896 = vector.shape_cast %895 : vector<15xf32> to vector<15x1xf32>
    %cst_139 = arith.constant dense<0.000000e+00> : vector<1xf32>
    %897 = vector.multi_reduction <add>, %896, %cst_139 [0] : vector<15x1xf32> to vector<1xf32>
    %898 = vector.shape_cast %897 : vector<1xf32> to vector<1x1xf32>
    %899 = arith.mulf %885, %885 : vector<15x15xf32>
    %cst_140 = arith.constant dense<0.000000e+00> : vector<15xf32>
    %900 = vector.multi_reduction <add>, %899, %cst_140 [1] : vector<15x15xf32> to vector<15xf32>
    %901 = vector.shape_cast %900 : vector<15xf32> to vector<15x1xf32>
    %cst_141 = arith.constant dense<0.000000e+00> : vector<1xf32>
    %902 = vector.multi_reduction <add>, %901, %cst_141 [0] : vector<15x1xf32> to vector<1xf32>
    %903 = vector.shape_cast %902 : vector<1xf32> to vector<1x1xf32>
    %904 = arith.addf %889, %898 : vector<1x1xf32>
    %905 = arith.addf %894, %903 : vector<1x1xf32>
    %cst_142 = arith.constant 0.00222222228 : f32
    %906 = vector.broadcast %cst_142 : f32 to vector<1x1xf32>
    %907 = arith.mulf %904, %906 : vector<1x1xf32>
    %cst_143 = arith.constant 0.00222222228 : f32
    %908 = vector.broadcast %cst_143 : f32 to vector<1x1xf32>
    %909 = arith.mulf %905, %908 : vector<1x1xf32>
    %910 = arith.mulf %907, %907 : vector<1x1xf32>
    %911 = arith.subf %909, %910 : vector<1x1xf32>
    %912 = vector.extract_strided_slice %112 {offsets = [0, 7], sizes = [1, 1], strides = [1, 1]} : vector<1x8xf32> to vector<1x1xf32>
    %cst_144 = arith.constant 9.99999974E-6 : f32
    %913 = vector.broadcast %cst_144 : f32 to vector<1x1xf32>
    %914 = arith.addf %911, %913 : vector<1x1xf32>
    %915 = math.rsqrt %914 : vector<1x1xf32>
    %916 = arith.mulf %912, %915 : vector<1x1xf32>
    %917 = vector.extract_strided_slice %113 {offsets = [0, 7], sizes = [1, 1], strides = [1, 1]} : vector<1x8xf32> to vector<1x1xf32>
    %918 = arith.mulf %907, %916 : vector<1x1xf32>
    %919 = arith.subf %917, %918 : vector<1x1xf32>
    %920 = vector.broadcast %916 : vector<1x1xf32> to vector<15x15xf32>
    %921 = arith.mulf %884, %920 : vector<15x15xf32>
    %922 = vector.broadcast %919 : vector<1x1xf32> to vector<15x15xf32>
    %923 = arith.addf %921, %922 : vector<15x15xf32>
    %cst_145 = arith.constant 0.000000e+00 : f32
    %924 = vector.broadcast %cst_145 : f32 to vector<15x15xf32>
    %925 = arith.maximumf %923, %924 : vector<15x15xf32>
    %926 = vector.extract_strided_slice %925 {offsets = [0, 0], sizes = [14, 15], strides = [1, 1]} : vector<15x15xf32> to vector<14x15xf32>
    %927 = vector.extract_strided_slice %925 {offsets = [1, 0], sizes = [14, 15], strides = [1, 1]} : vector<15x15xf32> to vector<14x15xf32>
    %928 = arith.maximumf %926, %927 : vector<14x15xf32>
    %929 = vector.extract_strided_slice %928 {offsets = [0, 0], sizes = [1, 15], strides = [1, 1]} : vector<14x15xf32> to vector<1x15xf32>
    %930 = vector.extract_strided_slice %929 {offsets = [0, 0], sizes = [1, 14], strides = [1, 1]} : vector<1x15xf32> to vector<1x14xf32>
    %931 = vector.extract_strided_slice %929 {offsets = [0, 1], sizes = [1, 14], strides = [1, 1]} : vector<1x15xf32> to vector<1x14xf32>
    %932 = arith.maximumf %930, %931 : vector<1x14xf32>
    %933 = vector.extract_strided_slice %928 {offsets = [2, 0], sizes = [1, 15], strides = [1, 1]} : vector<14x15xf32> to vector<1x15xf32>
    %934 = vector.extract_strided_slice %933 {offsets = [0, 0], sizes = [1, 14], strides = [1, 1]} : vector<1x15xf32> to vector<1x14xf32>
    %935 = vector.extract_strided_slice %933 {offsets = [0, 1], sizes = [1, 14], strides = [1, 1]} : vector<1x15xf32> to vector<1x14xf32>
    %936 = arith.maximumf %934, %935 : vector<1x14xf32>
    %937 = vector.extract_strided_slice %928 {offsets = [4, 0], sizes = [1, 15], strides = [1, 1]} : vector<14x15xf32> to vector<1x15xf32>
    %938 = vector.extract_strided_slice %937 {offsets = [0, 0], sizes = [1, 14], strides = [1, 1]} : vector<1x15xf32> to vector<1x14xf32>
    %939 = vector.extract_strided_slice %937 {offsets = [0, 1], sizes = [1, 14], strides = [1, 1]} : vector<1x15xf32> to vector<1x14xf32>
    %940 = arith.maximumf %938, %939 : vector<1x14xf32>
    %941 = vector.extract_strided_slice %928 {offsets = [6, 0], sizes = [1, 15], strides = [1, 1]} : vector<14x15xf32> to vector<1x15xf32>
    %942 = vector.extract_strided_slice %941 {offsets = [0, 0], sizes = [1, 14], strides = [1, 1]} : vector<1x15xf32> to vector<1x14xf32>
    %943 = vector.extract_strided_slice %941 {offsets = [0, 1], sizes = [1, 14], strides = [1, 1]} : vector<1x15xf32> to vector<1x14xf32>
    %944 = arith.maximumf %942, %943 : vector<1x14xf32>
    %945 = vector.extract_strided_slice %928 {offsets = [8, 0], sizes = [1, 15], strides = [1, 1]} : vector<14x15xf32> to vector<1x15xf32>
    %946 = vector.extract_strided_slice %945 {offsets = [0, 0], sizes = [1, 14], strides = [1, 1]} : vector<1x15xf32> to vector<1x14xf32>
    %947 = vector.extract_strided_slice %945 {offsets = [0, 1], sizes = [1, 14], strides = [1, 1]} : vector<1x15xf32> to vector<1x14xf32>
    %948 = arith.maximumf %946, %947 : vector<1x14xf32>
    %949 = vector.extract_strided_slice %928 {offsets = [10, 0], sizes = [1, 15], strides = [1, 1]} : vector<14x15xf32> to vector<1x15xf32>
    %950 = vector.extract_strided_slice %949 {offsets = [0, 0], sizes = [1, 14], strides = [1, 1]} : vector<1x15xf32> to vector<1x14xf32>
    %951 = vector.extract_strided_slice %949 {offsets = [0, 1], sizes = [1, 14], strides = [1, 1]} : vector<1x15xf32> to vector<1x14xf32>
    %952 = arith.maximumf %950, %951 : vector<1x14xf32>
    %953 = vector.extract_strided_slice %928 {offsets = [12, 0], sizes = [1, 15], strides = [1, 1]} : vector<14x15xf32> to vector<1x15xf32>
    %954 = vector.extract_strided_slice %953 {offsets = [0, 0], sizes = [1, 14], strides = [1, 1]} : vector<1x15xf32> to vector<1x14xf32>
    %955 = vector.extract_strided_slice %953 {offsets = [0, 1], sizes = [1, 14], strides = [1, 1]} : vector<1x15xf32> to vector<1x14xf32>
    %956 = arith.maximumf %954, %955 : vector<1x14xf32>
    %957 = vector.broadcast %916 : vector<1x1xf32> to vector<15x15xf32>
    %958 = arith.mulf %885, %957 : vector<15x15xf32>
    %959 = vector.broadcast %919 : vector<1x1xf32> to vector<15x15xf32>
    %960 = arith.addf %958, %959 : vector<15x15xf32>
    %cst_146 = arith.constant 0.000000e+00 : f32
    %961 = vector.broadcast %cst_146 : f32 to vector<15x15xf32>
    %962 = arith.maximumf %960, %961 : vector<15x15xf32>
    %963 = vector.extract_strided_slice %962 {offsets = [0, 0], sizes = [14, 15], strides = [1, 1]} : vector<15x15xf32> to vector<14x15xf32>
    %964 = vector.extract_strided_slice %962 {offsets = [1, 0], sizes = [14, 15], strides = [1, 1]} : vector<15x15xf32> to vector<14x15xf32>
    %965 = arith.maximumf %963, %964 : vector<14x15xf32>
    %966 = vector.extract_strided_slice %965 {offsets = [0, 0], sizes = [1, 15], strides = [1, 1]} : vector<14x15xf32> to vector<1x15xf32>
    %967 = vector.extract_strided_slice %966 {offsets = [0, 0], sizes = [1, 14], strides = [1, 1]} : vector<1x15xf32> to vector<1x14xf32>
    %968 = vector.extract_strided_slice %966 {offsets = [0, 1], sizes = [1, 14], strides = [1, 1]} : vector<1x15xf32> to vector<1x14xf32>
    %969 = arith.maximumf %967, %968 : vector<1x14xf32>
    %970 = vector.extract_strided_slice %965 {offsets = [2, 0], sizes = [1, 15], strides = [1, 1]} : vector<14x15xf32> to vector<1x15xf32>
    %971 = vector.extract_strided_slice %970 {offsets = [0, 0], sizes = [1, 14], strides = [1, 1]} : vector<1x15xf32> to vector<1x14xf32>
    %972 = vector.extract_strided_slice %970 {offsets = [0, 1], sizes = [1, 14], strides = [1, 1]} : vector<1x15xf32> to vector<1x14xf32>
    %973 = arith.maximumf %971, %972 : vector<1x14xf32>
    %974 = vector.extract_strided_slice %965 {offsets = [4, 0], sizes = [1, 15], strides = [1, 1]} : vector<14x15xf32> to vector<1x15xf32>
    %975 = vector.extract_strided_slice %974 {offsets = [0, 0], sizes = [1, 14], strides = [1, 1]} : vector<1x15xf32> to vector<1x14xf32>
    %976 = vector.extract_strided_slice %974 {offsets = [0, 1], sizes = [1, 14], strides = [1, 1]} : vector<1x15xf32> to vector<1x14xf32>
    %977 = arith.maximumf %975, %976 : vector<1x14xf32>
    %978 = vector.extract_strided_slice %965 {offsets = [6, 0], sizes = [1, 15], strides = [1, 1]} : vector<14x15xf32> to vector<1x15xf32>
    %979 = vector.extract_strided_slice %978 {offsets = [0, 0], sizes = [1, 14], strides = [1, 1]} : vector<1x15xf32> to vector<1x14xf32>
    %980 = vector.extract_strided_slice %978 {offsets = [0, 1], sizes = [1, 14], strides = [1, 1]} : vector<1x15xf32> to vector<1x14xf32>
    %981 = arith.maximumf %979, %980 : vector<1x14xf32>
    %982 = vector.extract_strided_slice %965 {offsets = [8, 0], sizes = [1, 15], strides = [1, 1]} : vector<14x15xf32> to vector<1x15xf32>
    %983 = vector.extract_strided_slice %982 {offsets = [0, 0], sizes = [1, 14], strides = [1, 1]} : vector<1x15xf32> to vector<1x14xf32>
    %984 = vector.extract_strided_slice %982 {offsets = [0, 1], sizes = [1, 14], strides = [1, 1]} : vector<1x15xf32> to vector<1x14xf32>
    %985 = arith.maximumf %983, %984 : vector<1x14xf32>
    %986 = vector.extract_strided_slice %965 {offsets = [10, 0], sizes = [1, 15], strides = [1, 1]} : vector<14x15xf32> to vector<1x15xf32>
    %987 = vector.extract_strided_slice %986 {offsets = [0, 0], sizes = [1, 14], strides = [1, 1]} : vector<1x15xf32> to vector<1x14xf32>
    %988 = vector.extract_strided_slice %986 {offsets = [0, 1], sizes = [1, 14], strides = [1, 1]} : vector<1x15xf32> to vector<1x14xf32>
    %989 = arith.maximumf %987, %988 : vector<1x14xf32>
    %990 = vector.extract_strided_slice %965 {offsets = [12, 0], sizes = [1, 15], strides = [1, 1]} : vector<14x15xf32> to vector<1x15xf32>
    %991 = vector.extract_strided_slice %990 {offsets = [0, 0], sizes = [1, 14], strides = [1, 1]} : vector<1x15xf32> to vector<1x14xf32>
    %992 = vector.extract_strided_slice %990 {offsets = [0, 1], sizes = [1, 14], strides = [1, 1]} : vector<1x15xf32> to vector<1x14xf32>
    %993 = arith.maximumf %991, %992 : vector<1x14xf32>
    %994 = tpu.concatenate %162, %166, %170, %174, %178, %182, %186, %272, %276, %280, %284, %288, %292, %296, %382, %386 in 1 : vector<1x14xf32>, vector<1x14xf32>, vector<1x14xf32>, vector<1x14xf32>, vector<1x14xf32>, vector<1x14xf32>, vector<1x14xf32>, vector<1x14xf32>, vector<1x14xf32>, vector<1x14xf32>, vector<1x14xf32>, vector<1x14xf32>, vector<1x14xf32>, vector<1x14xf32>, vector<1x14xf32>, vector<1x14xf32> -> vector<1x224xf32>
    %995 = tpu.concatenate %390, %394, %398, %402, %406, %492, %496, %500, %504, %508, %512, %516, %602, %606, %610, %614 in 1 : vector<1x14xf32>, vector<1x14xf32>, vector<1x14xf32>, vector<1x14xf32>, vector<1x14xf32>, vector<1x14xf32>, vector<1x14xf32>, vector<1x14xf32>, vector<1x14xf32>, vector<1x14xf32>, vector<1x14xf32>, vector<1x14xf32>, vector<1x14xf32>, vector<1x14xf32>, vector<1x14xf32>, vector<1x14xf32> -> vector<1x224xf32>
    %996 = tpu.concatenate %618, %622, %626, %712, %716, %720, %724, %728, %732, %736, %822, %826, %830, %834, %838, %842 in 1 : vector<1x14xf32>, vector<1x14xf32>, vector<1x14xf32>, vector<1x14xf32>, vector<1x14xf32>, vector<1x14xf32>, vector<1x14xf32>, vector<1x14xf32>, vector<1x14xf32>, vector<1x14xf32>, vector<1x14xf32>, vector<1x14xf32>, vector<1x14xf32>, vector<1x14xf32>, vector<1x14xf32>, vector<1x14xf32> -> vector<1x224xf32>
    %997 = tpu.concatenate %846, %932, %936, %940, %944, %948, %952, %956 in 1 : vector<1x14xf32>, vector<1x14xf32>, vector<1x14xf32>, vector<1x14xf32>, vector<1x14xf32>, vector<1x14xf32>, vector<1x14xf32>, vector<1x14xf32> -> vector<1x112xf32>
    %998 = tpu.concatenate %994, %995, %996, %997 in 1 : vector<1x224xf32>, vector<1x224xf32>, vector<1x224xf32>, vector<1x112xf32> -> vector<1x784xf32>
    %999 = tpu.concatenate %199, %203, %207, %211, %215, %219, %223, %309, %313, %317, %321, %325, %329, %333, %419, %423 in 1 : vector<1x14xf32>, vector<1x14xf32>, vector<1x14xf32>, vector<1x14xf32>, vector<1x14xf32>, vector<1x14xf32>, vector<1x14xf32>, vector<1x14xf32>, vector<1x14xf32>, vector<1x14xf32>, vector<1x14xf32>, vector<1x14xf32>, vector<1x14xf32>, vector<1x14xf32>, vector<1x14xf32>, vector<1x14xf32> -> vector<1x224xf32>
    %1000 = tpu.concatenate %427, %431, %435, %439, %443, %529, %533, %537, %541, %545, %549, %553, %639, %643, %647, %651 in 1 : vector<1x14xf32>, vector<1x14xf32>, vector<1x14xf32>, vector<1x14xf32>, vector<1x14xf32>, vector<1x14xf32>, vector<1x14xf32>, vector<1x14xf32>, vector<1x14xf32>, vector<1x14xf32>, vector<1x14xf32>, vector<1x14xf32>, vector<1x14xf32>, vector<1x14xf32>, vector<1x14xf32>, vector<1x14xf32> -> vector<1x224xf32>
    %1001 = tpu.concatenate %655, %659, %663, %749, %753, %757, %761, %765, %769, %773, %859, %863, %867, %871, %875, %879 in 1 : vector<1x14xf32>, vector<1x14xf32>, vector<1x14xf32>, vector<1x14xf32>, vector<1x14xf32>, vector<1x14xf32>, vector<1x14xf32>, vector<1x14xf32>, vector<1x14xf32>, vector<1x14xf32>, vector<1x14xf32>, vector<1x14xf32>, vector<1x14xf32>, vector<1x14xf32>, vector<1x14xf32>, vector<1x14xf32> -> vector<1x224xf32>
    %1002 = tpu.concatenate %883, %969, %973, %977, %981, %985, %989, %993 in 1 : vector<1x14xf32>, vector<1x14xf32>, vector<1x14xf32>, vector<1x14xf32>, vector<1x14xf32>, vector<1x14xf32>, vector<1x14xf32>, vector<1x14xf32> -> vector<1x112xf32>
    %1003 = tpu.concatenate %999, %1000, %1001, %1002 in 1 : vector<1x224xf32>, vector<1x224xf32>, vector<1x224xf32>, vector<1x112xf32> -> vector<1x784xf32>
    %1004 = tpu.concatenate %998, %1003 in 0 : vector<1x784xf32>, vector<1x784xf32> -> vector<2x784xf32>
    %c0_147 = arith.constant 0 : index
    %c0_148 = arith.constant 0 : index
    %1005 = vector.load %arg4[%c0_147, %c0_148] : memref<784x256xf32, #tpu.memory_space<vmem>>, vector<784x256xf32>
    %cst_149 = arith.constant dense<0.000000e+00> : vector<2x256xf32>
    %1006 = tpu.matmul %1004, %1005, %cst_149 {dimension_numbers = #tpu.dot_dimension_numbers<[1], [0], [0], [1], [0, 0, 1, 1], [], []>} : vector<2x784xf32>, vector<784x256xf32>, vector<2x256xf32> -> vector<2x256xf32>
    %cst_150 = arith.constant dense<0.000000e+00> : vector<256xf32>
    %1007 = vector.multi_reduction <add>, %1006, %cst_150 [0] : vector<2x256xf32> to vector<256xf32>
    %1008 = vector.shape_cast %1007 : vector<256xf32> to vector<1x256xf32>
    %cst_151 = arith.constant 2.000000e+00 : f32
    %1009 = vector.broadcast %cst_151 : f32 to vector<1x256xf32>
    %1010 = arith.divf %1008, %1009 : vector<1x256xf32>
    %1011 = arith.mulf %1006, %1006 : vector<2x256xf32>
    %cst_152 = arith.constant dense<0.000000e+00> : vector<256xf32>
    %1012 = vector.multi_reduction <add>, %1011, %cst_152 [0] : vector<2x256xf32> to vector<256xf32>
    %1013 = vector.shape_cast %1012 : vector<256xf32> to vector<1x256xf32>
    %cst_153 = arith.constant 2.000000e+00 : f32
    %1014 = vector.broadcast %cst_153 : f32 to vector<1x256xf32>
    %1015 = arith.divf %1013, %1014 : vector<1x256xf32>
    %1016 = arith.mulf %1010, %1010 : vector<1x256xf32>
    %1017 = arith.subf %1015, %1016 : vector<1x256xf32>
    %1018 = vector.broadcast %1010 : vector<1x256xf32> to vector<2x256xf32>
    %1019 = arith.subf %1006, %1018 : vector<2x256xf32>
    %cst_154 = arith.constant 9.99999974E-6 : f32
    %1020 = vector.broadcast %cst_154 : f32 to vector<1x256xf32>
    %1021 = arith.addf %1017, %1020 : vector<1x256xf32>
    %1022 = math.rsqrt %1021 : vector<1x256xf32>
    %1023 = vector.broadcast %1022 : vector<1x256xf32> to vector<2x256xf32>
    %1024 = arith.mulf %1019, %1023 : vector<2x256xf32>
    %c0_155 = arith.constant 0 : index
    %c0_156 = arith.constant 0 : index
    %1025 = vector.load %arg5[%c0_155, %c0_156] : memref<1x256xf32, #tpu.memory_space<vmem>>, vector<1x256xf32>
    %1026 = vector.broadcast %1025 : vector<1x256xf32> to vector<2x256xf32>
    %1027 = arith.mulf %1024, %1026 : vector<2x256xf32>
    %c0_157 = arith.constant 0 : index
    %c0_158 = arith.constant 0 : index
    %1028 = vector.load %arg6[%c0_157, %c0_158] : memref<1x256xf32, #tpu.memory_space<vmem>>, vector<1x256xf32>
    %1029 = vector.broadcast %1028 : vector<1x256xf32> to vector<2x256xf32>
    %1030 = arith.addf %1027, %1029 : vector<2x256xf32>
    %cst_159 = arith.constant 0.000000e+00 : f32
    %1031 = vector.broadcast %cst_159 : f32 to vector<2x256xf32>
    %1032 = arith.maximumf %1030, %1031 : vector<2x256xf32>
    %c0_160 = arith.constant 0 : index
    %c0_161 = arith.constant 0 : index
    %1033 = vector.load %arg7[%c0_160, %c0_161] : memref<256x10xf32, #tpu.memory_space<vmem>>, vector<256x10xf32>
    %cst_162 = arith.constant dense<0.000000e+00> : vector<2x10xf32>
    %1034 = tpu.matmul %1032, %1033, %cst_162 {dimension_numbers = #tpu.dot_dimension_numbers<[1], [0], [0], [1], [0, 0, 1, 1], [], []>} : vector<2x256xf32>, vector<256x10xf32>, vector<2x10xf32> -> vector<2x10xf32>
    %c0_163 = arith.constant 0 : index
    %c0_164 = arith.constant 0 : index
    %1035 = vector.load %arg8[%c0_163, %c0_164] : memref<1x10xf32, #tpu.memory_space<vmem>>, vector<1x10xf32>
    %1036 = vector.broadcast %1035 : vector<1x10xf32> to vector<2x10xf32>
    %1037 = arith.addf %1034, %1036 : vector<2x10xf32>
    %c0_165 = arith.constant 0 : index
    %c0_166 = arith.constant 0 : index
    %1038 = vector.load %arg9[%c0_165, %c0_166] : memref<2x10xf32, #tpu.memory_space<vmem>>, vector<2x10xf32>
    tpu.vector_store %arg9[%c0_165, %c0_166], %1037 {strides = array<i32>} : memref<2x10xf32, #tpu.memory_space<vmem>>, vector<2x10xf32>,
    return
  }
}

</mosaic_0001>

<llo_original>
// kernel: rosnet_forward.1
$region0: #{rosnet_forward.1}
  #allocation0 [shape = 'u32[]', space=smem, size = 0x4, offset = 0x4, fixed_abs, tag = 'smem constant byte address 0x4 - core index']
  #allocation1 [shape = 'u32[144,128]{1,0:T(1,128)}', space=vmem, size = 0x12000, scoped, tag = 'internal scratch']
  %s0 = inlined_call_operand.vmem [shape: f32[12,2,17,17], index: 0, kind: input, shape index: {}]
  %s1 = inlined_call_operand.vmem [shape: f32[1125,120], index: 1, kind: input, shape index: {}]
  %s2 = inlined_call_operand.vmem [shape: f32[1,8], index: 2, kind: input, shape index: {}]
  %s3 = inlined_call_operand.vmem [shape: f32[1,8], index: 3, kind: input, shape index: {}]
  %s4 = inlined_call_operand.vmem [shape: f32[784,256], index: 4, kind: input, shape index: {}]
  %s5 = inlined_call_operand.vmem [shape: f32[1,256], index: 5, kind: input, shape index: {}]
  %s6 = inlined_call_operand.vmem [shape: f32[1,256], index: 6, kind: input, shape index: {}]
  %s7 = inlined_call_operand.vmem [shape: f32[256,10], index: 7, kind: input, shape index: {}]
  %s8 = inlined_call_operand.vmem [shape: f32[1,10], index: 8, kind: input, shape index: {}]
  %s9 = inlined_call_operand.hbm [shape: f32[2,10], index: 9, kind: output, shape index: {}]
  %s10 = sld [smem:[#allocation0]]
  $region46: #{rosnet_forward.1} parent=0
    _
  %s12 = ssub.s32 1, %s10
  %s13 = scalar_select 0, %s12, %s10
  $region1: #{rosnet_forward.1} parent=0
    #allocation2 [shape = 'u8[1024]{0}', space=vmem, size = 0x400, scoped, tag = 'output window, operand 0, single buffered']
    #allocation3 [shape = 's32[1]{0}', space=sflag, size = 0x4, scoped, tag = 'scoped memory for rosnet_forward.1']
    %14 = vsyncpa [#allocation3], 0
    // Predicated region
    $region2: #{rosnet_forward.1} parent=1 // pred_check
      _
    $region3: #{rosnet_forward.1} parent=1 // pred_check_branch
      %16 = sbr.rel (0) target = $region5
    $region4: #{rosnet_forward.1} parent=1 // pred_region
      _
    $region5: #{rosnet_forward.1} parent=1 // pred_fallthru
      _
    // Predicated region
    $region6: #{rosnet_forward.1} parent=1 // pred_check
      _
    $region7: #{rosnet_forward.1} parent=1 // pred_check_branch
      %18 = sbr.rel (0) target = $region9
    $region8: #{rosnet_forward.1} parent=1 // pred_region
      _
    $region9: #{rosnet_forward.1} parent=1 // pred_fallthru
      _
    // Predicated region
    $region10: #{rosnet_forward.1} parent=1 // pred_check
      _
    $region11: #{rosnet_forward.1} parent=1 // pred_check_branch
      %20 = sbr.rel (0) target = $region13
    $region12: #{rosnet_forward.1} parent=1 // pred_region
      _
    $region13: #{rosnet_forward.1} parent=1 // pred_fallthru
      _
    // Predicated region
    $region14: #{rosnet_forward.1} parent=1 // pred_check
      _
    $region15: #{rosnet_forward.1} parent=1 // pred_check_branch
      %22 = sbr.rel (0) target = $region17
    $region16: #{rosnet_forward.1} parent=1 // pred_region
      _
    $region17: #{rosnet_forward.1} parent=1 // pred_fallthru
      _
    // Predicated region
    $region18: #{rosnet_forward.1} parent=1 // pred_check
      _
    $region19: #{rosnet_forward.1} parent=1 // pred_check_branch
      %24 = sbr.rel (0) target = $region21
    $region20: #{rosnet_forward.1} parent=1 // pred_region
      _
    $region21: #{rosnet_forward.1} parent=1 // pred_fallthru
      _
    // Predicated region
    $region22: #{rosnet_forward.1} parent=1 // pred_check
      _
    $region23: #{rosnet_forward.1} parent=1 // pred_check_branch
      %26 = sbr.rel (0) target = $region25
    $region24: #{rosnet_forward.1} parent=1 // pred_region
      _
    $region25: #{rosnet_forward.1} parent=1 // pred_fallthru
      _
    // Predicated region
    $region26: #{rosnet_forward.1} parent=1 // pred_check
      _
    $region27: #{rosnet_forward.1} parent=1 // pred_check_branch
      %28 = sbr.rel (0) target = $region29
    $region28: #{rosnet_forward.1} parent=1 // pred_region
      _
    $region29: #{rosnet_forward.1} parent=1 // pred_fallthru
      _
    // Predicated region
    $region30: #{rosnet_forward.1} parent=1 // pred_check
      _
    $region31: #{rosnet_forward.1} parent=1 // pred_check_branch
      %30 = sbr.rel (0) target = $region33
    $region32: #{rosnet_forward.1} parent=1 // pred_region
      _
    $region33: #{rosnet_forward.1} parent=1 // pred_fallthru
      _
    // Predicated region
    $region34: #{rosnet_forward.1} parent=1 // pred_check
      _
    $region35: #{rosnet_forward.1} parent=1 // pred_check_branch
      %32 = sbr.rel (0) target = $region37
    $region36: #{rosnet_forward.1} parent=1 // pred_region
      _
    $region37: #{rosnet_forward.1} parent=1 // pred_fallthru
      _
    %v33 = vld [vmem:[%s0] sm:$0xff]
    %v34 = vld [vmem:[%s0 + $0x8] sm:$0xff]
    %v35 = vld [vmem:[%s0 + $0x10] sm:$0x1]
    %v36 = vld [vmem:[%s0 + $0x18] sm:$0xff]
    %v37 = vld [vmem:[%s0 + $0x20] sm:$0xff]
    %v38 = vld [vmem:[%s0 + $0x28] sm:$0x1]
    %s39 = scalar_lea.vmem %s0, 48
    %v40 = vld [vmem:[%s39] sm:$0xff]
    %v41 = vld [vmem:[%s39 + $0x8] sm:$0xff]
    %v42 = vld [vmem:[%s39 + $0x10] sm:$0x1]
    %v43 = vld [vmem:[%s39 + $0x18] sm:$0xff]
    %v44 = vld [vmem:[%s39 + $0x20] sm:$0xff]
    %v45 = vld [vmem:[%s39 + $0x28] sm:$0x1]
    %s46 = scalar_lea.vmem %s0, 96
    %v47 = vld [vmem:[%s46] sm:$0xff]
    %v48 = vld [vmem:[%s46 + $0x8] sm:$0xff]
    %v49 = vld [vmem:[%s46 + $0x10] sm:$0x1]
    %v50 = vld [vmem:[%s46 + $0x18] sm:$0xff]
    %v51 = vld [vmem:[%s46 + $0x20] sm:$0xff]
    %v52 = vld [vmem:[%s46 + $0x28] sm:$0x1]
    %s53 = scalar_lea.vmem %s0, 144
    %v54 = vld [vmem:[%s53] sm:$0xff]
    %v55 = vld [vmem:[%s53 + $0x8] sm:$0xff]
    %v56 = vld [vmem:[%s53 + $0x10] sm:$0x1]
    %v57 = vld [vmem:[%s53 + $0x18] sm:$0xff]
    %v58 = vld [vmem:[%s53 + $0x20] sm:$0xff]
    %v59 = vld [vmem:[%s53 + $0x28] sm:$0x1]
    %s60 = scalar_lea.vmem %s0, 192
    %v61 = vld [vmem:[%s60] sm:$0xff]
    %v62 = vld [vmem:[%s60 + $0x8] sm:$0xff]
    %v63 = vld [vmem:[%s60 + $0x10] sm:$0x1]
    %v64 = vld [vmem:[%s60 + $0x18] sm:$0xff]
    %v65 = vld [vmem:[%s60 + $0x20] sm:$0xff]
    %v66 = vld [vmem:[%s60 + $0x28] sm:$0x1]
    %s67 = scalar_lea.vmem %s0, 240
    %v68 = vld [vmem:[%s67] sm:$0xff]
    %v69 = vld [vmem:[%s67 + $0x8] sm:$0xff]
    %v70 = vld [vmem:[%s67 + $0x10] sm:$0x1]
    %v71 = vld [vmem:[%s67 + $0x18] sm:$0xff]
    %v72 = vld [vmem:[%s67 + $0x20] sm:$0xff]
    %v73 = vld [vmem:[%s67 + $0x28] sm:$0x1]
    %s74 = scalar_lea.vmem %s0, 288
    %v75 = vld [vmem:[%s74] sm:$0xff]
    %v76 = vld [vmem:[%s74 + $0x8] sm:$0xff]
    %v77 = vld [vmem:[%s74 + $0x18] sm:$0xff]
    %v78 = vld [vmem:[%s74 + $0x20] sm:$0xff]
    %s79 = scalar_lea.vmem %s0, 336
    %v80 = vld [vmem:[%s79] sm:$0xff]
    %v81 = vld [vmem:[%s79 + $0x8] sm:$0xff]
    %v82 = vld [vmem:[%s79 + $0x18] sm:$0xff]
    %v83 = vld [vmem:[%s79 + $0x20] sm:$0xff]
    %s84 = scalar_lea.vmem %s0, 384
    %v85 = vld [vmem:[%s84] sm:$0xff]
    %v86 = vld [vmem:[%s84 + $0x8] sm:$0xff]
    %v87 = vld [vmem:[%s84 + $0x18] sm:$0xff]
    %v88 = vld [vmem:[%s84 + $0x20] sm:$0xff]
    %s89 = scalar_lea.vmem %s0, 432
    %v90 = vld [vmem:[%s89] sm:$0xff]
    %v91 = vld [vmem:[%s89 + $0x8] sm:$0xff]
    %v92 = vld [vmem:[%s89 + $0x18] sm:$0xff]
    %v93 = vld [vmem:[%s89 + $0x20] sm:$0xff]
    %s94 = scalar_lea.vmem %s0, 480
    %v95 = vld [vmem:[%s94] sm:$0xff]
    %v96 = vld [vmem:[%s94 + $0x8] sm:$0xff]
    %v97 = vld [vmem:[%s94 + $0x18] sm:$0xff]
    %v98 = vld [vmem:[%s94 + $0x20] sm:$0xff]
    %s99 = scalar_lea.vmem %s0, 528
    %v100 = vld [vmem:[%s99] sm:$0xff]
    %v101 = vld [vmem:[%s99 + $0x8] sm:$0xff]
    %v102 = vld [vmem:[%s99 + $0x18] sm:$0xff]
    %v103 = vld [vmem:[%s99 + $0x20] sm:$0xff]
    %108 = vrot.lane.b32.xlu0 %v54, 15
    %v109 = vpop.permute.xlu0 %108
    %110 = vrot.lane.b32.xlu0 %v55, 15
    %v111 = vpop.permute.xlu0 %110
    %112 = vrot.lane.b32.xlu0 %v57, 15
    %v113 = vpop.permute.xlu0 %112
    %114 = vrot.lane.b32.xlu0 %v58, 15
    %v115 = vpop.permute.xlu0 %114
    %124 = vrot.lane.b32.xlu0 %v33, 29
    %v125 = vpop.permute.xlu0 %124
    %126 = vrot.lane.b32.xlu0 %v34, 29
    %v127 = vpop.permute.xlu0 %126
    %128 = vrot.lane.b32.xlu0 %v36, 29
    %v129 = vpop.permute.xlu0 %128
    %130 = vrot.lane.b32.xlu0 %v37, 29
    %v131 = vpop.permute.xlu0 %130
    %136 = vrot.lane.b32.xlu0 %v54, 44
    %v137 = vpop.permute.xlu0 %136
    %138 = vrot.lane.b32.xlu0 %v55, 44
    %v139 = vpop.permute.xlu0 %138
    %140 = vrot.lane.b32.xlu0 %v57, 44
    %v141 = vpop.permute.xlu0 %140
    %142 = vrot.lane.b32.xlu0 %v58, 44
    %v143 = vpop.permute.xlu0 %142
    %148 = vrot.lane.b32.xlu0 %v33, 58
    %v149 = vpop.permute.xlu0 %148
    %150 = vrot.lane.b32.xlu0 %v34, 58
    %v151 = vpop.permute.xlu0 %150
    %152 = vrot.lane.b32.xlu0 %v36, 58
    %v153 = vpop.permute.xlu0 %152
    %154 = vrot.lane.b32.xlu0 %v37, 58
    %v155 = vpop.permute.xlu0 %154
    %164 = vrot.lane.b32.xlu0 %v75, 75
    %v165 = vpop.permute.xlu0 %164
    %166 = vrot.lane.b32.xlu0 %v76, 75
    %v167 = vpop.permute.xlu0 %166
    %168 = vrot.lane.b32.xlu0 %v77, 75
    %v169 = vpop.permute.xlu0 %168
    %170 = vrot.lane.b32.xlu0 %v78, 75
    %v171 = vpop.permute.xlu0 %170
    %180 = vrot.lane.b32.xlu0 %v90, 90
    %v181 = vpop.permute.xlu0 %180
    %182 = vrot.lane.b32.xlu0 %v91, 90
    %v183 = vpop.permute.xlu0 %182
    %184 = vrot.lane.b32.xlu0 %v92, 90
    %v185 = vpop.permute.xlu0 %184
    %186 = vrot.lane.b32.xlu0 %v93, 90
    %v187 = vpop.permute.xlu0 %186
    %192 = vrot.lane.b32.xlu0 %v75, 104
    %v193 = vpop.permute.xlu0 %192
    %194 = vrot.lane.b32.xlu0 %v76, 104
    %v195 = vpop.permute.xlu0 %194
    %196 = vrot.lane.b32.xlu0 %v77, 104
    %v197 = vpop.permute.xlu0 %196
    %198 = vrot.lane.b32.xlu0 %v78, 104
    %v199 = vpop.permute.xlu0 %198
    %204 = vrot.lane.b32.xlu0 %v90, 119
    %v205 = vpop.permute.xlu0 %204
    %206 = vrot.lane.b32.xlu0 %v91, 119
    %v207 = vpop.permute.xlu0 %206
    %208 = vrot.lane.b32.xlu0 %v92, 119
    %v209 = vpop.permute.xlu0 %208
    %210 = vrot.lane.b32.xlu0 %v93, 119
    %v211 = vpop.permute.xlu0 %210
    %216 = vrot.lane.b32.xlu0 %v75, 5
    %v217 = vpop.permute.xlu0 %216
    %218 = vrot.lane.b32.xlu0 %v76, 5
    %v219 = vpop.permute.xlu0 %218
    %220 = vrot.lane.b32.xlu0 %v77, 5
    %v221 = vpop.permute.xlu0 %220
    %222 = vrot.lane.b32.xlu0 %v78, 5
    %v223 = vpop.permute.xlu0 %222
    %vm228 = vcmask 1046528
    %v229 = vrot.slane %v33, 1
    %v230 = vrot.slane %v34, 1
    %v231 = vsel %vm228, %v229, %v230
    %v232 = vrot.slane %v36, 1
    %v233 = vrot.slane %v37, 1
    %v234 = vsel %vm228, %v232, %v233
    %235 = vrot.lane.b32.xlu0 %v231, 22
    %v236 = vpop.permute.xlu0 %235
    %237 = vrot.lane.b32.xlu0 %v230, 22
    %v238 = vpop.permute.xlu0 %237
    %239 = vrot.lane.b32.xlu0 %v234, 22
    %v240 = vpop.permute.xlu0 %239
    %241 = vrot.lane.b32.xlu0 %v233, 22
    %v242 = vpop.permute.xlu0 %241
    %v247 = vrot.slane %v54, 1
    %v248 = vrot.slane %v55, 1
    %v249 = vsel %vm228, %v247, %v248
    %v250 = vrot.slane %v57, 1
    %v251 = vrot.slane %v58, 1
    %v252 = vsel %vm228, %v250, %v251
    %253 = vrot.lane.b32.xlu0 %v249, 37
    %v254 = vpop.permute.xlu0 %253
    %255 = vrot.lane.b32.xlu0 %v248, 37
    %v256 = vpop.permute.xlu0 %255
    %257 = vrot.lane.b32.xlu0 %v252, 37
    %v258 = vpop.permute.xlu0 %257
    %259 = vrot.lane.b32.xlu0 %v251, 37
    %v260 = vpop.permute.xlu0 %259
    %265 = vrot.lane.b32.xlu0 %v231, 51
    %v266 = vpop.permute.xlu0 %265
    %267 = vrot.lane.b32.xlu0 %v230, 51
    %v268 = vpop.permute.xlu0 %267
    %269 = vrot.lane.b32.xlu0 %v234, 51
    %v270 = vpop.permute.xlu0 %269
    %271 = vrot.lane.b32.xlu0 %v233, 51
    %v272 = vpop.permute.xlu0 %271
    %277 = vrot.lane.b32.xlu0 %v249, 66
    %v278 = vpop.permute.xlu0 %277
    %279 = vrot.lane.b32.xlu0 %v248, 66
    %v280 = vpop.permute.xlu0 %279
    %281 = vrot.lane.b32.xlu0 %v252, 66
    %v282 = vpop.permute.xlu0 %281
    %283 = vrot.lane.b32.xlu0 %v251, 66
    %v284 = vpop.permute.xlu0 %283
    %289 = vrot.lane.b32.xlu0 %v231, 80
    %v290 = vpop.permute.xlu0 %289
    %291 = vrot.lane.b32.xlu0 %v230, 80
    %v292 = vpop.permute.xlu0 %291
    %293 = vrot.lane.b32.xlu0 %v234, 80
    %v294 = vpop.permute.xlu0 %293
    %295 = vrot.lane.b32.xlu0 %v233, 80
    %v296 = vpop.permute.xlu0 %295
    %v301 = vrot.slane %v75, 1
    %v302 = vrot.slane %v76, 1
    %v303 = vsel %vm228, %v301, %v302
    %v304 = vrot.slane %v77, 1
    %v305 = vrot.slane %v78, 1
    %v306 = vsel %vm228, %v304, %v305
    %307 = vrot.lane.b32.xlu0 %v303, 97
    %v308 = vpop.permute.xlu0 %307
    %309 = vrot.lane.b32.xlu0 %v302, 97
    %v310 = vpop.permute.xlu0 %309
    %311 = vrot.lane.b32.xlu0 %v306, 97
    %v312 = vpop.permute.xlu0 %311
    %313 = vrot.lane.b32.xlu0 %v305, 97
    %v314 = vpop.permute.xlu0 %313
    %vm319 = vcmask 121856
    %v320 = vsel %vm319, %v33, %v109
    %v321 = vsel %vm319, %v34, %v111
    %v322 = vsel %vm319, %v36, %v113
    %v323 = vsel %vm319, %v37, %v115
    %vm324 = vcmask 244736
    %v325 = vsel %vm324, %v320, %v125
    %v326 = vsel %vm324, %v321, %v127
    %v327 = vsel %vm324, %v322, %v129
    %v328 = vsel %vm324, %v323, %v131
    %vm329 = vcmask 367616
    %v330 = vsel %vm329, %v325, %v137
    %v331 = vsel %vm329, %v326, %v139
    %v332 = vsel %vm329, %v327, %v141
    %v333 = vsel %vm329, %v328, %v143
    %vm334 = vcmask 490496
    %v335 = vsel %vm334, %v330, %v149
    %v336 = vsel %vm334, %v331, %v151
    %v337 = vsel %vm334, %v332, %v153
    %v338 = vsel %vm334, %v333, %v155
    %vm339 = vcmask 613376
    %v340 = vsel %vm339, %v335, %v165
    %v341 = vsel %vm339, %v336, %v167
    %v342 = vsel %vm339, %v337, %v169
    %v343 = vsel %vm339, %v338, %v171
    %vm344 = vcmask 736256
    %v345 = vsel %vm344, %v340, %v181
    %v346 = vsel %vm344, %v341, %v183
    %v347 = vsel %vm344, %v342, %v185
    %v348 = vsel %vm344, %v343, %v187
    %vm349 = vcmask 859136
    %v350 = vsel %vm349, %v345, %v193
    %v351 = vsel %vm349, %v346, %v195
    %v352 = vsel %vm349, %v347, %v197
    %v353 = vsel %vm349, %v348, %v199
    %vm354 = vcmask 982016
    %v355 = vsel %vm354, %v350, %v205
    %v356 = vsel %vm354, %v351, %v207
    %v357 = vsel %vm354, %v352, %v209
    %v358 = vsel %vm354, %v353, %v211
    %vm359 = vcmask 56320
    %v360 = vsel %vm359, %v205, %v217
    %v361 = vsel %vm359, %v207, %v219
    %v362 = vsel %vm359, %v209, %v221
    %v363 = vsel %vm359, %v211, %v223
    %vm364 = vcmask 179200
    %v365 = vsel %vm364, %v360, %v236
    %v366 = vsel %vm364, %v361, %v238
    %v367 = vsel %vm364, %v362, %v240
    %v368 = vsel %vm364, %v363, %v242
    %vm369 = vcmask 302080
    %v370 = vsel %vm369, %v365, %v254
    %v371 = vsel %vm369, %v366, %v256
    %v372 = vsel %vm369, %v367, %v258
    %v373 = vsel %vm369, %v368, %v260
    %vm374 = vcmask 424960
    %v375 = vsel %vm374, %v370, %v266
    %v376 = vsel %vm374, %v371, %v268
    %v377 = vsel %vm374, %v372, %v270
    %v378 = vsel %vm374, %v373, %v272
    %vm379 = vcmask 547840
    %v380 = vsel %vm379, %v375, %v278
    %v381 = vsel %vm379, %v376, %v280
    %v382 = vsel %vm379, %v377, %v282
    %v383 = vsel %vm379, %v378, %v284
    %vm384 = vcmask 670720
    %v385 = vsel %vm384, %v380, %v290
    %v386 = vsel %vm384, %v381, %v292
    %v387 = vsel %vm384, %v382, %v294
    %v388 = vsel %vm384, %v383, %v296
    %vm389 = vcmask 793600
    %v390 = vsel %vm389, %v385, %v308
    %v391 = vsel %vm389, %v386, %v310
    %v392 = vsel %vm389, %v387, %v312
    %v393 = vsel %vm389, %v388, %v314
    %394 = vrot.lane.b32.xlu0 %v75, 14
    %v395 = vpop.permute.xlu0 %394
    %396 = vrot.lane.b32.xlu0 %v76, 14
    %v397 = vpop.permute.xlu0 %396
    %398 = vrot.lane.b32.xlu0 %v77, 14
    %v399 = vpop.permute.xlu0 %398
    %400 = vrot.lane.b32.xlu0 %v78, 14
    %v401 = vpop.permute.xlu0 %400
    %406 = vrot.lane.b32.xlu0 %v90, 29
    %v407 = vpop.permute.xlu0 %406
    %408 = vrot.lane.b32.xlu0 %v91, 29
    %v409 = vpop.permute.xlu0 %408
    %410 = vrot.lane.b32.xlu0 %v92, 29
    %v411 = vpop.permute.xlu0 %410
    %412 = vrot.lane.b32.xlu0 %v93, 29
    %v413 = vpop.permute.xlu0 %412
    %418 = vrot.lane.b32.xlu0 %v75, 43
    %v419 = vpop.permute.xlu0 %418
    %420 = vrot.lane.b32.xlu0 %v76, 43
    %v421 = vpop.permute.xlu0 %420
    %422 = vrot.lane.b32.xlu0 %v77, 43
    %v423 = vpop.permute.xlu0 %422
    %424 = vrot.lane.b32.xlu0 %v78, 43
    %v425 = vpop.permute.xlu0 %424
    %v432 = vrot.slane %v35, 1
    %v433 = vsel %vm228, %v230, %v432
    %v434 = vrot.slane %v38, 1
    %v435 = vsel %vm228, %v233, %v434
    %436 = vrot.lane.b32.xlu0 %v231, 60
    %v437 = vpop.permute.xlu0 %436
    %438 = vrot.lane.b32.xlu0 %v433, 60
    %v439 = vpop.permute.xlu0 %438
    %440 = vrot.lane.b32.xlu0 %v234, 60
    %v441 = vpop.permute.xlu0 %440
    %442 = vrot.lane.b32.xlu0 %v435, 60
    %v443 = vpop.permute.xlu0 %442
    %v450 = vrot.slane %v56, 1
    %v451 = vsel %vm228, %v248, %v450
    %v452 = vrot.slane %v59, 1
    %v453 = vsel %vm228, %v251, %v452
    %454 = vrot.lane.b32.xlu0 %v249, 75
    %v455 = vpop.permute.xlu0 %454
    %456 = vrot.lane.b32.xlu0 %v451, 75
    %v457 = vpop.permute.xlu0 %456
    %458 = vrot.lane.b32.xlu0 %v252, 75
    %v459 = vpop.permute.xlu0 %458
    %460 = vrot.lane.b32.xlu0 %v453, 75
    %v461 = vpop.permute.xlu0 %460
    %466 = vrot.lane.b32.xlu0 %v231, 89
    %v467 = vpop.permute.xlu0 %466
    %468 = vrot.lane.b32.xlu0 %v433, 89
    %v469 = vpop.permute.xlu0 %468
    %470 = vrot.lane.b32.xlu0 %v234, 89
    %v471 = vpop.permute.xlu0 %470
    %472 = vrot.lane.b32.xlu0 %v435, 89
    %v473 = vpop.permute.xlu0 %472
    %478 = vrot.lane.b32.xlu0 %v249, 104
    %v479 = vpop.permute.xlu0 %478
    %480 = vrot.lane.b32.xlu0 %v451, 104
    %v481 = vpop.permute.xlu0 %480
    %482 = vrot.lane.b32.xlu0 %v252, 104
    %v483 = vpop.permute.xlu0 %482
    %484 = vrot.lane.b32.xlu0 %v453, 104
    %v485 = vpop.permute.xlu0 %484
    %490 = vrot.lane.b32.xlu0 %v231, 118
    %v491 = vpop.permute.xlu0 %490
    %492 = vrot.lane.b32.xlu0 %v433, 118
    %v493 = vpop.permute.xlu0 %492
    %494 = vrot.lane.b32.xlu0 %v234, 118
    %v495 = vpop.permute.xlu0 %494
    %496 = vrot.lane.b32.xlu0 %v435, 118
    %v497 = vpop.permute.xlu0 %496
    %vm506 = vcmask 1040384
    %v507 = vrot.slane %v40, 7
    %v508 = vrot.slane %v41, 7
    %v509 = vsel %vm506, %v507, %v508
    %v510 = vrot.slane %v43, 7
    %v511 = vrot.slane %v44, 7
    %v512 = vsel %vm506, %v510, %v511
    %513 = vrot.lane.b32.xlu0 %v507, 7
    %v514 = vpop.permute.xlu0 %513
    %515 = vrot.lane.b32.xlu0 %v509, 7
    %v516 = vpop.permute.xlu0 %515
    %517 = vrot.lane.b32.xlu0 %v510, 7
    %v518 = vpop.permute.xlu0 %517
    %519 = vrot.lane.b32.xlu0 %v512, 7
    %v520 = vpop.permute.xlu0 %519
    %v529 = vrot.slane %v61, 7
    %v530 = vrot.slane %v62, 7
    %v531 = vsel %vm506, %v529, %v530
    %v532 = vrot.slane %v64, 7
    %v533 = vrot.slane %v65, 7
    %v534 = vsel %vm506, %v532, %v533
    %535 = vrot.lane.b32.xlu0 %v529, 22
    %v536 = vpop.permute.xlu0 %535
    %537 = vrot.lane.b32.xlu0 %v531, 22
    %v538 = vpop.permute.xlu0 %537
    %539 = vrot.lane.b32.xlu0 %v532, 22
    %v540 = vpop.permute.xlu0 %539
    %541 = vrot.lane.b32.xlu0 %v534, 22
    %v542 = vpop.permute.xlu0 %541
    %547 = vrot.lane.b32.xlu0 %v507, 36
    %v548 = vpop.permute.xlu0 %547
    %549 = vrot.lane.b32.xlu0 %v509, 36
    %v550 = vpop.permute.xlu0 %549
    %551 = vrot.lane.b32.xlu0 %v510, 36
    %v552 = vpop.permute.xlu0 %551
    %553 = vrot.lane.b32.xlu0 %v512, 36
    %v554 = vpop.permute.xlu0 %553
    %559 = vrot.lane.b32.xlu0 %v529, 51
    %v560 = vpop.permute.xlu0 %559
    %561 = vrot.lane.b32.xlu0 %v531, 51
    %v562 = vpop.permute.xlu0 %561
    %563 = vrot.lane.b32.xlu0 %v532, 51
    %v564 = vpop.permute.xlu0 %563
    %565 = vrot.lane.b32.xlu0 %v534, 51
    %v566 = vpop.permute.xlu0 %565
    %571 = vrot.lane.b32.xlu0 %v507, 65
    %v572 = vpop.permute.xlu0 %571
    %573 = vrot.lane.b32.xlu0 %v509, 65
    %v574 = vpop.permute.xlu0 %573
    %575 = vrot.lane.b32.xlu0 %v510, 65
    %v576 = vpop.permute.xlu0 %575
    %577 = vrot.lane.b32.xlu0 %v512, 65
    %v578 = vpop.permute.xlu0 %577
    %v587 = vrot.slane %v80, 7
    %v588 = vrot.slane %v81, 7
    %v589 = vsel %vm506, %v587, %v588
    %v590 = vrot.slane %v82, 7
    %v591 = vrot.slane %v83, 7
    %v592 = vsel %vm506, %v590, %v591
    %593 = vrot.lane.b32.xlu0 %v587, 82
    %v594 = vpop.permute.xlu0 %593
    %595 = vrot.lane.b32.xlu0 %v589, 82
    %v596 = vpop.permute.xlu0 %595
    %597 = vrot.lane.b32.xlu0 %v590, 82
    %v598 = vpop.permute.xlu0 %597
    %599 = vrot.lane.b32.xlu0 %v592, 82
    %v600 = vpop.permute.xlu0 %599
    %v609 = vrot.slane %v95, 7
    %v610 = vrot.slane %v96, 7
    %v611 = vsel %vm506, %v609, %v610
    %v612 = vrot.slane %v97, 7
    %v613 = vrot.slane %v98, 7
    %v614 = vsel %vm506, %v612, %v613
    %615 = vrot.lane.b32.xlu0 %v609, 97
    %v616 = vpop.permute.xlu0 %615
    %617 = vrot.lane.b32.xlu0 %v611, 97
    %v618 = vpop.permute.xlu0 %617
    %619 = vrot.lane.b32.xlu0 %v612, 97
    %v620 = vpop.permute.xlu0 %619
    %621 = vrot.lane.b32.xlu0 %v614, 97
    %v622 = vpop.permute.xlu0 %621
    %v627 = vsel %vm319, %v90, %v395
    %v628 = vsel %vm319, %v91, %v397
    %v629 = vsel %vm319, %v92, %v399
    %v630 = vsel %vm319, %v93, %v401
    %v631 = vsel %vm324, %v627, %v407
    %v632 = vsel %vm324, %v628, %v409
    %v633 = vsel %vm324, %v629, %v411
    %v634 = vsel %vm324, %v630, %v413
    %v635 = vsel %vm329, %v631, %v419
    %v636 = vsel %vm329, %v632, %v421
    %v637 = vsel %vm329, %v633, %v423
    %v638 = vsel %vm329, %v634, %v425
    %v639 = vsel %vm334, %v635, %v437
    %v640 = vsel %vm334, %v636, %v439
    %v641 = vsel %vm334, %v637, %v441
    %v642 = vsel %vm334, %v638, %v443
    %v643 = vsel %vm339, %v639, %v455
    %v644 = vsel %vm339, %v640, %v457
    %v645 = vsel %vm339, %v641, %v459
    %v646 = vsel %vm339, %v642, %v461
    %v647 = vsel %vm344, %v643, %v467
    %v648 = vsel %vm344, %v644, %v469
    %v649 = vsel %vm344, %v645, %v471
    %v650 = vsel %vm344, %v646, %v473
    %v651 = vsel %vm349, %v647, %v479
    %v652 = vsel %vm349, %v648, %v481
    %v653 = vsel %vm349, %v649, %v483
    %v654 = vsel %vm349, %v650, %v485
    %v655 = vsel %vm354, %v651, %v491
    %v656 = vsel %vm354, %v652, %v493
    %v657 = vsel %vm354, %v653, %v495
    %v658 = vsel %vm354, %v654, %v497
    %v659 = vsel %vm359, %v491, %v514
    %v660 = vsel %vm359, %v493, %v516
    %v661 = vsel %vm359, %v495, %v518
    %v662 = vsel %vm359, %v497, %v520
    %v663 = vsel %vm364, %v659, %v536
    %v664 = vsel %vm364, %v660, %v538
    %v665 = vsel %vm364, %v661, %v540
    %v666 = vsel %vm364, %v662, %v542
    %v667 = vsel %vm369, %v663, %v548
    %v668 = vsel %vm369, %v664, %v550
    %v669 = vsel %vm369, %v665, %v552
    %v670 = vsel %vm369, %v666, %v554
    %v671 = vsel %vm374, %v667, %v560
    %v672 = vsel %vm374, %v668, %v562
    %v673 = vsel %vm374, %v669, %v564
    %v674 = vsel %vm374, %v670, %v566
    %v675 = vsel %vm379, %v671, %v572
    %v676 = vsel %vm379, %v672, %v574
    %v677 = vsel %vm379, %v673, %v576
    %v678 = vsel %vm379, %v674, %v578
    %v679 = vsel %vm384, %v675, %v594
    %v680 = vsel %vm384, %v676, %v596
    %v681 = vsel %vm384, %v677, %v598
    %v682 = vsel %vm384, %v678, %v600
    %v683 = vsel %vm389, %v679, %v616
    %v684 = vsel %vm389, %v680, %v618
    %v685 = vsel %vm389, %v681, %v620
    %v686 = vsel %vm389, %v682, %v622
    %687 = vrot.lane.b32.xlu0 %v80, 127
    %v688 = vpop.permute.xlu0 %687
    %689 = vrot.lane.b32.xlu0 %v81, 127
    %v690 = vpop.permute.xlu0 %689
    %691 = vrot.lane.b32.xlu0 %v82, 127
    %v692 = vpop.permute.xlu0 %691
    %693 = vrot.lane.b32.xlu0 %v83, 127
    %v694 = vpop.permute.xlu0 %693
    %699 = vrot.lane.b32.xlu0 %v95, 14
    %v700 = vpop.permute.xlu0 %699
    %701 = vrot.lane.b32.xlu0 %v96, 14
    %v702 = vpop.permute.xlu0 %701
    %703 = vrot.lane.b32.xlu0 %v97, 14
    %v704 = vpop.permute.xlu0 %703
    %705 = vrot.lane.b32.xlu0 %v98, 14
    %v706 = vpop.permute.xlu0 %705
    %711 = vrot.lane.b32.xlu0 %v80, 28
    %v712 = vpop.permute.xlu0 %711
    %713 = vrot.lane.b32.xlu0 %v81, 28
    %v714 = vpop.permute.xlu0 %713
    %715 = vrot.lane.b32.xlu0 %v82, 28
    %v716 = vpop.permute.xlu0 %715
    %717 = vrot.lane.b32.xlu0 %v83, 28
    %v718 = vpop.permute.xlu0 %717
    %v723 = vrot.slane %v40, 1
    %v724 = vrot.slane %v41, 1
    %v725 = vsel %vm228, %v723, %v724
    %v726 = vrot.slane %v43, 1
    %v727 = vrot.slane %v44, 1
    %v728 = vsel %vm228, %v726, %v727
    %729 = vrot.lane.b32.xlu0 %v725, 45
    %v730 = vpop.permute.xlu0 %729
    %731 = vrot.lane.b32.xlu0 %v724, 45
    %v732 = vpop.permute.xlu0 %731
    %733 = vrot.lane.b32.xlu0 %v728, 45
    %v734 = vpop.permute.xlu0 %733
    %735 = vrot.lane.b32.xlu0 %v727, 45
    %v736 = vpop.permute.xlu0 %735
    %v741 = vrot.slane %v61, 1
    %v742 = vrot.slane %v62, 1
    %v743 = vsel %vm228, %v741, %v742
    %v744 = vrot.slane %v64, 1
    %v745 = vrot.slane %v65, 1
    %v746 = vsel %vm228, %v744, %v745
    %747 = vrot.lane.b32.xlu0 %v743, 60
    %v748 = vpop.permute.xlu0 %747
    %749 = vrot.lane.b32.xlu0 %v742, 60
    %v750 = vpop.permute.xlu0 %749
    %751 = vrot.lane.b32.xlu0 %v746, 60
    %v752 = vpop.permute.xlu0 %751
    %753 = vrot.lane.b32.xlu0 %v745, 60
    %v754 = vpop.permute.xlu0 %753
    %759 = vrot.lane.b32.xlu0 %v725, 74
    %v760 = vpop.permute.xlu0 %759
    %761 = vrot.lane.b32.xlu0 %v724, 74
    %v762 = vpop.permute.xlu0 %761
    %763 = vrot.lane.b32.xlu0 %v728, 74
    %v764 = vpop.permute.xlu0 %763
    %765 = vrot.lane.b32.xlu0 %v727, 74
    %v766 = vpop.permute.xlu0 %765
    %771 = vrot.lane.b32.xlu0 %v743, 89
    %v772 = vpop.permute.xlu0 %771
    %773 = vrot.lane.b32.xlu0 %v742, 89
    %v774 = vpop.permute.xlu0 %773
    %775 = vrot.lane.b32.xlu0 %v746, 89
    %v776 = vpop.permute.xlu0 %775
    %777 = vrot.lane.b32.xlu0 %v745, 89
    %v778 = vpop.permute.xlu0 %777
    %783 = vrot.lane.b32.xlu0 %v725, 103
    %v784 = vpop.permute.xlu0 %783
    %785 = vrot.lane.b32.xlu0 %v724, 103
    %v786 = vpop.permute.xlu0 %785
    %787 = vrot.lane.b32.xlu0 %v728, 103
    %v788 = vpop.permute.xlu0 %787
    %789 = vrot.lane.b32.xlu0 %v727, 103
    %v790 = vpop.permute.xlu0 %789
    %v795 = vrot.slane %v80, 1
    %v796 = vrot.slane %v81, 1
    %v797 = vsel %vm228, %v795, %v796
    %v798 = vrot.slane %v82, 1
    %v799 = vrot.slane %v83, 1
    %v800 = vsel %vm228, %v798, %v799
    %801 = vrot.lane.b32.xlu0 %v797, 120
    %v802 = vpop.permute.xlu0 %801
    %803 = vrot.lane.b32.xlu0 %v796, 120
    %v804 = vpop.permute.xlu0 %803
    %805 = vrot.lane.b32.xlu0 %v800, 120
    %v806 = vpop.permute.xlu0 %805
    %807 = vrot.lane.b32.xlu0 %v799, 120
    %v808 = vpop.permute.xlu0 %807
    %v813 = vrot.slane %v95, 1
    %v814 = vrot.slane %v96, 1
    %v815 = vsel %vm228, %v813, %v814
    %v816 = vrot.slane %v97, 1
    %v817 = vrot.slane %v98, 1
    %v818 = vsel %vm228, %v816, %v817
    %819 = vrot.lane.b32.xlu0 %v815, 7
    %v820 = vpop.permute.xlu0 %819
    %821 = vrot.lane.b32.xlu0 %v814, 7
    %v822 = vpop.permute.xlu0 %821
    %823 = vrot.lane.b32.xlu0 %v818, 7
    %v824 = vpop.permute.xlu0 %823
    %825 = vrot.lane.b32.xlu0 %v817, 7
    %v826 = vpop.permute.xlu0 %825
    %831 = vrot.lane.b32.xlu0 %v797, 21
    %v832 = vpop.permute.xlu0 %831
    %833 = vrot.lane.b32.xlu0 %v796, 21
    %v834 = vpop.permute.xlu0 %833
    %835 = vrot.lane.b32.xlu0 %v800, 21
    %v836 = vpop.permute.xlu0 %835
    %837 = vrot.lane.b32.xlu0 %v799, 21
    %v838 = vpop.permute.xlu0 %837
    %843 = vrot.lane.b32.xlu0 %v815, 36
    %v844 = vpop.permute.xlu0 %843
    %845 = vrot.lane.b32.xlu0 %v814, 36
    %v846 = vpop.permute.xlu0 %845
    %847 = vrot.lane.b32.xlu0 %v818, 36
    %v848 = vpop.permute.xlu0 %847
    %849 = vrot.lane.b32.xlu0 %v817, 36
    %v850 = vpop.permute.xlu0 %849
    %855 = vrot.lane.b32.xlu0 %v797, 50
    %v856 = vpop.permute.xlu0 %855
    %857 = vrot.lane.b32.xlu0 %v796, 50
    %v858 = vpop.permute.xlu0 %857
    %859 = vrot.lane.b32.xlu0 %v800, 50
    %v860 = vpop.permute.xlu0 %859
    %861 = vrot.lane.b32.xlu0 %v799, 50
    %v862 = vpop.permute.xlu0 %861
    %vm869 = vcmask 1045504
    %v870 = vrot.slane %v40, 2
    %v871 = vrot.slane %v41, 2
    %v872 = vsel %vm869, %v870, %v871
    %v873 = vrot.slane %v42, 2
    %v874 = vsel %vm869, %v871, %v873
    %v875 = vrot.slane %v43, 2
    %v876 = vrot.slane %v44, 2
    %v877 = vsel %vm869, %v875, %v876
    %v878 = vrot.slane %v45, 2
    %v879 = vsel %vm869, %v876, %v878
    %880 = vrot.lane.b32.xlu0 %v872, 67
    %v881 = vpop.permute.xlu0 %880
    %882 = vrot.lane.b32.xlu0 %v874, 67
    %v883 = vpop.permute.xlu0 %882
    %884 = vrot.lane.b32.xlu0 %v877, 67
    %v885 = vpop.permute.xlu0 %884
    %886 = vrot.lane.b32.xlu0 %v879, 67
    %v887 = vpop.permute.xlu0 %886
    %v894 = vrot.slane %v61, 2
    %v895 = vrot.slane %v62, 2
    %v896 = vsel %vm869, %v894, %v895
    %v897 = vrot.slane %v63, 2
    %v898 = vsel %vm869, %v895, %v897
    %v899 = vrot.slane %v64, 2
    %v900 = vrot.slane %v65, 2
    %v901 = vsel %vm869, %v899, %v900
    %v902 = vrot.slane %v66, 2
    %v903 = vsel %vm869, %v900, %v902
    %904 = vrot.lane.b32.xlu0 %v896, 82
    %v905 = vpop.permute.xlu0 %904
    %906 = vrot.lane.b32.xlu0 %v898, 82
    %v907 = vpop.permute.xlu0 %906
    %908 = vrot.lane.b32.xlu0 %v901, 82
    %v909 = vpop.permute.xlu0 %908
    %910 = vrot.lane.b32.xlu0 %v903, 82
    %v911 = vpop.permute.xlu0 %910
    %916 = vrot.lane.b32.xlu0 %v872, 96
    %v917 = vpop.permute.xlu0 %916
    %918 = vrot.lane.b32.xlu0 %v874, 96
    %v919 = vpop.permute.xlu0 %918
    %920 = vrot.lane.b32.xlu0 %v877, 96
    %v921 = vpop.permute.xlu0 %920
    %922 = vrot.lane.b32.xlu0 %v879, 96
    %v923 = vpop.permute.xlu0 %922
    %v928 = vsel %vm319, %v688, %v700
    %v929 = vsel %vm319, %v690, %v702
    %v930 = vsel %vm319, %v692, %v704
    %v931 = vsel %vm319, %v694, %v706
    %v932 = vsel %vm324, %v928, %v712
    %v933 = vsel %vm324, %v929, %v714
    %v934 = vsel %vm324, %v930, %v716
    %v935 = vsel %vm324, %v931, %v718
    %v936 = vsel %vm329, %v932, %v730
    %v937 = vsel %vm329, %v933, %v732
    %v938 = vsel %vm329, %v934, %v734
    %v939 = vsel %vm329, %v935, %v736
    %v940 = vsel %vm334, %v936, %v748
    %v941 = vsel %vm334, %v937, %v750
    %v942 = vsel %vm334, %v938, %v752
    %v943 = vsel %vm334, %v939, %v754
    %v944 = vsel %vm339, %v940, %v760
    %v945 = vsel %vm339, %v941, %v762
    %v946 = vsel %vm339, %v942, %v764
    %v947 = vsel %vm339, %v943, %v766
    %v948 = vsel %vm344, %v944, %v772
    %v949 = vsel %vm344, %v945, %v774
    %v950 = vsel %vm344, %v946, %v776
    %v951 = vsel %vm344, %v947, %v778
    %v952 = vsel %vm349, %v948, %v784
    %v953 = vsel %vm349, %v949, %v786
    %v954 = vsel %vm349, %v950, %v788
    %v955 = vsel %vm349, %v951, %v790
    %v956 = vsel %vm354, %v952, %v802
    %v957 = vsel %vm354, %v953, %v804
    %v958 = vsel %vm354, %v954, %v806
    %v959 = vsel %vm354, %v955, %v808
    %v960 = vsel %vm359, %v802, %v820
    %v961 = vsel %vm359, %v804, %v822
    %v962 = vsel %vm359, %v806, %v824
    %v963 = vsel %vm359, %v808, %v826
    %v964 = vsel %vm364, %v960, %v832
    %v965 = vsel %vm364, %v961, %v834
    %v966 = vsel %vm364, %v962, %v836
    %v967 = vsel %vm364, %v963, %v838
    %v968 = vsel %vm369, %v964, %v844
    %v969 = vsel %vm369, %v965, %v846
    %v970 = vsel %vm369, %v966, %v848
    %v971 = vsel %vm369, %v967, %v850
    %v972 = vsel %vm374, %v968, %v856
    %v973 = vsel %vm374, %v969, %v858
    %v974 = vsel %vm374, %v970, %v860
    %v975 = vsel %vm374, %v971, %v862
    %v976 = vsel %vm379, %v972, %v881
    %v977 = vsel %vm379, %v973, %v883
    %v978 = vsel %vm379, %v974, %v885
    %v979 = vsel %vm379, %v975, %v887
    %v980 = vsel %vm384, %v976, %v905
    %v981 = vsel %vm384, %v977, %v907
    %v982 = vsel %vm384, %v978, %v909
    %v983 = vsel %vm384, %v979, %v911
    %v984 = vsel %vm389, %v980, %v917
    %v985 = vsel %vm389, %v981, %v919
    %v986 = vsel %vm389, %v982, %v921
    %v987 = vsel %vm389, %v983, %v923
    %988 = vrot.lane.b32.xlu0 %v61, 127
    %v989 = vpop.permute.xlu0 %988
    %990 = vrot.lane.b32.xlu0 %v62, 127
    %v991 = vpop.permute.xlu0 %990
    %992 = vrot.lane.b32.xlu0 %v63, 127
    %v993 = vpop.permute.xlu0 %992
    %994 = vrot.lane.b32.xlu0 %v64, 127
    %v995 = vpop.permute.xlu0 %994
    %996 = vrot.lane.b32.xlu0 %v65, 127
    %v997 = vpop.permute.xlu0 %996
    %998 = vrot.lane.b32.xlu0 %v66, 127
    %v999 = vpop.permute.xlu0 %998
    %1006 = vrot.lane.b32.xlu0 %v40, 13
    %v1007 = vpop.permute.xlu0 %1006
    %1008 = vrot.lane.b32.xlu0 %v41, 13
    %v1009 = vpop.permute.xlu0 %1008
    %1010 = vrot.lane.b32.xlu0 %v42, 13
    %v1011 = vpop.permute.xlu0 %1010
    %1012 = vrot.lane.b32.xlu0 %v43, 13
    %v1013 = vpop.permute.xlu0 %1012
    %1014 = vrot.lane.b32.xlu0 %v44, 13
    %v1015 = vpop.permute.xlu0 %1014
    %1016 = vrot.lane.b32.xlu0 %v45, 13
    %v1017 = vpop.permute.xlu0 %1016
    %vm1028 = vcmask 1041408
    %v1029 = vrot.slane %v47, 6
    %v1030 = vrot.slane %v48, 6
    %v1031 = vsel %vm1028, %v1029, %v1030
    %v1032 = vrot.slane %v50, 6
    %v1033 = vrot.slane %v51, 6
    %v1034 = vsel %vm1028, %v1032, %v1033
    %1035 = vrot.lane.b32.xlu0 %v1029, 30
    %v1036 = vpop.permute.xlu0 %1035
    %1037 = vrot.lane.b32.xlu0 %v1031, 30
    %v1038 = vpop.permute.xlu0 %1037
    %1039 = vrot.lane.b32.xlu0 %v1030, 30
    %v1040 = vpop.permute.xlu0 %1039
    %1041 = vrot.lane.b32.xlu0 %v1032, 30
    %v1042 = vpop.permute.xlu0 %1041
    %1043 = vrot.lane.b32.xlu0 %v1034, 30
    %v1044 = vpop.permute.xlu0 %1043
    %1045 = vrot.lane.b32.xlu0 %v1033, 30
    %v1046 = vpop.permute.xlu0 %1045
    %v1057 = vrot.slane %v68, 6
    %v1058 = vrot.slane %v69, 6
    %v1059 = vsel %vm1028, %v1057, %v1058
    %v1060 = vrot.slane %v71, 6
    %v1061 = vrot.slane %v72, 6
    %v1062 = vsel %vm1028, %v1060, %v1061
    %1063 = vrot.lane.b32.xlu0 %v1057, 45
    %v1064 = vpop.permute.xlu0 %1063
    %1065 = vrot.lane.b32.xlu0 %v1059, 45
    %v1066 = vpop.permute.xlu0 %1065
    %1067 = vrot.lane.b32.xlu0 %v1058, 45
    %v1068 = vpop.permute.xlu0 %1067
    %1069 = vrot.lane.b32.xlu0 %v1060, 45
    %v1070 = vpop.permute.xlu0 %1069
    %1071 = vrot.lane.b32.xlu0 %v1062, 45
    %v1072 = vpop.permute.xlu0 %1071
    %1073 = vrot.lane.b32.xlu0 %v1061, 45
    %v1074 = vpop.permute.xlu0 %1073
    %1081 = vrot.lane.b32.xlu0 %v1029, 59
    %v1082 = vpop.permute.xlu0 %1081
    %1083 = vrot.lane.b32.xlu0 %v1031, 59
    %v1084 = vpop.permute.xlu0 %1083
    %1085 = vrot.lane.b32.xlu0 %v1030, 59
    %v1086 = vpop.permute.xlu0 %1085
    %1087 = vrot.lane.b32.xlu0 %v1032, 59
    %v1088 = vpop.permute.xlu0 %1087
    %1089 = vrot.lane.b32.xlu0 %v1034, 59
    %v1090 = vpop.permute.xlu0 %1089
    %1091 = vrot.lane.b32.xlu0 %v1033, 59
    %v1092 = vpop.permute.xlu0 %1091
    %1099 = vrot.lane.b32.xlu0 %v1057, 74
    %v1100 = vpop.permute.xlu0 %1099
    %1101 = vrot.lane.b32.xlu0 %v1059, 74
    %v1102 = vpop.permute.xlu0 %1101
    %1103 = vrot.lane.b32.xlu0 %v1058, 74
    %v1104 = vpop.permute.xlu0 %1103
    %1105 = vrot.lane.b32.xlu0 %v1060, 74
    %v1106 = vpop.permute.xlu0 %1105
    %1107 = vrot.lane.b32.xlu0 %v1062, 74
    %v1108 = vpop.permute.xlu0 %1107
    %1109 = vrot.lane.b32.xlu0 %v1061, 74
    %v1110 = vpop.permute.xlu0 %1109
    %1117 = vrot.lane.b32.xlu0 %v1029, 88
    %v1118 = vpop.permute.xlu0 %1117
    %1119 = vrot.lane.b32.xlu0 %v1031, 88
    %v1120 = vpop.permute.xlu0 %1119
    %1121 = vrot.lane.b32.xlu0 %v1030, 88
    %v1122 = vpop.permute.xlu0 %1121
    %1123 = vrot.lane.b32.xlu0 %v1032, 88
    %v1124 = vpop.permute.xlu0 %1123
    %1125 = vrot.lane.b32.xlu0 %v1034, 88
    %v1126 = vpop.permute.xlu0 %1125
    %1127 = vrot.lane.b32.xlu0 %v1033, 88
    %v1128 = vpop.permute.xlu0 %1127
    %v1139 = vrot.slane %v85, 6
    %v1140 = vrot.slane %v86, 6
    %v1141 = vsel %vm1028, %v1139, %v1140
    %v1142 = vrot.slane %v87, 6
    %v1143 = vrot.slane %v88, 6
    %v1144 = vsel %vm1028, %v1142, %v1143
    %1145 = vrot.lane.b32.xlu0 %v1139, 105
    %v1146 = vpop.permute.xlu0 %1145
    %1147 = vrot.lane.b32.xlu0 %v1141, 105
    %v1148 = vpop.permute.xlu0 %1147
    %1149 = vrot.lane.b32.xlu0 %v1140, 105
    %v1150 = vpop.permute.xlu0 %1149
    %1151 = vrot.lane.b32.xlu0 %v1142, 105
    %v1152 = vpop.permute.xlu0 %1151
    %1153 = vrot.lane.b32.xlu0 %v1144, 105
    %v1154 = vpop.permute.xlu0 %1153
    %1155 = vrot.lane.b32.xlu0 %v1143, 105
    %v1156 = vpop.permute.xlu0 %1155
    %v1167 = vrot.slane %v100, 6
    %v1168 = vrot.slane %v101, 6
    %v1169 = vsel %vm1028, %v1167, %v1168
    %v1170 = vrot.slane %v102, 6
    %v1171 = vrot.slane %v103, 6
    %v1172 = vsel %vm1028, %v1170, %v1171
    %1173 = vrot.lane.b32.xlu0 %v1167, 120
    %v1174 = vpop.permute.xlu0 %1173
    %1175 = vrot.lane.b32.xlu0 %v1169, 120
    %v1176 = vpop.permute.xlu0 %1175
    %1177 = vrot.lane.b32.xlu0 %v1168, 120
    %v1178 = vpop.permute.xlu0 %1177
    %1179 = vrot.lane.b32.xlu0 %v1170, 120
    %v1180 = vpop.permute.xlu0 %1179
    %1181 = vrot.lane.b32.xlu0 %v1172, 120
    %v1182 = vpop.permute.xlu0 %1181
    %1183 = vrot.lane.b32.xlu0 %v1171, 120
    %v1184 = vpop.permute.xlu0 %1183
    %1191 = vrot.lane.b32.xlu0 %v1139, 6
    %v1192 = vpop.permute.xlu0 %1191
    %1193 = vrot.lane.b32.xlu0 %v1141, 6
    %v1194 = vpop.permute.xlu0 %1193
    %1195 = vrot.lane.b32.xlu0 %v1140, 6
    %v1196 = vpop.permute.xlu0 %1195
    %1197 = vrot.lane.b32.xlu0 %v1142, 6
    %v1198 = vpop.permute.xlu0 %1197
    %1199 = vrot.lane.b32.xlu0 %v1144, 6
    %v1200 = vpop.permute.xlu0 %1199
    %1201 = vrot.lane.b32.xlu0 %v1143, 6
    %v1202 = vpop.permute.xlu0 %1201
    %1209 = vrot.lane.b32.xlu0 %v1167, 21
    %v1210 = vpop.permute.xlu0 %1209
    %1211 = vrot.lane.b32.xlu0 %v1169, 21
    %v1212 = vpop.permute.xlu0 %1211
    %1213 = vrot.lane.b32.xlu0 %v1168, 21
    %v1214 = vpop.permute.xlu0 %1213
    %1215 = vrot.lane.b32.xlu0 %v1170, 21
    %v1216 = vpop.permute.xlu0 %1215
    %1217 = vrot.lane.b32.xlu0 %v1172, 21
    %v1218 = vpop.permute.xlu0 %1217
    %1219 = vrot.lane.b32.xlu0 %v1171, 21
    %v1220 = vpop.permute.xlu0 %1219
    %1227 = vrot.lane.b32.xlu0 %v1139, 35
    %v1228 = vpop.permute.xlu0 %1227
    %1229 = vrot.lane.b32.xlu0 %v1141, 35
    %v1230 = vpop.permute.xlu0 %1229
    %1231 = vrot.lane.b32.xlu0 %v1140, 35
    %v1232 = vpop.permute.xlu0 %1231
    %1233 = vrot.lane.b32.xlu0 %v1142, 35
    %v1234 = vpop.permute.xlu0 %1233
    %1235 = vrot.lane.b32.xlu0 %v1144, 35
    %v1236 = vpop.permute.xlu0 %1235
    %1237 = vrot.lane.b32.xlu0 %v1143, 35
    %v1238 = vpop.permute.xlu0 %1237
    %v1245 = vrot.slane %v47, 7
    %v1246 = vrot.slane %v48, 7
    %v1247 = vsel %vm506, %v1245, %v1246
    %v1248 = vrot.slane %v50, 7
    %v1249 = vrot.slane %v51, 7
    %v1250 = vsel %vm506, %v1248, %v1249
    %1251 = vrot.lane.b32.xlu0 %v1245, 52
    %v1252 = vpop.permute.xlu0 %1251
    %1253 = vrot.lane.b32.xlu0 %v1247, 52
    %v1254 = vpop.permute.xlu0 %1253
    %1255 = vrot.lane.b32.xlu0 %v1246, 52
    %v1256 = vpop.permute.xlu0 %1255
    %1257 = vrot.lane.b32.xlu0 %v1248, 52
    %v1258 = vpop.permute.xlu0 %1257
    %1259 = vrot.lane.b32.xlu0 %v1250, 52
    %v1260 = vpop.permute.xlu0 %1259
    %1261 = vrot.lane.b32.xlu0 %v1249, 52
    %v1262 = vpop.permute.xlu0 %1261
    %v1269 = vrot.slane %v68, 7
    %v1270 = vrot.slane %v69, 7
    %v1271 = vsel %vm506, %v1269, %v1270
    %v1272 = vrot.slane %v71, 7
    %v1273 = vrot.slane %v72, 7
    %v1274 = vsel %vm506, %v1272, %v1273
    %1275 = vrot.lane.b32.xlu0 %v1269, 67
    %v1276 = vpop.permute.xlu0 %1275
    %1277 = vrot.lane.b32.xlu0 %v1271, 67
    %v1278 = vpop.permute.xlu0 %1277
    %1279 = vrot.lane.b32.xlu0 %v1270, 67
    %v1280 = vpop.permute.xlu0 %1279
    %1281 = vrot.lane.b32.xlu0 %v1272, 67
    %v1282 = vpop.permute.xlu0 %1281
    %1283 = vrot.lane.b32.xlu0 %v1274, 67
    %v1284 = vpop.permute.xlu0 %1283
    %1285 = vrot.lane.b32.xlu0 %v1273, 67
    %v1286 = vpop.permute.xlu0 %1285
    %1293 = vrot.lane.b32.xlu0 %v1245, 81
    %v1294 = vpop.permute.xlu0 %1293
    %1295 = vrot.lane.b32.xlu0 %v1247, 81
    %v1296 = vpop.permute.xlu0 %1295
    %1297 = vrot.lane.b32.xlu0 %v1246, 81
    %v1298 = vpop.permute.xlu0 %1297
    %1299 = vrot.lane.b32.xlu0 %v1248, 81
    %v1300 = vpop.permute.xlu0 %1299
    %1301 = vrot.lane.b32.xlu0 %v1250, 81
    %v1302 = vpop.permute.xlu0 %1301
    %1303 = vrot.lane.b32.xlu0 %v1249, 81
    %v1304 = vpop.permute.xlu0 %1303
    %1311 = vrot.lane.b32.xlu0 %v1269, 96
    %v1312 = vpop.permute.xlu0 %1311
    %1313 = vrot.lane.b32.xlu0 %v1271, 96
    %v1314 = vpop.permute.xlu0 %1313
    %1315 = vrot.lane.b32.xlu0 %v1270, 96
    %v1316 = vpop.permute.xlu0 %1315
    %1317 = vrot.lane.b32.xlu0 %v1272, 96
    %v1318 = vpop.permute.xlu0 %1317
    %1319 = vrot.lane.b32.xlu0 %v1274, 96
    %v1320 = vpop.permute.xlu0 %1319
    %1321 = vrot.lane.b32.xlu0 %v1273, 96
    %v1322 = vpop.permute.xlu0 %1321
    %v1329 = vsel %vm319, %v989, %v1007
    %v1330 = vsel %vm319, %v991, %v1009
    %v1331 = vsel %vm319, %v993, %v1011
    %v1332 = vsel %vm319, %v995, %v1013
    %v1333 = vsel %vm319, %v997, %v1015
    %v1334 = vsel %vm319, %v999, %v1017
    %v1335 = vsel %vm324, %v1329, %v1036
    %v1336 = vsel %vm324, %v1330, %v1038
    %v1337 = vsel %vm324, %v1331, %v1040
    %v1338 = vsel %vm324, %v1332, %v1042
    %v1339 = vsel %vm324, %v1333, %v1044
    %v1340 = vsel %vm324, %v1334, %v1046
    %v1341 = vsel %vm329, %v1335, %v1064
    %v1342 = vsel %vm329, %v1336, %v1066
    %v1343 = vsel %vm329, %v1337, %v1068
    %v1344 = vsel %vm329, %v1338, %v1070
    %v1345 = vsel %vm329, %v1339, %v1072
    %v1346 = vsel %vm329, %v1340, %v1074
    %v1347 = vsel %vm334, %v1341, %v1082
    %v1348 = vsel %vm334, %v1342, %v1084
    %v1349 = vsel %vm334, %v1343, %v1086
    %v1350 = vsel %vm334, %v1344, %v1088
    %v1351 = vsel %vm334, %v1345, %v1090
    %v1352 = vsel %vm334, %v1346, %v1092
    %v1353 = vsel %vm339, %v1347, %v1100
    %v1354 = vsel %vm339, %v1348, %v1102
    %v1355 = vsel %vm339, %v1349, %v1104
    %v1356 = vsel %vm339, %v1350, %v1106
    %v1357 = vsel %vm339, %v1351, %v1108
    %v1358 = vsel %vm339, %v1352, %v1110
    %v1359 = vsel %vm344, %v1353, %v1118
    %v1360 = vsel %vm344, %v1354, %v1120
    %v1361 = vsel %vm344, %v1355, %v1122
    %v1362 = vsel %vm344, %v1356, %v1124
    %v1363 = vsel %vm344, %v1357, %v1126
    %v1364 = vsel %vm344, %v1358, %v1128
    %v1365 = vsel %vm349, %v1359, %v1146
    %v1366 = vsel %vm349, %v1360, %v1148
    %v1367 = vsel %vm349, %v1361, %v1150
    %v1368 = vsel %vm349, %v1362, %v1152
    %v1369 = vsel %vm349, %v1363, %v1154
    %v1370 = vsel %vm349, %v1364, %v1156
    %v1371 = vsel %vm354, %v1365, %v1174
    %v1372 = vsel %vm354, %v1366, %v1176
    %v1373 = vsel %vm354, %v1367, %v1178
    %v1374 = vsel %vm354, %v1368, %v1180
    %v1375 = vsel %vm354, %v1369, %v1182
    %v1376 = vsel %vm354, %v1370, %v1184
    %v1377 = vsel %vm359, %v1174, %v1192
    %v1378 = vsel %vm359, %v1176, %v1194
    %v1379 = vsel %vm359, %v1178, %v1196
    %v1380 = vsel %vm359, %v1180, %v1198
    %v1381 = vsel %vm359, %v1182, %v1200
    %v1382 = vsel %vm359, %v1184, %v1202
    %v1383 = vsel %vm364, %v1377, %v1210
    %v1384 = vsel %vm364, %v1378, %v1212
    %v1385 = vsel %vm364, %v1379, %v1214
    %v1386 = vsel %vm364, %v1380, %v1216
    %v1387 = vsel %vm364, %v1381, %v1218
    %v1388 = vsel %vm364, %v1382, %v1220
    %v1389 = vsel %vm369, %v1383, %v1228
    %v1390 = vsel %vm369, %v1384, %v1230
    %v1391 = vsel %vm369, %v1385, %v1232
    %v1392 = vsel %vm369, %v1386, %v1234
    %v1393 = vsel %vm369, %v1387, %v1236
    %v1394 = vsel %vm369, %v1388, %v1238
    %v1395 = vsel %vm374, %v1389, %v1252
    %v1396 = vsel %vm374, %v1390, %v1254
    %v1397 = vsel %vm374, %v1391, %v1256
    %v1398 = vsel %vm374, %v1392, %v1258
    %v1399 = vsel %vm374, %v1393, %v1260
    %v1400 = vsel %vm374, %v1394, %v1262
    %v1401 = vsel %vm379, %v1395, %v1276
    %v1402 = vsel %vm379, %v1396, %v1278
    %v1403 = vsel %vm379, %v1397, %v1280
    %v1404 = vsel %vm379, %v1398, %v1282
    %v1405 = vsel %vm379, %v1399, %v1284
    %v1406 = vsel %vm379, %v1400, %v1286
    %v1407 = vsel %vm384, %v1401, %v1294
    %v1408 = vsel %vm384, %v1402, %v1296
    %v1409 = vsel %vm384, %v1403, %v1298
    %v1410 = vsel %vm384, %v1404, %v1300
    %v1411 = vsel %vm384, %v1405, %v1302
    %v1412 = vsel %vm384, %v1406, %v1304
    %v1413 = vsel %vm389, %v1407, %v1312
    %v1414 = vsel %vm389, %v1408, %v1314
    %v1415 = vsel %vm389, %v1409, %v1316
    %v1416 = vsel %vm389, %v1410, %v1318
    %v1417 = vsel %vm389, %v1411, %v1320
    %v1418 = vsel %vm389, %v1412, %v1322
    %1419 = vrot.lane.b32.xlu0 %v47, 126
    %v1420 = vpop.permute.xlu0 %1419
    %1421 = vrot.lane.b32.xlu0 %v48, 126
    %v1422 = vpop.permute.xlu0 %1421
    %1423 = vrot.lane.b32.xlu0 %v50, 126
    %v1424 = vpop.permute.xlu0 %1423
    %1425 = vrot.lane.b32.xlu0 %v51, 126
    %v1426 = vpop.permute.xlu0 %1425
    %1431 = vrot.lane.b32.xlu0 %v85, 15
    %v1432 = vpop.permute.xlu0 %1431
    %1433 = vrot.lane.b32.xlu0 %v86, 15
    %v1434 = vpop.permute.xlu0 %1433
    %1435 = vrot.lane.b32.xlu0 %v87, 15
    %v1436 = vpop.permute.xlu0 %1435
    %1437 = vrot.lane.b32.xlu0 %v88, 15
    %v1438 = vpop.permute.xlu0 %1437
    %1443 = vrot.lane.b32.xlu0 %v100, 30
    %v1444 = vpop.permute.xlu0 %1443
    %1445 = vrot.lane.b32.xlu0 %v101, 30
    %v1446 = vpop.permute.xlu0 %1445
    %1447 = vrot.lane.b32.xlu0 %v102, 30
    %v1448 = vpop.permute.xlu0 %1447
    %1449 = vrot.lane.b32.xlu0 %v103, 30
    %v1450 = vpop.permute.xlu0 %1449
    %1455 = vrot.lane.b32.xlu0 %v85, 44
    %v1456 = vpop.permute.xlu0 %1455
    %1457 = vrot.lane.b32.xlu0 %v86, 44
    %v1458 = vpop.permute.xlu0 %1457
    %1459 = vrot.lane.b32.xlu0 %v87, 44
    %v1460 = vpop.permute.xlu0 %1459
    %1461 = vrot.lane.b32.xlu0 %v88, 44
    %v1462 = vpop.permute.xlu0 %1461
    %1467 = vrot.lane.b32.xlu0 %v100, 59
    %v1468 = vpop.permute.xlu0 %1467
    %1469 = vrot.lane.b32.xlu0 %v101, 59
    %v1470 = vpop.permute.xlu0 %1469
    %1471 = vrot.lane.b32.xlu0 %v102, 59
    %v1472 = vpop.permute.xlu0 %1471
    %1473 = vrot.lane.b32.xlu0 %v103, 59
    %v1474 = vpop.permute.xlu0 %1473
    %1479 = vrot.lane.b32.xlu0 %v85, 73
    %v1480 = vpop.permute.xlu0 %1479
    %1481 = vrot.lane.b32.xlu0 %v86, 73
    %v1482 = vpop.permute.xlu0 %1481
    %1483 = vrot.lane.b32.xlu0 %v87, 73
    %v1484 = vpop.permute.xlu0 %1483
    %1485 = vrot.lane.b32.xlu0 %v88, 73
    %v1486 = vpop.permute.xlu0 %1485
    %v1493 = vrot.slane %v47, 1
    %v1494 = vrot.slane %v48, 1
    %v1495 = vsel %vm228, %v1493, %v1494
    %v1496 = vrot.slane %v49, 1
    %v1497 = vsel %vm228, %v1494, %v1496
    %v1498 = vrot.slane %v50, 1
    %v1499 = vrot.slane %v51, 1
    %v1500 = vsel %vm228, %v1498, %v1499
    %v1501 = vrot.slane %v52, 1
    %v1502 = vsel %vm228, %v1499, %v1501
    %1503 = vrot.lane.b32.xlu0 %v1495, 90
    %v1504 = vpop.permute.xlu0 %1503
    %1505 = vrot.lane.b32.xlu0 %v1497, 90
    %v1506 = vpop.permute.xlu0 %1505
    %1507 = vrot.lane.b32.xlu0 %v1500, 90
    %v1508 = vpop.permute.xlu0 %1507
    %1509 = vrot.lane.b32.xlu0 %v1502, 90
    %v1510 = vpop.permute.xlu0 %1509
    %v1517 = vrot.slane %v68, 1
    %v1518 = vrot.slane %v69, 1
    %v1519 = vsel %vm228, %v1517, %v1518
    %v1520 = vrot.slane %v70, 1
    %v1521 = vsel %vm228, %v1518, %v1520
    %v1522 = vrot.slane %v71, 1
    %v1523 = vrot.slane %v72, 1
    %v1524 = vsel %vm228, %v1522, %v1523
    %v1525 = vrot.slane %v73, 1
    %v1526 = vsel %vm228, %v1523, %v1525
    %1527 = vrot.lane.b32.xlu0 %v1519, 105
    %v1528 = vpop.permute.xlu0 %1527
    %1529 = vrot.lane.b32.xlu0 %v1521, 105
    %v1530 = vpop.permute.xlu0 %1529
    %1531 = vrot.lane.b32.xlu0 %v1524, 105
    %v1532 = vpop.permute.xlu0 %1531
    %1533 = vrot.lane.b32.xlu0 %v1526, 105
    %v1534 = vpop.permute.xlu0 %1533
    %1539 = vrot.lane.b32.xlu0 %v1495, 119
    %v1540 = vpop.permute.xlu0 %1539
    %1541 = vrot.lane.b32.xlu0 %v1497, 119
    %v1542 = vpop.permute.xlu0 %1541
    %1543 = vrot.lane.b32.xlu0 %v1500, 119
    %v1544 = vpop.permute.xlu0 %1543
    %1545 = vrot.lane.b32.xlu0 %v1502, 119
    %v1546 = vpop.permute.xlu0 %1545
    %1551 = vrot.lane.b32.xlu0 %v1519, 6
    %v1552 = vpop.permute.xlu0 %1551
    %1553 = vrot.lane.b32.xlu0 %v1521, 6
    %v1554 = vpop.permute.xlu0 %1553
    %1555 = vrot.lane.b32.xlu0 %v1524, 6
    %v1556 = vpop.permute.xlu0 %1555
    %1557 = vrot.lane.b32.xlu0 %v1526, 6
    %v1558 = vpop.permute.xlu0 %1557
    %1563 = vrot.lane.b32.xlu0 %v1495, 20
    %v1564 = vpop.permute.xlu0 %1563
    %1565 = vrot.lane.b32.xlu0 %v1497, 20
    %v1566 = vpop.permute.xlu0 %1565
    %1567 = vrot.lane.b32.xlu0 %v1500, 20
    %v1568 = vpop.permute.xlu0 %1567
    %1569 = vrot.lane.b32.xlu0 %v1502, 20
    %v1570 = vpop.permute.xlu0 %1569
    %v1575 = vsel %vm319, %v1420, %v1432
    %v1576 = vsel %vm319, %v1422, %v1434
    %v1577 = vsel %vm319, %v1424, %v1436
    %v1578 = vsel %vm319, %v1426, %v1438
    %v1579 = vsel %vm324, %v1575, %v1444
    %v1580 = vsel %vm324, %v1576, %v1446
    %v1581 = vsel %vm324, %v1577, %v1448
    %v1582 = vsel %vm324, %v1578, %v1450
    %v1583 = vsel %vm329, %v1579, %v1456
    %v1584 = vsel %vm329, %v1580, %v1458
    %v1585 = vsel %vm329, %v1581, %v1460
    %v1586 = vsel %vm329, %v1582, %v1462
    %v1587 = vsel %vm334, %v1583, %v1468
    %v1588 = vsel %vm334, %v1584, %v1470
    %v1589 = vsel %vm334, %v1585, %v1472
    %v1590 = vsel %vm334, %v1586, %v1474
    %v1591 = vsel %vm339, %v1587, %v1480
    %v1592 = vsel %vm339, %v1588, %v1482
    %v1593 = vsel %vm339, %v1589, %v1484
    %v1594 = vsel %vm339, %v1590, %v1486
    %v1595 = vsel %vm344, %v1591, %v1504
    %v1596 = vsel %vm344, %v1592, %v1506
    %v1597 = vsel %vm344, %v1593, %v1508
    %v1598 = vsel %vm344, %v1594, %v1510
    %v1599 = vsel %vm349, %v1595, %v1528
    %v1600 = vsel %vm349, %v1596, %v1530
    %v1601 = vsel %vm349, %v1597, %v1532
    %v1602 = vsel %vm349, %v1598, %v1534
    %v1603 = vsel %vm354, %v1599, %v1540
    %v1604 = vsel %vm354, %v1600, %v1542
    %v1605 = vsel %vm354, %v1601, %v1544
    %v1606 = vsel %vm354, %v1602, %v1546
    %v1607 = vsel %vm359, %v1540, %v1552
    %v1608 = vsel %vm359, %v1542, %v1554
    %v1609 = vsel %vm359, %v1544, %v1556
    %v1610 = vsel %vm359, %v1546, %v1558
    %v1611 = vsel %vm364, %v1607, %v1564
    %v1612 = vsel %vm364, %v1608, %v1566
    %v1613 = vsel %vm364, %v1609, %v1568
    %v1614 = vsel %vm364, %v1610, %v1570
    %v1623 = vrot.slane %v655, 1
    %v1624 = vrot.slane %v656, 1
    %v1625 = vsel %vm228, %v1623, %v1624
    %v1626 = vrot.slane %v683, 1
    %v1627 = vrot.slane %v684, 1
    %v1628 = vsel %vm228, %v1626, %v1627
    %v1629 = vrot.slane %v657, 1
    %v1630 = vrot.slane %v658, 1
    %v1631 = vsel %vm228, %v1629, %v1630
    %v1632 = vrot.slane %v685, 1
    %v1633 = vrot.slane %v686, 1
    %v1634 = vsel %vm228, %v1632, %v1633
    %1635 = vrot.lane.b32.xlu0 %v1625, 112
    %v1636 = vpop.permute.xlu0 %1635
    %1637 = vrot.lane.b32.xlu0 %v1628, 112
    %v1638 = vpop.permute.xlu0 %1637
    %1639 = vrot.lane.b32.xlu0 %v1624, 112
    %v1640 = vpop.permute.xlu0 %1639
    %1641 = vrot.lane.b32.xlu0 %v1627, 112
    %v1642 = vpop.permute.xlu0 %1641
    %1643 = vrot.lane.b32.xlu0 %v1631, 112
    %v1644 = vpop.permute.xlu0 %1643
    %1645 = vrot.lane.b32.xlu0 %v1634, 112
    %v1646 = vpop.permute.xlu0 %1645
    %1647 = vrot.lane.b32.xlu0 %v1630, 112
    %v1648 = vpop.permute.xlu0 %1647
    %1649 = vrot.lane.b32.xlu0 %v1633, 112
    %v1650 = vpop.permute.xlu0 %1649
    %vm1651 = vcmask 916480
    %v1652 = vsel %vm1651, %v1636, %v1638
    %v1653 = vsel %vm1651, %v1640, %v1642
    %v1654 = vsel %vm1651, %v1644, %v1646
    %v1655 = vsel %vm1651, %v1648, %v1650
    %1676 = vrot.lane.b32.xlu0 %v956, 96
    %v1677 = vpop.permute.xlu0 %1676
    %1678 = vrot.lane.b32.xlu0 %v984, 96
    %v1679 = vpop.permute.xlu0 %1678
    %1680 = vrot.lane.b32.xlu0 %v957, 96
    %v1681 = vpop.permute.xlu0 %1680
    %1682 = vrot.lane.b32.xlu0 %v985, 96
    %v1683 = vpop.permute.xlu0 %1682
    %1684 = vrot.lane.b32.xlu0 %v958, 96
    %v1685 = vpop.permute.xlu0 %1684
    %1686 = vrot.lane.b32.xlu0 %v986, 96
    %v1687 = vpop.permute.xlu0 %1686
    %1688 = vrot.lane.b32.xlu0 %v959, 96
    %v1689 = vpop.permute.xlu0 %1688
    %1690 = vrot.lane.b32.xlu0 %v987, 96
    %v1691 = vpop.permute.xlu0 %1690
    %vm1692 = vcmask 785408
    %v1693 = vsel %vm1692, %v1677, %v1679
    %v1694 = vsel %vm1692, %v1681, %v1683
    %v1695 = vsel %vm1692, %v1685, %v1687
    %v1696 = vsel %vm1692, %v1689, %v1691
    %v1721 = vrot.slane %v1371, 2
    %v1722 = vrot.slane %v1372, 2
    %v1723 = vsel %vm869, %v1721, %v1722
    %v1724 = vrot.slane %v1413, 2
    %v1725 = vrot.slane %v1414, 2
    %v1726 = vsel %vm869, %v1724, %v1725
    %v1727 = vrot.slane %v1373, 2
    %v1728 = vsel %vm869, %v1722, %v1727
    %v1729 = vrot.slane %v1415, 2
    %v1730 = vsel %vm869, %v1725, %v1729
    %v1731 = vrot.slane %v1374, 2
    %v1732 = vrot.slane %v1375, 2
    %v1733 = vsel %vm869, %v1731, %v1732
    %v1734 = vrot.slane %v1416, 2
    %v1735 = vrot.slane %v1417, 2
    %v1736 = vsel %vm869, %v1734, %v1735
    %v1737 = vrot.slane %v1376, 2
    %v1738 = vsel %vm869, %v1732, %v1737
    %v1739 = vrot.slane %v1418, 2
    %v1740 = vsel %vm869, %v1735, %v1739
    %1741 = vrot.lane.b32.xlu0 %v1723, 80
    %v1742 = vpop.permute.xlu0 %1741
    %1743 = vrot.lane.b32.xlu0 %v1726, 80
    %v1744 = vpop.permute.xlu0 %1743
    %1745 = vrot.lane.b32.xlu0 %v1728, 80
    %v1746 = vpop.permute.xlu0 %1745
    %1747 = vrot.lane.b32.xlu0 %v1730, 80
    %v1748 = vpop.permute.xlu0 %1747
    %1749 = vrot.lane.b32.xlu0 %v1733, 80
    %v1750 = vpop.permute.xlu0 %1749
    %1751 = vrot.lane.b32.xlu0 %v1736, 80
    %v1752 = vpop.permute.xlu0 %1751
    %1753 = vrot.lane.b32.xlu0 %v1738, 80
    %v1754 = vpop.permute.xlu0 %1753
    %1755 = vrot.lane.b32.xlu0 %v1740, 80
    %v1756 = vpop.permute.xlu0 %1755
    %vm1757 = vcmask 654336
    %v1758 = vsel %vm1757, %v1742, %v1744
    %v1759 = vsel %vm1757, %v1746, %v1748
    %v1760 = vsel %vm1757, %v1750, %v1752
    %v1761 = vsel %vm1757, %v1754, %v1756
    %v1782 = vrot.slane %v1603, 1
    %v1783 = vrot.slane %v1604, 1
    %v1784 = vsel %vm228, %v1782, %v1783
    %v1785 = vrot.slane %v1611, 1
    %v1786 = vrot.slane %v1612, 1
    %v1787 = vsel %vm228, %v1785, %v1786
    %v1788 = vrot.slane %v1605, 1
    %v1789 = vrot.slane %v1606, 1
    %v1790 = vsel %vm228, %v1788, %v1789
    %v1791 = vrot.slane %v1613, 1
    %v1792 = vrot.slane %v1614, 1
    %v1793 = vsel %vm228, %v1791, %v1792
    %1794 = vrot.lane.b32.xlu0 %v1784, 64
    %v1795 = vpop.permute.xlu0 %1794
    %1796 = vrot.lane.b32.xlu0 %v1787, 64
    %v1797 = vpop.permute.xlu0 %1796
    %1798 = vrot.lane.b32.xlu0 %v1783, 64
    %v1799 = vpop.permute.xlu0 %1798
    %1800 = vrot.lane.b32.xlu0 %v1786, 64
    %v1801 = vpop.permute.xlu0 %1800
    %1802 = vrot.lane.b32.xlu0 %v1790, 64
    %v1803 = vpop.permute.xlu0 %1802
    %1804 = vrot.lane.b32.xlu0 %v1793, 64
    %v1805 = vpop.permute.xlu0 %1804
    %1806 = vrot.lane.b32.xlu0 %v1789, 64
    %v1807 = vpop.permute.xlu0 %1806
    %1808 = vrot.lane.b32.xlu0 %v1792, 64
    %v1809 = vpop.permute.xlu0 %1808
    %vm1810 = vcmask 523264
    %v1811 = vsel %vm1810, %v1795, %v1797
    %v1812 = vsel %vm1810, %v1799, %v1801
    %v1813 = vsel %vm1810, %v1803, %v1805
    %v1814 = vsel %vm1810, %v1807, %v1809
    %v1819 = vsel %vm1651, %v390, %v1636
    %v1820 = vsel %vm1651, %v391, %v1640
    %v1821 = vsel %vm1651, %v392, %v1644
    %v1822 = vsel %vm1651, %v393, %v1648
    %v1823 = vsel %vm1692, %v1638, %v1677
    %v1824 = vsel %vm1692, %v1642, %v1681
    %v1825 = vsel %vm1692, %v1646, %v1685
    %v1826 = vsel %vm1692, %v1650, %v1689
    %v1827 = vsel %vm1757, %v1679, %v1742
    %v1828 = vsel %vm1757, %v1683, %v1746
    %v1829 = vsel %vm1757, %v1687, %v1750
    %v1830 = vsel %vm1757, %v1691, %v1754
    %v1831 = vsel %vm1810, %v1744, %v1795
    %v1832 = vsel %vm1810, %v1748, %v1799
    %v1833 = vsel %vm1810, %v1752, %v1803
    %v1834 = vsel %vm1810, %v1756, %v1807
    %v1835 = vld [vmem:[%s1] sm:$0xff]
    %v1836 = vld [vmem:[%s1 + $0x8] sm:$0xff]
    %v1837 = vld [vmem:[%s1 + $0x10] sm:$0xff]
    %v1838 = vld [vmem:[%s1 + $0x18] sm:$0xff]
    %v1839 = vld [vmem:[%s1 + $0x20] sm:$0xff]
    %v1840 = vld [vmem:[%s1 + $0x28] sm:$0xff]
    %v1841 = vld [vmem:[%s1 + $0x30] sm:$0xff]
    %v1842 = vld [vmem:[%s1 + $0x38] sm:$0xff]
    %v1843 = vld [vmem:[%s1 + $0x40] sm:$0xff]
    %v1844 = vld [vmem:[%s1 + $0x48] sm:$0xff]
    %v1845 = vld [vmem:[%s1 + $0x50] sm:$0xff]
    %v1846 = vld [vmem:[%s1 + $0x58] sm:$0xff]
    %v1847 = vld [vmem:[%s1 + $0x60] sm:$0xff]
    %v1848 = vld [vmem:[%s1 + $0x68] sm:$0xff]
    %v1849 = vld [vmem:[%s1 + $0x70] sm:$0xff]
    %v1850 = vld [vmem:[%s1 + $0x78] sm:$0xff]
    %v1851 = vld [vmem:[%s1 + $0x80] sm:$0xff]
    %v1852 = vld [vmem:[%s1 + $0x88] sm:$0xff]
    %v1853 = vld [vmem:[%s1 + $0x90] sm:$0xff]
    %v1854 = vld [vmem:[%s1 + $0x98] sm:$0xff]
    %v1855 = vld [vmem:[%s1 + $0xa0] sm:$0xff]
    %v1856 = vld [vmem:[%s1 + $0xa8] sm:$0xff]
    %v1857 = vld [vmem:[%s1 + $0xb0] sm:$0xff]
    %v1858 = vld [vmem:[%s1 + $0xb8] sm:$0xff]
    %v1859 = vld [vmem:[%s1 + $0xc0] sm:$0xff]
    %v1860 = vld [vmem:[%s1 + $0xc8] sm:$0xff]
    %v1861 = vld [vmem:[%s1 + $0xd0] sm:$0xff]
    %v1862 = vld [vmem:[%s1 + $0xd8] sm:$0xff]
    %v1863 = vld [vmem:[%s1 + $0xe0] sm:$0xff]
    %v1864 = vld [vmem:[%s1 + $0xe8] sm:$0xff]
    %v1865 = vld [vmem:[%s1 + $0xf0] sm:$0xff]
    %v1866 = vld [vmem:[%s1 + $0xf8] sm:$0xff]
    %v1867 = vld [vmem:[%s1 + $0x100] sm:$0xff]
    %v1868 = vld [vmem:[%s1 + $0x108] sm:$0xff]
    %v1869 = vld [vmem:[%s1 + $0x110] sm:$0xff]
    %v1870 = vld [vmem:[%s1 + $0x118] sm:$0xff]
    %v1871 = vld [vmem:[%s1 + $0x120] sm:$0xff]
    %v1872 = vld [vmem:[%s1 + $0x128] sm:$0xff]
    %v1873 = vld [vmem:[%s1 + $0x130] sm:$0xff]
    %v1874 = vld [vmem:[%s1 + $0x138] sm:$0xff]
    %v1875 = vld [vmem:[%s1 + $0x140] sm:$0xff]
    %v1876 = vld [vmem:[%s1 + $0x148] sm:$0xff]
    %v1877 = vld [vmem:[%s1 + $0x150] sm:$0xff]
    %v1878 = vld [vmem:[%s1 + $0x158] sm:$0xff]
    %v1879 = vld [vmem:[%s1 + $0x160] sm:$0xff]
    %v1880 = vld [vmem:[%s1 + $0x168] sm:$0xff]
    %v1881 = vld [vmem:[%s1 + $0x170] sm:$0xff]
    %v1882 = vld [vmem:[%s1 + $0x178] sm:$0xff]
    %v1883 = vld [vmem:[%s1 + $0x180] sm:$0xff]
    %v1884 = vld [vmem:[%s1 + $0x188] sm:$0xff]
    %v1885 = vld [vmem:[%s1 + $0x190] sm:$0xff]
    %v1886 = vld [vmem:[%s1 + $0x198] sm:$0xff]
    %v1887 = vld [vmem:[%s1 + $0x1a0] sm:$0xff]
    %v1888 = vld [vmem:[%s1 + $0x1a8] sm:$0xff]
    %v1889 = vld [vmem:[%s1 + $0x1b0] sm:$0xff]
    %v1890 = vld [vmem:[%s1 + $0x1b8] sm:$0xff]
    %v1891 = vld [vmem:[%s1 + $0x1c0] sm:$0xff]
    %v1892 = vld [vmem:[%s1 + $0x1c8] sm:$0xff]
    %v1893 = vld [vmem:[%s1 + $0x1d0] sm:$0xff]
    %v1894 = vld [vmem:[%s1 + $0x1d8] sm:$0xff]
    %v1895 = vld [vmem:[%s1 + $0x1e0] sm:$0xff]
    %v1896 = vld [vmem:[%s1 + $0x1e8] sm:$0xff]
    %v1897 = vld [vmem:[%s1 + $0x1f0] sm:$0xff]
    %v1898 = vld [vmem:[%s1 + $0x1f8] sm:$0xff]
    %v1899 = vld [vmem:[%s1 + $0x200] sm:$0xff]
    %v1900 = vld [vmem:[%s1 + $0x208] sm:$0xff]
    %v1901 = vld [vmem:[%s1 + $0x210] sm:$0xff]
    %v1902 = vld [vmem:[%s1 + $0x218] sm:$0xff]
    %v1903 = vld [vmem:[%s1 + $0x220] sm:$0xff]
    %v1904 = vld [vmem:[%s1 + $0x228] sm:$0xff]
    %v1905 = vld [vmem:[%s1 + $0x230] sm:$0xff]
    %v1906 = vld [vmem:[%s1 + $0x238] sm:$0xff]
    %v1907 = vld [vmem:[%s1 + $0x240] sm:$0xff]
    %v1908 = vld [vmem:[%s1 + $0x248] sm:$0xff]
    %v1909 = vld [vmem:[%s1 + $0x250] sm:$0xff]
    %v1910 = vld [vmem:[%s1 + $0x258] sm:$0xff]
    %v1911 = vld [vmem:[%s1 + $0x260] sm:$0xff]
    %v1912 = vld [vmem:[%s1 + $0x268] sm:$0xff]
    %v1913 = vld [vmem:[%s1 + $0x270] sm:$0xff]
    %v1914 = vld [vmem:[%s1 + $0x278] sm:$0xff]
    %v1915 = vld [vmem:[%s1 + $0x280] sm:$0xff]
    %v1916 = vld [vmem:[%s1 + $0x288] sm:$0xff]
    %v1917 = vld [vmem:[%s1 + $0x290] sm:$0xff]
    %v1918 = vld [vmem:[%s1 + $0x298] sm:$0xff]
    %v1919 = vld [vmem:[%s1 + $0x2a0] sm:$0xff]
    %v1920 = vld [vmem:[%s1 + $0x2a8] sm:$0xff]
    %v1921 = vld [vmem:[%s1 + $0x2b0] sm:$0xff]
    %v1922 = vld [vmem:[%s1 + $0x2b8] sm:$0xff]
    %v1923 = vld [vmem:[%s1 + $0x2c0] sm:$0xff]
    %v1924 = vld [vmem:[%s1 + $0x2c8] sm:$0xff]
    %v1925 = vld [vmem:[%s1 + $0x2d0] sm:$0xff]
    %v1926 = vld [vmem:[%s1 + $0x2d8] sm:$0xff]
    %v1927 = vld [vmem:[%s1 + $0x2e0] sm:$0xff]
    %v1928 = vld [vmem:[%s1 + $0x2e8] sm:$0xff]
    %v1929 = vld [vmem:[%s1 + $0x2f0] sm:$0xff]
    %v1930 = vld [vmem:[%s1 + $0x2f8] sm:$0xff]
    %v1931 = vld [vmem:[%s1 + $0x300] sm:$0xff]
    %v1932 = vld [vmem:[%s1 + $0x308] sm:$0xff]
    %v1933 = vld [vmem:[%s1 + $0x310] sm:$0xff]
    %v1934 = vld [vmem:[%s1 + $0x318] sm:$0xff]
    %v1935 = vld [vmem:[%s1 + $0x320] sm:$0xff]
    %v1936 = vld [vmem:[%s1 + $0x328] sm:$0xff]
    %v1937 = vld [vmem:[%s1 + $0x330] sm:$0xff]
    %v1938 = vld [vmem:[%s1 + $0x338] sm:$0xff]
    %v1939 = vld [vmem:[%s1 + $0x340] sm:$0xff]
    %v1940 = vld [vmem:[%s1 + $0x348] sm:$0xff]
    %v1941 = vld [vmem:[%s1 + $0x350] sm:$0xff]
    %v1942 = vld [vmem:[%s1 + $0x358] sm:$0xff]
    %v1943 = vld [vmem:[%s1 + $0x360] sm:$0xff]
    %v1944 = vld [vmem:[%s1 + $0x368] sm:$0xff]
    %v1945 = vld [vmem:[%s1 + $0x370] sm:$0xff]
    %v1946 = vld [vmem:[%s1 + $0x378] sm:$0xff]
    %v1947 = vld [vmem:[%s1 + $0x380] sm:$0xff]
    %v1948 = vld [vmem:[%s1 + $0x388] sm:$0xff]
    %v1949 = vld [vmem:[%s1 + $0x390] sm:$0xff]
    %v1950 = vld [vmem:[%s1 + $0x398] sm:$0xff]
    %v1951 = vld [vmem:[%s1 + $0x3a0] sm:$0xff]
    %v1952 = vld [vmem:[%s1 + $0x3a8] sm:$0xff]
    %v1953 = vld [vmem:[%s1 + $0x3b0] sm:$0xff]
    %v1954 = vld [vmem:[%s1 + $0x3b8] sm:$0xff]
    %v1955 = vld [vmem:[%s1 + $0x3c0] sm:$0xff]
    %v1956 = vld [vmem:[%s1 + $0x3c8] sm:$0xff]
    %v1957 = vld [vmem:[%s1 + $0x3d0] sm:$0xff]
    %v1958 = vld [vmem:[%s1 + $0x3d8] sm:$0xff]
    %v1959 = vld [vmem:[%s1 + $0x3e0] sm:$0xff]
    %v1960 = vld [vmem:[%s1 + $0x3e8] sm:$0xff]
    %v1961 = vld [vmem:[%s1 + $0x3f0] sm:$0xff]
    %v1962 = vld [vmem:[%s1 + $0x3f8] sm:$0xff]
    %v1963 = vld [vmem:[%s1 + $0x400] sm:$0xff]
    %v1964 = vld [vmem:[%s1 + $0x408] sm:$0xff]
    %v1965 = vld [vmem:[%s1 + $0x410] sm:$0xff]
    %v1966 = vld [vmem:[%s1 + $0x418] sm:$0xff]
    %v1967 = vld [vmem:[%s1 + $0x420] sm:$0xff]
    %v1968 = vld [vmem:[%s1 + $0x428] sm:$0xff]
    %v1969 = vld [vmem:[%s1 + $0x430] sm:$0xff]
    %v1970 = vld [vmem:[%s1 + $0x438] sm:$0xff]
    %v1971 = vld [vmem:[%s1 + $0x440] sm:$0xff]
    %v1972 = vld [vmem:[%s1 + $0x448] sm:$0xff]
    %v1973 = vld [vmem:[%s1 + $0x450] sm:$0xff]
    %v1974 = vld [vmem:[%s1 + $0x458] sm:$0xff]
    %v1975 = vld [vmem:[%s1 + $0x460] sm:$0x1f]
    %vm1976 = vcmask 826368
    %v1977 = vsel %vm1976, %v1811, 0
    %v1979 = vsel %vm1976, %v1812, 0
    %vm1981 = vcmask 1044480
    %v1983 = vsel %vm1981, %v1975, 0
    %1985 = vmatprep.subr.mxu0 0.0
    %1986 = vmatpush1.msra.mxu0 %v1835
    %1987 = vmatprep.subr.mxu0 0.0
    %1988 = vmatpush1.msra.mxu0 %v1836
    %1989 = vmatprep.subr.mxu0 0.0
    %1990 = vmatpush1.msra.mxu0 %v1837
    %1991 = vmatprep.subr.mxu0 0.0
    %1992 = vmatpush1.msra.mxu0 %v1838
    %1993 = vmatprep.subr.mxu0 0.0
    %1994 = vmatpush1.msra.mxu0 %v1839
    %1995 = vmatprep.subr.mxu0 0.0
    %1996 = vmatpush1.msra.mxu0 %v1840
    %1997 = vmatprep.subr.mxu0 0.0
    %1998 = vmatpush1.msra.mxu0 %v1841
    %1999 = vmatprep.subr.mxu0 0.0
    %2000 = vmatpush1.msra.mxu0 %v1842
    %2001 = vmatprep.subr.mxu0 0.0
    %2002 = vmatpush1.msra.mxu0 %v1843
    %2003 = vmatprep.subr.mxu0 0.0
    %2004 = vmatpush1.msra.mxu0 %v1844
    %2005 = vmatprep.subr.mxu0 0.0
    %2006 = vmatpush1.msra.mxu0 %v1845
    %2007 = vmatprep.subr.mxu0 0.0
    %2008 = vmatpush1.msra.mxu0 %v1846
    %2009 = vmatprep.subr.mxu0 0.0
    %2010 = vmatpush1.msra.mxu0 %v1847
    %2011 = vmatprep.subr.mxu0 0.0
    %2012 = vmatpush1.msra.mxu0 %v1848
    %2013 = vmatprep.subr.mxu0 0.0
    %2014 = vmatpush1.msra.mxu0 %v1849
    %2015 = vmatprep.subr.mxu0 0.0
    %2016 = vmatpush1.msra.mxu0 %v1850
    %2017 = vmatprep.subr.mxu0 0.0
    %2018 = vmatpush1.msra.mxu0 %v1851
    %2019 = vmatprep.subr.mxu0 0.0
    %2020 = vmatpush1.msra.mxu0 %v1852
    %2021 = vmatprep.subr.mxu0 0.0
    %2022 = vmatpush1.msra.mxu0 %v1853
    %2023 = vmatprep.subr.mxu0 0.0
    %2024 = vmatpush1.msra.mxu0 %v1854
    %2025 = vmatprep.subr.mxu0 0.0
    %2026 = vmatpush1.msra.mxu0 %v1855
    %2027 = vmatprep.subr.mxu0 0.0
    %2028 = vmatpush1.msra.mxu0 %v1856
    %2029 = vmatprep.subr.mxu0 0.0
    %2030 = vmatpush1.msra.mxu0 %v1857
    %2031 = vmatprep.subr.mxu0 0.0
    %2032 = vmatpush1.msra.mxu0 %v1858
    %2033 = vmatprep.subr.mxu0 0.0
    %2034 = vmatpush1.msra.mxu0 %v1859
    %2035 = vmatprep.subr.mxu0 0.0
    %2036 = vmatpush1.msra.mxu0 %v1860
    %2037 = vmatprep.subr.mxu0 0.0
    %2038 = vmatpush1.msra.mxu0 %v1861
    %2039 = vmatprep.subr.mxu0 0.0
    %2040 = vmatpush1.msra.mxu0 %v1862
    %2041 = vmatprep.subr.mxu0 0.0
    %2042 = vmatpush1.msra.mxu0 %v1863
    %2043 = vmatprep.subr.mxu0 0.0
    %2044 = vmatpush1.msra.mxu0 %v1864
    %2045 = vmatprep.subr.mxu0 0.0
    %2046 = vmatpush1.msra.mxu0 %v1865
    %2047 = vmatprep.subr.mxu0 0.0
    %2048 = vmatpush1.msra.mxu0 %v1866
    %2049 = vmatprep.mubr.f32.mxu0 %v1819
    %2050 = vmatmul.mubr.f32.gmra.mrb[0].mxu0 %v355
    %v2051 = vpop.f32.mrb[0].mxu0
    %v2052 = vadd.f32 0.0, %v2051
    %v2053 = vpop.f32.mrb[0].mxu0
    %2054 = vmatprep.mubr.f32.mxu0 %v1820
    %2055 = vmatmul.mubr.f32.gmra.mrb[0].mxu0 %v356
    %v2056 = vpop.f32.mrb[0].mxu0
    %v2057 = vadd.f32 0.0, %v2056
    %v2058 = vpop.f32.mrb[0].mxu0
    %2059 = vdwg.mxu0
    %2060 = vmatprep.subr.mxu0 0.0
    %2061 = vmatpush1.msra.mxu0 %v1867
    %2062 = vmatprep.subr.mxu0 0.0
    %2063 = vmatpush1.msra.mxu0 %v1868
    %2064 = vmatprep.subr.mxu0 0.0
    %2065 = vmatpush1.msra.mxu0 %v1869
    %2066 = vmatprep.subr.mxu0 0.0
    %2067 = vmatpush1.msra.mxu0 %v1870
    %2068 = vmatprep.subr.mxu0 0.0
    %2069 = vmatpush1.msra.mxu0 %v1871
    %2070 = vmatprep.subr.mxu0 0.0
    %2071 = vmatpush1.msra.mxu0 %v1872
    %2072 = vmatprep.subr.mxu0 0.0
    %2073 = vmatpush1.msra.mxu0 %v1873
    %2074 = vmatprep.subr.mxu0 0.0
    %2075 = vmatpush1.msra.mxu0 %v1874
    %2076 = vmatprep.subr.mxu0 0.0
    %2077 = vmatpush1.msra.mxu0 %v1875
    %2078 = vmatprep.subr.mxu0 0.0
    %2079 = vmatpush1.msra.mxu0 %v1876
    %2080 = vmatprep.subr.mxu0 0.0
    %2081 = vmatpush1.msra.mxu0 %v1877
    %2082 = vmatprep.subr.mxu0 0.0
    %2083 = vmatpush1.msra.mxu0 %v1878
    %2084 = vmatprep.subr.mxu0 0.0
    %2085 = vmatpush1.msra.mxu0 %v1879
    %2086 = vmatprep.subr.mxu0 0.0
    %2087 = vmatpush1.msra.mxu0 %v1880
    %2088 = vmatprep.subr.mxu0 0.0
    %2089 = vmatpush1.msra.mxu0 %v1881
    %2090 = vmatprep.subr.mxu0 0.0
    %2091 = vmatpush1.msra.mxu0 %v1882
    %2092 = vmatprep.subr.mxu0 0.0
    %2093 = vmatpush1.msra.mxu0 %v1883
    %2094 = vmatprep.subr.mxu0 0.0
    %2095 = vmatpush1.msra.mxu0 %v1884
    %2096 = vmatprep.subr.mxu0 0.0
    %2097 = vmatpush1.msra.mxu0 %v1885
    %2098 = vmatprep.subr.mxu0 0.0
    %2099 = vmatpush1.msra.mxu0 %v1886
    %2100 = vmatprep.subr.mxu0 0.0
    %2101 = vmatpush1.msra.mxu0 %v1887
    %2102 = vmatprep.subr.mxu0 0.0
    %2103 = vmatpush1.msra.mxu0 %v1888
    %2104 = vmatprep.subr.mxu0 0.0
    %2105 = vmatpush1.msra.mxu0 %v1889
    %2106 = vmatprep.subr.mxu0 0.0
    %2107 = vmatpush1.msra.mxu0 %v1890
    %2108 = vmatprep.subr.mxu0 0.0
    %2109 = vmatpush1.msra.mxu0 %v1891
    %2110 = vmatprep.subr.mxu0 0.0
    %2111 = vmatpush1.msra.mxu0 %v1892
    %2112 = vmatprep.subr.mxu0 0.0
    %2113 = vmatpush1.msra.mxu0 %v1893
    %2114 = vmatprep.subr.mxu0 0.0
    %2115 = vmatpush1.msra.mxu0 %v1894
    %2116 = vmatprep.subr.mxu0 0.0
    %2117 = vmatpush1.msra.mxu0 %v1895
    %2118 = vmatprep.subr.mxu0 0.0
    %2119 = vmatpush1.msra.mxu0 %v1896
    %2120 = vmatprep.subr.mxu0 0.0
    %2121 = vmatpush1.msra.mxu0 %v1897
    %2122 = vmatprep.subr.mxu0 0.0
    %2123 = vmatpush1.msra.mxu0 %v1898
    %2124 = vmatprep.mubr.f32.mxu0 %v1823
    %2125 = vmatmul.mubr.f32.gmra.mrb[0].mxu0 %v1652
    %v2126 = vpop.f32.mrb[0].mxu0
    %v2127 = vadd.f32 %v2052, %v2126
    %v2128 = vpop.f32.mrb[0].mxu0
    %2129 = vmatprep.mubr.f32.mxu0 %v1824
    %2130 = vmatmul.mubr.f32.gmra.mrb[0].mxu0 %v1653
    %v2131 = vpop.f32.mrb[0].mxu0
    %v2132 = vadd.f32 %v2057, %v2131
    %v2133 = vpop.f32.mrb[0].mxu0
    %2134 = vdwg.mxu0
    %2135 = vmatprep.subr.mxu0 0.0
    %2136 = vmatpush1.msra.mxu0 %v1899
    %2137 = vmatprep.subr.mxu0 0.0
    %2138 = vmatpush1.msra.mxu0 %v1900
    %2139 = vmatprep.subr.mxu0 0.0
    %2140 = vmatpush1.msra.mxu0 %v1901
    %2141 = vmatprep.subr.mxu0 0.0
    %2142 = vmatpush1.msra.mxu0 %v1902
    %2143 = vmatprep.subr.mxu0 0.0
    %2144 = vmatpush1.msra.mxu0 %v1903
    %2145 = vmatprep.subr.mxu0 0.0
    %2146 = vmatpush1.msra.mxu0 %v1904
    %2147 = vmatprep.subr.mxu0 0.0
    %2148 = vmatpush1.msra.mxu0 %v1905
    %2149 = vmatprep.subr.mxu0 0.0
    %2150 = vmatpush1.msra.mxu0 %v1906
    %2151 = vmatprep.subr.mxu0 0.0
    %2152 = vmatpush1.msra.mxu0 %v1907
    %2153 = vmatprep.subr.mxu0 0.0
    %2154 = vmatpush1.msra.mxu0 %v1908
    %2155 = vmatprep.subr.mxu0 0.0
    %2156 = vmatpush1.msra.mxu0 %v1909
    %2157 = vmatprep.subr.mxu0 0.0
    %2158 = vmatpush1.msra.mxu0 %v1910
    %2159 = vmatprep.subr.mxu0 0.0
    %2160 = vmatpush1.msra.mxu0 %v1911
    %2161 = vmatprep.subr.mxu0 0.0
    %2162 = vmatpush1.msra.mxu0 %v1912
    %2163 = vmatprep.subr.mxu0 0.0
    %2164 = vmatpush1.msra.mxu0 %v1913
    %2165 = vmatprep.subr.mxu0 0.0
    %2166 = vmatpush1.msra.mxu0 %v1914
    %2167 = vmatprep.subr.mxu0 0.0
    %2168 = vmatpush1.msra.mxu0 %v1915
    %2169 = vmatprep.subr.mxu0 0.0
    %2170 = vmatpush1.msra.mxu0 %v1916
    %2171 = vmatprep.subr.mxu0 0.0
    %2172 = vmatpush1.msra.mxu0 %v1917
    %2173 = vmatprep.subr.mxu0 0.0
    %2174 = vmatpush1.msra.mxu0 %v1918
    %2175 = vmatprep.subr.mxu0 0.0
    %2176 = vmatpush1.msra.mxu0 %v1919
    %2177 = vmatprep.subr.mxu0 0.0
    %2178 = vmatpush1.msra.mxu0 %v1920
    %2179 = vmatprep.subr.mxu0 0.0
    %2180 = vmatpush1.msra.mxu0 %v1921
    %2181 = vmatprep.subr.mxu0 0.0
    %2182 = vmatpush1.msra.mxu0 %v1922
    %2183 = vmatprep.subr.mxu0 0.0
    %2184 = vmatpush1.msra.mxu0 %v1923
    %2185 = vmatprep.subr.mxu0 0.0
    %2186 = vmatpush1.msra.mxu0 %v1924
    %2187 = vmatprep.subr.mxu0 0.0
    %2188 = vmatpush1.msra.mxu0 %v1925
    %2189 = vmatprep.subr.mxu0 0.0
    %2190 = vmatpush1.msra.mxu0 %v1926
    %2191 = vmatprep.subr.mxu0 0.0
    %2192 = vmatpush1.msra.mxu0 %v1927
    %2193 = vmatprep.subr.mxu0 0.0
    %2194 = vmatpush1.msra.mxu0 %v1928
    %2195 = vmatprep.subr.mxu0 0.0
    %2196 = vmatpush1.msra.mxu0 %v1929
    %2197 = vmatprep.subr.mxu0 0.0
    %2198 = vmatpush1.msra.mxu0 %v1930
    %2199 = vmatprep.mubr.f32.mxu0 %v1827
    %2200 = vmatmul.mubr.f32.gmra.mrb[0].mxu0 %v1693
    %v2201 = vpop.f32.mrb[0].mxu0
    %v2202 = vadd.f32 %v2127, %v2201
    %v2203 = vpop.f32.mrb[0].mxu0
    %2204 = vmatprep.mubr.f32.mxu0 %v1828
    %2205 = vmatmul.mubr.f32.gmra.mrb[0].mxu0 %v1694
    %v2206 = vpop.f32.mrb[0].mxu0
    %v2207 = vadd.f32 %v2132, %v2206
    %v2208 = vpop.f32.mrb[0].mxu0
    %2209 = vdwg.mxu0
    %2210 = vmatprep.subr.mxu0 0.0
    %2211 = vmatpush1.msra.mxu0 %v1931
    %2212 = vmatprep.subr.mxu0 0.0
    %2213 = vmatpush1.msra.mxu0 %v1932
    %2214 = vmatprep.subr.mxu0 0.0
    %2215 = vmatpush1.msra.mxu0 %v1933
    %2216 = vmatprep.subr.mxu0 0.0
    %2217 = vmatpush1.msra.mxu0 %v1934
    %2218 = vmatprep.subr.mxu0 0.0
    %2219 = vmatpush1.msra.mxu0 %v1935
    %2220 = vmatprep.subr.mxu0 0.0
    %2221 = vmatpush1.msra.mxu0 %v1936
    %2222 = vmatprep.subr.mxu0 0.0
    %2223 = vmatpush1.msra.mxu0 %v1937
    %2224 = vmatprep.subr.mxu0 0.0
    %2225 = vmatpush1.msra.mxu0 %v1938
    %2226 = vmatprep.subr.mxu0 0.0
    %2227 = vmatpush1.msra.mxu0 %v1939
    %2228 = vmatprep.subr.mxu0 0.0
    %2229 = vmatpush1.msra.mxu0 %v1940
    %2230 = vmatprep.subr.mxu0 0.0
    %2231 = vmatpush1.msra.mxu0 %v1941
    %2232 = vmatprep.subr.mxu0 0.0
    %2233 = vmatpush1.msra.mxu0 %v1942
    %2234 = vmatprep.subr.mxu0 0.0
    %2235 = vmatpush1.msra.mxu0 %v1943
    %2236 = vmatprep.subr.mxu0 0.0
    %2237 = vmatpush1.msra.mxu0 %v1944
    %2238 = vmatprep.subr.mxu0 0.0
    %2239 = vmatpush1.msra.mxu0 %v1945
    %2240 = vmatprep.subr.mxu0 0.0
    %2241 = vmatpush1.msra.mxu0 %v1946
    %2242 = vmatprep.subr.mxu0 0.0
    %2243 = vmatpush1.msra.mxu0 %v1947
    %2244 = vmatprep.subr.mxu0 0.0
    %2245 = vmatpush1.msra.mxu0 %v1948
    %2246 = vmatprep.subr.mxu0 0.0
    %2247 = vmatpush1.msra.mxu0 %v1949
    %2248 = vmatprep.subr.mxu0 0.0
    %2249 = vmatpush1.msra.mxu0 %v1950
    %2250 = vmatprep.subr.mxu0 0.0
    %2251 = vmatpush1.msra.mxu0 %v1951
    %2252 = vmatprep.subr.mxu0 0.0
    %2253 = vmatpush1.msra.mxu0 %v1952
    %2254 = vmatprep.subr.mxu0 0.0
    %2255 = vmatpush1.msra.mxu0 %v1953
    %2256 = vmatprep.subr.mxu0 0.0
    %2257 = vmatpush1.msra.mxu0 %v1954
    %2258 = vmatprep.subr.mxu0 0.0
    %2259 = vmatpush1.msra.mxu0 %v1955
    %2260 = vmatprep.subr.mxu0 0.0
    %2261 = vmatpush1.msra.mxu0 %v1956
    %2262 = vmatprep.subr.mxu0 0.0
    %2263 = vmatpush1.msra.mxu0 %v1957
    %2264 = vmatprep.subr.mxu0 0.0
    %2265 = vmatpush1.msra.mxu0 %v1958
    %2266 = vmatprep.subr.mxu0 0.0
    %2267 = vmatpush1.msra.mxu0 %v1959
    %2268 = vmatprep.subr.mxu0 0.0
    %2269 = vmatpush1.msra.mxu0 %v1960
    %2270 = vmatprep.subr.mxu0 0.0
    %2271 = vmatpush1.msra.mxu0 %v1961
    %2272 = vmatprep.subr.mxu0 0.0
    %2273 = vmatpush1.msra.mxu0 %v1962
    %2274 = vmatprep.mubr.f32.mxu0 %v1831
    %2275 = vmatmul.mubr.f32.gmra.mrb[0].mxu0 %v1758
    %v2276 = vpop.f32.mrb[0].mxu0
    %v2277 = vadd.f32 %v2202, %v2276
    %v2278 = vpop.f32.mrb[0].mxu0
    %2279 = vmatprep.mubr.f32.mxu0 %v1832
    %2280 = vmatmul.mubr.f32.gmra.mrb[0].mxu0 %v1759
    %v2281 = vpop.f32.mrb[0].mxu0
    %v2282 = vadd.f32 %v2207, %v2281
    %v2283 = vpop.f32.mrb[0].mxu0
    %2284 = vdwg.mxu0
    %2285 = vmatprep.subr.mxu0 0.0
    %2286 = vmatpush1.msra.mxu0 %v1963
    %2287 = vmatprep.subr.mxu0 0.0
    %2288 = vmatpush1.msra.mxu0 %v1964
    %2289 = vmatprep.subr.mxu0 0.0
    %2290 = vmatpush1.msra.mxu0 %v1965
    %2291 = vmatprep.subr.mxu0 0.0
    %2292 = vmatpush1.msra.mxu0 %v1966
    %2293 = vmatprep.subr.mxu0 0.0
    %2294 = vmatpush1.msra.mxu0 %v1967
    %2295 = vmatprep.subr.mxu0 0.0
    %2296 = vmatpush1.msra.mxu0 %v1968
    %2297 = vmatprep.subr.mxu0 0.0
    %2298 = vmatpush1.msra.mxu0 %v1969
    %2299 = vmatprep.subr.mxu0 0.0
    %2300 = vmatpush1.msra.mxu0 %v1970
    %2301 = vmatprep.subr.mxu0 0.0
    %2302 = vmatpush1.msra.mxu0 %v1971
    %2303 = vmatprep.subr.mxu0 0.0
    %2304 = vmatpush1.msra.mxu0 %v1972
    %2305 = vmatprep.subr.mxu0 0.0
    %2306 = vmatpush1.msra.mxu0 %v1973
    %2307 = vmatprep.subr.mxu0 0.0
    %2308 = vmatpush1.msra.mxu0 %v1974
    %2309 = vmatprep.subr.mxu0 0.0
    %2310 = vmatpush1.msra.mxu0 %v1983
    %2311 = vmatprep.subr.mxu0 0.0
    %2312 = vmatpush1.msra.mxu0 0.0
    %2313 = vmatprep.subr.mxu0 0.0
    %2314 = vmatpush1.msra.mxu0 0.0
    %2315 = vmatprep.subr.mxu0 0.0
    %2316 = vmatpush1.msra.mxu0 0.0
    %2317 = vmatprep.subr.mxu0 0.0
    %2318 = vmatpush1.msra.mxu0 0.0
    %2319 = vmatprep.subr.mxu0 0.0
    %2320 = vmatpush1.msra.mxu0 0.0
    %2321 = vmatprep.subr.mxu0 0.0
    %2322 = vmatpush1.msra.mxu0 0.0
    %2323 = vmatprep.subr.mxu0 0.0
    %2324 = vmatpush1.msra.mxu0 0.0
    %2325 = vmatprep.subr.mxu0 0.0
    %2326 = vmatpush1.msra.mxu0 0.0
    %2327 = vmatprep.subr.mxu0 0.0
    %2328 = vmatpush1.msra.mxu0 0.0
    %2329 = vmatprep.subr.mxu0 0.0
    %2330 = vmatpush1.msra.mxu0 0.0
    %2331 = vmatprep.subr.mxu0 0.0
    %2332 = vmatpush1.msra.mxu0 0.0
    %2333 = vmatprep.subr.mxu0 0.0
    %2334 = vmatpush1.msra.mxu0 0.0
    %2335 = vmatprep.subr.mxu0 0.0
    %2336 = vmatpush1.msra.mxu0 0.0
    %2337 = vmatprep.subr.mxu0 0.0
    %2338 = vmatpush1.msra.mxu0 0.0
    %2339 = vmatprep.subr.mxu0 0.0
    %2340 = vmatpush1.msra.mxu0 0.0
    %2341 = vmatprep.subr.mxu0 0.0
    %2342 = vmatpush1.msra.mxu0 0.0
    %2343 = vmatprep.subr.mxu0 0.0
    %2344 = vmatpush1.msra.mxu0 0.0
    %2345 = vmatprep.subr.mxu0 0.0
    %2346 = vmatpush1.msra.mxu0 0.0
    %2347 = vmatprep.subr.mxu0 0.0
    %2348 = vmatpush1.msra.mxu0 0.0
    %2349 = vmatprep.mubr.f32.mxu0 0.0
    %2350 = vmatmul.mubr.f32.gmra.mrb[0].mxu0 %v1977
    %v2351 = vpop.f32.mrb[0].mxu0
    %v2352 = vadd.f32 %v2277, %v2351
    %v2353 = vpop.f32.mrb[0].mxu0
    %2354 = vmatprep.mubr.f32.mxu0 0.0
    %2355 = vmatmul.mubr.f32.gmra.mrb[0].mxu0 %v1979
    %v2356 = vpop.f32.mrb[0].mxu0
    %v2357 = vadd.f32 %v2282, %v2356
    %v2358 = vpop.f32.mrb[0].mxu0
    %2359 = vdwg.mxu0
    %v2360 = vsel %vm1976, %v1813, 0
    %v2362 = vsel %vm1976, %v1814, 0
    %2364 = vmatprep.subr.mxu0 0.0
    %2365 = vmatpush1.msra.mxu0 %v1835
    %2366 = vmatprep.subr.mxu0 0.0
    %2367 = vmatpush1.msra.mxu0 %v1836
    %2368 = vmatprep.subr.mxu0 0.0
    %2369 = vmatpush1.msra.mxu0 %v1837
    %2370 = vmatprep.subr.mxu0 0.0
    %2371 = vmatpush1.msra.mxu0 %v1838
    %2372 = vmatprep.subr.mxu0 0.0
    %2373 = vmatpush1.msra.mxu0 %v1839
    %2374 = vmatprep.subr.mxu0 0.0
    %2375 = vmatpush1.msra.mxu0 %v1840
    %2376 = vmatprep.subr.mxu0 0.0
    %2377 = vmatpush1.msra.mxu0 %v1841
    %2378 = vmatprep.subr.mxu0 0.0
    %2379 = vmatpush1.msra.mxu0 %v1842
    %2380 = vmatprep.subr.mxu0 0.0
    %2381 = vmatpush1.msra.mxu0 %v1843
    %2382 = vmatprep.subr.mxu0 0.0
    %2383 = vmatpush1.msra.mxu0 %v1844
    %2384 = vmatprep.subr.mxu0 0.0
    %2385 = vmatpush1.msra.mxu0 %v1845
    %2386 = vmatprep.subr.mxu0 0.0
    %2387 = vmatpush1.msra.mxu0 %v1846
    %2388 = vmatprep.subr.mxu0 0.0
    %2389 = vmatpush1.msra.mxu0 %v1847
    %2390 = vmatprep.subr.mxu0 0.0
    %2391 = vmatpush1.msra.mxu0 %v1848
    %2392 = vmatprep.subr.mxu0 0.0
    %2393 = vmatpush1.msra.mxu0 %v1849
    %2394 = vmatprep.subr.mxu0 0.0
    %2395 = vmatpush1.msra.mxu0 %v1850
    %2396 = vmatprep.subr.mxu0 0.0
    %2397 = vmatpush1.msra.mxu0 %v1851
    %2398 = vmatprep.subr.mxu0 0.0
    %2399 = vmatpush1.msra.mxu0 %v1852
    %2400 = vmatprep.subr.mxu0 0.0
    %2401 = vmatpush1.msra.mxu0 %v1853
    %2402 = vmatprep.subr.mxu0 0.0
    %2403 = vmatpush1.msra.mxu0 %v1854
    %2404 = vmatprep.subr.mxu0 0.0
    %2405 = vmatpush1.msra.mxu0 %v1855
    %2406 = vmatprep.subr.mxu0 0.0
    %2407 = vmatpush1.msra.mxu0 %v1856
    %2408 = vmatprep.subr.mxu0 0.0
    %2409 = vmatpush1.msra.mxu0 %v1857
    %2410 = vmatprep.subr.mxu0 0.0
    %2411 = vmatpush1.msra.mxu0 %v1858
    %2412 = vmatprep.subr.mxu0 0.0
    %2413 = vmatpush1.msra.mxu0 %v1859
    %2414 = vmatprep.subr.mxu0 0.0
    %2415 = vmatpush1.msra.mxu0 %v1860
    %2416 = vmatprep.subr.mxu0 0.0
    %2417 = vmatpush1.msra.mxu0 %v1861
    %2418 = vmatprep.subr.mxu0 0.0
    %2419 = vmatpush1.msra.mxu0 %v1862
    %2420 = vmatprep.subr.mxu0 0.0
    %2421 = vmatpush1.msra.mxu0 %v1863
    %2422 = vmatprep.subr.mxu0 0.0
    %2423 = vmatpush1.msra.mxu0 %v1864
    %2424 = vmatprep.subr.mxu0 0.0
    %2425 = vmatpush1.msra.mxu0 %v1865
    %2426 = vmatprep.subr.mxu0 0.0
    %2427 = vmatpush1.msra.mxu0 %v1866
    %2428 = vmatprep.mubr.f32.mxu0 %v1821
    %2429 = vmatmul.mubr.f32.gmra.mrb[0].mxu0 %v357
    %v2430 = vpop.f32.mrb[0].mxu0
    %v2431 = vadd.f32 0.0, %v2430
    %v2432 = vpop.f32.mrb[0].mxu0
    %2433 = vmatprep.mubr.f32.mxu0 %v1822
    %2434 = vmatmul.mubr.f32.gmra.mrb[0].mxu0 %v358
    %v2435 = vpop.f32.mrb[0].mxu0
    %v2436 = vadd.f32 0.0, %v2435
    %v2437 = vpop.f32.mrb[0].mxu0
    %2438 = vdwg.mxu0
    %2439 = vmatprep.subr.mxu0 0.0
    %2440 = vmatpush1.msra.mxu0 %v1867
    %2441 = vmatprep.subr.mxu0 0.0
    %2442 = vmatpush1.msra.mxu0 %v1868
    %2443 = vmatprep.subr.mxu0 0.0
    %2444 = vmatpush1.msra.mxu0 %v1869
    %2445 = vmatprep.subr.mxu0 0.0
    %2446 = vmatpush1.msra.mxu0 %v1870
    %2447 = vmatprep.subr.mxu0 0.0
    %2448 = vmatpush1.msra.mxu0 %v1871
    %2449 = vmatprep.subr.mxu0 0.0
    %2450 = vmatpush1.msra.mxu0 %v1872
    %2451 = vmatprep.subr.mxu0 0.0
    %2452 = vmatpush1.msra.mxu0 %v1873
    %2453 = vmatprep.subr.mxu0 0.0
    %2454 = vmatpush1.msra.mxu0 %v1874
    %2455 = vmatprep.subr.mxu0 0.0
    %2456 = vmatpush1.msra.mxu0 %v1875
    %2457 = vmatprep.subr.mxu0 0.0
    %2458 = vmatpush1.msra.mxu0 %v1876
    %2459 = vmatprep.subr.mxu0 0.0
    %2460 = vmatpush1.msra.mxu0 %v1877
    %2461 = vmatprep.subr.mxu0 0.0
    %2462 = vmatpush1.msra.mxu0 %v1878
    %2463 = vmatprep.subr.mxu0 0.0
    %2464 = vmatpush1.msra.mxu0 %v1879
    %2465 = vmatprep.subr.mxu0 0.0
    %2466 = vmatpush1.msra.mxu0 %v1880
    %2467 = vmatprep.subr.mxu0 0.0
    %2468 = vmatpush1.msra.mxu0 %v1881
    %2469 = vmatprep.subr.mxu0 0.0
    %2470 = vmatpush1.msra.mxu0 %v1882
    %2471 = vmatprep.subr.mxu0 0.0
    %2472 = vmatpush1.msra.mxu0 %v1883
    %2473 = vmatprep.subr.mxu0 0.0
    %2474 = vmatpush1.msra.mxu0 %v1884
    %2475 = vmatprep.subr.mxu0 0.0
    %2476 = vmatpush1.msra.mxu0 %v1885
    %2477 = vmatprep.subr.mxu0 0.0
    %2478 = vmatpush1.msra.mxu0 %v1886
    %2479 = vmatprep.subr.mxu0 0.0
    %2480 = vmatpush1.msra.mxu0 %v1887
    %2481 = vmatprep.subr.mxu0 0.0
    %2482 = vmatpush1.msra.mxu0 %v1888
    %2483 = vmatprep.subr.mxu0 0.0
    %2484 = vmatpush1.msra.mxu0 %v1889
    %2485 = vmatprep.subr.mxu0 0.0
    %2486 = vmatpush1.msra.mxu0 %v1890
    %2487 = vmatprep.subr.mxu0 0.0
    %2488 = vmatpush1.msra.mxu0 %v1891
    %2489 = vmatprep.subr.mxu0 0.0
    %2490 = vmatpush1.msra.mxu0 %v1892
    %2491 = vmatprep.subr.mxu0 0.0
    %2492 = vmatpush1.msra.mxu0 %v1893
    %2493 = vmatprep.subr.mxu0 0.0
    %2494 = vmatpush1.msra.mxu0 %v1894
    %2495 = vmatprep.subr.mxu0 0.0
    %2496 = vmatpush1.msra.mxu0 %v1895
    %2497 = vmatprep.subr.mxu0 0.0
    %2498 = vmatpush1.msra.mxu0 %v1896
    %2499 = vmatprep.subr.mxu0 0.0
    %2500 = vmatpush1.msra.mxu0 %v1897
    %2501 = vmatprep.subr.mxu0 0.0
    %2502 = vmatpush1.msra.mxu0 %v1898
    %2503 = vmatprep.mubr.f32.mxu0 %v1825
    %2504 = vmatmul.mubr.f32.gmra.mrb[0].mxu0 %v1654
    %v2505 = vpop.f32.mrb[0].mxu0
    %v2506 = vadd.f32 %v2431, %v2505
    %v2507 = vpop.f32.mrb[0].mxu0
    %2508 = vmatprep.mubr.f32.mxu0 %v1826
    %2509 = vmatmul.mubr.f32.gmra.mrb[0].mxu0 %v1655
    %v2510 = vpop.f32.mrb[0].mxu0
    %v2511 = vadd.f32 %v2436, %v2510
    %v2512 = vpop.f32.mrb[0].mxu0
    %2513 = vdwg.mxu0
    %2514 = vmatprep.subr.mxu0 0.0
    %2515 = vmatpush1.msra.mxu0 %v1899
    %2516 = vmatprep.subr.mxu0 0.0
    %2517 = vmatpush1.msra.mxu0 %v1900
    %2518 = vmatprep.subr.mxu0 0.0
    %2519 = vmatpush1.msra.mxu0 %v1901
    %2520 = vmatprep.subr.mxu0 0.0
    %2521 = vmatpush1.msra.mxu0 %v1902
    %2522 = vmatprep.subr.mxu0 0.0
    %2523 = vmatpush1.msra.mxu0 %v1903
    %2524 = vmatprep.subr.mxu0 0.0
    %2525 = vmatpush1.msra.mxu0 %v1904
    %2526 = vmatprep.subr.mxu0 0.0
    %2527 = vmatpush1.msra.mxu0 %v1905
    %2528 = vmatprep.subr.mxu0 0.0
    %2529 = vmatpush1.msra.mxu0 %v1906
    %2530 = vmatprep.subr.mxu0 0.0
    %2531 = vmatpush1.msra.mxu0 %v1907
    %2532 = vmatprep.subr.mxu0 0.0
    %2533 = vmatpush1.msra.mxu0 %v1908
    %2534 = vmatprep.subr.mxu0 0.0
    %2535 = vmatpush1.msra.mxu0 %v1909
    %2536 = vmatprep.subr.mxu0 0.0
    %2537 = vmatpush1.msra.mxu0 %v1910
    %2538 = vmatprep.subr.mxu0 0.0
    %2539 = vmatpush1.msra.mxu0 %v1911
    %2540 = vmatprep.subr.mxu0 0.0
    %2541 = vmatpush1.msra.mxu0 %v1912
    %2542 = vmatprep.subr.mxu0 0.0
    %2543 = vmatpush1.msra.mxu0 %v1913
    %2544 = vmatprep.subr.mxu0 0.0
    %2545 = vmatpush1.msra.mxu0 %v1914
    %2546 = vmatprep.subr.mxu0 0.0
    %2547 = vmatpush1.msra.mxu0 %v1915
    %2548 = vmatprep.subr.mxu0 0.0
    %2549 = vmatpush1.msra.mxu0 %v1916
    %2550 = vmatprep.subr.mxu0 0.0
    %2551 = vmatpush1.msra.mxu0 %v1917
    %2552 = vmatprep.subr.mxu0 0.0
    %2553 = vmatpush1.msra.mxu0 %v1918
    %2554 = vmatprep.subr.mxu0 0.0
    %2555 = vmatpush1.msra.mxu0 %v1919
    %2556 = vmatprep.subr.mxu0 0.0
    %2557 = vmatpush1.msra.mxu0 %v1920
    %2558 = vmatprep.subr.mxu0 0.0
    %2559 = vmatpush1.msra.mxu0 %v1921
    %2560 = vmatprep.subr.mxu0 0.0
    %2561 = vmatpush1.msra.mxu0 %v1922
    %2562 = vmatprep.subr.mxu0 0.0
    %2563 = vmatpush1.msra.mxu0 %v1923
    %2564 = vmatprep.subr.mxu0 0.0
    %2565 = vmatpush1.msra.mxu0 %v1924
    %2566 = vmatprep.subr.mxu0 0.0
    %2567 = vmatpush1.msra.mxu0 %v1925
    %2568 = vmatprep.subr.mxu0 0.0
    %2569 = vmatpush1.msra.mxu0 %v1926
    %2570 = vmatprep.subr.mxu0 0.0
    %2571 = vmatpush1.msra.mxu0 %v1927
    %2572 = vmatprep.subr.mxu0 0.0
    %2573 = vmatpush1.msra.mxu0 %v1928
    %2574 = vmatprep.subr.mxu0 0.0
    %2575 = vmatpush1.msra.mxu0 %v1929
    %2576 = vmatprep.subr.mxu0 0.0
    %2577 = vmatpush1.msra.mxu0 %v1930
    %2578 = vmatprep.mubr.f32.mxu0 %v1829
    %2579 = vmatmul.mubr.f32.gmra.mrb[0].mxu0 %v1695
    %v2580 = vpop.f32.mrb[0].mxu0
    %v2581 = vadd.f32 %v2506, %v2580
    %v2582 = vpop.f32.mrb[0].mxu0
    %2583 = vmatprep.mubr.f32.mxu0 %v1830
    %2584 = vmatmul.mubr.f32.gmra.mrb[0].mxu0 %v1696
    %v2585 = vpop.f32.mrb[0].mxu0
    %v2586 = vadd.f32 %v2511, %v2585
    %v2587 = vpop.f32.mrb[0].mxu0
    %2588 = vdwg.mxu0
    %2589 = vmatprep.subr.mxu0 0.0
    %2590 = vmatpush1.msra.mxu0 %v1931
    %2591 = vmatprep.subr.mxu0 0.0
    %2592 = vmatpush1.msra.mxu0 %v1932
    %2593 = vmatprep.subr.mxu0 0.0
    %2594 = vmatpush1.msra.mxu0 %v1933
    %2595 = vmatprep.subr.mxu0 0.0
    %2596 = vmatpush1.msra.mxu0 %v1934
    %2597 = vmatprep.subr.mxu0 0.0
    %2598 = vmatpush1.msra.mxu0 %v1935
    %2599 = vmatprep.subr.mxu0 0.0
    %2600 = vmatpush1.msra.mxu0 %v1936
    %2601 = vmatprep.subr.mxu0 0.0
    %2602 = vmatpush1.msra.mxu0 %v1937
    %2603 = vmatprep.subr.mxu0 0.0
    %2604 = vmatpush1.msra.mxu0 %v1938
    %2605 = vmatprep.subr.mxu0 0.0
    %2606 = vmatpush1.msra.mxu0 %v1939
    %2607 = vmatprep.subr.mxu0 0.0
    %2608 = vmatpush1.msra.mxu0 %v1940
    %2609 = vmatprep.subr.mxu0 0.0
    %2610 = vmatpush1.msra.mxu0 %v1941
    %2611 = vmatprep.subr.mxu0 0.0
    %2612 = vmatpush1.msra.mxu0 %v1942
    %2613 = vmatprep.subr.mxu0 0.0
    %2614 = vmatpush1.msra.mxu0 %v1943
    %2615 = vmatprep.subr.mxu0 0.0
    %2616 = vmatpush1.msra.mxu0 %v1944
    %2617 = vmatprep.subr.mxu0 0.0
    %2618 = vmatpush1.msra.mxu0 %v1945
    %2619 = vmatprep.subr.mxu0 0.0
    %2620 = vmatpush1.msra.mxu0 %v1946
    %2621 = vmatprep.subr.mxu0 0.0
    %2622 = vmatpush1.msra.mxu0 %v1947
    %2623 = vmatprep.subr.mxu0 0.0
    %2624 = vmatpush1.msra.mxu0 %v1948
    %2625 = vmatprep.subr.mxu0 0.0
    %2626 = vmatpush1.msra.mxu0 %v1949
    %2627 = vmatprep.subr.mxu0 0.0
    %2628 = vmatpush1.msra.mxu0 %v1950
    %2629 = vmatprep.subr.mxu0 0.0
    %2630 = vmatpush1.msra.mxu0 %v1951
    %2631 = vmatprep.subr.mxu0 0.0
    %2632 = vmatpush1.msra.mxu0 %v1952
    %2633 = vmatprep.subr.mxu0 0.0
    %2634 = vmatpush1.msra.mxu0 %v1953
    %2635 = vmatprep.subr.mxu0 0.0
    %2636 = vmatpush1.msra.mxu0 %v1954
    %2637 = vmatprep.subr.mxu0 0.0
    %2638 = vmatpush1.msra.mxu0 %v1955
    %2639 = vmatprep.subr.mxu0 0.0
    %2640 = vmatpush1.msra.mxu0 %v1956
    %2641 = vmatprep.subr.mxu0 0.0
    %2642 = vmatpush1.msra.mxu0 %v1957
    %2643 = vmatprep.subr.mxu0 0.0
    %2644 = vmatpush1.msra.mxu0 %v1958
    %2645 = vmatprep.subr.mxu0 0.0
    %2646 = vmatpush1.msra.mxu0 %v1959
    %2647 = vmatprep.subr.mxu0 0.0
    %2648 = vmatpush1.msra.mxu0 %v1960
    %2649 = vmatprep.subr.mxu0 0.0
    %2650 = vmatpush1.msra.mxu0 %v1961
    %2651 = vmatprep.subr.mxu0 0.0
    %2652 = vmatpush1.msra.mxu0 %v1962
    %2653 = vmatprep.mubr.f32.mxu0 %v1833
    %2654 = vmatmul.mubr.f32.gmra.mrb[0].mxu0 %v1760
    %v2655 = vpop.f32.mrb[0].mxu0
    %v2656 = vadd.f32 %v2581, %v2655
    %v2657 = vpop.f32.mrb[0].mxu0
    %2658 = vmatprep.mubr.f32.mxu0 %v1834
    %2659 = vmatmul.mubr.f32.gmra.mrb[0].mxu0 %v1761
    %v2660 = vpop.f32.mrb[0].mxu0
    %v2661 = vadd.f32 %v2586, %v2660
    %v2662 = vpop.f32.mrb[0].mxu0
    %2663 = vdwg.mxu0
    %2664 = vmatprep.subr.mxu0 0.0
    %2665 = vmatpush1.msra.mxu0 %v1963
    %2666 = vmatprep.subr.mxu0 0.0
    %2667 = vmatpush1.msra.mxu0 %v1964
    %2668 = vmatprep.subr.mxu0 0.0
    %2669 = vmatpush1.msra.mxu0 %v1965
    %2670 = vmatprep.subr.mxu0 0.0
    %2671 = vmatpush1.msra.mxu0 %v1966
    %2672 = vmatprep.subr.mxu0 0.0
    %2673 = vmatpush1.msra.mxu0 %v1967
    %2674 = vmatprep.subr.mxu0 0.0
    %2675 = vmatpush1.msra.mxu0 %v1968
    %2676 = vmatprep.subr.mxu0 0.0
    %2677 = vmatpush1.msra.mxu0 %v1969
    %2678 = vmatprep.subr.mxu0 0.0
    %2679 = vmatpush1.msra.mxu0 %v1970
    %2680 = vmatprep.subr.mxu0 0.0
    %2681 = vmatpush1.msra.mxu0 %v1971
    %2682 = vmatprep.subr.mxu0 0.0
    %2683 = vmatpush1.msra.mxu0 %v1972
    %2684 = vmatprep.subr.mxu0 0.0
    %2685 = vmatpush1.msra.mxu0 %v1973
    %2686 = vmatprep.subr.mxu0 0.0
    %2687 = vmatpush1.msra.mxu0 %v1974
    %2688 = vmatprep.subr.mxu0 0.0
    %2689 = vmatpush1.msra.mxu0 %v1983
    %2690 = vmatprep.subr.mxu0 0.0
    %2691 = vmatpush1.msra.mxu0 0.0
    %2692 = vmatprep.subr.mxu0 0.0
    %2693 = vmatpush1.msra.mxu0 0.0
    %2694 = vmatprep.subr.mxu0 0.0
    %2695 = vmatpush1.msra.mxu0 0.0
    %2696 = vmatprep.subr.mxu0 0.0
    %2697 = vmatpush1.msra.mxu0 0.0
    %2698 = vmatprep.subr.mxu0 0.0
    %2699 = vmatpush1.msra.mxu0 0.0
    %2700 = vmatprep.subr.mxu0 0.0
    %2701 = vmatpush1.msra.mxu0 0.0
    %2702 = vmatprep.subr.mxu0 0.0
    %2703 = vmatpush1.msra.mxu0 0.0
    %2704 = vmatprep.subr.mxu0 0.0
    %2705 = vmatpush1.msra.mxu0 0.0
    %2706 = vmatprep.subr.mxu0 0.0
    %2707 = vmatpush1.msra.mxu0 0.0
    %2708 = vmatprep.subr.mxu0 0.0
    %2709 = vmatpush1.msra.mxu0 0.0
    %2710 = vmatprep.subr.mxu0 0.0
    %2711 = vmatpush1.msra.mxu0 0.0
    %2712 = vmatprep.subr.mxu0 0.0
    %2713 = vmatpush1.msra.mxu0 0.0
    %2714 = vmatprep.subr.mxu0 0.0
    %2715 = vmatpush1.msra.mxu0 0.0
    %2716 = vmatprep.subr.mxu0 0.0
    %2717 = vmatpush1.msra.mxu0 0.0
    %2718 = vmatprep.subr.mxu0 0.0
    %2719 = vmatpush1.msra.mxu0 0.0
    %2720 = vmatprep.subr.mxu0 0.0
    %2721 = vmatpush1.msra.mxu0 0.0
    %2722 = vmatprep.subr.mxu0 0.0
    %2723 = vmatpush1.msra.mxu0 0.0
    %2724 = vmatprep.subr.mxu0 0.0
    %2725 = vmatpush1.msra.mxu0 0.0
    %2726 = vmatprep.subr.mxu0 0.0
    %2727 = vmatpush1.msra.mxu0 0.0
    %2728 = vmatprep.mubr.f32.mxu0 0.0
    %2729 = vmatmul.mubr.f32.gmra.mrb[0].mxu0 %v2360
    %v2730 = vpop.f32.mrb[0].mxu0
    %v2731 = vadd.f32 %v2656, %v2730
    %v2732 = vpop.f32.mrb[0].mxu0
    %2733 = vmatprep.mubr.f32.mxu0 0.0
    %2734 = vmatmul.mubr.f32.gmra.mrb[0].mxu0 %v2362
    %v2735 = vpop.f32.mrb[0].mxu0
    %v2736 = vadd.f32 %v2661, %v2735
    %v2737 = vpop.f32.mrb[0].mxu0
    %2738 = vdwg.mxu0
    %v2739 = vld [vmem:[%s2] sm:$0x1]
    %v2740 = vld [vmem:[%s3] sm:$0x1]
    %v2741 = vsel %vm319, %v2352, 0.0
    %2742 = vadd.xlane.f32.xlu0 %v2741
    %v2743 = vpop.xlane.xlu0 %2742
    %vm2744 = vcmask 120832
    %v2745 = vsel %vm2744, %v2357, 0.0
    %2746 = vadd.xlane.f32.xlu0 %v2745
    %v2747 = vpop.xlane.xlu0 %2746
    %v2748 = vsel %vm228, %v2747, 0.0
    %v2749 = vadd.f32 %v2743, %v2748
    %v2750 = vrot.slane %v2749, 4
    %v2751 = vadd.f32 %v2749, %v2750
    %v2752 = vrot.slane %v2751, 2
    %v2753 = vadd.f32 %v2751, %v2752
    %v2754 = vrot.slane %v2753, 1
    %v2755 = vadd.f32 %v2753, %v2754
    %v2756 = vmul.f32 %v2352, %v2352
    %v2757 = vmul.f32 %v2357, %v2357
    %v2758 = vsel %vm319, %v2756, 0.0
    %2759 = vadd.xlane.f32.xlu0 %v2758
    %v2760 = vpop.xlane.xlu0 %2759
    %v2761 = vsel %vm2744, %v2757, 0.0
    %2762 = vadd.xlane.f32.xlu0 %v2761
    %v2763 = vpop.xlane.xlu0 %2762
    %v2764 = vsel %vm228, %v2763, 0.0
    %v2765 = vadd.f32 %v2760, %v2764
    %v2766 = vrot.slane %v2765, 4
    %v2767 = vadd.f32 %v2765, %v2766
    %v2768 = vrot.slane %v2767, 2
    %v2769 = vadd.f32 %v2767, %v2768
    %v2770 = vrot.slane %v2769, 1
    %v2771 = vadd.f32 %v2769, %v2770
    %v2772 = vsel %vm319, %v2731, 0.0
    %2773 = vadd.xlane.f32.xlu0 %v2772
    %v2774 = vpop.xlane.xlu0 %2773
    %v2775 = vsel %vm2744, %v2736, 0.0
    %2776 = vadd.xlane.f32.xlu0 %v2775
    %v2777 = vpop.xlane.xlu0 %2776
    %v2778 = vsel %vm228, %v2777, 0.0
    %v2779 = vadd.f32 %v2774, %v2778
    %v2780 = vrot.slane %v2779, 4
    %v2781 = vadd.f32 %v2779, %v2780
    %v2782 = vrot.slane %v2781, 2
    %v2783 = vadd.f32 %v2781, %v2782
    %v2784 = vrot.slane %v2783, 1
    %v2785 = vadd.f32 %v2783, %v2784
    %v2786 = vmul.f32 %v2731, %v2731
    %v2787 = vmul.f32 %v2736, %v2736
    %v2788 = vsel %vm319, %v2786, 0.0
    %2789 = vadd.xlane.f32.xlu0 %v2788
    %v2790 = vpop.xlane.xlu0 %2789
    %v2791 = vsel %vm2744, %v2787, 0.0
    %2792 = vadd.xlane.f32.xlu0 %v2791
    %v2793 = vpop.xlane.xlu0 %2792
    %v2794 = vsel %vm228, %v2793, 0.0
    %v2795 = vadd.f32 %v2790, %v2794
    %v2796 = vrot.slane %v2795, 4
    %v2797 = vadd.f32 %v2795, %v2796
    %v2798 = vrot.slane %v2797, 2
    %v2799 = vadd.f32 %v2797, %v2798
    %v2800 = vrot.slane %v2799, 1
    %v2801 = vadd.f32 %v2799, %v2800
    %v2802 = vadd.f32 %v2755, %v2785
    %v2803 = vadd.f32 %v2771, %v2801
    %v2804 = vmul.f32 %v2802, 0.0022222223
    %v2805 = vmul.f32 %v2803, 0.0022222223
    %v2806 = vmul.f32 %v2804, %v2804
    %v2807 = vsub.f32 %v2805, %v2806
    %v2808 = vadd.f32 %v2807, 1e-05
    %v2809 = vrsqrt.pop %v2808
    %v2810 = vmul.f32 %v2739, %v2809
    %v2811 = vmul.f32 %v2804, %v2810
    %v2812 = vsub.f32 %v2740, %v2811
    %v2814 = vlaneseq
    %v2815 = vshrl.u32 %v2814, 7
    %v2816 = vsub.s32 0, %v2815
    %v2817 = vrot.slane %v2810, %v2816
    %2818 = vset.pattern.permute.xlu0 0
    %2819 = vperm.xlu0 %2818, %v2817
    %v2820 = vpop.permute.xlu0 %2819
    %v2822 = vmul.f32 %v2352, %v2820
    %v2823 = vmul.f32 %v2357, %v2820
    %v2825 = vlaneseq
    %v2826 = vshrl.u32 %v2825, 7
    %v2827 = vsub.s32 0, %v2826
    %v2828 = vrot.slane %v2812, %v2827
    %2829 = vset.pattern.permute.xlu0 0
    %2830 = vperm.xlu0 %2829, %v2828
    %v2831 = vpop.permute.xlu0 %2830
    %v2833 = vadd.f32 %v2822, %v2831
    %v2834 = vadd.f32 %v2823, %v2831
    %v2835 = vmax.f32 %v2833, 0.0
    %v2836 = vmax.f32 %v2834, 0.0
    %v2839 = vrot.slane %v2835, 1
    %v2840 = vrot.slane %v2836, 1
    %v2841 = vsel %vm228, %v2839, %v2840
    %v2844 = vmax.f32 %v2835, %v2841
    %v2845 = vmax.f32 %v2836, %v2840
    %2847 = vrot.lane.b32.xlu0 %v2844, 127
    %v2848 = vpop.permute.xlu0 %2847
    %v2850 = vmax.f32 %v2844, %v2848
    %2852 = vrot.lane.b32.xlu0 %v2845, 127
    %v2853 = vpop.permute.xlu0 %2852
    %v2855 = vmax.f32 %v2845, %v2853
    %v2856 = vmul.f32 %v2731, %v2820
    %v2857 = vmul.f32 %v2736, %v2820
    %v2858 = vadd.f32 %v2856, %v2831
    %v2859 = vadd.f32 %v2857, %v2831
    %v2860 = vmax.f32 %v2858, 0.0
    %v2861 = vmax.f32 %v2859, 0.0
    %v2864 = vrot.slane %v2860, 1
    %v2865 = vrot.slane %v2861, 1
    %v2866 = vsel %vm228, %v2864, %v2865
    %v2869 = vmax.f32 %v2860, %v2866
    %v2870 = vmax.f32 %v2861, %v2865
    %2872 = vrot.lane.b32.xlu0 %v2869, 127
    %v2873 = vpop.permute.xlu0 %2872
    %v2875 = vmax.f32 %v2869, %v2873
    %2877 = vrot.lane.b32.xlu0 %v2870, 127
    %v2878 = vpop.permute.xlu0 %2877
    %v2880 = vmax.f32 %v2870, %v2878
    %2883 = vrot.lane.b32.xlu0 %v2352, 113
    %v2884 = vpop.permute.xlu0 %2883
    %2885 = vrot.lane.b32.xlu0 %v2357, 113
    %v2886 = vpop.permute.xlu0 %2885
    %v2889 = vsel %vm319, %v2884, 0.0
    %2890 = vadd.xlane.f32.xlu0 %v2889
    %v2891 = vpop.xlane.xlu0 %2890
    %v2892 = vsel %vm2744, %v2886, 0.0
    %2893 = vadd.xlane.f32.xlu0 %v2892
    %v2894 = vpop.xlane.xlu0 %2893
    %v2895 = vsel %vm228, %v2894, 0.0
    %v2896 = vadd.f32 %v2891, %v2895
    %v2897 = vrot.slane %v2896, 4
    %v2898 = vadd.f32 %v2896, %v2897
    %v2899 = vrot.slane %v2898, 2
    %v2900 = vadd.f32 %v2898, %v2899
    %v2901 = vrot.slane %v2900, 1
    %v2902 = vadd.f32 %v2900, %v2901
    %2905 = vrot.lane.b32.xlu0 %v2756, 113
    %v2906 = vpop.permute.xlu0 %2905
    %2907 = vrot.lane.b32.xlu0 %v2757, 113
    %v2908 = vpop.permute.xlu0 %2907
    %v2911 = vsel %vm319, %v2906, 0.0
    %2912 = vadd.xlane.f32.xlu0 %v2911
    %v2913 = vpop.xlane.xlu0 %2912
    %v2914 = vsel %vm2744, %v2908, 0.0
    %2915 = vadd.xlane.f32.xlu0 %v2914
    %v2916 = vpop.xlane.xlu0 %2915
    %v2917 = vsel %vm228, %v2916, 0.0
    %v2918 = vadd.f32 %v2913, %v2917
    %v2919 = vrot.slane %v2918, 4
    %v2920 = vadd.f32 %v2918, %v2919
    %v2921 = vrot.slane %v2920, 2
    %v2922 = vadd.f32 %v2920, %v2921
    %v2923 = vrot.slane %v2922, 1
    %v2924 = vadd.f32 %v2922, %v2923
    %2927 = vrot.lane.b32.xlu0 %v2731, 113
    %v2928 = vpop.permute.xlu0 %2927
    %2929 = vrot.lane.b32.xlu0 %v2736, 113
    %v2930 = vpop.permute.xlu0 %2929
    %v2933 = vsel %vm319, %v2928, 0.0
    %2934 = vadd.xlane.f32.xlu0 %v2933
    %v2935 = vpop.xlane.xlu0 %2934
    %v2936 = vsel %vm2744, %v2930, 0.0
    %2937 = vadd.xlane.f32.xlu0 %v2936
    %v2938 = vpop.xlane.xlu0 %2937
    %v2939 = vsel %vm228, %v2938, 0.0
    %v2940 = vadd.f32 %v2935, %v2939
    %v2941 = vrot.slane %v2940, 4
    %v2942 = vadd.f32 %v2940, %v2941
    %v2943 = vrot.slane %v2942, 2
    %v2944 = vadd.f32 %v2942, %v2943
    %v2945 = vrot.slane %v2944, 1
    %v2946 = vadd.f32 %v2944, %v2945
    %2949 = vrot.lane.b32.xlu0 %v2786, 113
    %v2950 = vpop.permute.xlu0 %2949
    %2951 = vrot.lane.b32.xlu0 %v2787, 113
    %v2952 = vpop.permute.xlu0 %2951
    %v2955 = vsel %vm319, %v2950, 0.0
    %2956 = vadd.xlane.f32.xlu0 %v2955
    %v2957 = vpop.xlane.xlu0 %2956
    %v2958 = vsel %vm2744, %v2952, 0.0
    %2959 = vadd.xlane.f32.xlu0 %v2958
    %v2960 = vpop.xlane.xlu0 %2959
    %v2961 = vsel %vm228, %v2960, 0.0
    %v2962 = vadd.f32 %v2957, %v2961
    %v2963 = vrot.slane %v2962, 4
    %v2964 = vadd.f32 %v2962, %v2963
    %v2965 = vrot.slane %v2964, 2
    %v2966 = vadd.f32 %v2964, %v2965
    %v2967 = vrot.slane %v2966, 1
    %v2968 = vadd.f32 %v2966, %v2967
    %v2969 = vadd.f32 %v2902, %v2946
    %v2970 = vadd.f32 %v2924, %v2968
    %v2971 = vmul.f32 %v2969, 0.0022222223
    %v2972 = vmul.f32 %v2970, 0.0022222223
    %v2973 = vmul.f32 %v2971, %v2971
    %v2974 = vsub.f32 %v2972, %v2973
    %v2975 = vadd.f32 %v2974, 1e-05
    %v2976 = vrsqrt.pop %v2975
    %v2977 = vmul.f32 %v2739, %v2976
    %v2978 = vmul.f32 %v2971, %v2977
    %v2979 = vsub.f32 %v2740, %v2978
    %v2981 = vlaneseq
    %v2982 = vshrl.u32 %v2981, 7
    %v2983 = vsub.s32 0, %v2982
    %v2984 = vrot.slane %v2977, %v2983
    %2985 = vset.pattern.permute.xlu0 1
    %2986 = vperm.xlu0 %2985, %v2984
    %v2987 = vpop.permute.xlu0 %2986
    %v2989 = vmul.f32 %v2352, %v2987
    %v2990 = vmul.f32 %v2357, %v2987
    %v2992 = vlaneseq
    %v2993 = vshrl.u32 %v2992, 7
    %v2994 = vsub.s32 0, %v2993
    %v2995 = vrot.slane %v2979, %v2994
    %2996 = vset.pattern.permute.xlu0 1
    %2997 = vperm.xlu0 %2996, %v2995
    %v2998 = vpop.permute.xlu0 %2997
    %v3000 = vadd.f32 %v2989, %v2998
    %v3001 = vadd.f32 %v2990, %v2998
    %v3002 = vmax.f32 %v3000, 0.0
    %v3003 = vmax.f32 %v3001, 0.0
    %v3006 = vrot.slane %v3002, 1
    %v3007 = vrot.slane %v3003, 1
    %v3008 = vsel %vm228, %v3006, %v3007
    %v3011 = vmax.f32 %v3002, %v3008
    %v3012 = vmax.f32 %v3003, %v3007
    %3014 = vrot.lane.b32.xlu0 %v3011, 127
    %v3015 = vpop.permute.xlu0 %3014
    %v3017 = vmax.f32 %v3011, %v3015
    %3019 = vrot.lane.b32.xlu0 %v3012, 127
    %v3020 = vpop.permute.xlu0 %3019
    %v3022 = vmax.f32 %v3012, %v3020
    %v3023 = vmul.f32 %v2731, %v2987
    %v3024 = vmul.f32 %v2736, %v2987
    %v3025 = vadd.f32 %v3023, %v2998
    %v3026 = vadd.f32 %v3024, %v2998
    %v3027 = vmax.f32 %v3025, 0.0
    %v3028 = vmax.f32 %v3026, 0.0
    %v3031 = vrot.slane %v3027, 1
    %v3032 = vrot.slane %v3028, 1
    %v3033 = vsel %vm228, %v3031, %v3032
    %v3036 = vmax.f32 %v3027, %v3033
    %v3037 = vmax.f32 %v3028, %v3032
    %3039 = vrot.lane.b32.xlu0 %v3036, 127
    %v3040 = vpop.permute.xlu0 %3039
    %v3042 = vmax.f32 %v3036, %v3040
    %3044 = vrot.lane.b32.xlu0 %v3037, 127
    %v3045 = vpop.permute.xlu0 %3044
    %v3047 = vmax.f32 %v3037, %v3045
    %3048 = vrot.lane.b32.xlu0 %v2352, 98
    %v3049 = vpop.permute.xlu0 %3048
    %3050 = vrot.lane.b32.xlu0 %v2357, 98
    %v3051 = vpop.permute.xlu0 %3050
    %v3054 = vsel %vm319, %v3049, 0.0
    %3055 = vadd.xlane.f32.xlu0 %v3054
    %v3056 = vpop.xlane.xlu0 %3055
    %v3057 = vsel %vm2744, %v3051, 0.0
    %3058 = vadd.xlane.f32.xlu0 %v3057
    %v3059 = vpop.xlane.xlu0 %3058
    %v3060 = vsel %vm228, %v3059, 0.0
    %v3061 = vadd.f32 %v3056, %v3060
    %v3062 = vrot.slane %v3061, 4
    %v3063 = vadd.f32 %v3061, %v3062
    %v3064 = vrot.slane %v3063, 2
    %v3065 = vadd.f32 %v3063, %v3064
    %v3066 = vrot.slane %v3065, 1
    %v3067 = vadd.f32 %v3065, %v3066
    %3068 = vrot.lane.b32.xlu0 %v2756, 98
    %v3069 = vpop.permute.xlu0 %3068
    %3070 = vrot.lane.b32.xlu0 %v2757, 98
    %v3071 = vpop.permute.xlu0 %3070
    %v3074 = vsel %vm319, %v3069, 0.0
    %3075 = vadd.xlane.f32.xlu0 %v3074
    %v3076 = vpop.xlane.xlu0 %3075
    %v3077 = vsel %vm2744, %v3071, 0.0
    %3078 = vadd.xlane.f32.xlu0 %v3077
    %v3079 = vpop.xlane.xlu0 %3078
    %v3080 = vsel %vm228, %v3079, 0.0
    %v3081 = vadd.f32 %v3076, %v3080
    %v3082 = vrot.slane %v3081, 4
    %v3083 = vadd.f32 %v3081, %v3082
    %v3084 = vrot.slane %v3083, 2
    %v3085 = vadd.f32 %v3083, %v3084
    %v3086 = vrot.slane %v3085, 1
    %v3087 = vadd.f32 %v3085, %v3086
    %3088 = vrot.lane.b32.xlu0 %v2731, 98
    %v3089 = vpop.permute.xlu0 %3088
    %3090 = vrot.lane.b32.xlu0 %v2736, 98
    %v3091 = vpop.permute.xlu0 %3090
    %v3094 = vsel %vm319, %v3089, 0.0
    %3095 = vadd.xlane.f32.xlu0 %v3094
    %v3096 = vpop.xlane.xlu0 %3095
    %v3097 = vsel %vm2744, %v3091, 0.0
    %3098 = vadd.xlane.f32.xlu0 %v3097
    %v3099 = vpop.xlane.xlu0 %3098
    %v3100 = vsel %vm228, %v3099, 0.0
    %v3101 = vadd.f32 %v3096, %v3100
    %v3102 = vrot.slane %v3101, 4
    %v3103 = vadd.f32 %v3101, %v3102
    %v3104 = vrot.slane %v3103, 2
    %v3105 = vadd.f32 %v3103, %v3104
    %v3106 = vrot.slane %v3105, 1
    %v3107 = vadd.f32 %v3105, %v3106
    %3108 = vrot.lane.b32.xlu0 %v2786, 98
    %v3109 = vpop.permute.xlu0 %3108
    %3110 = vrot.lane.b32.xlu0 %v2787, 98
    %v3111 = vpop.permute.xlu0 %3110
    %v3114 = vsel %vm319, %v3109, 0.0
    %3115 = vadd.xlane.f32.xlu0 %v3114
    %v3116 = vpop.xlane.xlu0 %3115
    %v3117 = vsel %vm2744, %v3111, 0.0
    %3118 = vadd.xlane.f32.xlu0 %v3117
    %v3119 = vpop.xlane.xlu0 %3118
    %v3120 = vsel %vm228, %v3119, 0.0
    %v3121 = vadd.f32 %v3116, %v3120
    %v3122 = vrot.slane %v3121, 4
    %v3123 = vadd.f32 %v3121, %v3122
    %v3124 = vrot.slane %v3123, 2
    %v3125 = vadd.f32 %v3123, %v3124
    %v3126 = vrot.slane %v3125, 1
    %v3127 = vadd.f32 %v3125, %v3126
    %v3128 = vadd.f32 %v3067, %v3107
    %v3129 = vadd.f32 %v3087, %v3127
    %v3130 = vmul.f32 %v3128, 0.0022222223
    %v3131 = vmul.f32 %v3129, 0.0022222223
    %v3132 = vmul.f32 %v3130, %v3130
    %v3133 = vsub.f32 %v3131, %v3132
    %v3134 = vadd.f32 %v3133, 1e-05
    %v3135 = vrsqrt.pop %v3134
    %v3136 = vmul.f32 %v2739, %v3135
    %v3137 = vmul.f32 %v3130, %v3136
    %v3138 = vsub.f32 %v2740, %v3137
    %v3140 = vlaneseq
    %v3141 = vshrl.u32 %v3140, 7
    %v3142 = vsub.s32 0, %v3141
    %v3143 = vrot.slane %v3136, %v3142
    %3144 = vset.pattern.permute.xlu0 2
    %3145 = vperm.xlu0 %3144, %v3143
    %v3146 = vpop.permute.xlu0 %3145
    %v3148 = vmul.f32 %v2352, %v3146
    %v3149 = vmul.f32 %v2357, %v3146
    %v3151 = vlaneseq
    %v3152 = vshrl.u32 %v3151, 7
    %v3153 = vsub.s32 0, %v3152
    %v3154 = vrot.slane %v3138, %v3153
    %3155 = vset.pattern.permute.xlu0 2
    %3156 = vperm.xlu0 %3155, %v3154
    %v3157 = vpop.permute.xlu0 %3156
    %v3159 = vadd.f32 %v3148, %v3157
    %v3160 = vadd.f32 %v3149, %v3157
    %v3161 = vmax.f32 %v3159, 0.0
    %v3162 = vmax.f32 %v3160, 0.0
    %v3165 = vrot.slane %v3161, 1
    %v3166 = vrot.slane %v3162, 1
    %v3167 = vsel %vm228, %v3165, %v3166
    %v3170 = vmax.f32 %v3161, %v3167
    %v3171 = vmax.f32 %v3162, %v3166
    %3173 = vrot.lane.b32.xlu0 %v3170, 127
    %v3174 = vpop.permute.xlu0 %3173
    %v3176 = vmax.f32 %v3170, %v3174
    %3178 = vrot.lane.b32.xlu0 %v3171, 127
    %v3179 = vpop.permute.xlu0 %3178
    %v3181 = vmax.f32 %v3171, %v3179
    %v3182 = vmul.f32 %v2731, %v3146
    %v3183 = vmul.f32 %v2736, %v3146
    %v3184 = vadd.f32 %v3182, %v3157
    %v3185 = vadd.f32 %v3183, %v3157
    %v3186 = vmax.f32 %v3184, 0.0
    %v3187 = vmax.f32 %v3185, 0.0
    %v3190 = vrot.slane %v3186, 1
    %v3191 = vrot.slane %v3187, 1
    %v3192 = vsel %vm228, %v3190, %v3191
    %v3195 = vmax.f32 %v3186, %v3192
    %v3196 = vmax.f32 %v3187, %v3191
    %3198 = vrot.lane.b32.xlu0 %v3195, 127
    %v3199 = vpop.permute.xlu0 %3198
    %v3201 = vmax.f32 %v3195, %v3199
    %3203 = vrot.lane.b32.xlu0 %v3196, 127
    %v3204 = vpop.permute.xlu0 %3203
    %v3206 = vmax.f32 %v3196, %v3204
    %3207 = vrot.lane.b32.xlu0 %v2352, 83
    %v3208 = vpop.permute.xlu0 %3207
    %3209 = vrot.lane.b32.xlu0 %v2357, 83
    %v3210 = vpop.permute.xlu0 %3209
    %v3213 = vsel %vm319, %v3208, 0.0
    %3214 = vadd.xlane.f32.xlu0 %v3213
    %v3215 = vpop.xlane.xlu0 %3214
    %v3216 = vsel %vm2744, %v3210, 0.0
    %3217 = vadd.xlane.f32.xlu0 %v3216
    %v3218 = vpop.xlane.xlu0 %3217
    %v3219 = vsel %vm228, %v3218, 0.0
    %v3220 = vadd.f32 %v3215, %v3219
    %v3221 = vrot.slane %v3220, 4
    %v3222 = vadd.f32 %v3220, %v3221
    %v3223 = vrot.slane %v3222, 2
    %v3224 = vadd.f32 %v3222, %v3223
    %v3225 = vrot.slane %v3224, 1
    %v3226 = vadd.f32 %v3224, %v3225
    %3227 = vrot.lane.b32.xlu0 %v2756, 83
    %v3228 = vpop.permute.xlu0 %3227
    %3229 = vrot.lane.b32.xlu0 %v2757, 83
    %v3230 = vpop.permute.xlu0 %3229
    %v3233 = vsel %vm319, %v3228, 0.0
    %3234 = vadd.xlane.f32.xlu0 %v3233
    %v3235 = vpop.xlane.xlu0 %3234
    %v3236 = vsel %vm2744, %v3230, 0.0
    %3237 = vadd.xlane.f32.xlu0 %v3236
    %v3238 = vpop.xlane.xlu0 %3237
    %v3239 = vsel %vm228, %v3238, 0.0
    %v3240 = vadd.f32 %v3235, %v3239
    %v3241 = vrot.slane %v3240, 4
    %v3242 = vadd.f32 %v3240, %v3241
    %v3243 = vrot.slane %v3242, 2
    %v3244 = vadd.f32 %v3242, %v3243
    %v3245 = vrot.slane %v3244, 1
    %v3246 = vadd.f32 %v3244, %v3245
    %3247 = vrot.lane.b32.xlu0 %v2731, 83
    %v3248 = vpop.permute.xlu0 %3247
    %3249 = vrot.lane.b32.xlu0 %v2736, 83
    %v3250 = vpop.permute.xlu0 %3249
    %v3253 = vsel %vm319, %v3248, 0.0
    %3254 = vadd.xlane.f32.xlu0 %v3253
    %v3255 = vpop.xlane.xlu0 %3254
    %v3256 = vsel %vm2744, %v3250, 0.0
    %3257 = vadd.xlane.f32.xlu0 %v3256
    %v3258 = vpop.xlane.xlu0 %3257
    %v3259 = vsel %vm228, %v3258, 0.0
    %v3260 = vadd.f32 %v3255, %v3259
    %v3261 = vrot.slane %v3260, 4
    %v3262 = vadd.f32 %v3260, %v3261
    %v3263 = vrot.slane %v3262, 2
    %v3264 = vadd.f32 %v3262, %v3263
    %v3265 = vrot.slane %v3264, 1
    %v3266 = vadd.f32 %v3264, %v3265
    %3267 = vrot.lane.b32.xlu0 %v2786, 83
    %v3268 = vpop.permute.xlu0 %3267
    %3269 = vrot.lane.b32.xlu0 %v2787, 83
    %v3270 = vpop.permute.xlu0 %3269
    %v3273 = vsel %vm319, %v3268, 0.0
    %3274 = vadd.xlane.f32.xlu0 %v3273
    %v3275 = vpop.xlane.xlu0 %3274
    %v3276 = vsel %vm2744, %v3270, 0.0
    %3277 = vadd.xlane.f32.xlu0 %v3276
    %v3278 = vpop.xlane.xlu0 %3277
    %v3279 = vsel %vm228, %v3278, 0.0
    %v3280 = vadd.f32 %v3275, %v3279
    %v3281 = vrot.slane %v3280, 4
    %v3282 = vadd.f32 %v3280, %v3281
    %v3283 = vrot.slane %v3282, 2
    %v3284 = vadd.f32 %v3282, %v3283
    %v3285 = vrot.slane %v3284, 1
    %v3286 = vadd.f32 %v3284, %v3285
    %v3287 = vadd.f32 %v3226, %v3266
    %v3288 = vadd.f32 %v3246, %v3286
    %v3289 = vmul.f32 %v3287, 0.0022222223
    %v3290 = vmul.f32 %v3288, 0.0022222223
    %v3291 = vmul.f32 %v3289, %v3289
    %v3292 = vsub.f32 %v3290, %v3291
    %v3293 = vadd.f32 %v3292, 1e-05
    %v3294 = vrsqrt.pop %v3293
    %v3295 = vmul.f32 %v2739, %v3294
    %v3296 = vmul.f32 %v3289, %v3295
    %v3297 = vsub.f32 %v2740, %v3296
    %v3299 = vlaneseq
    %v3300 = vshrl.u32 %v3299, 7
    %v3301 = vsub.s32 0, %v3300
    %v3302 = vrot.slane %v3295, %v3301
    %3303 = vset.pattern.permute.xlu0 3
    %3304 = vperm.xlu0 %3303, %v3302
    %v3305 = vpop.permute.xlu0 %3304
    %v3307 = vmul.f32 %v2352, %v3305
    %v3308 = vmul.f32 %v2357, %v3305
    %v3310 = vlaneseq
    %v3311 = vshrl.u32 %v3310, 7
    %v3312 = vsub.s32 0, %v3311
    %v3313 = vrot.slane %v3297, %v3312
    %3314 = vset.pattern.permute.xlu0 3
    %3315 = vperm.xlu0 %3314, %v3313
    %v3316 = vpop.permute.xlu0 %3315
    %v3318 = vadd.f32 %v3307, %v3316
    %v3319 = vadd.f32 %v3308, %v3316
    %v3320 = vmax.f32 %v3318, 0.0
    %v3321 = vmax.f32 %v3319, 0.0
    %v3324 = vrot.slane %v3320, 1
    %v3325 = vrot.slane %v3321, 1
    %v3326 = vsel %vm228, %v3324, %v3325
    %v3329 = vmax.f32 %v3320, %v3326
    %v3330 = vmax.f32 %v3321, %v3325
    %3332 = vrot.lane.b32.xlu0 %v3329, 127
    %v3333 = vpop.permute.xlu0 %3332
    %v3335 = vmax.f32 %v3329, %v3333
    %3337 = vrot.lane.b32.xlu0 %v3330, 127
    %v3338 = vpop.permute.xlu0 %3337
    %v3340 = vmax.f32 %v3330, %v3338
    %v3341 = vmul.f32 %v2731, %v3305
    %v3342 = vmul.f32 %v2736, %v3305
    %v3343 = vadd.f32 %v3341, %v3316
    %v3344 = vadd.f32 %v3342, %v3316
    %v3345 = vmax.f32 %v3343, 0.0
    %v3346 = vmax.f32 %v3344, 0.0
    %v3349 = vrot.slane %v3345, 1
    %v3350 = vrot.slane %v3346, 1
    %v3351 = vsel %vm228, %v3349, %v3350
    %v3354 = vmax.f32 %v3345, %v3351
    %v3355 = vmax.f32 %v3346, %v3350
    %3357 = vrot.lane.b32.xlu0 %v3354, 127
    %v3358 = vpop.permute.xlu0 %3357
    %v3360 = vmax.f32 %v3354, %v3358
    %3362 = vrot.lane.b32.xlu0 %v3355, 127
    %v3363 = vpop.permute.xlu0 %3362
    %v3365 = vmax.f32 %v3355, %v3363
    %3366 = vrot.lane.b32.xlu0 %v2352, 68
    %v3367 = vpop.permute.xlu0 %3366
    %3368 = vrot.lane.b32.xlu0 %v2357, 68
    %v3369 = vpop.permute.xlu0 %3368
    %v3372 = vsel %vm319, %v3367, 0.0
    %3373 = vadd.xlane.f32.xlu0 %v3372
    %v3374 = vpop.xlane.xlu0 %3373
    %v3375 = vsel %vm2744, %v3369, 0.0
    %3376 = vadd.xlane.f32.xlu0 %v3375
    %v3377 = vpop.xlane.xlu0 %3376
    %v3378 = vsel %vm228, %v3377, 0.0
    %v3379 = vadd.f32 %v3374, %v3378
    %v3380 = vrot.slane %v3379, 4
    %v3381 = vadd.f32 %v3379, %v3380
    %v3382 = vrot.slane %v3381, 2
    %v3383 = vadd.f32 %v3381, %v3382
    %v3384 = vrot.slane %v3383, 1
    %v3385 = vadd.f32 %v3383, %v3384
    %3386 = vrot.lane.b32.xlu0 %v2756, 68
    %v3387 = vpop.permute.xlu0 %3386
    %3388 = vrot.lane.b32.xlu0 %v2757, 68
    %v3389 = vpop.permute.xlu0 %3388
    %v3392 = vsel %vm319, %v3387, 0.0
    %3393 = vadd.xlane.f32.xlu0 %v3392
    %v3394 = vpop.xlane.xlu0 %3393
    %v3395 = vsel %vm2744, %v3389, 0.0
    %3396 = vadd.xlane.f32.xlu0 %v3395
    %v3397 = vpop.xlane.xlu0 %3396
    %v3398 = vsel %vm228, %v3397, 0.0
    %v3399 = vadd.f32 %v3394, %v3398
    %v3400 = vrot.slane %v3399, 4
    %v3401 = vadd.f32 %v3399, %v3400
    %v3402 = vrot.slane %v3401, 2
    %v3403 = vadd.f32 %v3401, %v3402
    %v3404 = vrot.slane %v3403, 1
    %v3405 = vadd.f32 %v3403, %v3404
    %3406 = vrot.lane.b32.xlu0 %v2731, 68
    %v3407 = vpop.permute.xlu0 %3406
    %3408 = vrot.lane.b32.xlu0 %v2736, 68
    %v3409 = vpop.permute.xlu0 %3408
    %v3412 = vsel %vm319, %v3407, 0.0
    %3413 = vadd.xlane.f32.xlu0 %v3412
    %v3414 = vpop.xlane.xlu0 %3413
    %v3415 = vsel %vm2744, %v3409, 0.0
    %3416 = vadd.xlane.f32.xlu0 %v3415
    %v3417 = vpop.xlane.xlu0 %3416
    %v3418 = vsel %vm228, %v3417, 0.0
    %v3419 = vadd.f32 %v3414, %v3418
    %v3420 = vrot.slane %v3419, 4
    %v3421 = vadd.f32 %v3419, %v3420
    %v3422 = vrot.slane %v3421, 2
    %v3423 = vadd.f32 %v3421, %v3422
    %v3424 = vrot.slane %v3423, 1
    %v3425 = vadd.f32 %v3423, %v3424
    %3426 = vrot.lane.b32.xlu0 %v2786, 68
    %v3427 = vpop.permute.xlu0 %3426
    %3428 = vrot.lane.b32.xlu0 %v2787, 68
    %v3429 = vpop.permute.xlu0 %3428
    %v3432 = vsel %vm319, %v3427, 0.0
    %3433 = vadd.xlane.f32.xlu0 %v3432
    %v3434 = vpop.xlane.xlu0 %3433
    %v3435 = vsel %vm2744, %v3429, 0.0
    %3436 = vadd.xlane.f32.xlu0 %v3435
    %v3437 = vpop.xlane.xlu0 %3436
    %v3438 = vsel %vm228, %v3437, 0.0
    %v3439 = vadd.f32 %v3434, %v3438
    %v3440 = vrot.slane %v3439, 4
    %v3441 = vadd.f32 %v3439, %v3440
    %v3442 = vrot.slane %v3441, 2
    %v3443 = vadd.f32 %v3441, %v3442
    %v3444 = vrot.slane %v3443, 1
    %v3445 = vadd.f32 %v3443, %v3444
    %v3446 = vadd.f32 %v3385, %v3425
    %v3447 = vadd.f32 %v3405, %v3445
    %v3448 = vmul.f32 %v3446, 0.0022222223
    %v3449 = vmul.f32 %v3447, 0.0022222223
    %v3450 = vmul.f32 %v3448, %v3448
    %v3451 = vsub.f32 %v3449, %v3450
    %v3452 = vadd.f32 %v3451, 1e-05
    %v3453 = vrsqrt.pop %v3452
    %v3454 = vmul.f32 %v2739, %v3453
    %v3455 = vmul.f32 %v3448, %v3454
    %v3456 = vsub.f32 %v2740, %v3455
    %v3458 = vlaneseq
    %v3459 = vshrl.u32 %v3458, 7
    %v3460 = vsub.s32 0, %v3459
    %v3461 = vrot.slane %v3454, %v3460
    %3462 = vset.pattern.permute.xlu0 4
    %3463 = vperm.xlu0 %3462, %v3461
    %v3464 = vpop.permute.xlu0 %3463
    %v3466 = vmul.f32 %v2352, %v3464
    %v3467 = vmul.f32 %v2357, %v3464
    %v3469 = vlaneseq
    %v3470 = vshrl.u32 %v3469, 7
    %v3471 = vsub.s32 0, %v3470
    %v3472 = vrot.slane %v3456, %v3471
    %3473 = vset.pattern.permute.xlu0 4
    %3474 = vperm.xlu0 %3473, %v3472
    %v3475 = vpop.permute.xlu0 %3474
    %v3477 = vadd.f32 %v3466, %v3475
    %v3478 = vadd.f32 %v3467, %v3475
    %v3479 = vmax.f32 %v3477, 0.0
    %v3480 = vmax.f32 %v3478, 0.0
    %v3483 = vrot.slane %v3479, 1
    %v3484 = vrot.slane %v3480, 1
    %v3485 = vsel %vm228, %v3483, %v3484
    %v3488 = vmax.f32 %v3479, %v3485
    %v3489 = vmax.f32 %v3480, %v3484
    %3491 = vrot.lane.b32.xlu0 %v3488, 127
    %v3492 = vpop.permute.xlu0 %3491
    %v3494 = vmax.f32 %v3488, %v3492
    %3496 = vrot.lane.b32.xlu0 %v3489, 127
    %v3497 = vpop.permute.xlu0 %3496
    %v3499 = vmax.f32 %v3489, %v3497
    %v3500 = vmul.f32 %v2731, %v3464
    %v3501 = vmul.f32 %v2736, %v3464
    %v3502 = vadd.f32 %v3500, %v3475
    %v3503 = vadd.f32 %v3501, %v3475
    %v3504 = vmax.f32 %v3502, 0.0
    %v3505 = vmax.f32 %v3503, 0.0
    %v3508 = vrot.slane %v3504, 1
    %v3509 = vrot.slane %v3505, 1
    %v3510 = vsel %vm228, %v3508, %v3509
    %v3513 = vmax.f32 %v3504, %v3510
    %v3514 = vmax.f32 %v3505, %v3509
    %3516 = vrot.lane.b32.xlu0 %v3513, 127
    %v3517 = vpop.permute.xlu0 %3516
    %v3519 = vmax.f32 %v3513, %v3517
    %3521 = vrot.lane.b32.xlu0 %v3514, 127
    %v3522 = vpop.permute.xlu0 %3521
    %v3524 = vmax.f32 %v3514, %v3522
    %3525 = vrot.lane.b32.xlu0 %v2352, 53
    %v3526 = vpop.permute.xlu0 %3525
    %3527 = vrot.lane.b32.xlu0 %v2357, 53
    %v3528 = vpop.permute.xlu0 %3527
    %v3531 = vsel %vm319, %v3526, 0.0
    %3532 = vadd.xlane.f32.xlu0 %v3531
    %v3533 = vpop.xlane.xlu0 %3532
    %v3534 = vsel %vm2744, %v3528, 0.0
    %3535 = vadd.xlane.f32.xlu0 %v3534
    %v3536 = vpop.xlane.xlu0 %3535
    %v3537 = vsel %vm228, %v3536, 0.0
    %v3538 = vadd.f32 %v3533, %v3537
    %v3539 = vrot.slane %v3538, 4
    %v3540 = vadd.f32 %v3538, %v3539
    %v3541 = vrot.slane %v3540, 2
    %v3542 = vadd.f32 %v3540, %v3541
    %v3543 = vrot.slane %v3542, 1
    %v3544 = vadd.f32 %v3542, %v3543
    %3545 = vrot.lane.b32.xlu0 %v2756, 53
    %v3546 = vpop.permute.xlu0 %3545
    %3547 = vrot.lane.b32.xlu0 %v2757, 53
    %v3548 = vpop.permute.xlu0 %3547
    %v3551 = vsel %vm319, %v3546, 0.0
    %3552 = vadd.xlane.f32.xlu0 %v3551
    %v3553 = vpop.xlane.xlu0 %3552
    %v3554 = vsel %vm2744, %v3548, 0.0
    %3555 = vadd.xlane.f32.xlu0 %v3554
    %v3556 = vpop.xlane.xlu0 %3555
    %v3557 = vsel %vm228, %v3556, 0.0
    %v3558 = vadd.f32 %v3553, %v3557
    %v3559 = vrot.slane %v3558, 4
    %v3560 = vadd.f32 %v3558, %v3559
    %v3561 = vrot.slane %v3560, 2
    %v3562 = vadd.f32 %v3560, %v3561
    %v3563 = vrot.slane %v3562, 1
    %v3564 = vadd.f32 %v3562, %v3563
    %3565 = vrot.lane.b32.xlu0 %v2731, 53
    %v3566 = vpop.permute.xlu0 %3565
    %3567 = vrot.lane.b32.xlu0 %v2736, 53
    %v3568 = vpop.permute.xlu0 %3567
    %v3571 = vsel %vm319, %v3566, 0.0
    %3572 = vadd.xlane.f32.xlu0 %v3571
    %v3573 = vpop.xlane.xlu0 %3572
    %v3574 = vsel %vm2744, %v3568, 0.0
    %3575 = vadd.xlane.f32.xlu0 %v3574
    %v3576 = vpop.xlane.xlu0 %3575
    %v3577 = vsel %vm228, %v3576, 0.0
    %v3578 = vadd.f32 %v3573, %v3577
    %v3579 = vrot.slane %v3578, 4
    %v3580 = vadd.f32 %v3578, %v3579
    %v3581 = vrot.slane %v3580, 2
    %v3582 = vadd.f32 %v3580, %v3581
    %v3583 = vrot.slane %v3582, 1
    %v3584 = vadd.f32 %v3582, %v3583
    %3585 = vrot.lane.b32.xlu0 %v2786, 53
    %v3586 = vpop.permute.xlu0 %3585
    %3587 = vrot.lane.b32.xlu0 %v2787, 53
    %v3588 = vpop.permute.xlu0 %3587
    %v3591 = vsel %vm319, %v3586, 0.0
    %3592 = vadd.xlane.f32.xlu0 %v3591
    %v3593 = vpop.xlane.xlu0 %3592
    %v3594 = vsel %vm2744, %v3588, 0.0
    %3595 = vadd.xlane.f32.xlu0 %v3594
    %v3596 = vpop.xlane.xlu0 %3595
    %v3597 = vsel %vm228, %v3596, 0.0
    %v3598 = vadd.f32 %v3593, %v3597
    %v3599 = vrot.slane %v3598, 4
    %v3600 = vadd.f32 %v3598, %v3599
    %v3601 = vrot.slane %v3600, 2
    %v3602 = vadd.f32 %v3600, %v3601
    %v3603 = vrot.slane %v3602, 1
    %v3604 = vadd.f32 %v3602, %v3603
    %v3605 = vadd.f32 %v3544, %v3584
    %v3606 = vadd.f32 %v3564, %v3604
    %v3607 = vmul.f32 %v3605, 0.0022222223
    %v3608 = vmul.f32 %v3606, 0.0022222223
    %v3609 = vmul.f32 %v3607, %v3607
    %v3610 = vsub.f32 %v3608, %v3609
    %v3611 = vadd.f32 %v3610, 1e-05
    %v3612 = vrsqrt.pop %v3611
    %v3613 = vmul.f32 %v2739, %v3612
    %v3614 = vmul.f32 %v3607, %v3613
    %v3615 = vsub.f32 %v2740, %v3614
    %v3617 = vlaneseq
    %v3618 = vshrl.u32 %v3617, 7
    %v3619 = vsub.s32 0, %v3618
    %v3620 = vrot.slane %v3613, %v3619
    %3621 = vset.pattern.permute.xlu0 5
    %3622 = vperm.xlu0 %3621, %v3620
    %v3623 = vpop.permute.xlu0 %3622
    %v3625 = vmul.f32 %v2352, %v3623
    %v3626 = vmul.f32 %v2357, %v3623
    %v3628 = vlaneseq
    %v3629 = vshrl.u32 %v3628, 7
    %v3630 = vsub.s32 0, %v3629
    %v3631 = vrot.slane %v3615, %v3630
    %3632 = vset.pattern.permute.xlu0 5
    %3633 = vperm.xlu0 %3632, %v3631
    %v3634 = vpop.permute.xlu0 %3633
    %v3636 = vadd.f32 %v3625, %v3634
    %v3637 = vadd.f32 %v3626, %v3634
    %v3638 = vmax.f32 %v3636, 0.0
    %v3639 = vmax.f32 %v3637, 0.0
    %v3642 = vrot.slane %v3638, 1
    %v3643 = vrot.slane %v3639, 1
    %v3644 = vsel %vm228, %v3642, %v3643
    %v3647 = vmax.f32 %v3638, %v3644
    %v3648 = vmax.f32 %v3639, %v3643
    %3650 = vrot.lane.b32.xlu0 %v3647, 127
    %v3651 = vpop.permute.xlu0 %3650
    %v3653 = vmax.f32 %v3647, %v3651
    %3655 = vrot.lane.b32.xlu0 %v3648, 127
    %v3656 = vpop.permute.xlu0 %3655
    %v3658 = vmax.f32 %v3648, %v3656
    %v3659 = vmul.f32 %v2731, %v3623
    %v3660 = vmul.f32 %v2736, %v3623
    %v3661 = vadd.f32 %v3659, %v3634
    %v3662 = vadd.f32 %v3660, %v3634
    %v3663 = vmax.f32 %v3661, 0.0
    %v3664 = vmax.f32 %v3662, 0.0
    %v3667 = vrot.slane %v3663, 1
    %v3668 = vrot.slane %v3664, 1
    %v3669 = vsel %vm228, %v3667, %v3668
    %v3672 = vmax.f32 %v3663, %v3669
    %v3673 = vmax.f32 %v3664, %v3668
    %3675 = vrot.lane.b32.xlu0 %v3672, 127
    %v3676 = vpop.permute.xlu0 %3675
    %v3678 = vmax.f32 %v3672, %v3676
    %3680 = vrot.lane.b32.xlu0 %v3673, 127
    %v3681 = vpop.permute.xlu0 %3680
    %v3683 = vmax.f32 %v3673, %v3681
    %3684 = vrot.lane.b32.xlu0 %v2352, 38
    %v3685 = vpop.permute.xlu0 %3684
    %3686 = vrot.lane.b32.xlu0 %v2357, 38
    %v3687 = vpop.permute.xlu0 %3686
    %v3690 = vsel %vm319, %v3685, 0.0
    %3691 = vadd.xlane.f32.xlu0 %v3690
    %v3692 = vpop.xlane.xlu0 %3691
    %v3693 = vsel %vm2744, %v3687, 0.0
    %3694 = vadd.xlane.f32.xlu0 %v3693
    %v3695 = vpop.xlane.xlu0 %3694
    %v3696 = vsel %vm228, %v3695, 0.0
    %v3697 = vadd.f32 %v3692, %v3696
    %v3698 = vrot.slane %v3697, 4
    %v3699 = vadd.f32 %v3697, %v3698
    %v3700 = vrot.slane %v3699, 2
    %v3701 = vadd.f32 %v3699, %v3700
    %v3702 = vrot.slane %v3701, 1
    %v3703 = vadd.f32 %v3701, %v3702
    %3704 = vrot.lane.b32.xlu0 %v2756, 38
    %v3705 = vpop.permute.xlu0 %3704
    %3706 = vrot.lane.b32.xlu0 %v2757, 38
    %v3707 = vpop.permute.xlu0 %3706
    %v3710 = vsel %vm319, %v3705, 0.0
    %3711 = vadd.xlane.f32.xlu0 %v3710
    %v3712 = vpop.xlane.xlu0 %3711
    %v3713 = vsel %vm2744, %v3707, 0.0
    %3714 = vadd.xlane.f32.xlu0 %v3713
    %v3715 = vpop.xlane.xlu0 %3714
    %v3716 = vsel %vm228, %v3715, 0.0
    %v3717 = vadd.f32 %v3712, %v3716
    %v3718 = vrot.slane %v3717, 4
    %v3719 = vadd.f32 %v3717, %v3718
    %v3720 = vrot.slane %v3719, 2
    %v3721 = vadd.f32 %v3719, %v3720
    %v3722 = vrot.slane %v3721, 1
    %v3723 = vadd.f32 %v3721, %v3722
    %3724 = vrot.lane.b32.xlu0 %v2731, 38
    %v3725 = vpop.permute.xlu0 %3724
    %3726 = vrot.lane.b32.xlu0 %v2736, 38
    %v3727 = vpop.permute.xlu0 %3726
    %v3730 = vsel %vm319, %v3725, 0.0
    %3731 = vadd.xlane.f32.xlu0 %v3730
    %v3732 = vpop.xlane.xlu0 %3731
    %v3733 = vsel %vm2744, %v3727, 0.0
    %3734 = vadd.xlane.f32.xlu0 %v3733
    %v3735 = vpop.xlane.xlu0 %3734
    %v3736 = vsel %vm228, %v3735, 0.0
    %v3737 = vadd.f32 %v3732, %v3736
    %v3738 = vrot.slane %v3737, 4
    %v3739 = vadd.f32 %v3737, %v3738
    %v3740 = vrot.slane %v3739, 2
    %v3741 = vadd.f32 %v3739, %v3740
    %v3742 = vrot.slane %v3741, 1
    %v3743 = vadd.f32 %v3741, %v3742
    %3744 = vrot.lane.b32.xlu0 %v2786, 38
    %v3745 = vpop.permute.xlu0 %3744
    %3746 = vrot.lane.b32.xlu0 %v2787, 38
    %v3747 = vpop.permute.xlu0 %3746
    %v3750 = vsel %vm319, %v3745, 0.0
    %3751 = vadd.xlane.f32.xlu0 %v3750
    %v3752 = vpop.xlane.xlu0 %3751
    %v3753 = vsel %vm2744, %v3747, 0.0
    %3754 = vadd.xlane.f32.xlu0 %v3753
    %v3755 = vpop.xlane.xlu0 %3754
    %v3756 = vsel %vm228, %v3755, 0.0
    %v3757 = vadd.f32 %v3752, %v3756
    %v3758 = vrot.slane %v3757, 4
    %v3759 = vadd.f32 %v3757, %v3758
    %v3760 = vrot.slane %v3759, 2
    %v3761 = vadd.f32 %v3759, %v3760
    %v3762 = vrot.slane %v3761, 1
    %v3763 = vadd.f32 %v3761, %v3762
    %v3764 = vadd.f32 %v3703, %v3743
    %v3765 = vadd.f32 %v3723, %v3763
    %v3766 = vmul.f32 %v3764, 0.0022222223
    %v3767 = vmul.f32 %v3765, 0.0022222223
    %v3768 = vmul.f32 %v3766, %v3766
    %v3769 = vsub.f32 %v3767, %v3768
    %v3770 = vadd.f32 %v3769, 1e-05
    %v3771 = vrsqrt.pop %v3770
    %v3772 = vmul.f32 %v2739, %v3771
    %v3773 = vmul.f32 %v3766, %v3772
    %v3774 = vsub.f32 %v2740, %v3773
    %v3776 = vlaneseq
    %v3777 = vshrl.u32 %v3776, 7
    %v3778 = vsub.s32 0, %v3777
    %v3779 = vrot.slane %v3772, %v3778
    %3780 = vset.pattern.permute.xlu0 6
    %3781 = vperm.xlu0 %3780, %v3779
    %v3782 = vpop.permute.xlu0 %3781
    %v3784 = vmul.f32 %v2352, %v3782
    %v3785 = vmul.f32 %v2357, %v3782
    %v3787 = vlaneseq
    %v3788 = vshrl.u32 %v3787, 7
    %v3789 = vsub.s32 0, %v3788
    %v3790 = vrot.slane %v3774, %v3789
    %3791 = vset.pattern.permute.xlu0 6
    %3792 = vperm.xlu0 %3791, %v3790
    %v3793 = vpop.permute.xlu0 %3792
    %v3795 = vadd.f32 %v3784, %v3793
    %v3796 = vadd.f32 %v3785, %v3793
    %v3797 = vmax.f32 %v3795, 0.0
    %v3798 = vmax.f32 %v3796, 0.0
    %v3801 = vrot.slane %v3797, 1
    %v3802 = vrot.slane %v3798, 1
    %v3803 = vsel %vm228, %v3801, %v3802
    %v3806 = vmax.f32 %v3797, %v3803
    %v3807 = vmax.f32 %v3798, %v3802
    %3809 = vrot.lane.b32.xlu0 %v3806, 127
    %v3810 = vpop.permute.xlu0 %3809
    %v3812 = vmax.f32 %v3806, %v3810
    %3814 = vrot.lane.b32.xlu0 %v3807, 127
    %v3815 = vpop.permute.xlu0 %3814
    %v3817 = vmax.f32 %v3807, %v3815
    %v3818 = vmul.f32 %v2731, %v3782
    %v3819 = vmul.f32 %v2736, %v3782
    %v3820 = vadd.f32 %v3818, %v3793
    %v3821 = vadd.f32 %v3819, %v3793
    %v3822 = vmax.f32 %v3820, 0.0
    %v3823 = vmax.f32 %v3821, 0.0
    %v3826 = vrot.slane %v3822, 1
    %v3827 = vrot.slane %v3823, 1
    %v3828 = vsel %vm228, %v3826, %v3827
    %v3831 = vmax.f32 %v3822, %v3828
    %v3832 = vmax.f32 %v3823, %v3827
    %3834 = vrot.lane.b32.xlu0 %v3831, 127
    %v3835 = vpop.permute.xlu0 %3834
    %v3837 = vmax.f32 %v3831, %v3835
    %3839 = vrot.lane.b32.xlu0 %v3832, 127
    %v3840 = vpop.permute.xlu0 %3839
    %v3842 = vmax.f32 %v3832, %v3840
    %3843 = vrot.lane.b32.xlu0 %v2352, 23
    %v3844 = vpop.permute.xlu0 %3843
    %3845 = vrot.lane.b32.xlu0 %v2357, 23
    %v3846 = vpop.permute.xlu0 %3845
    %v3849 = vsel %vm319, %v3844, 0.0
    %3850 = vadd.xlane.f32.xlu0 %v3849
    %v3851 = vpop.xlane.xlu0 %3850
    %v3852 = vsel %vm2744, %v3846, 0.0
    %3853 = vadd.xlane.f32.xlu0 %v3852
    %v3854 = vpop.xlane.xlu0 %3853
    %v3855 = vsel %vm228, %v3854, 0.0
    %v3856 = vadd.f32 %v3851, %v3855
    %v3857 = vrot.slane %v3856, 4
    %v3858 = vadd.f32 %v3856, %v3857
    %v3859 = vrot.slane %v3858, 2
    %v3860 = vadd.f32 %v3858, %v3859
    %v3861 = vrot.slane %v3860, 1
    %v3862 = vadd.f32 %v3860, %v3861
    %3863 = vrot.lane.b32.xlu0 %v2756, 23
    %v3864 = vpop.permute.xlu0 %3863
    %3865 = vrot.lane.b32.xlu0 %v2757, 23
    %v3866 = vpop.permute.xlu0 %3865
    %v3869 = vsel %vm319, %v3864, 0.0
    %3870 = vadd.xlane.f32.xlu0 %v3869
    %v3871 = vpop.xlane.xlu0 %3870
    %v3872 = vsel %vm2744, %v3866, 0.0
    %3873 = vadd.xlane.f32.xlu0 %v3872
    %v3874 = vpop.xlane.xlu0 %3873
    %v3875 = vsel %vm228, %v3874, 0.0
    %v3876 = vadd.f32 %v3871, %v3875
    %v3877 = vrot.slane %v3876, 4
    %v3878 = vadd.f32 %v3876, %v3877
    %v3879 = vrot.slane %v3878, 2
    %v3880 = vadd.f32 %v3878, %v3879
    %v3881 = vrot.slane %v3880, 1
    %v3882 = vadd.f32 %v3880, %v3881
    %3883 = vrot.lane.b32.xlu0 %v2731, 23
    %v3884 = vpop.permute.xlu0 %3883
    %3885 = vrot.lane.b32.xlu0 %v2736, 23
    %v3886 = vpop.permute.xlu0 %3885
    %v3889 = vsel %vm319, %v3884, 0.0
    %3890 = vadd.xlane.f32.xlu0 %v3889
    %v3891 = vpop.xlane.xlu0 %3890
    %v3892 = vsel %vm2744, %v3886, 0.0
    %3893 = vadd.xlane.f32.xlu0 %v3892
    %v3894 = vpop.xlane.xlu0 %3893
    %v3895 = vsel %vm228, %v3894, 0.0
    %v3896 = vadd.f32 %v3891, %v3895
    %v3897 = vrot.slane %v3896, 4
    %v3898 = vadd.f32 %v3896, %v3897
    %v3899 = vrot.slane %v3898, 2
    %v3900 = vadd.f32 %v3898, %v3899
    %v3901 = vrot.slane %v3900, 1
    %v3902 = vadd.f32 %v3900, %v3901
    %3903 = vrot.lane.b32.xlu0 %v2786, 23
    %v3904 = vpop.permute.xlu0 %3903
    %3905 = vrot.lane.b32.xlu0 %v2787, 23
    %v3906 = vpop.permute.xlu0 %3905
    %v3909 = vsel %vm319, %v3904, 0.0
    %3910 = vadd.xlane.f32.xlu0 %v3909
    %v3911 = vpop.xlane.xlu0 %3910
    %v3912 = vsel %vm2744, %v3906, 0.0
    %3913 = vadd.xlane.f32.xlu0 %v3912
    %v3914 = vpop.xlane.xlu0 %3913
    %v3915 = vsel %vm228, %v3914, 0.0
    %v3916 = vadd.f32 %v3911, %v3915
    %v3917 = vrot.slane %v3916, 4
    %v3918 = vadd.f32 %v3916, %v3917
    %v3919 = vrot.slane %v3918, 2
    %v3920 = vadd.f32 %v3918, %v3919
    %v3921 = vrot.slane %v3920, 1
    %v3922 = vadd.f32 %v3920, %v3921
    %v3923 = vadd.f32 %v3862, %v3902
    %v3924 = vadd.f32 %v3882, %v3922
    %v3925 = vmul.f32 %v3923, 0.0022222223
    %v3926 = vmul.f32 %v3924, 0.0022222223
    %v3927 = vmul.f32 %v3925, %v3925
    %v3928 = vsub.f32 %v3926, %v3927
    %v3929 = vadd.f32 %v3928, 1e-05
    %v3930 = vrsqrt.pop %v3929
    %v3931 = vmul.f32 %v2739, %v3930
    %v3932 = vmul.f32 %v3925, %v3931
    %v3933 = vsub.f32 %v2740, %v3932
    %v3935 = vlaneseq
    %v3936 = vshrl.u32 %v3935, 7
    %v3937 = vsub.s32 0, %v3936
    %v3938 = vrot.slane %v3931, %v3937
    %3939 = vset.pattern.permute.xlu0 7
    %3940 = vperm.xlu0 %3939, %v3938
    %v3941 = vpop.permute.xlu0 %3940
    %v3943 = vmul.f32 %v2352, %v3941
    %v3944 = vmul.f32 %v2357, %v3941
    %v3946 = vlaneseq
    %v3947 = vshrl.u32 %v3946, 7
    %v3948 = vsub.s32 0, %v3947
    %v3949 = vrot.slane %v3933, %v3948
    %3950 = vset.pattern.permute.xlu0 7
    %3951 = vperm.xlu0 %3950, %v3949
    %v3952 = vpop.permute.xlu0 %3951
    %v3954 = vadd.f32 %v3943, %v3952
    %v3955 = vadd.f32 %v3944, %v3952
    %v3956 = vmax.f32 %v3954, 0.0
    %v3957 = vmax.f32 %v3955, 0.0
    %v3960 = vrot.slane %v3956, 1
    %v3961 = vrot.slane %v3957, 1
    %v3962 = vsel %vm228, %v3960, %v3961
    %v3965 = vmax.f32 %v3956, %v3962
    %v3966 = vmax.f32 %v3957, %v3961
    %3968 = vrot.lane.b32.xlu0 %v3965, 127
    %v3969 = vpop.permute.xlu0 %3968
    %v3971 = vmax.f32 %v3965, %v3969
    %3973 = vrot.lane.b32.xlu0 %v3966, 127
    %v3974 = vpop.permute.xlu0 %3973
    %v3976 = vmax.f32 %v3966, %v3974
    %v3977 = vmul.f32 %v2731, %v3941
    %v3978 = vmul.f32 %v2736, %v3941
    %v3979 = vadd.f32 %v3977, %v3952
    %v3980 = vadd.f32 %v3978, %v3952
    %v3981 = vmax.f32 %v3979, 0.0
    %v3982 = vmax.f32 %v3980, 0.0
    %v3985 = vrot.slane %v3981, 1
    %v3986 = vrot.slane %v3982, 1
    %v3987 = vsel %vm228, %v3985, %v3986
    %v3990 = vmax.f32 %v3981, %v3987
    %v3991 = vmax.f32 %v3982, %v3986
    %3993 = vrot.lane.b32.xlu0 %v3990, 127
    %v3994 = vpop.permute.xlu0 %3993
    %v3996 = vmax.f32 %v3990, %v3994
    %3998 = vrot.lane.b32.xlu0 %v3991, 127
    %v3999 = vpop.permute.xlu0 %3998
    %v4001 = vmax.f32 %v3991, %v3999
    %v4003 = vrot.slane %v2850, 2
    %4004 = vrot.lane.b32.xlu0 %v4003, 14
    %v4005 = vpop.permute.xlu0 %4004
    %v4007 = vrot.slane %v2850, 4
    %4008 = vrot.lane.b32.xlu0 %v4007, 28
    %v4009 = vpop.permute.xlu0 %4008
    %v4011 = vrot.slane %v2850, 6
    %4012 = vrot.lane.b32.xlu0 %v4011, 42
    %v4013 = vpop.permute.xlu0 %4012
    %4016 = vrot.lane.b32.xlu0 %v2855, 56
    %v4017 = vpop.permute.xlu0 %4016
    %v4019 = vrot.slane %v2855, 2
    %4020 = vrot.lane.b32.xlu0 %v4019, 70
    %v4021 = vpop.permute.xlu0 %4020
    %v4023 = vrot.slane %v2855, 4
    %4024 = vrot.lane.b32.xlu0 %v4023, 84
    %v4025 = vpop.permute.xlu0 %4024
    %4028 = vrot.lane.b32.xlu0 %v3017, 83
    %v4029 = vpop.permute.xlu0 %4028
    %v4031 = vrot.slane %v3017, 2
    %4032 = vrot.lane.b32.xlu0 %v4031, 97
    %v4033 = vpop.permute.xlu0 %4032
    %v4035 = vrot.slane %v3017, 4
    %4036 = vrot.lane.b32.xlu0 %v4035, 111
    %v4037 = vpop.permute.xlu0 %4036
    %v4039 = vrot.slane %v3017, 6
    %4040 = vrot.lane.b32.xlu0 %v4039, 125
    %v4041 = vpop.permute.xlu0 %4040
    %4044 = vrot.lane.b32.xlu0 %v3022, 11
    %v4045 = vpop.permute.xlu0 %4044
    %v4047 = vrot.slane %v3022, 2
    %4048 = vrot.lane.b32.xlu0 %v4047, 25
    %v4049 = vpop.permute.xlu0 %4048
    %v4051 = vrot.slane %v3022, 4
    %4052 = vrot.lane.b32.xlu0 %v4051, 39
    %v4053 = vpop.permute.xlu0 %4052
    %4056 = vrot.lane.b32.xlu0 %v3176, 38
    %v4057 = vpop.permute.xlu0 %4056
    %v4059 = vrot.slane %v3176, 2
    %4060 = vrot.lane.b32.xlu0 %v4059, 52
    %v4061 = vpop.permute.xlu0 %4060
    %vm4063 = vcmask 113664
    %v4064 = vsel %vm4063, %v2850, %v4005
    %vm4065 = vcmask 228352
    %v4066 = vsel %vm4065, %v4064, %v4009
    %vm4067 = vcmask 343040
    %v4068 = vsel %vm4067, %v4066, %v4013
    %vm4069 = vcmask 457728
    %v4070 = vsel %vm4069, %v4068, %v4017
    %vm4071 = vcmask 572416
    %v4072 = vsel %vm4071, %v4070, %v4021
    %vm4073 = vcmask 687104
    %v4074 = vsel %vm4073, %v4072, %v4025
    %vm4075 = vcmask 801792
    %v4076 = vsel %vm4075, %v4074, %v4029
    %v4077 = vsel %vm1651, %v4076, %v4033
    %vm4078 = vcmask 1031168
    %v4079 = vsel %vm4078, %v4077, %v4037
    %vm4080 = vcmask 97280
    %v4081 = vsel %vm4080, %v4037, %v4041
    %vm4082 = vcmask 211968
    %v4083 = vsel %vm4082, %v4081, %v4045
    %vm4084 = vcmask 326656
    %v4085 = vsel %vm4084, %v4083, %v4049
    %vm4086 = vcmask 441344
    %v4087 = vsel %vm4086, %v4085, %v4053
    %vm4088 = vcmask 556032
    %v4089 = vsel %vm4088, %v4087, %v4057
    %v4090 = vsel %vm384, %v4089, %v4061
    %4091 = vrot.lane.b32.xlu0 %v3176, 98
    %v4092 = vpop.permute.xlu0 %4091
    %4094 = vrot.lane.b32.xlu0 %v4059, 112
    %v4095 = vpop.permute.xlu0 %4094
    %v4098 = vrot.slane %v3181, 4
    %4099 = vrot.lane.b32.xlu0 %v4098, 126
    %v4100 = vpop.permute.xlu0 %4099
    %v4102 = vrot.slane %v3181, 6
    %4103 = vrot.lane.b32.xlu0 %v4102, 12
    %v4104 = vpop.permute.xlu0 %4103
    %4106 = vrot.lane.b32.xlu0 %v3181, 26
    %v4107 = vpop.permute.xlu0 %4106
    %v4110 = vrot.slane %v3335, 4
    %4111 = vrot.lane.b32.xlu0 %v4110, 25
    %v4112 = vpop.permute.xlu0 %4111
    %v4114 = vrot.slane %v3335, 6
    %4115 = vrot.lane.b32.xlu0 %v4114, 39
    %v4116 = vpop.permute.xlu0 %4115
    %4118 = vrot.lane.b32.xlu0 %v3335, 53
    %v4119 = vpop.permute.xlu0 %4118
    %v4121 = vrot.slane %v3335, 2
    %4122 = vrot.lane.b32.xlu0 %v4121, 67
    %v4123 = vpop.permute.xlu0 %4122
    %v4126 = vrot.slane %v3340, 4
    %4127 = vrot.lane.b32.xlu0 %v4126, 81
    %v4128 = vpop.permute.xlu0 %4127
    %v4130 = vrot.slane %v3340, 6
    %4131 = vrot.lane.b32.xlu0 %v4130, 95
    %v4132 = vpop.permute.xlu0 %4131
    %4134 = vrot.lane.b32.xlu0 %v3340, 109
    %v4135 = vpop.permute.xlu0 %4134
    %v4138 = vrot.slane %v3494, 4
    %4139 = vrot.lane.b32.xlu0 %v4138, 108
    %v4140 = vpop.permute.xlu0 %4139
    %v4142 = vrot.slane %v3494, 6
    %4143 = vrot.lane.b32.xlu0 %v4142, 122
    %v4144 = vpop.permute.xlu0 %4143
    %4146 = vrot.lane.b32.xlu0 %v3494, 8
    %v4147 = vpop.permute.xlu0 %4146
    %v4149 = vrot.slane %v3494, 2
    %4150 = vrot.lane.b32.xlu0 %v4149, 22
    %v4151 = vpop.permute.xlu0 %4150
    %v4153 = vsel %vm4063, %v4092, %v4095
    %v4154 = vsel %vm4065, %v4153, %v4100
    %v4155 = vsel %vm4067, %v4154, %v4104
    %v4156 = vsel %vm4069, %v4155, %v4107
    %v4157 = vsel %vm4071, %v4156, %v4112
    %v4158 = vsel %vm4073, %v4157, %v4116
    %v4159 = vsel %vm4075, %v4158, %v4119
    %v4160 = vsel %vm1651, %v4159, %v4123
    %v4161 = vsel %vm4078, %v4160, %v4128
    %v4162 = vsel %vm4080, %v4128, %v4132
    %v4163 = vsel %vm4082, %v4162, %v4135
    %v4164 = vsel %vm4084, %v4163, %v4140
    %v4165 = vsel %vm4086, %v4164, %v4144
    %v4166 = vsel %vm4088, %v4165, %v4147
    %v4167 = vsel %vm384, %v4166, %v4151
    %4169 = vrot.lane.b32.xlu0 %v3499, 68
    %v4170 = vpop.permute.xlu0 %4169
    %v4172 = vrot.slane %v3499, 2
    %4173 = vrot.lane.b32.xlu0 %v4172, 82
    %v4174 = vpop.permute.xlu0 %4173
    %v4176 = vrot.slane %v3499, 4
    %4177 = vrot.lane.b32.xlu0 %v4176, 96
    %v4178 = vpop.permute.xlu0 %4177
    %4181 = vrot.lane.b32.xlu0 %v3653, 95
    %v4182 = vpop.permute.xlu0 %4181
    %v4184 = vrot.slane %v3653, 2
    %4185 = vrot.lane.b32.xlu0 %v4184, 109
    %v4186 = vpop.permute.xlu0 %4185
    %v4188 = vrot.slane %v3653, 4
    %4189 = vrot.lane.b32.xlu0 %v4188, 123
    %v4190 = vpop.permute.xlu0 %4189
    %v4192 = vrot.slane %v3653, 6
    %4193 = vrot.lane.b32.xlu0 %v4192, 9
    %v4194 = vpop.permute.xlu0 %4193
    %4197 = vrot.lane.b32.xlu0 %v3658, 23
    %v4198 = vpop.permute.xlu0 %4197
    %v4200 = vrot.slane %v3658, 2
    %4201 = vrot.lane.b32.xlu0 %v4200, 37
    %v4202 = vpop.permute.xlu0 %4201
    %v4204 = vrot.slane %v3658, 4
    %4205 = vrot.lane.b32.xlu0 %v4204, 51
    %v4206 = vpop.permute.xlu0 %4205
    %4209 = vrot.lane.b32.xlu0 %v3812, 50
    %v4210 = vpop.permute.xlu0 %4209
    %v4212 = vrot.slane %v3812, 2
    %4213 = vrot.lane.b32.xlu0 %v4212, 64
    %v4214 = vpop.permute.xlu0 %4213
    %v4216 = vrot.slane %v3812, 4
    %4217 = vrot.lane.b32.xlu0 %v4216, 78
    %v4218 = vpop.permute.xlu0 %4217
    %v4220 = vrot.slane %v3812, 6
    %4221 = vrot.lane.b32.xlu0 %v4220, 92
    %v4222 = vpop.permute.xlu0 %4221
    %4225 = vrot.lane.b32.xlu0 %v3817, 106
    %v4226 = vpop.permute.xlu0 %4225
    %v4228 = vrot.slane %v3817, 2
    %4229 = vrot.lane.b32.xlu0 %v4228, 120
    %v4230 = vpop.permute.xlu0 %4229
    %v4232 = vsel %vm4063, %v4170, %v4174
    %v4233 = vsel %vm4065, %v4232, %v4178
    %v4234 = vsel %vm4067, %v4233, %v4182
    %v4235 = vsel %vm4069, %v4234, %v4186
    %v4236 = vsel %vm4071, %v4235, %v4190
    %v4237 = vsel %vm4073, %v4236, %v4194
    %v4238 = vsel %vm4075, %v4237, %v4198
    %v4239 = vsel %vm1651, %v4238, %v4202
    %v4240 = vsel %vm4078, %v4239, %v4206
    %v4241 = vsel %vm4080, %v4206, %v4210
    %v4242 = vsel %vm4082, %v4241, %v4214
    %v4243 = vsel %vm4084, %v4242, %v4218
    %v4244 = vsel %vm4086, %v4243, %v4222
    %v4245 = vsel %vm4088, %v4244, %v4226
    %v4246 = vsel %vm384, %v4245, %v4230
    %4247 = vrot.lane.b32.xlu0 %v3817, 38
    %v4248 = vpop.permute.xlu0 %4247
    %v4251 = vrot.slane %v3971, 4
    %4252 = vrot.lane.b32.xlu0 %v4251, 37
    %v4253 = vpop.permute.xlu0 %4252
    %v4255 = vrot.slane %v3971, 6
    %4256 = vrot.lane.b32.xlu0 %v4255, 51
    %v4257 = vpop.permute.xlu0 %4256
    %4259 = vrot.lane.b32.xlu0 %v3971, 65
    %v4260 = vpop.permute.xlu0 %4259
    %v4262 = vrot.slane %v3971, 2
    %4263 = vrot.lane.b32.xlu0 %v4262, 79
    %v4264 = vpop.permute.xlu0 %4263
    %v4267 = vrot.slane %v3976, 4
    %4268 = vrot.lane.b32.xlu0 %v4267, 93
    %v4269 = vpop.permute.xlu0 %4268
    %v4271 = vrot.slane %v3976, 6
    %4272 = vrot.lane.b32.xlu0 %v4271, 107
    %v4273 = vpop.permute.xlu0 %4272
    %4275 = vrot.lane.b32.xlu0 %v3976, 121
    %v4276 = vpop.permute.xlu0 %4275
    %v4278 = vsel %vm4063, %v4248, %v4253
    %v4279 = vsel %vm4065, %v4278, %v4257
    %v4280 = vsel %vm4067, %v4279, %v4260
    %v4281 = vsel %vm4069, %v4280, %v4264
    %v4282 = vsel %vm4071, %v4281, %v4269
    %v4283 = vsel %vm4073, %v4282, %v4273
    %v4284 = vsel %vm4075, %v4283, %v4276
    %v4287 = vrot.slane %v4161, 4
    %v4288 = vrot.slane %v4167, 4
    %4289 = vrot.lane.b32.xlu0 %v4287, 96
    %v4290 = vpop.permute.xlu0 %4289
    %4291 = vrot.lane.b32.xlu0 %v4288, 96
    %v4292 = vpop.permute.xlu0 %4291
    %v4293 = vsel %vm1692, %v4290, %v4292
    %4299 = vrot.lane.b32.xlu0 %v4240, 64
    %v4300 = vpop.permute.xlu0 %4299
    %4301 = vrot.lane.b32.xlu0 %v4246, 64
    %v4302 = vpop.permute.xlu0 %4301
    %v4303 = vsel %vm1810, %v4300, %v4302
    %v4308 = vrot.slane %v4284, 4
    %4309 = vrot.lane.b32.xlu0 %v4308, 32
    %v4310 = vpop.permute.xlu0 %4309
    %v4312 = vsel %vm1692, %v4090, %v4290
    %v4313 = vsel %vm1810, %v4292, %v4300
    %vm4314 = vcmask 261120
    %v4315 = vsel %vm4314, %v4302, %v4310
    %v4317 = vrot.slane %v2875, 2
    %4318 = vrot.lane.b32.xlu0 %v4317, 14
    %v4319 = vpop.permute.xlu0 %4318
    %v4321 = vrot.slane %v2875, 4
    %4322 = vrot.lane.b32.xlu0 %v4321, 28
    %v4323 = vpop.permute.xlu0 %4322
    %v4325 = vrot.slane %v2875, 6
    %4326 = vrot.lane.b32.xlu0 %v4325, 42
    %v4327 = vpop.permute.xlu0 %4326
    %4330 = vrot.lane.b32.xlu0 %v2880, 56
    %v4331 = vpop.permute.xlu0 %4330
    %v4333 = vrot.slane %v2880, 2
    %4334 = vrot.lane.b32.xlu0 %v4333, 70
    %v4335 = vpop.permute.xlu0 %4334
    %v4337 = vrot.slane %v2880, 4
    %4338 = vrot.lane.b32.xlu0 %v4337, 84
    %v4339 = vpop.permute.xlu0 %4338
    %4342 = vrot.lane.b32.xlu0 %v3042, 83
    %v4343 = vpop.permute.xlu0 %4342
    %v4345 = vrot.slane %v3042, 2
    %4346 = vrot.lane.b32.xlu0 %v4345, 97
    %v4347 = vpop.permute.xlu0 %4346
    %v4349 = vrot.slane %v3042, 4
    %4350 = vrot.lane.b32.xlu0 %v4349, 111
    %v4351 = vpop.permute.xlu0 %4350
    %v4353 = vrot.slane %v3042, 6
    %4354 = vrot.lane.b32.xlu0 %v4353, 125
    %v4355 = vpop.permute.xlu0 %4354
    %4358 = vrot.lane.b32.xlu0 %v3047, 11
    %v4359 = vpop.permute.xlu0 %4358
    %v4361 = vrot.slane %v3047, 2
    %4362 = vrot.lane.b32.xlu0 %v4361, 25
    %v4363 = vpop.permute.xlu0 %4362
    %v4365 = vrot.slane %v3047, 4
    %4366 = vrot.lane.b32.xlu0 %v4365, 39
    %v4367 = vpop.permute.xlu0 %4366
    %4370 = vrot.lane.b32.xlu0 %v3201, 38
    %v4371 = vpop.permute.xlu0 %4370
    %v4373 = vrot.slane %v3201, 2
    %4374 = vrot.lane.b32.xlu0 %v4373, 52
    %v4375 = vpop.permute.xlu0 %4374
    %v4377 = vsel %vm4063, %v2875, %v4319
    %v4378 = vsel %vm4065, %v4377, %v4323
    %v4379 = vsel %vm4067, %v4378, %v4327
    %v4380 = vsel %vm4069, %v4379, %v4331
    %v4381 = vsel %vm4071, %v4380, %v4335
    %v4382 = vsel %vm4073, %v4381, %v4339
    %v4383 = vsel %vm4075, %v4382, %v4343
    %v4384 = vsel %vm1651, %v4383, %v4347
    %v4385 = vsel %vm4078, %v4384, %v4351
    %v4386 = vsel %vm4080, %v4351, %v4355
    %v4387 = vsel %vm4082, %v4386, %v4359
    %v4388 = vsel %vm4084, %v4387, %v4363
    %v4389 = vsel %vm4086, %v4388, %v4367
    %v4390 = vsel %vm4088, %v4389, %v4371
    %v4391 = vsel %vm384, %v4390, %v4375
    %4392 = vrot.lane.b32.xlu0 %v3201, 98
    %v4393 = vpop.permute.xlu0 %4392
    %4395 = vrot.lane.b32.xlu0 %v4373, 112
    %v4396 = vpop.permute.xlu0 %4395
    %v4399 = vrot.slane %v3206, 4
    %4400 = vrot.lane.b32.xlu0 %v4399, 126
    %v4401 = vpop.permute.xlu0 %4400
    %v4403 = vrot.slane %v3206, 6
    %4404 = vrot.lane.b32.xlu0 %v4403, 12
    %v4405 = vpop.permute.xlu0 %4404
    %4407 = vrot.lane.b32.xlu0 %v3206, 26
    %v4408 = vpop.permute.xlu0 %4407
    %v4411 = vrot.slane %v3360, 4
    %4412 = vrot.lane.b32.xlu0 %v4411, 25
    %v4413 = vpop.permute.xlu0 %4412
    %v4415 = vrot.slane %v3360, 6
    %4416 = vrot.lane.b32.xlu0 %v4415, 39
    %v4417 = vpop.permute.xlu0 %4416
    %4419 = vrot.lane.b32.xlu0 %v3360, 53
    %v4420 = vpop.permute.xlu0 %4419
    %v4422 = vrot.slane %v3360, 2
    %4423 = vrot.lane.b32.xlu0 %v4422, 67
    %v4424 = vpop.permute.xlu0 %4423
    %v4427 = vrot.slane %v3365, 4
    %4428 = vrot.lane.b32.xlu0 %v4427, 81
    %v4429 = vpop.permute.xlu0 %4428
    %v4431 = vrot.slane %v3365, 6
    %4432 = vrot.lane.b32.xlu0 %v4431, 95
    %v4433 = vpop.permute.xlu0 %4432
    %4435 = vrot.lane.b32.xlu0 %v3365, 109
    %v4436 = vpop.permute.xlu0 %4435
    %v4439 = vrot.slane %v3519, 4
    %4440 = vrot.lane.b32.xlu0 %v4439, 108
    %v4441 = vpop.permute.xlu0 %4440
    %v4443 = vrot.slane %v3519, 6
    %4444 = vrot.lane.b32.xlu0 %v4443, 122
    %v4445 = vpop.permute.xlu0 %4444
    %4447 = vrot.lane.b32.xlu0 %v3519, 8
    %v4448 = vpop.permute.xlu0 %4447
    %v4450 = vrot.slane %v3519, 2
    %4451 = vrot.lane.b32.xlu0 %v4450, 22
    %v4452 = vpop.permute.xlu0 %4451
    %v4454 = vsel %vm4063, %v4393, %v4396
    %v4455 = vsel %vm4065, %v4454, %v4401
    %v4456 = vsel %vm4067, %v4455, %v4405
    %v4457 = vsel %vm4069, %v4456, %v4408
    %v4458 = vsel %vm4071, %v4457, %v4413
    %v4459 = vsel %vm4073, %v4458, %v4417
    %v4460 = vsel %vm4075, %v4459, %v4420
    %v4461 = vsel %vm1651, %v4460, %v4424
    %v4462 = vsel %vm4078, %v4461, %v4429
    %v4463 = vsel %vm4080, %v4429, %v4433
    %v4464 = vsel %vm4082, %v4463, %v4436
    %v4465 = vsel %vm4084, %v4464, %v4441
    %v4466 = vsel %vm4086, %v4465, %v4445
    %v4467 = vsel %vm4088, %v4466, %v4448
    %v4468 = vsel %vm384, %v4467, %v4452
    %4470 = vrot.lane.b32.xlu0 %v3524, 68
    %v4471 = vpop.permute.xlu0 %4470
    %v4473 = vrot.slane %v3524, 2
    %4474 = vrot.lane.b32.xlu0 %v4473, 82
    %v4475 = vpop.permute.xlu0 %4474
    %v4477 = vrot.slane %v3524, 4
    %4478 = vrot.lane.b32.xlu0 %v4477, 96
    %v4479 = vpop.permute.xlu0 %4478
    %4482 = vrot.lane.b32.xlu0 %v3678, 95
    %v4483 = vpop.permute.xlu0 %4482
    %v4485 = vrot.slane %v3678, 2
    %4486 = vrot.lane.b32.xlu0 %v4485, 109
    %v4487 = vpop.permute.xlu0 %4486
    %v4489 = vrot.slane %v3678, 4
    %4490 = vrot.lane.b32.xlu0 %v4489, 123
    %v4491 = vpop.permute.xlu0 %4490
    %v4493 = vrot.slane %v3678, 6
    %4494 = vrot.lane.b32.xlu0 %v4493, 9
    %v4495 = vpop.permute.xlu0 %4494
    %4498 = vrot.lane.b32.xlu0 %v3683, 23
    %v4499 = vpop.permute.xlu0 %4498
    %v4501 = vrot.slane %v3683, 2
    %4502 = vrot.lane.b32.xlu0 %v4501, 37
    %v4503 = vpop.permute.xlu0 %4502
    %v4505 = vrot.slane %v3683, 4
    %4506 = vrot.lane.b32.xlu0 %v4505, 51
    %v4507 = vpop.permute.xlu0 %4506
    %4510 = vrot.lane.b32.xlu0 %v3837, 50
    %v4511 = vpop.permute.xlu0 %4510
    %v4513 = vrot.slane %v3837, 2
    %4514 = vrot.lane.b32.xlu0 %v4513, 64
    %v4515 = vpop.permute.xlu0 %4514
    %v4517 = vrot.slane %v3837, 4
    %4518 = vrot.lane.b32.xlu0 %v4517, 78
    %v4519 = vpop.permute.xlu0 %4518
    %v4521 = vrot.slane %v3837, 6
    %4522 = vrot.lane.b32.xlu0 %v4521, 92
    %v4523 = vpop.permute.xlu0 %4522
    %4526 = vrot.lane.b32.xlu0 %v3842, 106
    %v4527 = vpop.permute.xlu0 %4526
    %v4529 = vrot.slane %v3842, 2
    %4530 = vrot.lane.b32.xlu0 %v4529, 120
    %v4531 = vpop.permute.xlu0 %4530
    %v4533 = vsel %vm4063, %v4471, %v4475
    %v4534 = vsel %vm4065, %v4533, %v4479
    %v4535 = vsel %vm4067, %v4534, %v4483
    %v4536 = vsel %vm4069, %v4535, %v4487
    %v4537 = vsel %vm4071, %v4536, %v4491
    %v4538 = vsel %vm4073, %v4537, %v4495
    %v4539 = vsel %vm4075, %v4538, %v4499
    %v4540 = vsel %vm1651, %v4539, %v4503
    %v4541 = vsel %vm4078, %v4540, %v4507
    %v4542 = vsel %vm4080, %v4507, %v4511
    %v4543 = vsel %vm4082, %v4542, %v4515
    %v4544 = vsel %vm4084, %v4543, %v4519
    %v4545 = vsel %vm4086, %v4544, %v4523
    %v4546 = vsel %vm4088, %v4545, %v4527
    %v4547 = vsel %vm384, %v4546, %v4531
    %4548 = vrot.lane.b32.xlu0 %v3842, 38
    %v4549 = vpop.permute.xlu0 %4548
    %v4552 = vrot.slane %v3996, 4
    %4553 = vrot.lane.b32.xlu0 %v4552, 37
    %v4554 = vpop.permute.xlu0 %4553
    %v4556 = vrot.slane %v3996, 6
    %4557 = vrot.lane.b32.xlu0 %v4556, 51
    %v4558 = vpop.permute.xlu0 %4557
    %4560 = vrot.lane.b32.xlu0 %v3996, 65
    %v4561 = vpop.permute.xlu0 %4560
    %v4563 = vrot.slane %v3996, 2
    %4564 = vrot.lane.b32.xlu0 %v4563, 79
    %v4565 = vpop.permute.xlu0 %4564
    %v4568 = vrot.slane %v4001, 4
    %4569 = vrot.lane.b32.xlu0 %v4568, 93
    %v4570 = vpop.permute.xlu0 %4569
    %v4572 = vrot.slane %v4001, 6
    %4573 = vrot.lane.b32.xlu0 %v4572, 107
    %v4574 = vpop.permute.xlu0 %4573
    %4576 = vrot.lane.b32.xlu0 %v4001, 121
    %v4577 = vpop.permute.xlu0 %4576
    %v4579 = vsel %vm4063, %v4549, %v4554
    %v4580 = vsel %vm4065, %v4579, %v4558
    %v4581 = vsel %vm4067, %v4580, %v4561
    %v4582 = vsel %vm4069, %v4581, %v4565
    %v4583 = vsel %vm4071, %v4582, %v4570
    %v4584 = vsel %vm4073, %v4583, %v4574
    %v4585 = vsel %vm4075, %v4584, %v4577
    %v4588 = vrot.slane %v4462, 4
    %v4589 = vrot.slane %v4468, 4
    %4590 = vrot.lane.b32.xlu0 %v4588, 96
    %v4591 = vpop.permute.xlu0 %4590
    %4592 = vrot.lane.b32.xlu0 %v4589, 96
    %v4593 = vpop.permute.xlu0 %4592
    %v4594 = vsel %vm1692, %v4591, %v4593
    %4599 = vrot.lane.b32.xlu0 %v4541, 64
    %v4600 = vpop.permute.xlu0 %4599
    %4601 = vrot.lane.b32.xlu0 %v4547, 64
    %v4602 = vpop.permute.xlu0 %4601
    %v4603 = vsel %vm1810, %v4600, %v4602
    %v4607 = vrot.slane %v4585, 4
    %4608 = vrot.lane.b32.xlu0 %v4607, 32
    %v4609 = vpop.permute.xlu0 %4608
    %v4611 = vsel %vm1692, %v4391, %v4591
    %v4612 = vsel %vm1810, %v4593, %v4600
    %v4613 = vsel %vm4314, %v4602, %v4609
    %v4618 = vrot.slane %v4385, 7
    %v4619 = vrot.slane %v4611, 7
    %v4620 = vrot.slane %v4594, 7
    %v4621 = vrot.slane %v4612, 7
    %v4622 = vrot.slane %v4603, 7
    %v4623 = vrot.slane %v4613, 7
    %v4624 = vrot.slane %v4609, 7
    %v4632 = vsel %vm506, %v4079, %v4618
    %v4633 = vsel %vm506, %v4312, %v4619
    %v4634 = vsel %vm506, %v4293, %v4620
    %v4635 = vsel %vm506, %v4313, %v4621
    %v4636 = vsel %vm506, %v4303, %v4622
    %v4637 = vsel %vm506, %v4315, %v4623
    %v4638 = vsel %vm506, %v4310, %v4624
    %v4639 = vld [vmem:[%s4] sm:$0xff]
    %v4640 = vld [vmem:[%s4 + $0x8] sm:$0xff]
    %v4641 = vld [vmem:[%s4 + $0x10] sm:$0xff]
    %v4642 = vld [vmem:[%s4 + $0x18] sm:$0xff]
    %v4643 = vld [vmem:[%s4 + $0x20] sm:$0xff]
    %v4644 = vld [vmem:[%s4 + $0x28] sm:$0xff]
    %v4645 = vld [vmem:[%s4 + $0x30] sm:$0xff]
    %v4646 = vld [vmem:[%s4 + $0x38] sm:$0xff]
    %v4647 = vld [vmem:[%s4 + $0x40] sm:$0xff]
    %v4648 = vld [vmem:[%s4 + $0x48] sm:$0xff]
    %v4649 = vld [vmem:[%s4 + $0x50] sm:$0xff]
    %v4650 = vld [vmem:[%s4 + $0x58] sm:$0xff]
    %v4651 = vld [vmem:[%s4 + $0x60] sm:$0xff]
    %v4652 = vld [vmem:[%s4 + $0x68] sm:$0xff]
    %v4653 = vld [vmem:[%s4 + $0x70] sm:$0xff]
    %v4654 = vld [vmem:[%s4 + $0x78] sm:$0xff]
    %v4655 = vld [vmem:[%s4 + $0x80] sm:$0xff]
    %v4656 = vld [vmem:[%s4 + $0x88] sm:$0xff]
    %v4657 = vld [vmem:[%s4 + $0x90] sm:$0xff]
    %v4658 = vld [vmem:[%s4 + $0x98] sm:$0xff]
    %v4659 = vld [vmem:[%s4 + $0xa0] sm:$0xff]
    %v4660 = vld [vmem:[%s4 + $0xa8] sm:$0xff]
    %v4661 = vld [vmem:[%s4 + $0xb0] sm:$0xff]
    %v4662 = vld [vmem:[%s4 + $0xb8] sm:$0xff]
    %v4663 = vld [vmem:[%s4 + $0xc0] sm:$0xff]
    %v4664 = vld [vmem:[%s4 + $0xc8] sm:$0xff]
    %v4665 = vld [vmem:[%s4 + $0xd0] sm:$0xff]
    %v4666 = vld [vmem:[%s4 + $0xd8] sm:$0xff]
    %v4667 = vld [vmem:[%s4 + $0xe0] sm:$0xff]
    %v4668 = vld [vmem:[%s4 + $0xe8] sm:$0xff]
    %v4669 = vld [vmem:[%s4 + $0xf0] sm:$0xff]
    %v4670 = vld [vmem:[%s4 + $0xf8] sm:$0xff]
    %v4671 = vld [vmem:[%s4 + $0x100] sm:$0xff]
    %v4672 = vld [vmem:[%s4 + $0x108] sm:$0xff]
    %v4673 = vld [vmem:[%s4 + $0x110] sm:$0xff]
    %v4674 = vld [vmem:[%s4 + $0x118] sm:$0xff]
    %v4675 = vld [vmem:[%s4 + $0x120] sm:$0xff]
    %v4676 = vld [vmem:[%s4 + $0x128] sm:$0xff]
    %v4677 = vld [vmem:[%s4 + $0x130] sm:$0xff]
    %v4678 = vld [vmem:[%s4 + $0x138] sm:$0xff]
    %v4679 = vld [vmem:[%s4 + $0x140] sm:$0xff]
    %v4680 = vld [vmem:[%s4 + $0x148] sm:$0xff]
    %v4681 = vld [vmem:[%s4 + $0x150] sm:$0xff]
    %v4682 = vld [vmem:[%s4 + $0x158] sm:$0xff]
    %v4683 = vld [vmem:[%s4 + $0x160] sm:$0xff]
    %v4684 = vld [vmem:[%s4 + $0x168] sm:$0xff]
    %v4685 = vld [vmem:[%s4 + $0x170] sm:$0xff]
    %v4686 = vld [vmem:[%s4 + $0x178] sm:$0xff]
    %v4687 = vld [vmem:[%s4 + $0x180] sm:$0xff]
    %v4688 = vld [vmem:[%s4 + $0x188] sm:$0xff]
    %v4689 = vld [vmem:[%s4 + $0x190] sm:$0xff]
    %v4690 = vld [vmem:[%s4 + $0x198] sm:$0xff]
    %v4691 = vld [vmem:[%s4 + $0x1a0] sm:$0xff]
    %v4692 = vld [vmem:[%s4 + $0x1a8] sm:$0xff]
    %v4693 = vld [vmem:[%s4 + $0x1b0] sm:$0xff]
    %v4694 = vld [vmem:[%s4 + $0x1b8] sm:$0xff]
    %v4695 = vld [vmem:[%s4 + $0x1c0] sm:$0xff]
    %v4696 = vld [vmem:[%s4 + $0x1c8] sm:$0xff]
    %v4697 = vld [vmem:[%s4 + $0x1d0] sm:$0xff]
    %v4698 = vld [vmem:[%s4 + $0x1d8] sm:$0xff]
    %v4699 = vld [vmem:[%s4 + $0x1e0] sm:$0xff]
    %v4700 = vld [vmem:[%s4 + $0x1e8] sm:$0xff]
    %v4701 = vld [vmem:[%s4 + $0x1f0] sm:$0xff]
    %v4702 = vld [vmem:[%s4 + $0x1f8] sm:$0xff]
    %v4703 = vld [vmem:[%s4 + $0x200] sm:$0xff]
    %v4704 = vld [vmem:[%s4 + $0x208] sm:$0xff]
    %v4705 = vld [vmem:[%s4 + $0x210] sm:$0xff]
    %v4706 = vld [vmem:[%s4 + $0x218] sm:$0xff]
    %v4707 = vld [vmem:[%s4 + $0x220] sm:$0xff]
    %v4708 = vld [vmem:[%s4 + $0x228] sm:$0xff]
    %v4709 = vld [vmem:[%s4 + $0x230] sm:$0xff]
    %v4710 = vld [vmem:[%s4 + $0x238] sm:$0xff]
    %v4711 = vld [vmem:[%s4 + $0x240] sm:$0xff]
    %v4712 = vld [vmem:[%s4 + $0x248] sm:$0xff]
    %v4713 = vld [vmem:[%s4 + $0x250] sm:$0xff]
    %v4714 = vld [vmem:[%s4 + $0x258] sm:$0xff]
    %v4715 = vld [vmem:[%s4 + $0x260] sm:$0xff]
    %v4716 = vld [vmem:[%s4 + $0x268] sm:$0xff]
    %v4717 = vld [vmem:[%s4 + $0x270] sm:$0xff]
    %v4718 = vld [vmem:[%s4 + $0x278] sm:$0xff]
    %v4719 = vld [vmem:[%s4 + $0x280] sm:$0xff]
    %v4720 = vld [vmem:[%s4 + $0x288] sm:$0xff]
    %v4721 = vld [vmem:[%s4 + $0x290] sm:$0xff]
    %v4722 = vld [vmem:[%s4 + $0x298] sm:$0xff]
    %v4723 = vld [vmem:[%s4 + $0x2a0] sm:$0xff]
    %v4724 = vld [vmem:[%s4 + $0x2a8] sm:$0xff]
    %v4725 = vld [vmem:[%s4 + $0x2b0] sm:$0xff]
    %v4726 = vld [vmem:[%s4 + $0x2b8] sm:$0xff]
    %v4727 = vld [vmem:[%s4 + $0x2c0] sm:$0xff]
    %v4728 = vld [vmem:[%s4 + $0x2c8] sm:$0xff]
    %v4729 = vld [vmem:[%s4 + $0x2d0] sm:$0xff]
    %v4730 = vld [vmem:[%s4 + $0x2d8] sm:$0xff]
    %v4731 = vld [vmem:[%s4 + $0x2e0] sm:$0xff]
    %v4732 = vld [vmem:[%s4 + $0x2e8] sm:$0xff]
    %v4733 = vld [vmem:[%s4 + $0x2f0] sm:$0xff]
    %v4734 = vld [vmem:[%s4 + $0x2f8] sm:$0xff]
    %v4735 = vld [vmem:[%s4 + $0x300] sm:$0xff]
    %v4736 = vld [vmem:[%s4 + $0x308] sm:$0xff]
    %v4737 = vld [vmem:[%s4 + $0x310] sm:$0xff]
    %v4738 = vld [vmem:[%s4 + $0x318] sm:$0xff]
    %v4739 = vld [vmem:[%s4 + $0x320] sm:$0xff]
    %v4740 = vld [vmem:[%s4 + $0x328] sm:$0xff]
    %v4741 = vld [vmem:[%s4 + $0x330] sm:$0xff]
    %v4742 = vld [vmem:[%s4 + $0x338] sm:$0xff]
    %v4743 = vld [vmem:[%s4 + $0x340] sm:$0xff]
    %v4744 = vld [vmem:[%s4 + $0x348] sm:$0xff]
    %v4745 = vld [vmem:[%s4 + $0x350] sm:$0xff]
    %v4746 = vld [vmem:[%s4 + $0x358] sm:$0xff]
    %v4747 = vld [vmem:[%s4 + $0x360] sm:$0xff]
    %v4748 = vld [vmem:[%s4 + $0x368] sm:$0xff]
    %v4749 = vld [vmem:[%s4 + $0x370] sm:$0xff]
    %v4750 = vld [vmem:[%s4 + $0x378] sm:$0xff]
    %v4751 = vld [vmem:[%s4 + $0x380] sm:$0xff]
    %v4752 = vld [vmem:[%s4 + $0x388] sm:$0xff]
    %v4753 = vld [vmem:[%s4 + $0x390] sm:$0xff]
    %v4754 = vld [vmem:[%s4 + $0x398] sm:$0xff]
    %v4755 = vld [vmem:[%s4 + $0x3a0] sm:$0xff]
    %v4756 = vld [vmem:[%s4 + $0x3a8] sm:$0xff]
    %v4757 = vld [vmem:[%s4 + $0x3b0] sm:$0xff]
    %v4758 = vld [vmem:[%s4 + $0x3b8] sm:$0xff]
    %v4759 = vld [vmem:[%s4 + $0x3c0] sm:$0xff]
    %v4760 = vld [vmem:[%s4 + $0x3c8] sm:$0xff]
    %v4761 = vld [vmem:[%s4 + $0x3d0] sm:$0xff]
    %v4762 = vld [vmem:[%s4 + $0x3d8] sm:$0xff]
    %v4763 = vld [vmem:[%s4 + $0x3e0] sm:$0xff]
    %v4764 = vld [vmem:[%s4 + $0x3e8] sm:$0xff]
    %v4765 = vld [vmem:[%s4 + $0x3f0] sm:$0xff]
    %v4766 = vld [vmem:[%s4 + $0x3f8] sm:$0xff]
    %v4767 = vld [vmem:[%s4 + $0x400] sm:$0xff]
    %v4768 = vld [vmem:[%s4 + $0x408] sm:$0xff]
    %v4769 = vld [vmem:[%s4 + $0x410] sm:$0xff]
    %v4770 = vld [vmem:[%s4 + $0x418] sm:$0xff]
    %v4771 = vld [vmem:[%s4 + $0x420] sm:$0xff]
    %v4772 = vld [vmem:[%s4 + $0x428] sm:$0xff]
    %v4773 = vld [vmem:[%s4 + $0x430] sm:$0xff]
    %v4774 = vld [vmem:[%s4 + $0x438] sm:$0xff]
    %v4775 = vld [vmem:[%s4 + $0x440] sm:$0xff]
    %v4776 = vld [vmem:[%s4 + $0x448] sm:$0xff]
    %v4777 = vld [vmem:[%s4 + $0x450] sm:$0xff]
    %v4778 = vld [vmem:[%s4 + $0x458] sm:$0xff]
    %v4779 = vld [vmem:[%s4 + $0x460] sm:$0xff]
    %v4780 = vld [vmem:[%s4 + $0x468] sm:$0xff]
    %v4781 = vld [vmem:[%s4 + $0x470] sm:$0xff]
    %v4782 = vld [vmem:[%s4 + $0x478] sm:$0xff]
    %v4783 = vld [vmem:[%s4 + $0x480] sm:$0xff]
    %v4784 = vld [vmem:[%s4 + $0x488] sm:$0xff]
    %v4785 = vld [vmem:[%s4 + $0x490] sm:$0xff]
    %v4786 = vld [vmem:[%s4 + $0x498] sm:$0xff]
    %v4787 = vld [vmem:[%s4 + $0x4a0] sm:$0xff]
    %v4788 = vld [vmem:[%s4 + $0x4a8] sm:$0xff]
    %v4789 = vld [vmem:[%s4 + $0x4b0] sm:$0xff]
    %v4790 = vld [vmem:[%s4 + $0x4b8] sm:$0xff]
    %v4791 = vld [vmem:[%s4 + $0x4c0] sm:$0xff]
    %v4792 = vld [vmem:[%s4 + $0x4c8] sm:$0xff]
    %v4793 = vld [vmem:[%s4 + $0x4d0] sm:$0xff]
    %v4794 = vld [vmem:[%s4 + $0x4d8] sm:$0xff]
    %v4795 = vld [vmem:[%s4 + $0x4e0] sm:$0xff]
    %v4796 = vld [vmem:[%s4 + $0x4e8] sm:$0xff]
    %v4797 = vld [vmem:[%s4 + $0x4f0] sm:$0xff]
    %v4798 = vld [vmem:[%s4 + $0x4f8] sm:$0xff]
    %v4799 = vld [vmem:[%s4 + $0x500] sm:$0xff]
    %v4800 = vld [vmem:[%s4 + $0x508] sm:$0xff]
    %v4801 = vld [vmem:[%s4 + $0x510] sm:$0xff]
    %v4802 = vld [vmem:[%s4 + $0x518] sm:$0xff]
    %v4803 = vld [vmem:[%s4 + $0x520] sm:$0xff]
    %v4804 = vld [vmem:[%s4 + $0x528] sm:$0xff]
    %v4805 = vld [vmem:[%s4 + $0x530] sm:$0xff]
    %v4806 = vld [vmem:[%s4 + $0x538] sm:$0xff]
    %v4807 = vld [vmem:[%s4 + $0x540] sm:$0xff]
    %v4808 = vld [vmem:[%s4 + $0x548] sm:$0xff]
    %v4809 = vld [vmem:[%s4 + $0x550] sm:$0xff]
    %v4810 = vld [vmem:[%s4 + $0x558] sm:$0xff]
    %v4811 = vld [vmem:[%s4 + $0x560] sm:$0xff]
    %v4812 = vld [vmem:[%s4 + $0x568] sm:$0xff]
    %v4813 = vld [vmem:[%s4 + $0x570] sm:$0xff]
    %v4814 = vld [vmem:[%s4 + $0x578] sm:$0xff]
    %v4815 = vld [vmem:[%s4 + $0x580] sm:$0xff]
    %v4816 = vld [vmem:[%s4 + $0x588] sm:$0xff]
    %v4817 = vld [vmem:[%s4 + $0x590] sm:$0xff]
    %v4818 = vld [vmem:[%s4 + $0x598] sm:$0xff]
    %v4819 = vld [vmem:[%s4 + $0x5a0] sm:$0xff]
    %v4820 = vld [vmem:[%s4 + $0x5a8] sm:$0xff]
    %v4821 = vld [vmem:[%s4 + $0x5b0] sm:$0xff]
    %v4822 = vld [vmem:[%s4 + $0x5b8] sm:$0xff]
    %v4823 = vld [vmem:[%s4 + $0x5c0] sm:$0xff]
    %v4824 = vld [vmem:[%s4 + $0x5c8] sm:$0xff]
    %v4825 = vld [vmem:[%s4 + $0x5d0] sm:$0xff]
    %v4826 = vld [vmem:[%s4 + $0x5d8] sm:$0xff]
    %v4827 = vld [vmem:[%s4 + $0x5e0] sm:$0xff]
    %v4828 = vld [vmem:[%s4 + $0x5e8] sm:$0xff]
    %v4829 = vld [vmem:[%s4 + $0x5f0] sm:$0xff]
    %v4830 = vld [vmem:[%s4 + $0x5f8] sm:$0xff]
    %v4831 = vld [vmem:[%s4 + $0x600] sm:$0xff]
    %v4832 = vld [vmem:[%s4 + $0x608] sm:$0xff]
    %v4833 = vld [vmem:[%s4 + $0x610] sm:$0xff]
    %v4834 = vld [vmem:[%s4 + $0x618] sm:$0xff]
    %vm4835 = vcmask 130048
    %v4837 = vsel %vm4835, %v4638, 0
    %4839 = vmatprep.subr.mxu0 %v4640
    %4840 = vmatpush1.msra.mxu0 %v4639
    %4841 = vmatprep.subr.mxu0 %v4642
    %4842 = vmatpush1.msra.mxu0 %v4641
    %4843 = vmatprep.subr.mxu0 %v4644
    %4844 = vmatpush1.msra.mxu0 %v4643
    %4845 = vmatprep.subr.mxu0 %v4646
    %4846 = vmatpush1.msra.mxu0 %v4645
    %4847 = vmatprep.subr.mxu0 %v4648
    %4848 = vmatpush1.msra.mxu0 %v4647
    %4849 = vmatprep.subr.mxu0 %v4650
    %4850 = vmatpush1.msra.mxu0 %v4649
    %4851 = vmatprep.subr.mxu0 %v4652
    %4852 = vmatpush1.msra.mxu0 %v4651
    %4853 = vmatprep.subr.mxu0 %v4654
    %4854 = vmatpush1.msra.mxu0 %v4653
    %4855 = vmatprep.subr.mxu0 %v4656
    %4856 = vmatpush1.msra.mxu0 %v4655
    %4857 = vmatprep.subr.mxu0 %v4658
    %4858 = vmatpush1.msra.mxu0 %v4657
    %4859 = vmatprep.subr.mxu0 %v4660
    %4860 = vmatpush1.msra.mxu0 %v4659
    %4861 = vmatprep.subr.mxu0 %v4662
    %4862 = vmatpush1.msra.mxu0 %v4661
    %4863 = vmatprep.subr.mxu0 %v4664
    %4864 = vmatpush1.msra.mxu0 %v4663
    %4865 = vmatprep.subr.mxu0 %v4666
    %4866 = vmatpush1.msra.mxu0 %v4665
    %4867 = vmatprep.subr.mxu0 %v4668
    %4868 = vmatpush1.msra.mxu0 %v4667
    %4869 = vmatprep.subr.mxu0 %v4670
    %4870 = vmatpush1.msra.mxu0 %v4669
    %4871 = vmatprep.subr.mxu0 %v4672
    %4872 = vmatpush1.msra.mxu0 %v4671
    %4873 = vmatprep.subr.mxu0 %v4674
    %4874 = vmatpush1.msra.mxu0 %v4673
    %4875 = vmatprep.subr.mxu0 %v4676
    %4876 = vmatpush1.msra.mxu0 %v4675
    %4877 = vmatprep.subr.mxu0 %v4678
    %4878 = vmatpush1.msra.mxu0 %v4677
    %4879 = vmatprep.subr.mxu0 %v4680
    %4880 = vmatpush1.msra.mxu0 %v4679
    %4881 = vmatprep.subr.mxu0 %v4682
    %4882 = vmatpush1.msra.mxu0 %v4681
    %4883 = vmatprep.subr.mxu0 %v4684
    %4884 = vmatpush1.msra.mxu0 %v4683
    %4885 = vmatprep.subr.mxu0 %v4686
    %4886 = vmatpush1.msra.mxu0 %v4685
    %4887 = vmatprep.subr.mxu0 %v4688
    %4888 = vmatpush1.msra.mxu0 %v4687
    %4889 = vmatprep.subr.mxu0 %v4690
    %4890 = vmatpush1.msra.mxu0 %v4689
    %4891 = vmatprep.subr.mxu0 %v4692
    %4892 = vmatpush1.msra.mxu0 %v4691
    %4893 = vmatprep.subr.mxu0 %v4694
    %4894 = vmatpush1.msra.mxu0 %v4693
    %4895 = vmatprep.subr.mxu0 %v4696
    %4896 = vmatpush1.msra.mxu0 %v4695
    %4897 = vmatprep.subr.mxu0 %v4698
    %4898 = vmatpush1.msra.mxu0 %v4697
    %4899 = vmatprep.subr.mxu0 %v4700
    %4900 = vmatpush1.msra.mxu0 %v4699
    %4901 = vmatprep.subr.mxu0 %v4702
    %4902 = vmatpush1.msra.mxu0 %v4701
    %4903 = vmatprep.mubr.f32.mxu0 %v4633
    %4904 = vmatmul.mubr.f32.gmra.mrb[0].mxu0 %v4632
    %v4905 = vpop.f32.mrb[0].mxu0
    %v4906 = vadd.f32 0.0, %v4905
    %v4907 = vpop.f32.mrb[0].mxu0
    %v4908 = vadd.f32 0.0, %v4907
    %4909 = vdwg.mxu0
    %4910 = vmatprep.subr.mxu0 %v4704
    %4911 = vmatpush1.msra.mxu0 %v4703
    %4912 = vmatprep.subr.mxu0 %v4706
    %4913 = vmatpush1.msra.mxu0 %v4705
    %4914 = vmatprep.subr.mxu0 %v4708
    %4915 = vmatpush1.msra.mxu0 %v4707
    %4916 = vmatprep.subr.mxu0 %v4710
    %4917 = vmatpush1.msra.mxu0 %v4709
    %4918 = vmatprep.subr.mxu0 %v4712
    %4919 = vmatpush1.msra.mxu0 %v4711
    %4920 = vmatprep.subr.mxu0 %v4714
    %4921 = vmatpush1.msra.mxu0 %v4713
    %4922 = vmatprep.subr.mxu0 %v4716
    %4923 = vmatpush1.msra.mxu0 %v4715
    %4924 = vmatprep.subr.mxu0 %v4718
    %4925 = vmatpush1.msra.mxu0 %v4717
    %4926 = vmatprep.subr.mxu0 %v4720
    %4927 = vmatpush1.msra.mxu0 %v4719
    %4928 = vmatprep.subr.mxu0 %v4722
    %4929 = vmatpush1.msra.mxu0 %v4721
    %4930 = vmatprep.subr.mxu0 %v4724
    %4931 = vmatpush1.msra.mxu0 %v4723
    %4932 = vmatprep.subr.mxu0 %v4726
    %4933 = vmatpush1.msra.mxu0 %v4725
    %4934 = vmatprep.subr.mxu0 %v4728
    %4935 = vmatpush1.msra.mxu0 %v4727
    %4936 = vmatprep.subr.mxu0 %v4730
    %4937 = vmatpush1.msra.mxu0 %v4729
    %4938 = vmatprep.subr.mxu0 %v4732
    %4939 = vmatpush1.msra.mxu0 %v4731
    %4940 = vmatprep.subr.mxu0 %v4734
    %4941 = vmatpush1.msra.mxu0 %v4733
    %4942 = vmatprep.subr.mxu0 %v4736
    %4943 = vmatpush1.msra.mxu0 %v4735
    %4944 = vmatprep.subr.mxu0 %v4738
    %4945 = vmatpush1.msra.mxu0 %v4737
    %4946 = vmatprep.subr.mxu0 %v4740
    %4947 = vmatpush1.msra.mxu0 %v4739
    %4948 = vmatprep.subr.mxu0 %v4742
    %4949 = vmatpush1.msra.mxu0 %v4741
    %4950 = vmatprep.subr.mxu0 %v4744
    %4951 = vmatpush1.msra.mxu0 %v4743
    %4952 = vmatprep.subr.mxu0 %v4746
    %4953 = vmatpush1.msra.mxu0 %v4745
    %4954 = vmatprep.subr.mxu0 %v4748
    %4955 = vmatpush1.msra.mxu0 %v4747
    %4956 = vmatprep.subr.mxu0 %v4750
    %4957 = vmatpush1.msra.mxu0 %v4749
    %4958 = vmatprep.subr.mxu0 %v4752
    %4959 = vmatpush1.msra.mxu0 %v4751
    %4960 = vmatprep.subr.mxu0 %v4754
    %4961 = vmatpush1.msra.mxu0 %v4753
    %4962 = vmatprep.subr.mxu0 %v4756
    %4963 = vmatpush1.msra.mxu0 %v4755
    %4964 = vmatprep.subr.mxu0 %v4758
    %4965 = vmatpush1.msra.mxu0 %v4757
    %4966 = vmatprep.subr.mxu0 %v4760
    %4967 = vmatpush1.msra.mxu0 %v4759
    %4968 = vmatprep.subr.mxu0 %v4762
    %4969 = vmatpush1.msra.mxu0 %v4761
    %4970 = vmatprep.subr.mxu0 %v4764
    %4971 = vmatpush1.msra.mxu0 %v4763
    %4972 = vmatprep.subr.mxu0 %v4766
    %4973 = vmatpush1.msra.mxu0 %v4765
    %4974 = vmatprep.mubr.f32.mxu0 %v4635
    %4975 = vmatmul.mubr.f32.gmra.mrb[0].mxu0 %v4634
    %v4976 = vpop.f32.mrb[0].mxu0
    %v4977 = vadd.f32 %v4906, %v4976
    %v4978 = vpop.f32.mrb[0].mxu0
    %v4979 = vadd.f32 %v4908, %v4978
    %4980 = vdwg.mxu0
    %4981 = vmatprep.subr.mxu0 %v4768
    %4982 = vmatpush1.msra.mxu0 %v4767
    %4983 = vmatprep.subr.mxu0 %v4770
    %4984 = vmatpush1.msra.mxu0 %v4769
    %4985 = vmatprep.subr.mxu0 %v4772
    %4986 = vmatpush1.msra.mxu0 %v4771
    %4987 = vmatprep.subr.mxu0 %v4774
    %4988 = vmatpush1.msra.mxu0 %v4773
    %4989 = vmatprep.subr.mxu0 %v4776
    %4990 = vmatpush1.msra.mxu0 %v4775
    %4991 = vmatprep.subr.mxu0 %v4778
    %4992 = vmatpush1.msra.mxu0 %v4777
    %4993 = vmatprep.subr.mxu0 %v4780
    %4994 = vmatpush1.msra.mxu0 %v4779
    %4995 = vmatprep.subr.mxu0 %v4782
    %4996 = vmatpush1.msra.mxu0 %v4781
    %4997 = vmatprep.subr.mxu0 %v4784
    %4998 = vmatpush1.msra.mxu0 %v4783
    %4999 = vmatprep.subr.mxu0 %v4786
    %5000 = vmatpush1.msra.mxu0 %v4785
    %5001 = vmatprep.subr.mxu0 %v4788
    %5002 = vmatpush1.msra.mxu0 %v4787
    %5003 = vmatprep.subr.mxu0 %v4790
    %5004 = vmatpush1.msra.mxu0 %v4789
    %5005 = vmatprep.subr.mxu0 %v4792
    %5006 = vmatpush1.msra.mxu0 %v4791
    %5007 = vmatprep.subr.mxu0 %v4794
    %5008 = vmatpush1.msra.mxu0 %v4793
    %5009 = vmatprep.subr.mxu0 %v4796
    %5010 = vmatpush1.msra.mxu0 %v4795
    %5011 = vmatprep.subr.mxu0 %v4798
    %5012 = vmatpush1.msra.mxu0 %v4797
    %5013 = vmatprep.subr.mxu0 %v4800
    %5014 = vmatpush1.msra.mxu0 %v4799
    %5015 = vmatprep.subr.mxu0 %v4802
    %5016 = vmatpush1.msra.mxu0 %v4801
    %5017 = vmatprep.subr.mxu0 %v4804
    %5018 = vmatpush1.msra.mxu0 %v4803
    %5019 = vmatprep.subr.mxu0 %v4806
    %5020 = vmatpush1.msra.mxu0 %v4805
    %5021 = vmatprep.subr.mxu0 %v4808
    %5022 = vmatpush1.msra.mxu0 %v4807
    %5023 = vmatprep.subr.mxu0 %v4810
    %5024 = vmatpush1.msra.mxu0 %v4809
    %5025 = vmatprep.subr.mxu0 %v4812
    %5026 = vmatpush1.msra.mxu0 %v4811
    %5027 = vmatprep.subr.mxu0 %v4814
    %5028 = vmatpush1.msra.mxu0 %v4813
    %5029 = vmatprep.subr.mxu0 %v4816
    %5030 = vmatpush1.msra.mxu0 %v4815
    %5031 = vmatprep.subr.mxu0 %v4818
    %5032 = vmatpush1.msra.mxu0 %v4817
    %5033 = vmatprep.subr.mxu0 %v4820
    %5034 = vmatpush1.msra.mxu0 %v4819
    %5035 = vmatprep.subr.mxu0 %v4822
    %5036 = vmatpush1.msra.mxu0 %v4821
    %5037 = vmatprep.subr.mxu0 %v4824
    %5038 = vmatpush1.msra.mxu0 %v4823
    %5039 = vmatprep.subr.mxu0 %v4826
    %5040 = vmatpush1.msra.mxu0 %v4825
    %5041 = vmatprep.subr.mxu0 %v4828
    %5042 = vmatpush1.msra.mxu0 %v4827
    %5043 = vmatprep.subr.mxu0 %v4830
    %5044 = vmatpush1.msra.mxu0 %v4829
    %5045 = vmatprep.mubr.f32.mxu0 %v4637
    %5046 = vmatmul.mubr.f32.gmra.mrb[0].mxu0 %v4636
    %v5047 = vpop.f32.mrb[0].mxu0
    %v5048 = vadd.f32 %v4977, %v5047
    %v5049 = vpop.f32.mrb[0].mxu0
    %v5050 = vadd.f32 %v4979, %v5049
    %5051 = vdwg.mxu0
    %5052 = vmatprep.subr.mxu0 %v4832
    %5053 = vmatpush1.msra.mxu0 %v4831
    %5054 = vmatprep.subr.mxu0 %v4834
    %5055 = vmatpush1.msra.mxu0 %v4833
    %5056 = vmatprep.subr.mxu0 0.0
    %5057 = vmatpush1.msra.mxu0 0.0
    %5058 = vmatprep.subr.mxu0 0.0
    %5059 = vmatpush1.msra.mxu0 0.0
    %5060 = vmatprep.subr.mxu0 0.0
    %5061 = vmatpush1.msra.mxu0 0.0
    %5062 = vmatprep.subr.mxu0 0.0
    %5063 = vmatpush1.msra.mxu0 0.0
    %5064 = vmatprep.subr.mxu0 0.0
    %5065 = vmatpush1.msra.mxu0 0.0
    %5066 = vmatprep.subr.mxu0 0.0
    %5067 = vmatpush1.msra.mxu0 0.0
    %5068 = vmatprep.subr.mxu0 0.0
    %5069 = vmatpush1.msra.mxu0 0.0
    %5070 = vmatprep.subr.mxu0 0.0
    %5071 = vmatpush1.msra.mxu0 0.0
    %5072 = vmatprep.subr.mxu0 0.0
    %5073 = vmatpush1.msra.mxu0 0.0
    %5074 = vmatprep.subr.mxu0 0.0
    %5075 = vmatpush1.msra.mxu0 0.0
    %5076 = vmatprep.subr.mxu0 0.0
    %5077 = vmatpush1.msra.mxu0 0.0
    %5078 = vmatprep.subr.mxu0 0.0
    %5079 = vmatpush1.msra.mxu0 0.0
    %5080 = vmatprep.subr.mxu0 0.0
    %5081 = vmatpush1.msra.mxu0 0.0
    %5082 = vmatprep.subr.mxu0 0.0
    %5083 = vmatpush1.msra.mxu0 0.0
    %5084 = vmatprep.subr.mxu0 0.0
    %5085 = vmatpush1.msra.mxu0 0.0
    %5086 = vmatprep.subr.mxu0 0.0
    %5087 = vmatpush1.msra.mxu0 0.0
    %5088 = vmatprep.subr.mxu0 0.0
    %5089 = vmatpush1.msra.mxu0 0.0
    %5090 = vmatprep.subr.mxu0 0.0
    %5091 = vmatpush1.msra.mxu0 0.0
    %5092 = vmatprep.subr.mxu0 0.0
    %5093 = vmatpush1.msra.mxu0 0.0
    %5094 = vmatprep.subr.mxu0 0.0
    %5095 = vmatpush1.msra.mxu0 0.0
    %5096 = vmatprep.subr.mxu0 0.0
    %5097 = vmatpush1.msra.mxu0 0.0
    %5098 = vmatprep.subr.mxu0 0.0
    %5099 = vmatpush1.msra.mxu0 0.0
    %5100 = vmatprep.subr.mxu0 0.0
    %5101 = vmatpush1.msra.mxu0 0.0
    %5102 = vmatprep.subr.mxu0 0.0
    %5103 = vmatpush1.msra.mxu0 0.0
    %5104 = vmatprep.subr.mxu0 0.0
    %5105 = vmatpush1.msra.mxu0 0.0
    %5106 = vmatprep.subr.mxu0 0.0
    %5107 = vmatpush1.msra.mxu0 0.0
    %5108 = vmatprep.subr.mxu0 0.0
    %5109 = vmatpush1.msra.mxu0 0.0
    %5110 = vmatprep.subr.mxu0 0.0
    %5111 = vmatpush1.msra.mxu0 0.0
    %5112 = vmatprep.subr.mxu0 0.0
    %5113 = vmatpush1.msra.mxu0 0.0
    %5114 = vmatprep.subr.mxu0 0.0
    %5115 = vmatpush1.msra.mxu0 0.0
    %5116 = vmatprep.mubr.f32.mxu0 0.0
    %5117 = vmatmul.mubr.f32.gmra.mrb[0].mxu0 %v4837
    %v5118 = vpop.f32.mrb[0].mxu0
    %v5119 = vadd.f32 %v5048, %v5118
    %v5120 = vpop.f32.mrb[0].mxu0
    %v5121 = vadd.f32 %v5050, %v5120
    %5122 = vdwg.mxu0
    %v5123 = vsel %vm1028, %v5119, 0.0
    %v5124 = vrot.slane %v5123, 4
    %v5125 = vadd.f32 %v5123, %v5124
    %v5126 = vrot.slane %v5125, 2
    %v5127 = vadd.f32 %v5125, %v5126
    %v5128 = vrot.slane %v5127, 1
    %v5129 = vadd.f32 %v5127, %v5128
    %v5130 = vsel %vm1028, %v5121, 0.0
    %v5131 = vrot.slane %v5130, 4
    %v5132 = vadd.f32 %v5130, %v5131
    %v5133 = vrot.slane %v5132, 2
    %v5134 = vadd.f32 %v5132, %v5133
    %v5135 = vrot.slane %v5134, 1
    %v5136 = vadd.f32 %v5134, %v5135
    %v5137 = vrcp.pop 2.0
    %v5138 = vmul.f32 %v5129, %v5137
    %v5139 = vmul.f32 %v5136, %v5137
    %v5140 = vmul.f32 %v5119, %v5119
    %v5141 = vmul.f32 %v5121, %v5121
    %v5142 = vsel %vm1028, %v5140, 0.0
    %v5143 = vrot.slane %v5142, 4
    %v5144 = vadd.f32 %v5142, %v5143
    %v5145 = vrot.slane %v5144, 2
    %v5146 = vadd.f32 %v5144, %v5145
    %v5147 = vrot.slane %v5146, 1
    %v5148 = vadd.f32 %v5146, %v5147
    %v5149 = vsel %vm1028, %v5141, 0.0
    %v5150 = vrot.slane %v5149, 4
    %v5151 = vadd.f32 %v5149, %v5150
    %v5152 = vrot.slane %v5151, 2
    %v5153 = vadd.f32 %v5151, %v5152
    %v5154 = vrot.slane %v5153, 1
    %v5155 = vadd.f32 %v5153, %v5154
    %v5156 = vmul.f32 %v5148, %v5137
    %v5157 = vmul.f32 %v5155, %v5137
    %v5158 = vmul.f32 %v5138, %v5138
    %v5159 = vmul.f32 %v5139, %v5139
    %v5160 = vsub.f32 %v5156, %v5158
    %v5161 = vsub.f32 %v5157, %v5159
    %v5162 = vsub.f32 %v5119, %v5138
    %v5163 = vsub.f32 %v5121, %v5139
    %v5164 = vadd.f32 %v5160, 1e-05
    %v5165 = vadd.f32 %v5161, 1e-05
    %v5166 = vrsqrt.pop %v5164
    %v5167 = vrsqrt.pop %v5165
    %v5168 = vmul.f32 %v5162, %v5166
    %v5169 = vmul.f32 %v5163, %v5167
    %v5170 = vld [vmem:[%s5] sm:$0x3]
    %v5172 = vlaneseq
    %v5173 = vshrl.u32 %v5172, 7
    %v5174 = vsub.s32 0, %v5173
    %v5175 = vrot.slane %v5170, %v5174
    %v5176 = vlaneseq
    %v5177 = vshrl.u32 %v5176, 7
    %v5178 = vsub.s32 1, %v5177
    %v5179 = vrot.slane %v5170, %v5178
    %v5182 = vmul.f32 %v5168, %v5175
    %v5183 = vmul.f32 %v5169, %v5179
    %v5184 = vld [vmem:[%s6] sm:$0x3]
    %v5186 = vlaneseq
    %v5187 = vshrl.u32 %v5186, 7
    %v5188 = vsub.s32 0, %v5187
    %v5189 = vrot.slane %v5184, %v5188
    %v5190 = vlaneseq
    %v5191 = vshrl.u32 %v5190, 7
    %v5192 = vsub.s32 1, %v5191
    %v5193 = vrot.slane %v5184, %v5192
    %v5196 = vadd.f32 %v5182, %v5189
    %v5197 = vadd.f32 %v5183, %v5193
    %v5198 = vmax.f32 %v5196, 0.0
    %v5199 = vmax.f32 %v5197, 0.0
    %v5200 = vld [vmem:[%s7] sm:$0xff]
    %v5201 = vld [vmem:[%s7 + $0x8] sm:$0xff]
    %v5202 = vld [vmem:[%s7 + $0x10] sm:$0xff]
    %v5203 = vld [vmem:[%s7 + $0x18] sm:$0xff]
    %v5204 = vld [vmem:[%s7 + $0x20] sm:$0xff]
    %v5205 = vld [vmem:[%s7 + $0x28] sm:$0xff]
    %v5206 = vld [vmem:[%s7 + $0x30] sm:$0xff]
    %v5207 = vld [vmem:[%s7 + $0x38] sm:$0xff]
    %v5208 = vld [vmem:[%s7 + $0x40] sm:$0xff]
    %v5209 = vld [vmem:[%s7 + $0x48] sm:$0xff]
    %v5210 = vld [vmem:[%s7 + $0x50] sm:$0xff]
    %v5211 = vld [vmem:[%s7 + $0x58] sm:$0xff]
    %v5212 = vld [vmem:[%s7 + $0x60] sm:$0xff]
    %v5213 = vld [vmem:[%s7 + $0x68] sm:$0xff]
    %v5214 = vld [vmem:[%s7 + $0x70] sm:$0xff]
    %v5215 = vld [vmem:[%s7 + $0x78] sm:$0xff]
    %v5216 = vld [vmem:[%s7 + $0x80] sm:$0xff]
    %v5217 = vld [vmem:[%s7 + $0x88] sm:$0xff]
    %v5218 = vld [vmem:[%s7 + $0x90] sm:$0xff]
    %v5219 = vld [vmem:[%s7 + $0x98] sm:$0xff]
    %v5220 = vld [vmem:[%s7 + $0xa0] sm:$0xff]
    %v5221 = vld [vmem:[%s7 + $0xa8] sm:$0xff]
    %v5222 = vld [vmem:[%s7 + $0xb0] sm:$0xff]
    %v5223 = vld [vmem:[%s7 + $0xb8] sm:$0xff]
    %v5224 = vld [vmem:[%s7 + $0xc0] sm:$0xff]
    %v5225 = vld [vmem:[%s7 + $0xc8] sm:$0xff]
    %v5226 = vld [vmem:[%s7 + $0xd0] sm:$0xff]
    %v5227 = vld [vmem:[%s7 + $0xd8] sm:$0xff]
    %v5228 = vld [vmem:[%s7 + $0xe0] sm:$0xff]
    %v5229 = vld [vmem:[%s7 + $0xe8] sm:$0xff]
    %v5230 = vld [vmem:[%s7 + $0xf0] sm:$0xff]
    %v5231 = vld [vmem:[%s7 + $0xf8] sm:$0xff]
    %v5232 = vld [vmem:[%s8] sm:$0x1]
    %v5234 = vlaneseq
    %v5235 = vshrl.u32 %v5234, 7
    %v5236 = vsub.s32 0, %v5235
    %v5237 = vrot.slane %v5232, %v5236
    %5239 = vmatprep.subr.mxu0 0.0
    %5240 = vmatpush1.msra.mxu0 %v5200
    %5241 = vmatprep.subr.mxu0 0.0
    %5242 = vmatpush1.msra.mxu0 %v5201
    %5243 = vmatprep.subr.mxu0 0.0
    %5244 = vmatpush1.msra.mxu0 %v5202
    %5245 = vmatprep.subr.mxu0 0.0
    %5246 = vmatpush1.msra.mxu0 %v5203
    %5247 = vmatprep.subr.mxu0 0.0
    %5248 = vmatpush1.msra.mxu0 %v5204
    %5249 = vmatprep.subr.mxu0 0.0
    %5250 = vmatpush1.msra.mxu0 %v5205
    %5251 = vmatprep.subr.mxu0 0.0
    %5252 = vmatpush1.msra.mxu0 %v5206
    %5253 = vmatprep.subr.mxu0 0.0
    %5254 = vmatpush1.msra.mxu0 %v5207
    %5255 = vmatprep.subr.mxu0 0.0
    %5256 = vmatpush1.msra.mxu0 %v5208
    %5257 = vmatprep.subr.mxu0 0.0
    %5258 = vmatpush1.msra.mxu0 %v5209
    %5259 = vmatprep.subr.mxu0 0.0
    %5260 = vmatpush1.msra.mxu0 %v5210
    %5261 = vmatprep.subr.mxu0 0.0
    %5262 = vmatpush1.msra.mxu0 %v5211
    %5263 = vmatprep.subr.mxu0 0.0
    %5264 = vmatpush1.msra.mxu0 %v5212
    %5265 = vmatprep.subr.mxu0 0.0
    %5266 = vmatpush1.msra.mxu0 %v5213
    %5267 = vmatprep.subr.mxu0 0.0
    %5268 = vmatpush1.msra.mxu0 %v5214
    %5269 = vmatprep.subr.mxu0 0.0
    %5270 = vmatpush1.msra.mxu0 %v5215
    %5271 = vmatprep.subr.mxu0 0.0
    %5272 = vmatpush1.msra.mxu0 %v5216
    %5273 = vmatprep.subr.mxu0 0.0
    %5274 = vmatpush1.msra.mxu0 %v5217
    %5275 = vmatprep.subr.mxu0 0.0
    %5276 = vmatpush1.msra.mxu0 %v5218
    %5277 = vmatprep.subr.mxu0 0.0
    %5278 = vmatpush1.msra.mxu0 %v5219
    %5279 = vmatprep.subr.mxu0 0.0
    %5280 = vmatpush1.msra.mxu0 %v5220
    %5281 = vmatprep.subr.mxu0 0.0
    %5282 = vmatpush1.msra.mxu0 %v5221
    %5283 = vmatprep.subr.mxu0 0.0
    %5284 = vmatpush1.msra.mxu0 %v5222
    %5285 = vmatprep.subr.mxu0 0.0
    %5286 = vmatpush1.msra.mxu0 %v5223
    %5287 = vmatprep.subr.mxu0 0.0
    %5288 = vmatpush1.msra.mxu0 %v5224
    %5289 = vmatprep.subr.mxu0 0.0
    %5290 = vmatpush1.msra.mxu0 %v5225
    %5291 = vmatprep.subr.mxu0 0.0
    %5292 = vmatpush1.msra.mxu0 %v5226
    %5293 = vmatprep.subr.mxu0 0.0
    %5294 = vmatpush1.msra.mxu0 %v5227
    %5295 = vmatprep.subr.mxu0 0.0
    %5296 = vmatpush1.msra.mxu0 %v5228
    %5297 = vmatprep.subr.mxu0 0.0
    %5298 = vmatpush1.msra.mxu0 %v5229
    %5299 = vmatprep.subr.mxu0 0.0
    %5300 = vmatpush1.msra.mxu0 %v5230
    %5301 = vmatprep.subr.mxu0 0.0
    %5302 = vmatpush1.msra.mxu0 %v5231
    %5303 = vmatprep.mubr.f32.mxu0 %v5199
    %5304 = vmatmul.mubr.f32.gmra.mrb[0].mxu0 %v5198
    %v5305 = vpop.f32.mrb[0].mxu0
    %v5306 = vadd.f32 %v5237, %v5305
    %v5307 = vpop.f32.mrb[0].mxu0
    %5308 = vdwg.mxu0
    %vm5309 = vcmask 74752
    %5310 = vst.msk [vmem:[#allocation2] sm:$0x3] %vm5309, %v5306
    // Predicated region
    $region38: #{rosnet_forward.1} parent=1 // pred_check
      _
    $region39: #{rosnet_forward.1} parent=1 // pred_check_branch
      %5312 = sbr.rel (0) target = $region41
    $region40: #{rosnet_forward.1} parent=1 // pred_region
      %s5314 = ssub.s32 32, 32
      %5315 = vsyncadd [#allocation3], %s5314
      %s5317 = sshll.u32 [#allocation2], 4
      %s5318 = int_to_ptr.vmem [resolvable:$true] %s5317
      %5320 = dma.vmem_to_hbm [thread:$0]  %s5318, 32, %s9, [#allocation3]
    $region41: #{rosnet_forward.1} parent=1 // pred_fallthru
      _
    // Predicated region
    $region42: #{rosnet_forward.1} parent=1 // pred_check
      _
    $region43: #{rosnet_forward.1} parent=1 // pred_check_branch
      %5322 = sbr.rel (0) target = $region45
    $region44: #{rosnet_forward.1} parent=1 // pred_region
      %5323 = dma.done [#allocation3], 32
    $region45: #{rosnet_forward.1} parent=1 // pred_fallthru
      _
    %5324 = vsyncpa [#allocation3], 1

</llo_original>
